<compile_context>
chip_gen: v7x
topology: tpu7x:2x2x1
jax: 0.10.0
libtpu: 0.0.40
codegen_flags: <defaults>
</compile_context>

<pallas_src>
import functools
import math

import numpy as np
import jax
import jax.numpy as jnp
from jax import lax
from jax.experimental import pallas as pl
from jax.experimental.pallas import tpu as pltpu


# ---------------------------------------------------------------------------
# Small helpers (static conv geometry, glue-side im2col, weight re-layout).
# ---------------------------------------------------------------------------
def _conv_out(n, k, s):
    return (n - k) // s + 1


def _im2col_nchw(x, k, s):
    """x: (B, C, H, W) -> (B, OH*OW, k*k*C); patch columns ordered (kh, kw, ci)."""
    B, C, H, W = x.shape
    OH, OW = _conv_out(H, k, s), _conv_out(W, k, s)
    xc = jnp.transpose(x, (0, 2, 3, 1))                         # (B, H, W, C)
    cols = [xc[:, kh:kh + s * OH:s, kw:kw + s * OW:s, :]
            for kh in range(k) for kw in range(k)]
    p = jnp.stack(cols, axis=3)                                 # (B, OH, OW, k*k, C)
    return p.reshape(B, OH * OW, k * k * C), OH, OW


def _selection_matrix(ih, iw, k, s):
    """S[j, m, p] = 1 iff flat input position p feeds output position m at offset j."""
    oh, ow = _conv_out(ih, k, s), _conv_out(iw, k, s)
    S = np.zeros((k * k, oh * ow, ih * iw), np.float32)
    for kh in range(k):
        for kw in range(k):
            j = kh * k + kw
            for a in range(oh):
                for b in range(ow):
                    S[j, a * ow + b, (a * s + kh) * iw + (b * s + kw)] = 1.0
    return jnp.asarray(S)


def _conv_w_to_gemm(w):
    """(Cout, Cin, k, k) torch layout -> (k*k, Cin, Cout) per-offset GEMM stack."""
    cout, cin, k, _ = w.shape
    return jnp.transpose(w, (2, 3, 1, 0)).reshape(k * k, cin, cout)


def _act(x, kind):
    if kind == "relu":
        return jnp.maximum(x, 0.0)
    if kind == "elu":
        return jnp.where(x > 0, x, jnp.exp(x) - 1.0)
    raise ValueError(kind)


# ---------------------------------------------------------------------------
# The fused Pallas kernel: one grid step == one batch element.
# ---------------------------------------------------------------------------
def _fused_encoder_kernel(*refs, n_mlp, add_pos_emb, activation):
    it = iter(refs)
    patches1 = next(it)                    # (1, P1, k1*k1*Cin)
    state = next(it)                       # (1, 1, state_dim)
    w1 = next(it); b1 = next(it)           # (k1*k1*Cin, 32), (1, 32)
    s2 = next(it); w2 = next(it); b2 = next(it)   # (16, M2, P1), (16, 32, 64), (1, 64)
    s3 = next(it); w3 = next(it); b3 = next(it)   # (9, M3, M2), (9, 64, 64), (1, 64)
    wup = next(it); bup = next(it)         # (64, T), (1, T)
    mlp = [(next(it), next(it)) for _ in range(n_mlp)]
    pos = next(it) if add_pos_emb else None
    o_ref = next(it)                       # (1, n_tok, out_dim)

    f32 = jnp.float32

    # ---- conv1: im2col GEMM + bias + activation --------------------------
    h = jnp.dot(patches1[0], w1[...], preferred_element_type=f32) + b1[...]
    h = _act(h, activation)                                    # (P1, 32)

    # ---- conv2 / conv3: in-kernel im2col via selection matmuls -----------
    for sel, w, b in ((s2, w2, b2), (s3, w3, b3)):
        kk = sel.shape[0]
        m_out = sel.shape[1]
        n_out = w.shape[-1]
        acc = jnp.zeros((m_out, n_out), f32)
        for j in range(kk):                                    # static unroll
            rows = jnp.dot(sel[j], h, preferred_element_type=f32)
            acc = acc + jnp.dot(rows, w[j], preferred_element_type=f32)
        h = _act(acc + b[...], activation)                     # (m_out, Cout)

    # ---- 1x1 token up-conv (no activation), fused right after conv3 ------
    v = jnp.dot(h, wup[...], preferred_element_type=f32) + bup[...]   # (16, T)

    # ---- state MLP + RLProjection (every layer followed by activation) ---
    s = state[0]                                               # (1, state_dim)
    for w, b in mlp:
        s = _act(jnp.dot(s, w[...], preferred_element_type=f32) + b[...],
                 activation)                                   # -> (1, T)

    tokens = jnp.concatenate([s, v], axis=0)                   # (1 + P*P, T)
    if pos is not None:
        tokens = jnp.concatenate([tokens, pos[...]], axis=1)   # (n_tok, 2T)
    o_ref[0] = tokens.astype(o_ref.dtype)


# ---------------------------------------------------------------------------
# Parameter construction (PyTorch layouts / default init) + kernel-side prep.
# ---------------------------------------------------------------------------
def make_params(key, cfg):
    T = cfg["token_dim"]
    Ds = cfg["state_dim"]
    hid = cfg["hidden_dims"]
    keys = iter(jax.random.split(key, 32))

    def uni(k, shape, fan_in):
        bound = 1.0 / math.sqrt(fan_in)
        return jax.random.uniform(k, shape, jnp.float32, -bound, bound)

    def conv_p(cout, cin, ksz):
        fan_in = cin * ksz * ksz
        return (uni(next(keys), (cout, cin, ksz, ksz), fan_in),
                uni(next(keys), (cout,), fan_in))

    def lin_p(din, dout):
        return (uni(next(keys), (din, dout), din),
                uni(next(keys), (dout,), din))

    params = {}
    # front_base = NatureEncoder(2, flatten=False)
    params["conv1"] = conv_p(32, 2, 8)     # stride 4
    params["conv2"] = conv_p(64, 32, 4)    # stride 2
    params["conv3"] = conv_p(64, 64, 3)    # stride 1
    # front_up_conv = Conv2d(64, token_dim, 1)
    params["up"] = conv_p(T, 64, 1)

    layers, last = [], Ds
    for hdim in hid:
        layers.append(lin_p(last, hdim))
        last = hdim
    params["base"] = layers                # MLPBase(state_dim, hidden_dims)
    params["state_proj"] = lin_p(last, T)  # RLProjection (Linear + activation)

    if cfg["add_pos_emb"]:
        n_emb = (1 + int(cfg["camera_num"] == 2)) * 16 + 1
        params["pos_emb"] = jax.random.normal(next(keys), (n_emb, T), jnp.float32)
    return params


def prepare_kernel_params(params, cfg, image_hw):
    """Re-layout weights for the fused kernel; build constant selection matrices."""
    H, W = image_hw
    oh1, ow1 = _conv_out(H, 8, 4), _conv_out(W, 8, 4)
    oh2, ow2 = _conv_out(oh1, 4, 2), _conv_out(ow1, 4, 2)
    oh3, ow3 = _conv_out(oh2, 3, 1), _conv_out(ow2, 3, 1)

    w1, b1 = params["conv1"]
    w2, b2 = params["conv2"]
    w3, b3 = params["conv3"]
    wu, bu = params["up"]

    kp = dict(
        w1=_conv_w_to_gemm(w1).reshape(-1, w1.shape[0]),        # (k*k*Cin, 32)
        b1=b1.reshape(1, -1),
        s2=_selection_matrix(oh1, ow1, 4, 2),                   # (16, 36, 225)
        w2=_conv_w_to_gemm(w2),                                 # (16, 32, 64)
        b2=b2.reshape(1, -1),
        s3=_selection_matrix(oh2, ow2, 3, 1),                   # (9, 16, 36)
        w3=_conv_w_to_gemm(w3),                                 # (9, 64, 64)
        b3=b3.reshape(1, -1),
        wup=wu.reshape(wu.shape[0], wu.shape[1]).T,             # (64, T)
        bup=bu.reshape(1, -1),
        mlp=[(w, b.reshape(1, -1)) for (w, b) in params["base"]]
            + [(params["state_proj"][0], params["state_proj"][1].reshape(1, -1))],
    )
    if cfg["add_pos_emb"]:
        n_tok = 1 + oh3 * ow3
        kp["pos"] = params["pos_emb"][:n_tok]                   # idx = arange(n_tok)
    return kp


# ---------------------------------------------------------------------------
# Forward pass (mirrors LocoTransformerBaseV3Encoder.forward, camera_num == 1).
# ---------------------------------------------------------------------------
def loco_transformer_forward(kparams, visual_x, state_x, cfg):
    T = cfg["token_dim"]
    add_pos_emb = cfg["add_pos_emb"]
    # TODO(synk): camera_num == 2 neck branch not implemented (module references
    #             self.neck_base which is never defined in __init__).
    assert cfg["camera_num"] == 1
    # TODO(synk): return_raw_visual_vecs=True path (raw flattened conv3 output)
    #             is not produced by the fused kernel.

    if visual_x.ndim <= 3:
        visual_x = visual_x[None]
        state_x = state_x[None]
    visual_x = visual_x.reshape((-1,) + visual_x.shape[-3:])
    B = visual_x.shape[0]
    state_x = state_x.reshape(B, 1, state_x.shape[-1])

    # Only remaining XLA glue on the hot path: im2col of the raw input frames.
    patches1, _, _ = _im2col_nchw(visual_x, 8, 4)               # (B, P1, k*k*Cin)

    n_vis = kparams["s3"].shape[1]                              # num_patches ** 2
    n_tok = 1 + n_vis
    out_dim = T * (1 + int(add_pos_emb))

    def batch_spec(shape):
        nd = len(shape)
        return pl.BlockSpec((1,) + tuple(shape[1:]),
                            lambda b, _nd=nd: (b,) + (0,) * (_nd - 1))

    def const_spec(arr):
        nd = arr.ndim
        return pl.BlockSpec(arr.shape, lambda b, _nd=nd: (0,) * _nd)

    inputs = [patches1, state_x,
              kparams["w1"], kparams["b1"],
              kparams["s2"], kparams["w2"], kparams["b2"],
              kparams["s3"], kparams["w3"], kparams["b3"],
              kparams["wup"], kparams["bup"]]
    specs = [batch_spec(patches1.shape), batch_spec(state_x.shape)]
    specs += [const_spec(a) for a in inputs[2:]]
    for w, b in kparams["mlp"]:
        inputs += [w, b]
        specs += [const_spec(w), const_spec(b)]
    if add_pos_emb:
        inputs.append(kparams["pos"])
        specs.append(const_spec(kparams["pos"]))

    kernel = functools.partial(
        _fused_encoder_kernel,
        n_mlp=len(kparams["mlp"]),
        add_pos_emb=add_pos_emb,
        activation=cfg["activation"],
    )

    out = pl.pallas_call(
        kernel,
        out_shape=jax.ShapeDtypeStruct((B, n_tok, out_dim), jnp.float32),
        grid=(B,),
        in_specs=specs,
        out_specs=pl.BlockSpec((1, n_tok, out_dim), lambda b: (b, 0, 0)),
        compiler_params=pltpu.CompilerParams(
            dimension_semantics=("parallel",)),
    )(*inputs)

    return jnp.transpose(out, (1, 0, 2))                        # (n_tok, B, out_dim)


# ---------------------------------------------------------------------------
# Pure-JAX reference (for validation only).
# ---------------------------------------------------------------------------
def reference_forward(params, visual_x, state_x, cfg):
    prec = lax.Precision.HIGHEST
    if visual_x.ndim <= 3:
        visual_x = visual_x[None]
        state_x = state_x[None]
    visual_x = visual_x.reshape((-1,) + visual_x.shape[-3:])

    def act(x):
        return jax.nn.relu(x) if cfg["activation"] == "relu" else jax.nn.elu(x)

    def conv(x, wb, s):
        w, b = wb
        y = lax.conv_general_dilated(
            x, w, (s, s), "VALID",
            dimension_numbers=("NCHW", "OIHW", "NCHW"), precision=prec)
        return y + b[None, :, None, None]

    h = act(conv(visual_x, params["conv1"], 4))
    h = act(conv(h, params["conv2"], 2))
    h = act(conv(h, params["conv3"], 1))
    v = conv(h, params["up"], 1)                                # (B, T, P, P)
    Bv, T, P, _ = v.shape
    v = v.reshape(Bv, T, P * P).transpose(2, 0, 1)              # (P*P, B, T)

    s = state_x
    for w, b in params["base"]:
        s = act(jnp.dot(s, w, precision=prec) + b)
    w, b = params["state_proj"]
    s = act(jnp.dot(s, w, precision=prec) + b)[None]            # (1, B, T)

    out = jnp.concatenate([s, v], axis=0)
    if cfg["add_pos_emb"]:
        pe = params["pos_emb"][: out.shape[0]]
        pe = jnp.broadcast_to(pe[:, None, :], (out.shape[0], Bv, T))
        out = jnp.concatenate([out, pe], axis=-1)
    return out


# ---------------------------------------------------------------------------
if __name__ == "__main__":
    cfg = dict(
        in_channels=2,
        camera_num=1,
        token_dim=16,
        activation="relu",
        state_dim=48,
        hidden_dims=[32, 32],
        add_pos_emb=True,
    )

    key = jax.random.PRNGKey(0)
    kp_key, kv, ks = jax.random.split(key, 3)
    params = make_params(kp_key, cfg)

    # 64x64 frames -> Nature CNN spatial 64 -> 15 -> 6 -> 4 => 16 visual tokens,
    # matching per_modal_tokens = 16 and the 17-row positional embedding table.
    B, H, W = 2, 64, 64
    visual_x = jax.random.normal(kv, (B, 2, H, W), jnp.float32)
    state_x = jax.random.normal(ks, (B, cfg["state_dim"]), jnp.float32)

    kparams = prepare_kernel_params(params, cfg, (H, W))

    fwd = jax.jit(functools.partial(loco_transformer_forward, cfg=cfg))
    out = jax.block_until_ready(fwd(kparams, visual_x, state_x))

    n_tokens = 1 + 4 * 4
    expected = (n_tokens, B, cfg["token_dim"] * (1 + int(cfg["add_pos_emb"])))
    assert out.shape == expected, (out.shape, expected)
    assert bool(jnp.all(jnp.isfinite(out)))

    ref = reference_forward(params, visual_x, state_x, cfg)
    np.testing.assert_allclose(np.asarray(out), np.asarray(ref),
                               rtol=5e-2, atol=5e-2)

    print("KERNEL_OK")
</pallas_src>

<mosaic_0001>
module attributes {stable_mosaic.version = 11 : i64} {
  func.func @_fused_encoder_kernel(%arg0: i32, %arg1: memref<1x225x128xf32, #tpu.memory_space<vmem>>, %arg2: memref<1x1x48xf32, #tpu.memory_space<vmem>>, %arg3: memref<128x32xf32, #tpu.memory_space<vmem>>, %arg4: memref<1x32xf32, #tpu.memory_space<vmem>>, %arg5: memref<16x36x225xf32, #tpu.memory_space<vmem>>, %arg6: memref<16x32x64xf32, #tpu.memory_space<vmem>>, %arg7: memref<1x64xf32, #tpu.memory_space<vmem>>, %arg8: memref<9x16x36xf32, #tpu.memory_space<vmem>>, %arg9: memref<9x64x64xf32, #tpu.memory_space<vmem>>, %arg10: memref<1x64xf32, #tpu.memory_space<vmem>>, %arg11: memref<64x16xf32, #tpu.memory_space<vmem>>, %arg12: memref<1x16xf32, #tpu.memory_space<vmem>>, %arg13: memref<48x32xf32, #tpu.memory_space<vmem>>, %arg14: memref<1x32xf32, #tpu.memory_space<vmem>>, %arg15: memref<32x32xf32, #tpu.memory_space<vmem>>, %arg16: memref<1x32xf32, #tpu.memory_space<vmem>>, %arg17: memref<32x16xf32, #tpu.memory_space<vmem>>, %arg18: memref<1x16xf32, #tpu.memory_space<vmem>>, %arg19: memref<17x16xf32, #tpu.memory_space<vmem>>, %arg20: memref<1x17x32xf32, #tpu.memory_space<vmem>>) attributes {dimension_semantics = [#tpu.dimension_semantics<parallel>], iteration_bounds = array<i64: 2>, scalar_prefetch = 0 : i64, scratch_operands = 0 : i64, tpu.core_type = #tpu.core_type<tc>, window_params = [{transform_indices = @transform_0, window_bounds = array<i64: 1, 225, 128>}, {transform_indices = @transform_1, window_bounds = array<i64: 1, 1, 48>}, {pipeline_mode = #tpu.pipeline_mode<synchronous>, transform_indices = @transform_2, window_bounds = array<i64: 128, 32>}, {pipeline_mode = #tpu.pipeline_mode<synchronous>, transform_indices = @transform_3, window_bounds = array<i64: 1, 32>}, {pipeline_mode = #tpu.pipeline_mode<synchronous>, transform_indices = @transform_4, window_bounds = array<i64: 16, 36, 225>}, {pipeline_mode = #tpu.pipeline_mode<synchronous>, transform_indices = @transform_5, window_bounds = array<i64: 16, 32, 64>}, {pipeline_mode = #tpu.pipeline_mode<synchronous>, transform_indices = @transform_6, window_bounds = array<i64: 1, 64>}, {pipeline_mode = #tpu.pipeline_mode<synchronous>, transform_indices = @transform_7, window_bounds = array<i64: 9, 16, 36>}, {pipeline_mode = #tpu.pipeline_mode<synchronous>, transform_indices = @transform_8, window_bounds = array<i64: 9, 64, 64>}, {pipeline_mode = #tpu.pipeline_mode<synchronous>, transform_indices = @transform_9, window_bounds = array<i64: 1, 64>}, {pipeline_mode = #tpu.pipeline_mode<synchronous>, transform_indices = @transform_10, window_bounds = array<i64: 64, 16>}, {pipeline_mode = #tpu.pipeline_mode<synchronous>, transform_indices = @transform_11, window_bounds = array<i64: 1, 16>}, {pipeline_mode = #tpu.pipeline_mode<synchronous>, transform_indices = @transform_12, window_bounds = array<i64: 48, 32>}, {pipeline_mode = #tpu.pipeline_mode<synchronous>, transform_indices = @transform_13, window_bounds = array<i64: 1, 32>}, {pipeline_mode = #tpu.pipeline_mode<synchronous>, transform_indices = @transform_14, window_bounds = array<i64: 32, 32>}, {pipeline_mode = #tpu.pipeline_mode<synchronous>, transform_indices = @transform_15, window_bounds = array<i64: 1, 32>}, {pipeline_mode = #tpu.pipeline_mode<synchronous>, transform_indices = @transform_16, window_bounds = array<i64: 32, 16>}, {pipeline_mode = #tpu.pipeline_mode<synchronous>, transform_indices = @transform_17, window_bounds = array<i64: 1, 16>}, {pipeline_mode = #tpu.pipeline_mode<synchronous>, transform_indices = @transform_18, window_bounds = array<i64: 17, 16>}, {transform_indices = @transform_19, window_bounds = array<i64: 1, 17, 32>}]} {
    %c0 = arith.constant 0 : index
    %c0_0 = arith.constant 0 : index
    %c0_1 = arith.constant 0 : index
    %0 = vector.load %arg1[%c0, %c0_0, %c0_1] : memref<1x225x128xf32, #tpu.memory_space<vmem>>, vector<1x225x128xf32>
    %1 = vector.shape_cast %0 : vector<1x225x128xf32> to vector<225x128xf32>
    %c0_2 = arith.constant 0 : index
    %c0_3 = arith.constant 0 : index
    %2 = vector.load %arg3[%c0_2, %c0_3] : memref<128x32xf32, #tpu.memory_space<vmem>>, vector<128x32xf32>
    %cst = arith.constant dense<0.000000e+00> : vector<225x32xf32>
    %3 = tpu.matmul %1, %2, %cst {dimension_numbers = #tpu.dot_dimension_numbers<[1], [0], [0], [1], [0, 0, 1, 1], [], []>} : vector<225x128xf32>, vector<128x32xf32>, vector<225x32xf32> -> vector<225x32xf32>
    %c0_4 = arith.constant 0 : index
    %c0_5 = arith.constant 0 : index
    %4 = vector.load %arg4[%c0_4, %c0_5] : memref<1x32xf32, #tpu.memory_space<vmem>>, vector<1x32xf32>
    %5 = vector.broadcast %4 : vector<1x32xf32> to vector<225x32xf32>
    %6 = arith.addf %3, %5 : vector<225x32xf32>
    %cst_6 = arith.constant 0.000000e+00 : f32
    %7 = vector.broadcast %cst_6 : f32 to vector<225x32xf32>
    %8 = arith.maximumf %6, %7 : vector<225x32xf32>
    %cst_7 = arith.constant 0.000000e+00 : f32
    %9 = vector.broadcast %cst_7 : f32 to vector<36x64xf32>
    %c0_8 = arith.constant 0 : index
    %c0_9 = arith.constant 0 : index
    %c0_10 = arith.constant 0 : index
    %10 = vector.load %arg5[%c0_8, %c0_9, %c0_10] : memref<16x36x225xf32, #tpu.memory_space<vmem>>, vector<1x36x225xf32>
    %11 = vector.shape_cast %10 : vector<1x36x225xf32> to vector<36x225xf32>
    %cst_11 = arith.constant dense<0.000000e+00> : vector<36x32xf32>
    %12 = tpu.matmul %11, %8, %cst_11 {dimension_numbers = #tpu.dot_dimension_numbers<[1], [0], [0], [1], [0, 0, 1, 1], [], []>} : vector<36x225xf32>, vector<225x32xf32>, vector<36x32xf32> -> vector<36x32xf32>
    %c0_12 = arith.constant 0 : index
    %c0_13 = arith.constant 0 : index
    %c0_14 = arith.constant 0 : index
    %13 = vector.load %arg6[%c0_12, %c0_13, %c0_14] : memref<16x32x64xf32, #tpu.memory_space<vmem>>, vector<1x32x64xf32>
    %14 = vector.shape_cast %13 : vector<1x32x64xf32> to vector<32x64xf32>
    %cst_15 = arith.constant dense<0.000000e+00> : vector<36x64xf32>
    %15 = tpu.matmul %12, %14, %cst_15 {dimension_numbers = #tpu.dot_dimension_numbers<[1], [0], [0], [1], [0, 0, 1, 1], [], []>} : vector<36x32xf32>, vector<32x64xf32>, vector<36x64xf32> -> vector<36x64xf32>
    %16 = arith.addf %9, %15 : vector<36x64xf32>
    %c1 = arith.constant 1 : index
    %c0_16 = arith.constant 0 : index
    %c0_17 = arith.constant 0 : index
    %17 = vector.load %arg5[%c1, %c0_16, %c0_17] : memref<16x36x225xf32, #tpu.memory_space<vmem>>, vector<1x36x225xf32>
    %18 = vector.shape_cast %17 : vector<1x36x225xf32> to vector<36x225xf32>
    %cst_18 = arith.constant dense<0.000000e+00> : vector<36x32xf32>
    %19 = tpu.matmul %18, %8, %cst_18 {dimension_numbers = #tpu.dot_dimension_numbers<[1], [0], [0], [1], [0, 0, 1, 1], [], []>} : vector<36x225xf32>, vector<225x32xf32>, vector<36x32xf32> -> vector<36x32xf32>
    %c1_19 = arith.constant 1 : index
    %c0_20 = arith.constant 0 : index
    %c0_21 = arith.constant 0 : index
    %20 = vector.load %arg6[%c1_19, %c0_20, %c0_21] : memref<16x32x64xf32, #tpu.memory_space<vmem>>, vector<1x32x64xf32>
    %21 = vector.shape_cast %20 : vector<1x32x64xf32> to vector<32x64xf32>
    %cst_22 = arith.constant dense<0.000000e+00> : vector<36x64xf32>
    %22 = tpu.matmul %19, %21, %cst_22 {dimension_numbers = #tpu.dot_dimension_numbers<[1], [0], [0], [1], [0, 0, 1, 1], [], []>} : vector<36x32xf32>, vector<32x64xf32>, vector<36x64xf32> -> vector<36x64xf32>
    %23 = arith.addf %16, %22 : vector<36x64xf32>
    %c2 = arith.constant 2 : index
    %c0_23 = arith.constant 0 : index
    %c0_24 = arith.constant 0 : index
    %24 = vector.load %arg5[%c2, %c0_23, %c0_24] : memref<16x36x225xf32, #tpu.memory_space<vmem>>, vector<1x36x225xf32>
    %25 = vector.shape_cast %24 : vector<1x36x225xf32> to vector<36x225xf32>
    %cst_25 = arith.constant dense<0.000000e+00> : vector<36x32xf32>
    %26 = tpu.matmul %25, %8, %cst_25 {dimension_numbers = #tpu.dot_dimension_numbers<[1], [0], [0], [1], [0, 0, 1, 1], [], []>} : vector<36x225xf32>, vector<225x32xf32>, vector<36x32xf32> -> vector<36x32xf32>
    %c2_26 = arith.constant 2 : index
    %c0_27 = arith.constant 0 : index
    %c0_28 = arith.constant 0 : index
    %27 = vector.load %arg6[%c2_26, %c0_27, %c0_28] : memref<16x32x64xf32, #tpu.memory_space<vmem>>, vector<1x32x64xf32>
    %28 = vector.shape_cast %27 : vector<1x32x64xf32> to vector<32x64xf32>
    %cst_29 = arith.constant dense<0.000000e+00> : vector<36x64xf32>
    %29 = tpu.matmul %26, %28, %cst_29 {dimension_numbers = #tpu.dot_dimension_numbers<[1], [0], [0], [1], [0, 0, 1, 1], [], []>} : vector<36x32xf32>, vector<32x64xf32>, vector<36x64xf32> -> vector<36x64xf32>
    %30 = arith.addf %23, %29 : vector<36x64xf32>
    %c3 = arith.constant 3 : index
    %c0_30 = arith.constant 0 : index
    %c0_31 = arith.constant 0 : index
    %31 = vector.load %arg5[%c3, %c0_30, %c0_31] : memref<16x36x225xf32, #tpu.memory_space<vmem>>, vector<1x36x225xf32>
    %32 = vector.shape_cast %31 : vector<1x36x225xf32> to vector<36x225xf32>
    %cst_32 = arith.constant dense<0.000000e+00> : vector<36x32xf32>
    %33 = tpu.matmul %32, %8, %cst_32 {dimension_numbers = #tpu.dot_dimension_numbers<[1], [0], [0], [1], [0, 0, 1, 1], [], []>} : vector<36x225xf32>, vector<225x32xf32>, vector<36x32xf32> -> vector<36x32xf32>
    %c3_33 = arith.constant 3 : index
    %c0_34 = arith.constant 0 : index
    %c0_35 = arith.constant 0 : index
    %34 = vector.load %arg6[%c3_33, %c0_34, %c0_35] : memref<16x32x64xf32, #tpu.memory_space<vmem>>, vector<1x32x64xf32>
    %35 = vector.shape_cast %34 : vector<1x32x64xf32> to vector<32x64xf32>
    %cst_36 = arith.constant dense<0.000000e+00> : vector<36x64xf32>
    %36 = tpu.matmul %33, %35, %cst_36 {dimension_numbers = #tpu.dot_dimension_numbers<[1], [0], [0], [1], [0, 0, 1, 1], [], []>} : vector<36x32xf32>, vector<32x64xf32>, vector<36x64xf32> -> vector<36x64xf32>
    %37 = arith.addf %30, %36 : vector<36x64xf32>
    %c4 = arith.constant 4 : index
    %c0_37 = arith.constant 0 : index
    %c0_38 = arith.constant 0 : index
    %38 = vector.load %arg5[%c4, %c0_37, %c0_38] : memref<16x36x225xf32, #tpu.memory_space<vmem>>, vector<1x36x225xf32>
    %39 = vector.shape_cast %38 : vector<1x36x225xf32> to vector<36x225xf32>
    %cst_39 = arith.constant dense<0.000000e+00> : vector<36x32xf32>
    %40 = tpu.matmul %39, %8, %cst_39 {dimension_numbers = #tpu.dot_dimension_numbers<[1], [0], [0], [1], [0, 0, 1, 1], [], []>} : vector<36x225xf32>, vector<225x32xf32>, vector<36x32xf32> -> vector<36x32xf32>
    %c4_40 = arith.constant 4 : index
    %c0_41 = arith.constant 0 : index
    %c0_42 = arith.constant 0 : index
    %41 = vector.load %arg6[%c4_40, %c0_41, %c0_42] : memref<16x32x64xf32, #tpu.memory_space<vmem>>, vector<1x32x64xf32>
    %42 = vector.shape_cast %41 : vector<1x32x64xf32> to vector<32x64xf32>
    %cst_43 = arith.constant dense<0.000000e+00> : vector<36x64xf32>
    %43 = tpu.matmul %40, %42, %cst_43 {dimension_numbers = #tpu.dot_dimension_numbers<[1], [0], [0], [1], [0, 0, 1, 1], [], []>} : vector<36x32xf32>, vector<32x64xf32>, vector<36x64xf32> -> vector<36x64xf32>
    %44 = arith.addf %37, %43 : vector<36x64xf32>
    %c5 = arith.constant 5 : index
    %c0_44 = arith.constant 0 : index
    %c0_45 = arith.constant 0 : index
    %45 = vector.load %arg5[%c5, %c0_44, %c0_45] : memref<16x36x225xf32, #tpu.memory_space<vmem>>, vector<1x36x225xf32>
    %46 = vector.shape_cast %45 : vector<1x36x225xf32> to vector<36x225xf32>
    %cst_46 = arith.constant dense<0.000000e+00> : vector<36x32xf32>
    %47 = tpu.matmul %46, %8, %cst_46 {dimension_numbers = #tpu.dot_dimension_numbers<[1], [0], [0], [1], [0, 0, 1, 1], [], []>} : vector<36x225xf32>, vector<225x32xf32>, vector<36x32xf32> -> vector<36x32xf32>
    %c5_47 = arith.constant 5 : index
    %c0_48 = arith.constant 0 : index
    %c0_49 = arith.constant 0 : index
    %48 = vector.load %arg6[%c5_47, %c0_48, %c0_49] : memref<16x32x64xf32, #tpu.memory_space<vmem>>, vector<1x32x64xf32>
    %49 = vector.shape_cast %48 : vector<1x32x64xf32> to vector<32x64xf32>
    %cst_50 = arith.constant dense<0.000000e+00> : vector<36x64xf32>
    %50 = tpu.matmul %47, %49, %cst_50 {dimension_numbers = #tpu.dot_dimension_numbers<[1], [0], [0], [1], [0, 0, 1, 1], [], []>} : vector<36x32xf32>, vector<32x64xf32>, vector<36x64xf32> -> vector<36x64xf32>
    %51 = arith.addf %44, %50 : vector<36x64xf32>
    %c6 = arith.constant 6 : index
    %c0_51 = arith.constant 0 : index
    %c0_52 = arith.constant 0 : index
    %52 = vector.load %arg5[%c6, %c0_51, %c0_52] : memref<16x36x225xf32, #tpu.memory_space<vmem>>, vector<1x36x225xf32>
    %53 = vector.shape_cast %52 : vector<1x36x225xf32> to vector<36x225xf32>
    %cst_53 = arith.constant dense<0.000000e+00> : vector<36x32xf32>
    %54 = tpu.matmul %53, %8, %cst_53 {dimension_numbers = #tpu.dot_dimension_numbers<[1], [0], [0], [1], [0, 0, 1, 1], [], []>} : vector<36x225xf32>, vector<225x32xf32>, vector<36x32xf32> -> vector<36x32xf32>
    %c6_54 = arith.constant 6 : index
    %c0_55 = arith.constant 0 : index
    %c0_56 = arith.constant 0 : index
    %55 = vector.load %arg6[%c6_54, %c0_55, %c0_56] : memref<16x32x64xf32, #tpu.memory_space<vmem>>, vector<1x32x64xf32>
    %56 = vector.shape_cast %55 : vector<1x32x64xf32> to vector<32x64xf32>
    %cst_57 = arith.constant dense<0.000000e+00> : vector<36x64xf32>
    %57 = tpu.matmul %54, %56, %cst_57 {dimension_numbers = #tpu.dot_dimension_numbers<[1], [0], [0], [1], [0, 0, 1, 1], [], []>} : vector<36x32xf32>, vector<32x64xf32>, vector<36x64xf32> -> vector<36x64xf32>
    %58 = arith.addf %51, %57 : vector<36x64xf32>
    %c7 = arith.constant 7 : index
    %c0_58 = arith.constant 0 : index
    %c0_59 = arith.constant 0 : index
    %59 = vector.load %arg5[%c7, %c0_58, %c0_59] : memref<16x36x225xf32, #tpu.memory_space<vmem>>, vector<1x36x225xf32>
    %60 = vector.shape_cast %59 : vector<1x36x225xf32> to vector<36x225xf32>
    %cst_60 = arith.constant dense<0.000000e+00> : vector<36x32xf32>
    %61 = tpu.matmul %60, %8, %cst_60 {dimension_numbers = #tpu.dot_dimension_numbers<[1], [0], [0], [1], [0, 0, 1, 1], [], []>} : vector<36x225xf32>, vector<225x32xf32>, vector<36x32xf32> -> vector<36x32xf32>
    %c7_61 = arith.constant 7 : index
    %c0_62 = arith.constant 0 : index
    %c0_63 = arith.constant 0 : index
    %62 = vector.load %arg6[%c7_61, %c0_62, %c0_63] : memref<16x32x64xf32, #tpu.memory_space<vmem>>, vector<1x32x64xf32>
    %63 = vector.shape_cast %62 : vector<1x32x64xf32> to vector<32x64xf32>
    %cst_64 = arith.constant dense<0.000000e+00> : vector<36x64xf32>
    %64 = tpu.matmul %61, %63, %cst_64 {dimension_numbers = #tpu.dot_dimension_numbers<[1], [0], [0], [1], [0, 0, 1, 1], [], []>} : vector<36x32xf32>, vector<32x64xf32>, vector<36x64xf32> -> vector<36x64xf32>
    %65 = arith.addf %58, %64 : vector<36x64xf32>
    %c8 = arith.constant 8 : index
    %c0_65 = arith.constant 0 : index
    %c0_66 = arith.constant 0 : index
    %66 = vector.load %arg5[%c8, %c0_65, %c0_66] : memref<16x36x225xf32, #tpu.memory_space<vmem>>, vector<1x36x225xf32>
    %67 = vector.shape_cast %66 : vector<1x36x225xf32> to vector<36x225xf32>
    %cst_67 = arith.constant dense<0.000000e+00> : vector<36x32xf32>
    %68 = tpu.matmul %67, %8, %cst_67 {dimension_numbers = #tpu.dot_dimension_numbers<[1], [0], [0], [1], [0, 0, 1, 1], [], []>} : vector<36x225xf32>, vector<225x32xf32>, vector<36x32xf32> -> vector<36x32xf32>
    %c8_68 = arith.constant 8 : index
    %c0_69 = arith.constant 0 : index
    %c0_70 = arith.constant 0 : index
    %69 = vector.load %arg6[%c8_68, %c0_69, %c0_70] : memref<16x32x64xf32, #tpu.memory_space<vmem>>, vector<1x32x64xf32>
    %70 = vector.shape_cast %69 : vector<1x32x64xf32> to vector<32x64xf32>
    %cst_71 = arith.constant dense<0.000000e+00> : vector<36x64xf32>
    %71 = tpu.matmul %68, %70, %cst_71 {dimension_numbers = #tpu.dot_dimension_numbers<[1], [0], [0], [1], [0, 0, 1, 1], [], []>} : vector<36x32xf32>, vector<32x64xf32>, vector<36x64xf32> -> vector<36x64xf32>
    %72 = arith.addf %65, %71 : vector<36x64xf32>
    %c9 = arith.constant 9 : index
    %c0_72 = arith.constant 0 : index
    %c0_73 = arith.constant 0 : index
    %73 = vector.load %arg5[%c9, %c0_72, %c0_73] : memref<16x36x225xf32, #tpu.memory_space<vmem>>, vector<1x36x225xf32>
    %74 = vector.shape_cast %73 : vector<1x36x225xf32> to vector<36x225xf32>
    %cst_74 = arith.constant dense<0.000000e+00> : vector<36x32xf32>
    %75 = tpu.matmul %74, %8, %cst_74 {dimension_numbers = #tpu.dot_dimension_numbers<[1], [0], [0], [1], [0, 0, 1, 1], [], []>} : vector<36x225xf32>, vector<225x32xf32>, vector<36x32xf32> -> vector<36x32xf32>
    %c9_75 = arith.constant 9 : index
    %c0_76 = arith.constant 0 : index
    %c0_77 = arith.constant 0 : index
    %76 = vector.load %arg6[%c9_75, %c0_76, %c0_77] : memref<16x32x64xf32, #tpu.memory_space<vmem>>, vector<1x32x64xf32>
    %77 = vector.shape_cast %76 : vector<1x32x64xf32> to vector<32x64xf32>
    %cst_78 = arith.constant dense<0.000000e+00> : vector<36x64xf32>
    %78 = tpu.matmul %75, %77, %cst_78 {dimension_numbers = #tpu.dot_dimension_numbers<[1], [0], [0], [1], [0, 0, 1, 1], [], []>} : vector<36x32xf32>, vector<32x64xf32>, vector<36x64xf32> -> vector<36x64xf32>
    %79 = arith.addf %72, %78 : vector<36x64xf32>
    %c10 = arith.constant 10 : index
    %c0_79 = arith.constant 0 : index
    %c0_80 = arith.constant 0 : index
    %80 = vector.load %arg5[%c10, %c0_79, %c0_80] : memref<16x36x225xf32, #tpu.memory_space<vmem>>, vector<1x36x225xf32>
    %81 = vector.shape_cast %80 : vector<1x36x225xf32> to vector<36x225xf32>
    %cst_81 = arith.constant dense<0.000000e+00> : vector<36x32xf32>
    %82 = tpu.matmul %81, %8, %cst_81 {dimension_numbers = #tpu.dot_dimension_numbers<[1], [0], [0], [1], [0, 0, 1, 1], [], []>} : vector<36x225xf32>, vector<225x32xf32>, vector<36x32xf32> -> vector<36x32xf32>
    %c10_82 = arith.constant 10 : index
    %c0_83 = arith.constant 0 : index
    %c0_84 = arith.constant 0 : index
    %83 = vector.load %arg6[%c10_82, %c0_83, %c0_84] : memref<16x32x64xf32, #tpu.memory_space<vmem>>, vector<1x32x64xf32>
    %84 = vector.shape_cast %83 : vector<1x32x64xf32> to vector<32x64xf32>
    %cst_85 = arith.constant dense<0.000000e+00> : vector<36x64xf32>
    %85 = tpu.matmul %82, %84, %cst_85 {dimension_numbers = #tpu.dot_dimension_numbers<[1], [0], [0], [1], [0, 0, 1, 1], [], []>} : vector<36x32xf32>, vector<32x64xf32>, vector<36x64xf32> -> vector<36x64xf32>
    %86 = arith.addf %79, %85 : vector<36x64xf32>
    %c11 = arith.constant 11 : index
    %c0_86 = arith.constant 0 : index
    %c0_87 = arith.constant 0 : index
    %87 = vector.load %arg5[%c11, %c0_86, %c0_87] : memref<16x36x225xf32, #tpu.memory_space<vmem>>, vector<1x36x225xf32>
    %88 = vector.shape_cast %87 : vector<1x36x225xf32> to vector<36x225xf32>
    %cst_88 = arith.constant dense<0.000000e+00> : vector<36x32xf32>
    %89 = tpu.matmul %88, %8, %cst_88 {dimension_numbers = #tpu.dot_dimension_numbers<[1], [0], [0], [1], [0, 0, 1, 1], [], []>} : vector<36x225xf32>, vector<225x32xf32>, vector<36x32xf32> -> vector<36x32xf32>
    %c11_89 = arith.constant 11 : index
    %c0_90 = arith.constant 0 : index
    %c0_91 = arith.constant 0 : index
    %90 = vector.load %arg6[%c11_89, %c0_90, %c0_91] : memref<16x32x64xf32, #tpu.memory_space<vmem>>, vector<1x32x64xf32>
    %91 = vector.shape_cast %90 : vector<1x32x64xf32> to vector<32x64xf32>
    %cst_92 = arith.constant dense<0.000000e+00> : vector<36x64xf32>
    %92 = tpu.matmul %89, %91, %cst_92 {dimension_numbers = #tpu.dot_dimension_numbers<[1], [0], [0], [1], [0, 0, 1, 1], [], []>} : vector<36x32xf32>, vector<32x64xf32>, vector<36x64xf32> -> vector<36x64xf32>
    %93 = arith.addf %86, %92 : vector<36x64xf32>
    %c12 = arith.constant 12 : index
    %c0_93 = arith.constant 0 : index
    %c0_94 = arith.constant 0 : index
    %94 = vector.load %arg5[%c12, %c0_93, %c0_94] : memref<16x36x225xf32, #tpu.memory_space<vmem>>, vector<1x36x225xf32>
    %95 = vector.shape_cast %94 : vector<1x36x225xf32> to vector<36x225xf32>
    %cst_95 = arith.constant dense<0.000000e+00> : vector<36x32xf32>
    %96 = tpu.matmul %95, %8, %cst_95 {dimension_numbers = #tpu.dot_dimension_numbers<[1], [0], [0], [1], [0, 0, 1, 1], [], []>} : vector<36x225xf32>, vector<225x32xf32>, vector<36x32xf32> -> vector<36x32xf32>
    %c12_96 = arith.constant 12 : index
    %c0_97 = arith.constant 0 : index
    %c0_98 = arith.constant 0 : index
    %97 = vector.load %arg6[%c12_96, %c0_97, %c0_98] : memref<16x32x64xf32, #tpu.memory_space<vmem>>, vector<1x32x64xf32>
    %98 = vector.shape_cast %97 : vector<1x32x64xf32> to vector<32x64xf32>
    %cst_99 = arith.constant dense<0.000000e+00> : vector<36x64xf32>
    %99 = tpu.matmul %96, %98, %cst_99 {dimension_numbers = #tpu.dot_dimension_numbers<[1], [0], [0], [1], [0, 0, 1, 1], [], []>} : vector<36x32xf32>, vector<32x64xf32>, vector<36x64xf32> -> vector<36x64xf32>
    %100 = arith.addf %93, %99 : vector<36x64xf32>
    %c13 = arith.constant 13 : index
    %c0_100 = arith.constant 0 : index
    %c0_101 = arith.constant 0 : index
    %101 = vector.load %arg5[%c13, %c0_100, %c0_101] : memref<16x36x225xf32, #tpu.memory_space<vmem>>, vector<1x36x225xf32>
    %102 = vector.shape_cast %101 : vector<1x36x225xf32> to vector<36x225xf32>
    %cst_102 = arith.constant dense<0.000000e+00> : vector<36x32xf32>
    %103 = tpu.matmul %102, %8, %cst_102 {dimension_numbers = #tpu.dot_dimension_numbers<[1], [0], [0], [1], [0, 0, 1, 1], [], []>} : vector<36x225xf32>, vector<225x32xf32>, vector<36x32xf32> -> vector<36x32xf32>
    %c13_103 = arith.constant 13 : index
    %c0_104 = arith.constant 0 : index
    %c0_105 = arith.constant 0 : index
    %104 = vector.load %arg6[%c13_103, %c0_104, %c0_105] : memref<16x32x64xf32, #tpu.memory_space<vmem>>, vector<1x32x64xf32>
    %105 = vector.shape_cast %104 : vector<1x32x64xf32> to vector<32x64xf32>
    %cst_106 = arith.constant dense<0.000000e+00> : vector<36x64xf32>
    %106 = tpu.matmul %103, %105, %cst_106 {dimension_numbers = #tpu.dot_dimension_numbers<[1], [0], [0], [1], [0, 0, 1, 1], [], []>} : vector<36x32xf32>, vector<32x64xf32>, vector<36x64xf32> -> vector<36x64xf32>
    %107 = arith.addf %100, %106 : vector<36x64xf32>
    %c14 = arith.constant 14 : index
    %c0_107 = arith.constant 0 : index
    %c0_108 = arith.constant 0 : index
    %108 = vector.load %arg5[%c14, %c0_107, %c0_108] : memref<16x36x225xf32, #tpu.memory_space<vmem>>, vector<1x36x225xf32>
    %109 = vector.shape_cast %108 : vector<1x36x225xf32> to vector<36x225xf32>
    %cst_109 = arith.constant dense<0.000000e+00> : vector<36x32xf32>
    %110 = tpu.matmul %109, %8, %cst_109 {dimension_numbers = #tpu.dot_dimension_numbers<[1], [0], [0], [1], [0, 0, 1, 1], [], []>} : vector<36x225xf32>, vector<225x32xf32>, vector<36x32xf32> -> vector<36x32xf32>
    %c14_110 = arith.constant 14 : index
    %c0_111 = arith.constant 0 : index
    %c0_112 = arith.constant 0 : index
    %111 = vector.load %arg6[%c14_110, %c0_111, %c0_112] : memref<16x32x64xf32, #tpu.memory_space<vmem>>, vector<1x32x64xf32>
    %112 = vector.shape_cast %111 : vector<1x32x64xf32> to vector<32x64xf32>
    %cst_113 = arith.constant dense<0.000000e+00> : vector<36x64xf32>
    %113 = tpu.matmul %110, %112, %cst_113 {dimension_numbers = #tpu.dot_dimension_numbers<[1], [0], [0], [1], [0, 0, 1, 1], [], []>} : vector<36x32xf32>, vector<32x64xf32>, vector<36x64xf32> -> vector<36x64xf32>
    %114 = arith.addf %107, %113 : vector<36x64xf32>
    %c15 = arith.constant 15 : index
    %c0_114 = arith.constant 0 : index
    %c0_115 = arith.constant 0 : index
    %115 = vector.load %arg5[%c15, %c0_114, %c0_115] : memref<16x36x225xf32, #tpu.memory_space<vmem>>, vector<1x36x225xf32>
    %116 = vector.shape_cast %115 : vector<1x36x225xf32> to vector<36x225xf32>
    %cst_116 = arith.constant dense<0.000000e+00> : vector<36x32xf32>
    %117 = tpu.matmul %116, %8, %cst_116 {dimension_numbers = #tpu.dot_dimension_numbers<[1], [0], [0], [1], [0, 0, 1, 1], [], []>} : vector<36x225xf32>, vector<225x32xf32>, vector<36x32xf32> -> vector<36x32xf32>
    %c15_117 = arith.constant 15 : index
    %c0_118 = arith.constant 0 : index
    %c0_119 = arith.constant 0 : index
    %118 = vector.load %arg6[%c15_117, %c0_118, %c0_119] : memref<16x32x64xf32, #tpu.memory_space<vmem>>, vector<1x32x64xf32>
    %119 = vector.shape_cast %118 : vector<1x32x64xf32> to vector<32x64xf32>
    %cst_120 = arith.constant dense<0.000000e+00> : vector<36x64xf32>
    %120 = tpu.matmul %117, %119, %cst_120 {dimension_numbers = #tpu.dot_dimension_numbers<[1], [0], [0], [1], [0, 0, 1, 1], [], []>} : vector<36x32xf32>, vector<32x64xf32>, vector<36x64xf32> -> vector<36x64xf32>
    %121 = arith.addf %114, %120 : vector<36x64xf32>
    %c0_121 = arith.constant 0 : index
    %c0_122 = arith.constant 0 : index
    %122 = vector.load %arg7[%c0_121, %c0_122] : memref<1x64xf32, #tpu.memory_space<vmem>>, vector<1x64xf32>
    %123 = vector.broadcast %122 : vector<1x64xf32> to vector<36x64xf32>
    %124 = arith.addf %121, %123 : vector<36x64xf32>
    %cst_123 = arith.constant 0.000000e+00 : f32
    %125 = vector.broadcast %cst_123 : f32 to vector<36x64xf32>
    %126 = arith.maximumf %124, %125 : vector<36x64xf32>
    %cst_124 = arith.constant 0.000000e+00 : f32
    %127 = vector.broadcast %cst_124 : f32 to vector<16x64xf32>
    %c0_125 = arith.constant 0 : index
    %c0_126 = arith.constant 0 : index
    %c0_127 = arith.constant 0 : index
    %128 = vector.load %arg8[%c0_125, %c0_126, %c0_127] : memref<9x16x36xf32, #tpu.memory_space<vmem>>, vector<1x16x36xf32>
    %129 = vector.shape_cast %128 : vector<1x16x36xf32> to vector<16x36xf32>
    %cst_128 = arith.constant dense<0.000000e+00> : vector<16x64xf32>
    %130 = tpu.matmul %129, %126, %cst_128 {dimension_numbers = #tpu.dot_dimension_numbers<[1], [0], [0], [1], [0, 0, 1, 1], [], []>} : vector<16x36xf32>, vector<36x64xf32>, vector<16x64xf32> -> vector<16x64xf32>
    %c0_129 = arith.constant 0 : index
    %c0_130 = arith.constant 0 : index
    %c0_131 = arith.constant 0 : index
    %131 = vector.load %arg9[%c0_129, %c0_130, %c0_131] : memref<9x64x64xf32, #tpu.memory_space<vmem>>, vector<1x64x64xf32>
    %132 = vector.shape_cast %131 : vector<1x64x64xf32> to vector<64x64xf32>
    %cst_132 = arith.constant dense<0.000000e+00> : vector<16x64xf32>
    %133 = tpu.matmul %130, %132, %cst_132 {dimension_numbers = #tpu.dot_dimension_numbers<[1], [0], [0], [1], [0, 0, 1, 1], [], []>} : vector<16x64xf32>, vector<64x64xf32>, vector<16x64xf32> -> vector<16x64xf32>
    %134 = arith.addf %127, %133 : vector<16x64xf32>
    %c1_133 = arith.constant 1 : index
    %c0_134 = arith.constant 0 : index
    %c0_135 = arith.constant 0 : index
    %135 = vector.load %arg8[%c1_133, %c0_134, %c0_135] : memref<9x16x36xf32, #tpu.memory_space<vmem>>, vector<1x16x36xf32>
    %136 = vector.shape_cast %135 : vector<1x16x36xf32> to vector<16x36xf32>
    %cst_136 = arith.constant dense<0.000000e+00> : vector<16x64xf32>
    %137 = tpu.matmul %136, %126, %cst_136 {dimension_numbers = #tpu.dot_dimension_numbers<[1], [0], [0], [1], [0, 0, 1, 1], [], []>} : vector<16x36xf32>, vector<36x64xf32>, vector<16x64xf32> -> vector<16x64xf32>
    %c1_137 = arith.constant 1 : index
    %c0_138 = arith.constant 0 : index
    %c0_139 = arith.constant 0 : index
    %138 = vector.load %arg9[%c1_137, %c0_138, %c0_139] : memref<9x64x64xf32, #tpu.memory_space<vmem>>, vector<1x64x64xf32>
    %139 = vector.shape_cast %138 : vector<1x64x64xf32> to vector<64x64xf32>
    %cst_140 = arith.constant dense<0.000000e+00> : vector<16x64xf32>
    %140 = tpu.matmul %137, %139, %cst_140 {dimension_numbers = #tpu.dot_dimension_numbers<[1], [0], [0], [1], [0, 0, 1, 1], [], []>} : vector<16x64xf32>, vector<64x64xf32>, vector<16x64xf32> -> vector<16x64xf32>
    %141 = arith.addf %134, %140 : vector<16x64xf32>
    %c2_141 = arith.constant 2 : index
    %c0_142 = arith.constant 0 : index
    %c0_143 = arith.constant 0 : index
    %142 = vector.load %arg8[%c2_141, %c0_142, %c0_143] : memref<9x16x36xf32, #tpu.memory_space<vmem>>, vector<1x16x36xf32>
    %143 = vector.shape_cast %142 : vector<1x16x36xf32> to vector<16x36xf32>
    %cst_144 = arith.constant dense<0.000000e+00> : vector<16x64xf32>
    %144 = tpu.matmul %143, %126, %cst_144 {dimension_numbers = #tpu.dot_dimension_numbers<[1], [0], [0], [1], [0, 0, 1, 1], [], []>} : vector<16x36xf32>, vector<36x64xf32>, vector<16x64xf32> -> vector<16x64xf32>
    %c2_145 = arith.constant 2 : index
    %c0_146 = arith.constant 0 : index
    %c0_147 = arith.constant 0 : index
    %145 = vector.load %arg9[%c2_145, %c0_146, %c0_147] : memref<9x64x64xf32, #tpu.memory_space<vmem>>, vector<1x64x64xf32>
    %146 = vector.shape_cast %145 : vector<1x64x64xf32> to vector<64x64xf32>
    %cst_148 = arith.constant dense<0.000000e+00> : vector<16x64xf32>
    %147 = tpu.matmul %144, %146, %cst_148 {dimension_numbers = #tpu.dot_dimension_numbers<[1], [0], [0], [1], [0, 0, 1, 1], [], []>} : vector<16x64xf32>, vector<64x64xf32>, vector<16x64xf32> -> vector<16x64xf32>
    %148 = arith.addf %141, %147 : vector<16x64xf32>
    %c3_149 = arith.constant 3 : index
    %c0_150 = arith.constant 0 : index
    %c0_151 = arith.constant 0 : index
    %149 = vector.load %arg8[%c3_149, %c0_150, %c0_151] : memref<9x16x36xf32, #tpu.memory_space<vmem>>, vector<1x16x36xf32>
    %150 = vector.shape_cast %149 : vector<1x16x36xf32> to vector<16x36xf32>
    %cst_152 = arith.constant dense<0.000000e+00> : vector<16x64xf32>
    %151 = tpu.matmul %150, %126, %cst_152 {dimension_numbers = #tpu.dot_dimension_numbers<[1], [0], [0], [1], [0, 0, 1, 1], [], []>} : vector<16x36xf32>, vector<36x64xf32>, vector<16x64xf32> -> vector<16x64xf32>
    %c3_153 = arith.constant 3 : index
    %c0_154 = arith.constant 0 : index
    %c0_155 = arith.constant 0 : index
    %152 = vector.load %arg9[%c3_153, %c0_154, %c0_155] : memref<9x64x64xf32, #tpu.memory_space<vmem>>, vector<1x64x64xf32>
    %153 = vector.shape_cast %152 : vector<1x64x64xf32> to vector<64x64xf32>
    %cst_156 = arith.constant dense<0.000000e+00> : vector<16x64xf32>
    %154 = tpu.matmul %151, %153, %cst_156 {dimension_numbers = #tpu.dot_dimension_numbers<[1], [0], [0], [1], [0, 0, 1, 1], [], []>} : vector<16x64xf32>, vector<64x64xf32>, vector<16x64xf32> -> vector<16x64xf32>
    %155 = arith.addf %148, %154 : vector<16x64xf32>
    %c4_157 = arith.constant 4 : index
    %c0_158 = arith.constant 0 : index
    %c0_159 = arith.constant 0 : index
    %156 = vector.load %arg8[%c4_157, %c0_158, %c0_159] : memref<9x16x36xf32, #tpu.memory_space<vmem>>, vector<1x16x36xf32>
    %157 = vector.shape_cast %156 : vector<1x16x36xf32> to vector<16x36xf32>
    %cst_160 = arith.constant dense<0.000000e+00> : vector<16x64xf32>
    %158 = tpu.matmul %157, %126, %cst_160 {dimension_numbers = #tpu.dot_dimension_numbers<[1], [0], [0], [1], [0, 0, 1, 1], [], []>} : vector<16x36xf32>, vector<36x64xf32>, vector<16x64xf32> -> vector<16x64xf32>
    %c4_161 = arith.constant 4 : index
    %c0_162 = arith.constant 0 : index
    %c0_163 = arith.constant 0 : index
    %159 = vector.load %arg9[%c4_161, %c0_162, %c0_163] : memref<9x64x64xf32, #tpu.memory_space<vmem>>, vector<1x64x64xf32>
    %160 = vector.shape_cast %159 : vector<1x64x64xf32> to vector<64x64xf32>
    %cst_164 = arith.constant dense<0.000000e+00> : vector<16x64xf32>
    %161 = tpu.matmul %158, %160, %cst_164 {dimension_numbers = #tpu.dot_dimension_numbers<[1], [0], [0], [1], [0, 0, 1, 1], [], []>} : vector<16x64xf32>, vector<64x64xf32>, vector<16x64xf32> -> vector<16x64xf32>
    %162 = arith.addf %155, %161 : vector<16x64xf32>
    %c5_165 = arith.constant 5 : index
    %c0_166 = arith.constant 0 : index
    %c0_167 = arith.constant 0 : index
    %163 = vector.load %arg8[%c5_165, %c0_166, %c0_167] : memref<9x16x36xf32, #tpu.memory_space<vmem>>, vector<1x16x36xf32>
    %164 = vector.shape_cast %163 : vector<1x16x36xf32> to vector<16x36xf32>
    %cst_168 = arith.constant dense<0.000000e+00> : vector<16x64xf32>
    %165 = tpu.matmul %164, %126, %cst_168 {dimension_numbers = #tpu.dot_dimension_numbers<[1], [0], [0], [1], [0, 0, 1, 1], [], []>} : vector<16x36xf32>, vector<36x64xf32>, vector<16x64xf32> -> vector<16x64xf32>
    %c5_169 = arith.constant 5 : index
    %c0_170 = arith.constant 0 : index
    %c0_171 = arith.constant 0 : index
    %166 = vector.load %arg9[%c5_169, %c0_170, %c0_171] : memref<9x64x64xf32, #tpu.memory_space<vmem>>, vector<1x64x64xf32>
    %167 = vector.shape_cast %166 : vector<1x64x64xf32> to vector<64x64xf32>
    %cst_172 = arith.constant dense<0.000000e+00> : vector<16x64xf32>
    %168 = tpu.matmul %165, %167, %cst_172 {dimension_numbers = #tpu.dot_dimension_numbers<[1], [0], [0], [1], [0, 0, 1, 1], [], []>} : vector<16x64xf32>, vector<64x64xf32>, vector<16x64xf32> -> vector<16x64xf32>
    %169 = arith.addf %162, %168 : vector<16x64xf32>
    %c6_173 = arith.constant 6 : index
    %c0_174 = arith.constant 0 : index
    %c0_175 = arith.constant 0 : index
    %170 = vector.load %arg8[%c6_173, %c0_174, %c0_175] : memref<9x16x36xf32, #tpu.memory_space<vmem>>, vector<1x16x36xf32>
    %171 = vector.shape_cast %170 : vector<1x16x36xf32> to vector<16x36xf32>
    %cst_176 = arith.constant dense<0.000000e+00> : vector<16x64xf32>
    %172 = tpu.matmul %171, %126, %cst_176 {dimension_numbers = #tpu.dot_dimension_numbers<[1], [0], [0], [1], [0, 0, 1, 1], [], []>} : vector<16x36xf32>, vector<36x64xf32>, vector<16x64xf32> -> vector<16x64xf32>
    %c6_177 = arith.constant 6 : index
    %c0_178 = arith.constant 0 : index
    %c0_179 = arith.constant 0 : index
    %173 = vector.load %arg9[%c6_177, %c0_178, %c0_179] : memref<9x64x64xf32, #tpu.memory_space<vmem>>, vector<1x64x64xf32>
    %174 = vector.shape_cast %173 : vector<1x64x64xf32> to vector<64x64xf32>
    %cst_180 = arith.constant dense<0.000000e+00> : vector<16x64xf32>
    %175 = tpu.matmul %172, %174, %cst_180 {dimension_numbers = #tpu.dot_dimension_numbers<[1], [0], [0], [1], [0, 0, 1, 1], [], []>} : vector<16x64xf32>, vector<64x64xf32>, vector<16x64xf32> -> vector<16x64xf32>
    %176 = arith.addf %169, %175 : vector<16x64xf32>
    %c7_181 = arith.constant 7 : index
    %c0_182 = arith.constant 0 : index
    %c0_183 = arith.constant 0 : index
    %177 = vector.load %arg8[%c7_181, %c0_182, %c0_183] : memref<9x16x36xf32, #tpu.memory_space<vmem>>, vector<1x16x36xf32>
    %178 = vector.shape_cast %177 : vector<1x16x36xf32> to vector<16x36xf32>
    %cst_184 = arith.constant dense<0.000000e+00> : vector<16x64xf32>
    %179 = tpu.matmul %178, %126, %cst_184 {dimension_numbers = #tpu.dot_dimension_numbers<[1], [0], [0], [1], [0, 0, 1, 1], [], []>} : vector<16x36xf32>, vector<36x64xf32>, vector<16x64xf32> -> vector<16x64xf32>
    %c7_185 = arith.constant 7 : index
    %c0_186 = arith.constant 0 : index
    %c0_187 = arith.constant 0 : index
    %180 = vector.load %arg9[%c7_185, %c0_186, %c0_187] : memref<9x64x64xf32, #tpu.memory_space<vmem>>, vector<1x64x64xf32>
    %181 = vector.shape_cast %180 : vector<1x64x64xf32> to vector<64x64xf32>
    %cst_188 = arith.constant dense<0.000000e+00> : vector<16x64xf32>
    %182 = tpu.matmul %179, %181, %cst_188 {dimension_numbers = #tpu.dot_dimension_numbers<[1], [0], [0], [1], [0, 0, 1, 1], [], []>} : vector<16x64xf32>, vector<64x64xf32>, vector<16x64xf32> -> vector<16x64xf32>
    %183 = arith.addf %176, %182 : vector<16x64xf32>
    %c8_189 = arith.constant 8 : index
    %c0_190 = arith.constant 0 : index
    %c0_191 = arith.constant 0 : index
    %184 = vector.load %arg8[%c8_189, %c0_190, %c0_191] : memref<9x16x36xf32, #tpu.memory_space<vmem>>, vector<1x16x36xf32>
    %185 = vector.shape_cast %184 : vector<1x16x36xf32> to vector<16x36xf32>
    %cst_192 = arith.constant dense<0.000000e+00> : vector<16x64xf32>
    %186 = tpu.matmul %185, %126, %cst_192 {dimension_numbers = #tpu.dot_dimension_numbers<[1], [0], [0], [1], [0, 0, 1, 1], [], []>} : vector<16x36xf32>, vector<36x64xf32>, vector<16x64xf32> -> vector<16x64xf32>
    %c8_193 = arith.constant 8 : index
    %c0_194 = arith.constant 0 : index
    %c0_195 = arith.constant 0 : index
    %187 = vector.load %arg9[%c8_193, %c0_194, %c0_195] : memref<9x64x64xf32, #tpu.memory_space<vmem>>, vector<1x64x64xf32>
    %188 = vector.shape_cast %187 : vector<1x64x64xf32> to vector<64x64xf32>
    %cst_196 = arith.constant dense<0.000000e+00> : vector<16x64xf32>
    %189 = tpu.matmul %186, %188, %cst_196 {dimension_numbers = #tpu.dot_dimension_numbers<[1], [0], [0], [1], [0, 0, 1, 1], [], []>} : vector<16x64xf32>, vector<64x64xf32>, vector<16x64xf32> -> vector<16x64xf32>
    %190 = arith.addf %183, %189 : vector<16x64xf32>
    %c0_197 = arith.constant 0 : index
    %c0_198 = arith.constant 0 : index
    %191 = vector.load %arg10[%c0_197, %c0_198] : memref<1x64xf32, #tpu.memory_space<vmem>>, vector<1x64xf32>
    %192 = vector.broadcast %191 : vector<1x64xf32> to vector<16x64xf32>
    %193 = arith.addf %190, %192 : vector<16x64xf32>
    %cst_199 = arith.constant 0.000000e+00 : f32
    %194 = vector.broadcast %cst_199 : f32 to vector<16x64xf32>
    %195 = arith.maximumf %193, %194 : vector<16x64xf32>
    %c0_200 = arith.constant 0 : index
    %c0_201 = arith.constant 0 : index
    %196 = vector.load %arg11[%c0_200, %c0_201] : memref<64x16xf32, #tpu.memory_space<vmem>>, vector<64x16xf32>
    %cst_202 = arith.constant dense<0.000000e+00> : vector<16x16xf32>
    %197 = tpu.matmul %195, %196, %cst_202 {dimension_numbers = #tpu.dot_dimension_numbers<[1], [0], [0], [1], [0, 0, 1, 1], [], []>} : vector<16x64xf32>, vector<64x16xf32>, vector<16x16xf32> -> vector<16x16xf32>
    %c0_203 = arith.constant 0 : index
    %c0_204 = arith.constant 0 : index
    %198 = vector.load %arg12[%c0_203, %c0_204] : memref<1x16xf32, #tpu.memory_space<vmem>>, vector<1x16xf32>
    %199 = vector.broadcast %198 : vector<1x16xf32> to vector<16x16xf32>
    %200 = arith.addf %197, %199 : vector<16x16xf32>
    %c0_205 = arith.constant 0 : index
    %c0_206 = arith.constant 0 : index
    %c0_207 = arith.constant 0 : index
    %201 = vector.load %arg2[%c0_205, %c0_206, %c0_207] : memref<1x1x48xf32, #tpu.memory_space<vmem>>, vector<1x1x48xf32>
    %202 = vector.shape_cast %201 : vector<1x1x48xf32> to vector<1x48xf32>
    %c0_208 = arith.constant 0 : index
    %c0_209 = arith.constant 0 : index
    %203 = vector.load %arg13[%c0_208, %c0_209] : memref<48x32xf32, #tpu.memory_space<vmem>>, vector<48x32xf32>
    %cst_210 = arith.constant dense<0.000000e+00> : vector<1x32xf32>
    %204 = tpu.matmul %202, %203, %cst_210 {dimension_numbers = #tpu.dot_dimension_numbers<[1], [0], [0], [1], [0, 0, 1, 1], [], []>} : vector<1x48xf32>, vector<48x32xf32>, vector<1x32xf32> -> vector<1x32xf32>
    %c0_211 = arith.constant 0 : index
    %c0_212 = arith.constant 0 : index
    %205 = vector.load %arg14[%c0_211, %c0_212] : memref<1x32xf32, #tpu.memory_space<vmem>>, vector<1x32xf32>
    %206 = arith.addf %204, %205 : vector<1x32xf32>
    %cst_213 = arith.constant 0.000000e+00 : f32
    %207 = vector.broadcast %cst_213 : f32 to vector<1x32xf32>
    %208 = arith.maximumf %206, %207 : vector<1x32xf32>
    %c0_214 = arith.constant 0 : index
    %c0_215 = arith.constant 0 : index
    %209 = vector.load %arg15[%c0_214, %c0_215] : memref<32x32xf32, #tpu.memory_space<vmem>>, vector<32x32xf32>
    %cst_216 = arith.constant dense<0.000000e+00> : vector<1x32xf32>
    %210 = tpu.matmul %208, %209, %cst_216 {dimension_numbers = #tpu.dot_dimension_numbers<[1], [0], [0], [1], [0, 0, 1, 1], [], []>} : vector<1x32xf32>, vector<32x32xf32>, vector<1x32xf32> -> vector<1x32xf32>
    %c0_217 = arith.constant 0 : index
    %c0_218 = arith.constant 0 : index
    %211 = vector.load %arg16[%c0_217, %c0_218] : memref<1x32xf32, #tpu.memory_space<vmem>>, vector<1x32xf32>
    %212 = arith.addf %210, %211 : vector<1x32xf32>
    %cst_219 = arith.constant 0.000000e+00 : f32
    %213 = vector.broadcast %cst_219 : f32 to vector<1x32xf32>
    %214 = arith.maximumf %212, %213 : vector<1x32xf32>
    %c0_220 = arith.constant 0 : index
    %c0_221 = arith.constant 0 : index
    %215 = vector.load %arg17[%c0_220, %c0_221] : memref<32x16xf32, #tpu.memory_space<vmem>>, vector<32x16xf32>
    %cst_222 = arith.constant dense<0.000000e+00> : vector<1x16xf32>
    %216 = tpu.matmul %214, %215, %cst_222 {dimension_numbers = #tpu.dot_dimension_numbers<[1], [0], [0], [1], [0, 0, 1, 1], [], []>} : vector<1x32xf32>, vector<32x16xf32>, vector<1x16xf32> -> vector<1x16xf32>
    %c0_223 = arith.constant 0 : index
    %c0_224 = arith.constant 0 : index
    %217 = vector.load %arg18[%c0_223, %c0_224] : memref<1x16xf32, #tpu.memory_space<vmem>>, vector<1x16xf32>
    %218 = arith.addf %216, %217 : vector<1x16xf32>
    %cst_225 = arith.constant 0.000000e+00 : f32
    %219 = vector.broadcast %cst_225 : f32 to vector<1x16xf32>
    %220 = arith.maximumf %218, %219 : vector<1x16xf32>
    %221 = tpu.concatenate %220, %200 in 0 : vector<1x16xf32>, vector<16x16xf32> -> vector<17x16xf32>
    %c0_226 = arith.constant 0 : index
    %c0_227 = arith.constant 0 : index
    %222 = vector.load %arg19[%c0_226, %c0_227] : memref<17x16xf32, #tpu.memory_space<vmem>>, vector<17x16xf32>
    %223 = tpu.concatenate %221, %222 in 1 : vector<17x16xf32>, vector<17x16xf32> -> vector<17x32xf32>
    %c0_228 = arith.constant 0 : index
    %c0_229 = arith.constant 0 : index
    %c0_230 = arith.constant 0 : index
    %224 = vector.load %arg20[%c0_228, %c0_229, %c0_230] : memref<1x17x32xf32, #tpu.memory_space<vmem>>, vector<1x17x32xf32>
    %225 = vector.shape_cast %224 : vector<1x17x32xf32> to vector<17x32xf32>
    %226 = vector.shape_cast %223 : vector<17x32xf32> to vector<1x17x32xf32>
    tpu.vector_store %arg20[%c0_228, %c0_229, %c0_230], %226 {strides = array<i32>} : memref<1x17x32xf32, #tpu.memory_space<vmem>>, vector<1x17x32xf32>,
    return
  }
  func.func @transform_0(%arg0: i32) -> (i32, i32, i32) {
    %c0_i32 = arith.constant 0 : i32
    %c0_i32_0 = arith.constant 0 : i32
    %c0_i32_1 = arith.constant 0 : i32
    return %arg0, %c0_i32, %c0_i32_0 : i32, i32, i32
  }
  func.func @transform_1(%arg0: i32) -> (i32, i32, i32) {
    %c0_i32 = arith.constant 0 : i32
    %c0_i32_0 = arith.constant 0 : i32
    %c0_i32_1 = arith.constant 0 : i32
    return %arg0, %c0_i32, %c0_i32_0 : i32, i32, i32
  }
  func.func @transform_2(%arg0: i32) -> (i32, i32) {
    %c0_i32 = arith.constant 0 : i32
    %c0_i32_0 = arith.constant 0 : i32
    %c0_i32_1 = arith.constant 0 : i32
    return %c0_i32, %c0_i32_0 : i32, i32
  }
  func.func @transform_3(%arg0: i32) -> (i32, i32) {
    %c0_i32 = arith.constant 0 : i32
    %c0_i32_0 = arith.constant 0 : i32
    %c0_i32_1 = arith.constant 0 : i32
    return %c0_i32, %c0_i32_0 : i32, i32
  }
  func.func @transform_4(%arg0: i32) -> (i32, i32, i32) {
    %c0_i32 = arith.constant 0 : i32
    %c0_i32_0 = arith.constant 0 : i32
    %c0_i32_1 = arith.constant 0 : i32
    %c0_i32_2 = arith.constant 0 : i32
    return %c0_i32, %c0_i32_0, %c0_i32_1 : i32, i32, i32
  }
  func.func @transform_5(%arg0: i32) -> (i32, i32, i32) {
    %c0_i32 = arith.constant 0 : i32
    %c0_i32_0 = arith.constant 0 : i32
    %c0_i32_1 = arith.constant 0 : i32
    %c0_i32_2 = arith.constant 0 : i32
    return %c0_i32, %c0_i32_0, %c0_i32_1 : i32, i32, i32
  }
  func.func @transform_6(%arg0: i32) -> (i32, i32) {
    %c0_i32 = arith.constant 0 : i32
    %c0_i32_0 = arith.constant 0 : i32
    %c0_i32_1 = arith.constant 0 : i32
    return %c0_i32, %c0_i32_0 : i32, i32
  }
  func.func @transform_7(%arg0: i32) -> (i32, i32, i32) {
    %c0_i32 = arith.constant 0 : i32
    %c0_i32_0 = arith.constant 0 : i32
    %c0_i32_1 = arith.constant 0 : i32
    %c0_i32_2 = arith.constant 0 : i32
    return %c0_i32, %c0_i32_0, %c0_i32_1 : i32, i32, i32
  }
  func.func @transform_8(%arg0: i32) -> (i32, i32, i32) {
    %c0_i32 = arith.constant 0 : i32
    %c0_i32_0 = arith.constant 0 : i32
    %c0_i32_1 = arith.constant 0 : i32
    %c0_i32_2 = arith.constant 0 : i32
    return %c0_i32, %c0_i32_0, %c0_i32_1 : i32, i32, i32
  }
  func.func @transform_9(%arg0: i32) -> (i32, i32) {
    %c0_i32 = arith.constant 0 : i32
    %c0_i32_0 = arith.constant 0 : i32
    %c0_i32_1 = arith.constant 0 : i32
    return %c0_i32, %c0_i32_0 : i32, i32
  }
  func.func @transform_10(%arg0: i32) -> (i32, i32) {
    %c0_i32 = arith.constant 0 : i32
    %c0_i32_0 = arith.constant 0 : i32
    %c0_i32_1 = arith.constant 0 : i32
    return %c0_i32, %c0_i32_0 : i32, i32
  }
  func.func @transform_11(%arg0: i32) -> (i32, i32) {
    %c0_i32 = arith.constant 0 : i32
    %c0_i32_0 = arith.constant 0 : i32
    %c0_i32_1 = arith.constant 0 : i32
    return %c0_i32, %c0_i32_0 : i32, i32
  }
  func.func @transform_12(%arg0: i32) -> (i32, i32) {
    %c0_i32 = arith.constant 0 : i32
    %c0_i32_0 = arith.constant 0 : i32
    %c0_i32_1 = arith.constant 0 : i32
    return %c0_i32, %c0_i32_0 : i32, i32
  }
  func.func @transform_13(%arg0: i32) -> (i32, i32) {
    %c0_i32 = arith.constant 0 : i32
    %c0_i32_0 = arith.constant 0 : i32
    %c0_i32_1 = arith.constant 0 : i32
    return %c0_i32, %c0_i32_0 : i32, i32
  }
  func.func @transform_14(%arg0: i32) -> (i32, i32) {
    %c0_i32 = arith.constant 0 : i32
    %c0_i32_0 = arith.constant 0 : i32
    %c0_i32_1 = arith.constant 0 : i32
    return %c0_i32, %c0_i32_0 : i32, i32
  }
  func.func @transform_15(%arg0: i32) -> (i32, i32) {
    %c0_i32 = arith.constant 0 : i32
    %c0_i32_0 = arith.constant 0 : i32
    %c0_i32_1 = arith.constant 0 : i32
    return %c0_i32, %c0_i32_0 : i32, i32
  }
  func.func @transform_16(%arg0: i32) -> (i32, i32) {
    %c0_i32 = arith.constant 0 : i32
    %c0_i32_0 = arith.constant 0 : i32
    %c0_i32_1 = arith.constant 0 : i32
    return %c0_i32, %c0_i32_0 : i32, i32
  }
  func.func @transform_17(%arg0: i32) -> (i32, i32) {
    %c0_i32 = arith.constant 0 : i32
    %c0_i32_0 = arith.constant 0 : i32
    %c0_i32_1 = arith.constant 0 : i32
    return %c0_i32, %c0_i32_0 : i32, i32
  }
  func.func @transform_18(%arg0: i32) -> (i32, i32) {
    %c0_i32 = arith.constant 0 : i32
    %c0_i32_0 = arith.constant 0 : i32
    %c0_i32_1 = arith.constant 0 : i32
    return %c0_i32, %c0_i32_0 : i32, i32
  }
  func.func @transform_19(%arg0: i32) -> (i32, i32, i32) {
    %c0_i32 = arith.constant 0 : i32
    %c0_i32_0 = arith.constant 0 : i32
    %c0_i32_1 = arith.constant 0 : i32
    return %arg0, %c0_i32, %c0_i32_0 : i32, i32, i32
  }
}

</mosaic_0001>

<llo_original>
// kernel: loco_transformer_forward.1
$region0: #{loco_transformer_forward.1}
  #allocation0 [shape = 'u32[]', space=smem, size = 0x4, offset = 0x4, fixed_abs, tag = 'smem constant byte address 0x4 - core index']
  #allocation1 [shape = 'u32[144,128]{1,0:T(1,128)}', space=vmem, size = 0x12000, scoped, tag = 'internal scratch']
  %s0 = inlined_call_operand.vmem [shape: f32[2,225,128], index: 0, kind: input, shape index: {}]
  %s1 = inlined_call_operand.vmem [shape: f32[2,1,48], index: 1, kind: input, shape index: {}]
  %s2 = inlined_call_operand.vmem [shape: f32[128,32], index: 2, kind: input, shape index: {}]
  %s3 = inlined_call_operand.vmem [shape: f32[1,32], index: 3, kind: input, shape index: {}]
  %s4 = inlined_call_operand.vmem [shape: f32[16,36,225], index: 4, kind: input, shape index: {}]
  %s5 = inlined_call_operand.vmem [shape: f32[16,32,64], index: 5, kind: input, shape index: {}]
  %s6 = inlined_call_operand.vmem [shape: f32[1,64], index: 6, kind: input, shape index: {}]
  %s7 = inlined_call_operand.vmem [shape: f32[9,16,36], index: 7, kind: input, shape index: {}]
  %s8 = inlined_call_operand.vmem [shape: f32[9,64,64], index: 8, kind: input, shape index: {}]
  %s9 = inlined_call_operand.vmem [shape: f32[1,64], index: 9, kind: input, shape index: {}]
  %s10 = inlined_call_operand.vmem [shape: f32[64,16], index: 10, kind: input, shape index: {}]
  %s11 = inlined_call_operand.vmem [shape: f32[1,16], index: 11, kind: input, shape index: {}]
  %s12 = inlined_call_operand.vmem [shape: f32[48,32], index: 12, kind: input, shape index: {}]
  %s13 = inlined_call_operand.vmem [shape: f32[1,32], index: 13, kind: input, shape index: {}]
  %s14 = inlined_call_operand.vmem [shape: f32[32,32], index: 14, kind: input, shape index: {}]
  %s15 = inlined_call_operand.vmem [shape: f32[1,32], index: 15, kind: input, shape index: {}]
  %s16 = inlined_call_operand.vmem [shape: f32[32,16], index: 16, kind: input, shape index: {}]
  %s17 = inlined_call_operand.vmem [shape: f32[1,16], index: 17, kind: input, shape index: {}]
  %s18 = inlined_call_operand.vmem [shape: f32[17,16], index: 18, kind: input, shape index: {}]
  %s19 = inlined_call_operand.vmem [shape: f32[2,17,32], index: 19, kind: output, shape index: {}]
  %s20 = sld [smem:[#allocation0]]
  $region109: #{loco_transformer_forward.1} parent=0
    _
  %s22 = ssub.s32 1, %s20
  %s23 = scalar_select 0, %s22, %s20
  loop: start=0, step=1, limit=4
  $region2: #{loco_transformer_forward.1} parent=0 // loop_pre_header
    _
  $region3: #{loco_transformer_forward.1} parent=0 // loop_header
    %s25 = sphi 0, %s29
    %p26 = scmp.ge.s32.totalorder %s25, 4
    %s35 = sphi 0, %s37
    %s38 = sphi 0, %s35
    %s39 = sphi 0, %s38
    %s55 = sphi 0, %s39
    %s61 = sphi 0, %s63
    %s64 = sphi 0, %s61
    %s65 = sphi 0, %s64
    %s81 = sphi 0, %s65
    %s85 = sphi 0, %s85
    %s87 = sphi 0, %s85
    %s88 = sphi 0, %s87
    %s102 = sphi 0, %s88
    %s106 = sphi 0, %s106
    %s108 = sphi 0, %s106
    %s109 = sphi 0, %s108
    %s123 = sphi 0, %s109
    %s127 = sphi 0, %s127
    %s129 = sphi 0, %s127
    %s130 = sphi 0, %s129
    %s144 = sphi 0, %s130
    %s148 = sphi 0, %s148
    %s150 = sphi 0, %s148
    %s151 = sphi 0, %s150
    %s165 = sphi 0, %s151
    %s169 = sphi 0, %s169
    %s171 = sphi 0, %s169
    %s172 = sphi 0, %s171
    %s186 = sphi 0, %s172
    %s190 = sphi 0, %s190
    %s192 = sphi 0, %s190
    %s193 = sphi 0, %s192
    %s207 = sphi 0, %s193
    %s211 = sphi 0, %s211
    %s213 = sphi 0, %s211
    %s214 = sphi 0, %s213
    %s228 = sphi 0, %s214
    %s232 = sphi 0, %s232
    %s234 = sphi 0, %s232
    %s235 = sphi 0, %s234
    %s249 = sphi 0, %s235
    %s253 = sphi 0, %s253
    %s255 = sphi 0, %s253
    %s256 = sphi 0, %s255
    %s270 = sphi 0, %s256
    %s274 = sphi 0, %s274
    %s276 = sphi 0, %s274
    %s277 = sphi 0, %s276
    %s291 = sphi 0, %s277
    %s295 = sphi 0, %s295
    %s297 = sphi 0, %s295
    %s298 = sphi 0, %s297
    %s312 = sphi 0, %s298
    %s316 = sphi 0, %s316
    %s318 = sphi 0, %s316
    %s319 = sphi 0, %s318
    %s333 = sphi 0, %s319
    %s337 = sphi 0, %s337
    %s339 = sphi 0, %s337
    %s340 = sphi 0, %s339
    %s354 = sphi 0, %s340
    %s358 = sphi 0, %s358
    %s360 = sphi 0, %s358
    %s361 = sphi 0, %s360
    %s375 = sphi 0, %s361
    %s379 = sphi 0, %s379
    %s381 = sphi 0, %s379
    %s382 = sphi 0, %s381
    %s396 = sphi 0, %s382
    %s400 = sphi 0, %s400
    %s402 = sphi 0, %s400
    %s403 = sphi 0, %s402
    %s417 = sphi 0, %s403
    %s421 = sphi 0, %s421
    %s423 = sphi 0, %s421
    %s424 = sphi 0, %s423
    %s438 = sphi 0, %s424
    %s444 = sphi 0, %s446
    %s447 = sphi 0, %s444
    %s448 = sphi 0, %s447
    %s464 = sphi 0, %s448
  $region4: #{loco_transformer_forward.1} parent=0 // loop_header_branch
    %28 = sbr.rel (%p26) target = $region8
  $region5: #{loco_transformer_forward.1} parent=0 // loop_body
    %s30 = ssub.s32 %s25, 1
    %s31 = ssub.s32 %s25, 2
    %s32 = sadd.s32 %s25, 1
    %s33 = ssub.s32 %s25, %s32
    %p34 = scmp.eq.s32.totalorder %s33, 0
    %s36 = sadd.s32 %s35, 1
    %s37 = scalar_select %p34, %s35, %s36
    %p40 = pneg %p34
    %p41 = scmp.eq.s32.totalorder %s25, 1
    %p42 = por %p40, %p41
    %p43 = scmp.ne.s32.totalorder %s35, %s38
    %p44 = scmp.eq.s32.totalorder %s25, 0
    %p45 = por %p43, %p44
    %p46 = scmp.ne.s32.totalorder %s35, %s38
    %p47 = scmp.eq.s32.totalorder %s30, 1
    %p48 = por %p46, %p47
    %p49 = scmp.ne.s32.totalorder %s38, %s39
    %p50 = scmp.eq.s32.totalorder %s30, 0
    %p51 = por %p49, %p50
    %p52 = scmp.ne.s32.totalorder %s38, %s39
    %p53 = scmp.eq.s32.totalorder %s31, 1
    %p54 = por %p52, %p53
    %p56 = scmp.ne.s32.totalorder %s39, %s55
    %p57 = scmp.eq.s32.totalorder %s31, 0
    %p58 = por %p56, %p57
    %s59 = ssub.s32 %s25, %s32
    %p60 = scmp.eq.s32.totalorder %s59, 0
    %s62 = sadd.s32 %s61, 1
    %s63 = scalar_select %p60, %s61, %s62
    %p66 = pneg %p60
    %p67 = scmp.eq.s32.totalorder %s25, 1
    %p68 = por %p66, %p67
    %p69 = scmp.ne.s32.totalorder %s61, %s64
    %p70 = scmp.eq.s32.totalorder %s25, 0
    %p71 = por %p69, %p70
    %p72 = scmp.ne.s32.totalorder %s61, %s64
    %p73 = scmp.eq.s32.totalorder %s30, 1
    %p74 = por %p72, %p73
    %p75 = scmp.ne.s32.totalorder %s64, %s65
    %p76 = scmp.eq.s32.totalorder %s30, 0
    %p77 = por %p75, %p76
    %p78 = scmp.ne.s32.totalorder %s64, %s65
    %p79 = scmp.eq.s32.totalorder %s31, 1
    %p80 = por %p78, %p79
    %p82 = scmp.ne.s32.totalorder %s65, %s81
    %p83 = scmp.eq.s32.totalorder %s31, 0
    %p84 = por %p82, %p83
    %s86 = sadd.s32 %s85, 1
    %p89 = scmp.eq.s32.totalorder %s25, 1
    %p90 = scmp.ne.s32.totalorder %s85, %s87
    %p91 = scmp.eq.s32.totalorder %s25, 0
    %p92 = por %p90, %p91
    %p93 = scmp.ne.s32.totalorder %s85, %s87
    %p94 = scmp.eq.s32.totalorder %s30, 1
    %p95 = por %p93, %p94
    %p96 = scmp.ne.s32.totalorder %s87, %s88
    %p97 = scmp.eq.s32.totalorder %s30, 0
    %p98 = por %p96, %p97
    %p99 = scmp.ne.s32.totalorder %s87, %s88
    %p100 = scmp.eq.s32.totalorder %s31, 1
    %p101 = por %p99, %p100
    %p103 = scmp.ne.s32.totalorder %s88, %s102
    %p104 = scmp.eq.s32.totalorder %s31, 0
    %p105 = por %p103, %p104
    %s107 = sadd.s32 %s106, 1
    %p110 = scmp.eq.s32.totalorder %s25, 1
    %p111 = scmp.ne.s32.totalorder %s106, %s108
    %p112 = scmp.eq.s32.totalorder %s25, 0
    %p113 = por %p111, %p112
    %p114 = scmp.ne.s32.totalorder %s106, %s108
    %p115 = scmp.eq.s32.totalorder %s30, 1
    %p116 = por %p114, %p115
    %p117 = scmp.ne.s32.totalorder %s108, %s109
    %p118 = scmp.eq.s32.totalorder %s30, 0
    %p119 = por %p117, %p118
    %p120 = scmp.ne.s32.totalorder %s108, %s109
    %p121 = scmp.eq.s32.totalorder %s31, 1
    %p122 = por %p120, %p121
    %p124 = scmp.ne.s32.totalorder %s109, %s123
    %p125 = scmp.eq.s32.totalorder %s31, 0
    %p126 = por %p124, %p125
    %s128 = sadd.s32 %s127, 1
    %p131 = scmp.eq.s32.totalorder %s25, 1
    %p132 = scmp.ne.s32.totalorder %s127, %s129
    %p133 = scmp.eq.s32.totalorder %s25, 0
    %p134 = por %p132, %p133
    %p135 = scmp.ne.s32.totalorder %s127, %s129
    %p136 = scmp.eq.s32.totalorder %s30, 1
    %p137 = por %p135, %p136
    %p138 = scmp.ne.s32.totalorder %s129, %s130
    %p139 = scmp.eq.s32.totalorder %s30, 0
    %p140 = por %p138, %p139
    %p141 = scmp.ne.s32.totalorder %s129, %s130
    %p142 = scmp.eq.s32.totalorder %s31, 1
    %p143 = por %p141, %p142
    %p145 = scmp.ne.s32.totalorder %s130, %s144
    %p146 = scmp.eq.s32.totalorder %s31, 0
    %p147 = por %p145, %p146
    %s149 = sadd.s32 %s148, 1
    %p152 = scmp.eq.s32.totalorder %s25, 1
    %p153 = scmp.ne.s32.totalorder %s148, %s150
    %p154 = scmp.eq.s32.totalorder %s25, 0
    %p155 = por %p153, %p154
    %p156 = scmp.ne.s32.totalorder %s148, %s150
    %p157 = scmp.eq.s32.totalorder %s30, 1
    %p158 = por %p156, %p157
    %p159 = scmp.ne.s32.totalorder %s150, %s151
    %p160 = scmp.eq.s32.totalorder %s30, 0
    %p161 = por %p159, %p160
    %p162 = scmp.ne.s32.totalorder %s150, %s151
    %p163 = scmp.eq.s32.totalorder %s31, 1
    %p164 = por %p162, %p163
    %p166 = scmp.ne.s32.totalorder %s151, %s165
    %p167 = scmp.eq.s32.totalorder %s31, 0
    %p168 = por %p166, %p167
    %s170 = sadd.s32 %s169, 1
    %p173 = scmp.eq.s32.totalorder %s25, 1
    %p174 = scmp.ne.s32.totalorder %s169, %s171
    %p175 = scmp.eq.s32.totalorder %s25, 0
    %p176 = por %p174, %p175
    %p177 = scmp.ne.s32.totalorder %s169, %s171
    %p178 = scmp.eq.s32.totalorder %s30, 1
    %p179 = por %p177, %p178
    %p180 = scmp.ne.s32.totalorder %s171, %s172
    %p181 = scmp.eq.s32.totalorder %s30, 0
    %p182 = por %p180, %p181
    %p183 = scmp.ne.s32.totalorder %s171, %s172
    %p184 = scmp.eq.s32.totalorder %s31, 1
    %p185 = por %p183, %p184
    %p187 = scmp.ne.s32.totalorder %s172, %s186
    %p188 = scmp.eq.s32.totalorder %s31, 0
    %p189 = por %p187, %p188
    %s191 = sadd.s32 %s190, 1
    %p194 = scmp.eq.s32.totalorder %s25, 1
    %p195 = scmp.ne.s32.totalorder %s190, %s192
    %p196 = scmp.eq.s32.totalorder %s25, 0
    %p197 = por %p195, %p196
    %p198 = scmp.ne.s32.totalorder %s190, %s192
    %p199 = scmp.eq.s32.totalorder %s30, 1
    %p200 = por %p198, %p199
    %p201 = scmp.ne.s32.totalorder %s192, %s193
    %p202 = scmp.eq.s32.totalorder %s30, 0
    %p203 = por %p201, %p202
    %p204 = scmp.ne.s32.totalorder %s192, %s193
    %p205 = scmp.eq.s32.totalorder %s31, 1
    %p206 = por %p204, %p205
    %p208 = scmp.ne.s32.totalorder %s193, %s207
    %p209 = scmp.eq.s32.totalorder %s31, 0
    %p210 = por %p208, %p209
    %s212 = sadd.s32 %s211, 1
    %p215 = scmp.eq.s32.totalorder %s25, 1
    %p216 = scmp.ne.s32.totalorder %s211, %s213
    %p217 = scmp.eq.s32.totalorder %s25, 0
    %p218 = por %p216, %p217
    %p219 = scmp.ne.s32.totalorder %s211, %s213
    %p220 = scmp.eq.s32.totalorder %s30, 1
    %p221 = por %p219, %p220
    %p222 = scmp.ne.s32.totalorder %s213, %s214
    %p223 = scmp.eq.s32.totalorder %s30, 0
    %p224 = por %p222, %p223
    %p225 = scmp.ne.s32.totalorder %s213, %s214
    %p226 = scmp.eq.s32.totalorder %s31, 1
    %p227 = por %p225, %p226
    %p229 = scmp.ne.s32.totalorder %s214, %s228
    %p230 = scmp.eq.s32.totalorder %s31, 0
    %p231 = por %p229, %p230
    %s233 = sadd.s32 %s232, 1
    %p236 = scmp.eq.s32.totalorder %s25, 1
    %p237 = scmp.ne.s32.totalorder %s232, %s234
    %p238 = scmp.eq.s32.totalorder %s25, 0
    %p239 = por %p237, %p238
    %p240 = scmp.ne.s32.totalorder %s232, %s234
    %p241 = scmp.eq.s32.totalorder %s30, 1
    %p242 = por %p240, %p241
    %p243 = scmp.ne.s32.totalorder %s234, %s235
    %p244 = scmp.eq.s32.totalorder %s30, 0
    %p245 = por %p243, %p244
    %p246 = scmp.ne.s32.totalorder %s234, %s235
    %p247 = scmp.eq.s32.totalorder %s31, 1
    %p248 = por %p246, %p247
    %p250 = scmp.ne.s32.totalorder %s235, %s249
    %p251 = scmp.eq.s32.totalorder %s31, 0
    %p252 = por %p250, %p251
    %s254 = sadd.s32 %s253, 1
    %p257 = scmp.eq.s32.totalorder %s25, 1
    %p258 = scmp.ne.s32.totalorder %s253, %s255
    %p259 = scmp.eq.s32.totalorder %s25, 0
    %p260 = por %p258, %p259
    %p261 = scmp.ne.s32.totalorder %s253, %s255
    %p262 = scmp.eq.s32.totalorder %s30, 1
    %p263 = por %p261, %p262
    %p264 = scmp.ne.s32.totalorder %s255, %s256
    %p265 = scmp.eq.s32.totalorder %s30, 0
    %p266 = por %p264, %p265
    %p267 = scmp.ne.s32.totalorder %s255, %s256
    %p268 = scmp.eq.s32.totalorder %s31, 1
    %p269 = por %p267, %p268
    %p271 = scmp.ne.s32.totalorder %s256, %s270
    %p272 = scmp.eq.s32.totalorder %s31, 0
    %p273 = por %p271, %p272
    %s275 = sadd.s32 %s274, 1
    %p278 = scmp.eq.s32.totalorder %s25, 1
    %p279 = scmp.ne.s32.totalorder %s274, %s276
    %p280 = scmp.eq.s32.totalorder %s25, 0
    %p281 = por %p279, %p280
    %p282 = scmp.ne.s32.totalorder %s274, %s276
    %p283 = scmp.eq.s32.totalorder %s30, 1
    %p284 = por %p282, %p283
    %p285 = scmp.ne.s32.totalorder %s276, %s277
    %p286 = scmp.eq.s32.totalorder %s30, 0
    %p287 = por %p285, %p286
    %p288 = scmp.ne.s32.totalorder %s276, %s277
    %p289 = scmp.eq.s32.totalorder %s31, 1
    %p290 = por %p288, %p289
    %p292 = scmp.ne.s32.totalorder %s277, %s291
    %p293 = scmp.eq.s32.totalorder %s31, 0
    %p294 = por %p292, %p293
    %s296 = sadd.s32 %s295, 1
    %p299 = scmp.eq.s32.totalorder %s25, 1
    %p300 = scmp.ne.s32.totalorder %s295, %s297
    %p301 = scmp.eq.s32.totalorder %s25, 0
    %p302 = por %p300, %p301
    %p303 = scmp.ne.s32.totalorder %s295, %s297
    %p304 = scmp.eq.s32.totalorder %s30, 1
    %p305 = por %p303, %p304
    %p306 = scmp.ne.s32.totalorder %s297, %s298
    %p307 = scmp.eq.s32.totalorder %s30, 0
    %p308 = por %p306, %p307
    %p309 = scmp.ne.s32.totalorder %s297, %s298
    %p310 = scmp.eq.s32.totalorder %s31, 1
    %p311 = por %p309, %p310
    %p313 = scmp.ne.s32.totalorder %s298, %s312
    %p314 = scmp.eq.s32.totalorder %s31, 0
    %p315 = por %p313, %p314
    %s317 = sadd.s32 %s316, 1
    %p320 = scmp.eq.s32.totalorder %s25, 1
    %p321 = scmp.ne.s32.totalorder %s316, %s318
    %p322 = scmp.eq.s32.totalorder %s25, 0
    %p323 = por %p321, %p322
    %p324 = scmp.ne.s32.totalorder %s316, %s318
    %p325 = scmp.eq.s32.totalorder %s30, 1
    %p326 = por %p324, %p325
    %p327 = scmp.ne.s32.totalorder %s318, %s319
    %p328 = scmp.eq.s32.totalorder %s30, 0
    %p329 = por %p327, %p328
    %p330 = scmp.ne.s32.totalorder %s318, %s319
    %p331 = scmp.eq.s32.totalorder %s31, 1
    %p332 = por %p330, %p331
    %p334 = scmp.ne.s32.totalorder %s319, %s333
    %p335 = scmp.eq.s32.totalorder %s31, 0
    %p336 = por %p334, %p335
    %s338 = sadd.s32 %s337, 1
    %p341 = scmp.eq.s32.totalorder %s25, 1
    %p342 = scmp.ne.s32.totalorder %s337, %s339
    %p343 = scmp.eq.s32.totalorder %s25, 0
    %p344 = por %p342, %p343
    %p345 = scmp.ne.s32.totalorder %s337, %s339
    %p346 = scmp.eq.s32.totalorder %s30, 1
    %p347 = por %p345, %p346
    %p348 = scmp.ne.s32.totalorder %s339, %s340
    %p349 = scmp.eq.s32.totalorder %s30, 0
    %p350 = por %p348, %p349
    %p351 = scmp.ne.s32.totalorder %s339, %s340
    %p352 = scmp.eq.s32.totalorder %s31, 1
    %p353 = por %p351, %p352
    %p355 = scmp.ne.s32.totalorder %s340, %s354
    %p356 = scmp.eq.s32.totalorder %s31, 0
    %p357 = por %p355, %p356
    %s359 = sadd.s32 %s358, 1
    %p362 = scmp.eq.s32.totalorder %s25, 1
    %p363 = scmp.ne.s32.totalorder %s358, %s360
    %p364 = scmp.eq.s32.totalorder %s25, 0
    %p365 = por %p363, %p364
    %p366 = scmp.ne.s32.totalorder %s358, %s360
    %p367 = scmp.eq.s32.totalorder %s30, 1
    %p368 = por %p366, %p367
    %p369 = scmp.ne.s32.totalorder %s360, %s361
    %p370 = scmp.eq.s32.totalorder %s30, 0
    %p371 = por %p369, %p370
    %p372 = scmp.ne.s32.totalorder %s360, %s361
    %p373 = scmp.eq.s32.totalorder %s31, 1
    %p374 = por %p372, %p373
    %p376 = scmp.ne.s32.totalorder %s361, %s375
    %p377 = scmp.eq.s32.totalorder %s31, 0
    %p378 = por %p376, %p377
    %s380 = sadd.s32 %s379, 1
    %p383 = scmp.eq.s32.totalorder %s25, 1
    %p384 = scmp.ne.s32.totalorder %s379, %s381
    %p385 = scmp.eq.s32.totalorder %s25, 0
    %p386 = por %p384, %p385
    %p387 = scmp.ne.s32.totalorder %s379, %s381
    %p388 = scmp.eq.s32.totalorder %s30, 1
    %p389 = por %p387, %p388
    %p390 = scmp.ne.s32.totalorder %s381, %s382
    %p391 = scmp.eq.s32.totalorder %s30, 0
    %p392 = por %p390, %p391
    %p393 = scmp.ne.s32.totalorder %s381, %s382
    %p394 = scmp.eq.s32.totalorder %s31, 1
    %p395 = por %p393, %p394
    %p397 = scmp.ne.s32.totalorder %s382, %s396
    %p398 = scmp.eq.s32.totalorder %s31, 0
    %p399 = por %p397, %p398
    %s401 = sadd.s32 %s400, 1
    %p404 = scmp.eq.s32.totalorder %s25, 1
    %p405 = scmp.ne.s32.totalorder %s400, %s402
    %p406 = scmp.eq.s32.totalorder %s25, 0
    %p407 = por %p405, %p406
    %p408 = scmp.ne.s32.totalorder %s400, %s402
    %p409 = scmp.eq.s32.totalorder %s30, 1
    %p410 = por %p408, %p409
    %p411 = scmp.ne.s32.totalorder %s402, %s403
    %p412 = scmp.eq.s32.totalorder %s30, 0
    %p413 = por %p411, %p412
    %p414 = scmp.ne.s32.totalorder %s402, %s403
    %p415 = scmp.eq.s32.totalorder %s31, 1
    %p416 = por %p414, %p415
    %p418 = scmp.ne.s32.totalorder %s403, %s417
    %p419 = scmp.eq.s32.totalorder %s31, 0
    %p420 = por %p418, %p419
    %s422 = sadd.s32 %s421, 1
    %p425 = scmp.eq.s32.totalorder %s25, 1
    %p426 = scmp.ne.s32.totalorder %s421, %s423
    %p427 = scmp.eq.s32.totalorder %s25, 0
    %p428 = por %p426, %p427
    %p429 = scmp.ne.s32.totalorder %s421, %s423
    %p430 = scmp.eq.s32.totalorder %s30, 1
    %p431 = por %p429, %p430
    %p432 = scmp.ne.s32.totalorder %s423, %s424
    %p433 = scmp.eq.s32.totalorder %s30, 0
    %p434 = por %p432, %p433
    %p435 = scmp.ne.s32.totalorder %s423, %s424
    %p436 = scmp.eq.s32.totalorder %s31, 1
    %p437 = por %p435, %p436
    %p439 = scmp.ne.s32.totalorder %s424, %s438
    %p440 = scmp.eq.s32.totalorder %s31, 0
    %p441 = por %p439, %p440
    %s442 = ssub.s32 %s25, %s32
    %p443 = scmp.eq.s32.totalorder %s442, 0
    %s445 = sadd.s32 %s444, 1
    %s446 = scalar_select %p443, %s444, %s445
    %p449 = pneg %p443
    %p450 = scmp.eq.s32.totalorder %s25, 1
    %p451 = por %p449, %p450
    %p452 = scmp.ne.s32.totalorder %s444, %s447
    %p453 = scmp.eq.s32.totalorder %s25, 0
    %p454 = por %p452, %p453
    %p455 = scmp.ne.s32.totalorder %s444, %s447
    %p456 = scmp.eq.s32.totalorder %s30, 1
    %p457 = por %p455, %p456
    %p458 = scmp.ne.s32.totalorder %s447, %s448
    %p459 = scmp.eq.s32.totalorder %s30, 0
    %p460 = por %p458, %p459
    %p461 = scmp.ne.s32.totalorder %s447, %s448
    %p462 = scmp.eq.s32.totalorder %s31, 1
    %p463 = por %p461, %p462
    %p465 = scmp.ne.s32.totalorder %s448, %s464
    %p466 = scmp.eq.s32.totalorder %s31, 0
    %p467 = por %p465, %p466
    %p468 = scmp.le.s32.totalorder 1, %s25
    %p469 = scmp.lt.s32.totalorder %s25, 3
    %p470 = pnand %p468, %p469
    %p471 = pneg %p470
    // Predicated region
    $region9: #{loco_transformer_forward.1} parent=5 // pred_check
      _
    $region10: #{loco_transformer_forward.1} parent=5 // pred_check_branch
      %473 = sbr.rel (%p470) target = $region12
    $region11: #{loco_transformer_forward.1} parent=5 // pred_region
      %s474 = ssub.s32 %s25, 1
      // Predicated region
      $region13: #{loco_transformer_forward.1} parent=11 // pred_check
        %p475 = pneg %p98
      $region14: #{loco_transformer_forward.1} parent=11 // pred_check_branch
        %477 = sbr.rel (%p475) target = $region16
      $region15: #{loco_transformer_forward.1} parent=11 // pred_region
        _
      $region16: #{loco_transformer_forward.1} parent=11 // pred_fallthru
        _
      // Predicated region
      $region17: #{loco_transformer_forward.1} parent=11 // pred_check
        %p478 = pneg %p119
      $region18: #{loco_transformer_forward.1} parent=11 // pred_check_branch
        %480 = sbr.rel (%p478) target = $region20
      $region19: #{loco_transformer_forward.1} parent=11 // pred_region
        _
      $region20: #{loco_transformer_forward.1} parent=11 // pred_fallthru
        _
      // Predicated region
      $region21: #{loco_transformer_forward.1} parent=11 // pred_check
        %p481 = pneg %p140
      $region22: #{loco_transformer_forward.1} parent=11 // pred_check_branch
        %483 = sbr.rel (%p481) target = $region24
      $region23: #{loco_transformer_forward.1} parent=11 // pred_region
        _
      $region24: #{loco_transformer_forward.1} parent=11 // pred_fallthru
        _
      // Predicated region
      $region25: #{loco_transformer_forward.1} parent=11 // pred_check
        %p484 = pneg %p161
      $region26: #{loco_transformer_forward.1} parent=11 // pred_check_branch
        %486 = sbr.rel (%p484) target = $region28
      $region27: #{loco_transformer_forward.1} parent=11 // pred_region
        _
      $region28: #{loco_transformer_forward.1} parent=11 // pred_fallthru
        _
      // Predicated region
      $region29: #{loco_transformer_forward.1} parent=11 // pred_check
        %p487 = pneg %p182
      $region30: #{loco_transformer_forward.1} parent=11 // pred_check_branch
        %489 = sbr.rel (%p487) target = $region32
      $region31: #{loco_transformer_forward.1} parent=11 // pred_region
        _
      $region32: #{loco_transformer_forward.1} parent=11 // pred_fallthru
        _
      // Predicated region
      $region33: #{loco_transformer_forward.1} parent=11 // pred_check
        %p490 = pneg %p203
      $region34: #{loco_transformer_forward.1} parent=11 // pred_check_branch
        %492 = sbr.rel (%p490) target = $region36
      $region35: #{loco_transformer_forward.1} parent=11 // pred_region
        _
      $region36: #{loco_transformer_forward.1} parent=11 // pred_fallthru
        _
      // Predicated region
      $region37: #{loco_transformer_forward.1} parent=11 // pred_check
        %p493 = pneg %p224
      $region38: #{loco_transformer_forward.1} parent=11 // pred_check_branch
        %495 = sbr.rel (%p493) target = $region40
      $region39: #{loco_transformer_forward.1} parent=11 // pred_region
        _
      $region40: #{loco_transformer_forward.1} parent=11 // pred_fallthru
        _
      // Predicated region
      $region41: #{loco_transformer_forward.1} parent=11 // pred_check
        %p496 = pneg %p245
      $region42: #{loco_transformer_forward.1} parent=11 // pred_check_branch
        %498 = sbr.rel (%p496) target = $region44
      $region43: #{loco_transformer_forward.1} parent=11 // pred_region
        _
      $region44: #{loco_transformer_forward.1} parent=11 // pred_fallthru
        _
      // Predicated region
      $region45: #{loco_transformer_forward.1} parent=11 // pred_check
        %p499 = pneg %p266
      $region46: #{loco_transformer_forward.1} parent=11 // pred_check_branch
        %501 = sbr.rel (%p499) target = $region48
      $region47: #{loco_transformer_forward.1} parent=11 // pred_region
        _
      $region48: #{loco_transformer_forward.1} parent=11 // pred_fallthru
        _
      // Predicated region
      $region49: #{loco_transformer_forward.1} parent=11 // pred_check
        %p502 = pneg %p287
      $region50: #{loco_transformer_forward.1} parent=11 // pred_check_branch
        %504 = sbr.rel (%p502) target = $region52
      $region51: #{loco_transformer_forward.1} parent=11 // pred_region
        _
      $region52: #{loco_transformer_forward.1} parent=11 // pred_fallthru
        _
      // Predicated region
      $region53: #{loco_transformer_forward.1} parent=11 // pred_check
        %p505 = pneg %p308
      $region54: #{loco_transformer_forward.1} parent=11 // pred_check_branch
        %507 = sbr.rel (%p505) target = $region56
      $region55: #{loco_transformer_forward.1} parent=11 // pred_region
        _
      $region56: #{loco_transformer_forward.1} parent=11 // pred_fallthru
        _
      // Predicated region
      $region57: #{loco_transformer_forward.1} parent=11 // pred_check
        %p508 = pneg %p329
      $region58: #{loco_transformer_forward.1} parent=11 // pred_check_branch
        %510 = sbr.rel (%p508) target = $region60
      $region59: #{loco_transformer_forward.1} parent=11 // pred_region
        _
      $region60: #{loco_transformer_forward.1} parent=11 // pred_fallthru
        _
      // Predicated region
      $region61: #{loco_transformer_forward.1} parent=11 // pred_check
        %p511 = pneg %p350
      $region62: #{loco_transformer_forward.1} parent=11 // pred_check_branch
        %513 = sbr.rel (%p511) target = $region64
      $region63: #{loco_transformer_forward.1} parent=11 // pred_region
        _
      $region64: #{loco_transformer_forward.1} parent=11 // pred_fallthru
        _
      // Predicated region
      $region65: #{loco_transformer_forward.1} parent=11 // pred_check
        %p514 = pneg %p371
      $region66: #{loco_transformer_forward.1} parent=11 // pred_check_branch
        %516 = sbr.rel (%p514) target = $region68
      $region67: #{loco_transformer_forward.1} parent=11 // pred_region
        _
      $region68: #{loco_transformer_forward.1} parent=11 // pred_fallthru
        _
      // Predicated region
      $region69: #{loco_transformer_forward.1} parent=11 // pred_check
        %p517 = pneg %p392
      $region70: #{loco_transformer_forward.1} parent=11 // pred_check_branch
        %519 = sbr.rel (%p517) target = $region72
      $region71: #{loco_transformer_forward.1} parent=11 // pred_region
        _
      $region72: #{loco_transformer_forward.1} parent=11 // pred_fallthru
        _
      // Predicated region
      $region73: #{loco_transformer_forward.1} parent=11 // pred_check
        %p520 = pneg %p413
      $region74: #{loco_transformer_forward.1} parent=11 // pred_check_branch
        %522 = sbr.rel (%p520) target = $region76
      $region75: #{loco_transformer_forward.1} parent=11 // pred_region
        _
      $region76: #{loco_transformer_forward.1} parent=11 // pred_fallthru
        _
      // Predicated region
      $region77: #{loco_transformer_forward.1} parent=11 // pred_check
        %p523 = pneg %p434
      $region78: #{loco_transformer_forward.1} parent=11 // pred_check_branch
        %525 = sbr.rel (%p523) target = $region80
      $region79: #{loco_transformer_forward.1} parent=11 // pred_region
        _
      $region80: #{loco_transformer_forward.1} parent=11 // pred_fallthru
        _
    $region12: #{loco_transformer_forward.1} parent=5 // pred_fallthru
      _
    %p526 = scmp.lt.s32.totalorder %s25, 2
    // Predicated region
    $region81: #{loco_transformer_forward.1} parent=5 // pred_check
      %p527 = pneg %p526
    $region82: #{loco_transformer_forward.1} parent=5 // pred_check_branch
      %529 = sbr.rel (%p527) target = $region84
    $region83: #{loco_transformer_forward.1} parent=5 // pred_region
      // Predicated region
      $region85: #{loco_transformer_forward.1} parent=83 // pred_check
        %p530 = pneg %p45
      $region86: #{loco_transformer_forward.1} parent=83 // pred_check_branch
        %532 = sbr.rel (%p530) target = $region88
      $region87: #{loco_transformer_forward.1} parent=83 // pred_region
        %p533 = scmp.lt.s32.totalorder %s25, 1
        %s534 = scalar_select %p533, %s25, 1
        %s535 = smul.addr %s534, 29
        %s536 = smul.addr %s535, 8
        %s537 = scalar_lea.vmem %s0, %s536
      $region88: #{loco_transformer_forward.1} parent=83 // pred_fallthru
        _
      // Predicated region
      $region89: #{loco_transformer_forward.1} parent=83 // pred_check
        %p538 = pneg %p71
      $region90: #{loco_transformer_forward.1} parent=83 // pred_check_branch
        %540 = sbr.rel (%p538) target = $region92
      $region91: #{loco_transformer_forward.1} parent=83 // pred_region
        %p541 = scmp.lt.s32.totalorder %s25, 1
        %s542 = scalar_select %p541, %s25, 1
        %s543 = scalar_lea.vmem %s1, %s542
      $region92: #{loco_transformer_forward.1} parent=83 // pred_fallthru
        _
    $region84: #{loco_transformer_forward.1} parent=5 // pred_fallthru
      _
    %p544 = scmp.le.s32.totalorder 1, %s25
    %p545 = scmp.lt.s32.totalorder %s25, 3
    %p546 = pnand %p544, %p545
    %p547 = pneg %p546
    // Predicated region
    $region93: #{loco_transformer_forward.1} parent=5 // pred_check
      _
    $region94: #{loco_transformer_forward.1} parent=5 // pred_check_branch
      %549 = sbr.rel (%p546) target = $region96
    $region95: #{loco_transformer_forward.1} parent=5 // pred_region
      %s550 = ssub.s32 %s25, 1
      %p551 = scmp.lt.s32.totalorder %s30, 1
      %s552 = scalar_select %p551, %s30, 1
      %s553 = smul.addr %s552, 29
      %s554 = smul.addr %s553, 8
      %s555 = scalar_lea.vmem %s0, %s554
      %p556 = pneg %p51
      %p557 = pneg %p48
      %p558 = scmp.lt.s32.totalorder %s30, 1
      %s559 = scalar_select %p558, %s30, 1
      %s560 = scalar_lea.vmem %s1, %s559
      %p561 = pneg %p77
      %p562 = pneg %p74
      %p563 = pneg %p98
      %p564 = pneg %p95
      %p565 = pneg %p119
      %p566 = pneg %p116
      %p567 = pneg %p140
      %p568 = pneg %p137
      %p569 = pneg %p161
      %p570 = pneg %p158
      %p571 = pneg %p182
      %p572 = pneg %p179
      %p573 = pneg %p203
      %p574 = pneg %p200
      %p575 = pneg %p224
      %p576 = pneg %p221
      %p577 = pneg %p245
      %p578 = pneg %p242
      %p579 = pneg %p266
      %p580 = pneg %p263
      %p581 = pneg %p287
      %p582 = pneg %p284
      %p583 = pneg %p308
      %p584 = pneg %p305
      %p585 = pneg %p329
      %p586 = pneg %p326
      %p587 = pneg %p350
      %p588 = pneg %p347
      %p589 = pneg %p371
      %p590 = pneg %p368
      %p591 = pneg %p392
      %p592 = pneg %p389
      %p593 = pneg %p413
      %p594 = pneg %p410
      %p595 = pneg %p434
      %p596 = pneg %p431
      %p597 = pneg %p460
      %p598 = pneg %p457
      %p599 = scmp.lt.s32.totalorder %s30, 1
      %s600 = scalar_select %p599, %s30, 1
      %s601 = smul.addr %s600, 3
      %s602 = smul.addr %s601, 8
      %s603 = scalar_lea.vmem %s19, %s602
      %p604 = scmp.lt.s32.totalorder %s30, 1
      %s605 = scalar_select %p604, %s30, 1
      %s606 = smul.addr %s605, 29
      %s607 = smul.addr %s606, 8
      %s608 = scalar_lea.vmem %s0, %s607
      %p609 = scmp.lt.s32.totalorder %s30, 1
      %s610 = scalar_select %p609, %s30, 1
      %s611 = scalar_lea.vmem %s1, %s610
      %p612 = scmp.lt.s32.totalorder %s30, 1
      %s613 = scalar_select %p612, %s30, 1
      %s614 = smul.addr %s613, 3
      %s615 = smul.addr %s614, 8
      %s616 = scalar_lea.vmem %s19, %s615
      %v617 = vld [vmem:[%s608] sm:$0xff]
      %v618 = vld [vmem:[%s608 + $0x8] sm:$0xff]
      %v619 = vld [vmem:[%s608 + $0x10] sm:$0xff]
      %v620 = vld [vmem:[%s608 + $0x18] sm:$0xff]
      %v621 = vld [vmem:[%s608 + $0x20] sm:$0xff]
      %v622 = vld [vmem:[%s608 + $0x28] sm:$0xff]
      %v623 = vld [vmem:[%s608 + $0x30] sm:$0xff]
      %v624 = vld [vmem:[%s608 + $0x38] sm:$0xff]
      %v625 = vld [vmem:[%s608 + $0x40] sm:$0xff]
      %v626 = vld [vmem:[%s608 + $0x48] sm:$0xff]
      %v627 = vld [vmem:[%s608 + $0x50] sm:$0xff]
      %v628 = vld [vmem:[%s608 + $0x58] sm:$0xff]
      %v629 = vld [vmem:[%s608 + $0x60] sm:$0xff]
      %v630 = vld [vmem:[%s608 + $0x68] sm:$0xff]
      %v631 = vld [vmem:[%s608 + $0x70] sm:$0xff]
      %v632 = vld [vmem:[%s608 + $0x78] sm:$0xff]
      %v633 = vld [vmem:[%s608 + $0x80] sm:$0xff]
      %v634 = vld [vmem:[%s608 + $0x88] sm:$0xff]
      %v635 = vld [vmem:[%s608 + $0x90] sm:$0xff]
      %v636 = vld [vmem:[%s608 + $0x98] sm:$0xff]
      %v637 = vld [vmem:[%s608 + $0xa0] sm:$0xff]
      %v638 = vld [vmem:[%s608 + $0xa8] sm:$0xff]
      %v639 = vld [vmem:[%s608 + $0xb0] sm:$0xff]
      %v640 = vld [vmem:[%s608 + $0xb8] sm:$0xff]
      %v641 = vld [vmem:[%s608 + $0xc0] sm:$0xff]
      %v642 = vld [vmem:[%s608 + $0xc8] sm:$0xff]
      %v643 = vld [vmem:[%s608 + $0xd0] sm:$0xff]
      %v644 = vld [vmem:[%s608 + $0xd8] sm:$0xff]
      %v645 = vld [vmem:[%s608 + $0xe0] sm:$0x1]
      %v646 = vld [vmem:[%s2] sm:$0xff]
      %v647 = vld [vmem:[%s2 + $0x8] sm:$0xff]
      %v648 = vld [vmem:[%s2 + $0x10] sm:$0xff]
      %v649 = vld [vmem:[%s2 + $0x18] sm:$0xff]
      %v650 = vld [vmem:[%s2 + $0x20] sm:$0xff]
      %v651 = vld [vmem:[%s2 + $0x28] sm:$0xff]
      %v652 = vld [vmem:[%s2 + $0x30] sm:$0xff]
      %v653 = vld [vmem:[%s2 + $0x38] sm:$0xff]
      %v654 = vld [vmem:[%s2 + $0x40] sm:$0xff]
      %v655 = vld [vmem:[%s2 + $0x48] sm:$0xff]
      %v656 = vld [vmem:[%s2 + $0x50] sm:$0xff]
      %v657 = vld [vmem:[%s2 + $0x58] sm:$0xff]
      %v658 = vld [vmem:[%s2 + $0x60] sm:$0xff]
      %v659 = vld [vmem:[%s2 + $0x68] sm:$0xff]
      %v660 = vld [vmem:[%s2 + $0x70] sm:$0xff]
      %v661 = vld [vmem:[%s2 + $0x78] sm:$0xff]
      %v662 = vld [vmem:[%s3] sm:$0x1]
      %v664 = vlaneseq
      %v665 = vshrl.u32 %v664, 7
      %v666 = vsub.s32 0, %v665
      %v667 = vrot.slane %v662, %v666
      %669 = vmatprep.subr.mxu0 0.0
      %670 = vmatpush1.msra.mxu0 %v646
      %671 = vmatprep.subr.mxu0 0.0
      %672 = vmatpush1.msra.mxu0 %v647
      %673 = vmatprep.subr.mxu0 0.0
      %674 = vmatpush1.msra.mxu0 %v648
      %675 = vmatprep.subr.mxu0 0.0
      %676 = vmatpush1.msra.mxu0 %v649
      %677 = vmatprep.subr.mxu0 0.0
      %678 = vmatpush1.msra.mxu0 %v650
      %679 = vmatprep.subr.mxu0 0.0
      %680 = vmatpush1.msra.mxu0 %v651
      %681 = vmatprep.subr.mxu0 0.0
      %682 = vmatpush1.msra.mxu0 %v652
      %683 = vmatprep.subr.mxu0 0.0
      %684 = vmatpush1.msra.mxu0 %v653
      %685 = vmatprep.subr.mxu0 0.0
      %686 = vmatpush1.msra.mxu0 %v654
      %687 = vmatprep.subr.mxu0 0.0
      %688 = vmatpush1.msra.mxu0 %v655
      %689 = vmatprep.subr.mxu0 0.0
      %690 = vmatpush1.msra.mxu0 %v656
      %691 = vmatprep.subr.mxu0 0.0
      %692 = vmatpush1.msra.mxu0 %v657
      %693 = vmatprep.subr.mxu0 0.0
      %694 = vmatpush1.msra.mxu0 %v658
      %695 = vmatprep.subr.mxu0 0.0
      %696 = vmatpush1.msra.mxu0 %v659
      %697 = vmatprep.subr.mxu0 0.0
      %698 = vmatpush1.msra.mxu0 %v660
      %699 = vmatprep.subr.mxu0 0.0
      %700 = vmatpush1.msra.mxu0 %v661
      %701 = vmatprep.subr.mxu0 0.0
      %702 = vmatpush1.msra.mxu0 0.0
      %703 = vmatprep.subr.mxu0 0.0
      %704 = vmatpush1.msra.mxu0 0.0
      %705 = vmatprep.subr.mxu0 0.0
      %706 = vmatpush1.msra.mxu0 0.0
      %707 = vmatprep.subr.mxu0 0.0
      %708 = vmatpush1.msra.mxu0 0.0
      %709 = vmatprep.subr.mxu0 0.0
      %710 = vmatpush1.msra.mxu0 0.0
      %711 = vmatprep.subr.mxu0 0.0
      %712 = vmatpush1.msra.mxu0 0.0
      %713 = vmatprep.subr.mxu0 0.0
      %714 = vmatpush1.msra.mxu0 0.0
      %715 = vmatprep.subr.mxu0 0.0
      %716 = vmatpush1.msra.mxu0 0.0
      %717 = vmatprep.subr.mxu0 0.0
      %718 = vmatpush1.msra.mxu0 0.0
      %719 = vmatprep.subr.mxu0 0.0
      %720 = vmatpush1.msra.mxu0 0.0
      %721 = vmatprep.subr.mxu0 0.0
      %722 = vmatpush1.msra.mxu0 0.0
      %723 = vmatprep.subr.mxu0 0.0
      %724 = vmatpush1.msra.mxu0 0.0
      %725 = vmatprep.subr.mxu0 0.0
      %726 = vmatpush1.msra.mxu0 0.0
      %727 = vmatprep.subr.mxu0 0.0
      %728 = vmatpush1.msra.mxu0 0.0
      %729 = vmatprep.subr.mxu0 0.0
      %730 = vmatpush1.msra.mxu0 0.0
      %731 = vmatprep.subr.mxu0 0.0
      %732 = vmatpush1.msra.mxu0 0.0
      %733 = vmatprep.mubr.f32.mxu0 0.0
      %734 = vmatmul.mubr.f32.gmra.mrb[0].mxu0 %v617
      %v735 = vpop.f32.mrb[0].mxu0
      %v736 = vadd.f32 %v667, %v735
      %v737 = vpop.f32.mrb[0].mxu0
      %738 = vmatprep.mubr.f32.mxu0 0.0
      %739 = vmatmul.mubr.f32.gmra.mrb[0].mxu0 %v618
      %v740 = vpop.f32.mrb[0].mxu0
      %v741 = vadd.f32 %v667, %v740
      %v742 = vpop.f32.mrb[0].mxu0
      %743 = vmatprep.mubr.f32.mxu0 0.0
      %744 = vmatmul.mubr.f32.gmra.mrb[0].mxu0 %v619
      %v745 = vpop.f32.mrb[0].mxu0
      %v746 = vadd.f32 %v667, %v745
      %v747 = vpop.f32.mrb[0].mxu0
      %748 = vmatprep.mubr.f32.mxu0 0.0
      %749 = vmatmul.mubr.f32.gmra.mrb[0].mxu0 %v620
      %v750 = vpop.f32.mrb[0].mxu0
      %v751 = vadd.f32 %v667, %v750
      %v752 = vpop.f32.mrb[0].mxu0
      %753 = vmatprep.mubr.f32.mxu0 0.0
      %754 = vmatmul.mubr.f32.gmra.mrb[0].mxu0 %v621
      %v755 = vpop.f32.mrb[0].mxu0
      %v756 = vadd.f32 %v667, %v755
      %v757 = vpop.f32.mrb[0].mxu0
      %758 = vmatprep.mubr.f32.mxu0 0.0
      %759 = vmatmul.mubr.f32.gmra.mrb[0].mxu0 %v622
      %v760 = vpop.f32.mrb[0].mxu0
      %v761 = vadd.f32 %v667, %v760
      %v762 = vpop.f32.mrb[0].mxu0
      %763 = vmatprep.mubr.f32.mxu0 0.0
      %764 = vmatmul.mubr.f32.gmra.mrb[0].mxu0 %v623
      %v765 = vpop.f32.mrb[0].mxu0
      %v766 = vadd.f32 %v667, %v765
      %v767 = vpop.f32.mrb[0].mxu0
      %768 = vmatprep.mubr.f32.mxu0 0.0
      %769 = vmatmul.mubr.f32.gmra.mrb[0].mxu0 %v624
      %v770 = vpop.f32.mrb[0].mxu0
      %v771 = vadd.f32 %v667, %v770
      %v772 = vpop.f32.mrb[0].mxu0
      %773 = vmatprep.mubr.f32.mxu0 0.0
      %774 = vmatmul.mubr.f32.gmra.mrb[0].mxu0 %v625
      %v775 = vpop.f32.mrb[0].mxu0
      %v776 = vadd.f32 %v667, %v775
      %v777 = vpop.f32.mrb[0].mxu0
      %778 = vmatprep.mubr.f32.mxu0 0.0
      %779 = vmatmul.mubr.f32.gmra.mrb[0].mxu0 %v626
      %v780 = vpop.f32.mrb[0].mxu0
      %v781 = vadd.f32 %v667, %v780
      %v782 = vpop.f32.mrb[0].mxu0
      %783 = vmatprep.mubr.f32.mxu0 0.0
      %784 = vmatmul.mubr.f32.gmra.mrb[0].mxu0 %v627
      %v785 = vpop.f32.mrb[0].mxu0
      %v786 = vadd.f32 %v667, %v785
      %v787 = vpop.f32.mrb[0].mxu0
      %788 = vmatprep.mubr.f32.mxu0 0.0
      %789 = vmatmul.mubr.f32.gmra.mrb[0].mxu0 %v628
      %v790 = vpop.f32.mrb[0].mxu0
      %v791 = vadd.f32 %v667, %v790
      %v792 = vpop.f32.mrb[0].mxu0
      %793 = vmatprep.mubr.f32.mxu0 0.0
      %794 = vmatmul.mubr.f32.gmra.mrb[0].mxu0 %v629
      %v795 = vpop.f32.mrb[0].mxu0
      %v796 = vadd.f32 %v667, %v795
      %v797 = vpop.f32.mrb[0].mxu0
      %798 = vmatprep.mubr.f32.mxu0 0.0
      %799 = vmatmul.mubr.f32.gmra.mrb[0].mxu0 %v630
      %v800 = vpop.f32.mrb[0].mxu0
      %v801 = vadd.f32 %v667, %v800
      %v802 = vpop.f32.mrb[0].mxu0
      %803 = vmatprep.mubr.f32.mxu0 0.0
      %804 = vmatmul.mubr.f32.gmra.mrb[0].mxu0 %v631
      %v805 = vpop.f32.mrb[0].mxu0
      %v806 = vadd.f32 %v667, %v805
      %v807 = vpop.f32.mrb[0].mxu0
      %808 = vmatprep.mubr.f32.mxu0 0.0
      %809 = vmatmul.mubr.f32.gmra.mrb[0].mxu0 %v632
      %v810 = vpop.f32.mrb[0].mxu0
      %v811 = vadd.f32 %v667, %v810
      %v812 = vpop.f32.mrb[0].mxu0
      %813 = vmatprep.mubr.f32.mxu0 0.0
      %814 = vmatmul.mubr.f32.gmra.mrb[0].mxu0 %v633
      %v815 = vpop.f32.mrb[0].mxu0
      %v816 = vadd.f32 %v667, %v815
      %v817 = vpop.f32.mrb[0].mxu0
      %818 = vmatprep.mubr.f32.mxu0 0.0
      %819 = vmatmul.mubr.f32.gmra.mrb[0].mxu0 %v634
      %v820 = vpop.f32.mrb[0].mxu0
      %v821 = vadd.f32 %v667, %v820
      %v822 = vpop.f32.mrb[0].mxu0
      %823 = vmatprep.mubr.f32.mxu0 0.0
      %824 = vmatmul.mubr.f32.gmra.mrb[0].mxu0 %v635
      %v825 = vpop.f32.mrb[0].mxu0
      %v826 = vadd.f32 %v667, %v825
      %v827 = vpop.f32.mrb[0].mxu0
      %828 = vmatprep.mubr.f32.mxu0 0.0
      %829 = vmatmul.mubr.f32.gmra.mrb[0].mxu0 %v636
      %v830 = vpop.f32.mrb[0].mxu0
      %v831 = vadd.f32 %v667, %v830
      %v832 = vpop.f32.mrb[0].mxu0
      %833 = vmatprep.mubr.f32.mxu0 0.0
      %834 = vmatmul.mubr.f32.gmra.mrb[0].mxu0 %v637
      %v835 = vpop.f32.mrb[0].mxu0
      %v836 = vadd.f32 %v667, %v835
      %v837 = vpop.f32.mrb[0].mxu0
      %838 = vmatprep.mubr.f32.mxu0 0.0
      %839 = vmatmul.mubr.f32.gmra.mrb[0].mxu0 %v638
      %v840 = vpop.f32.mrb[0].mxu0
      %v841 = vadd.f32 %v667, %v840
      %v842 = vpop.f32.mrb[0].mxu0
      %843 = vmatprep.mubr.f32.mxu0 0.0
      %844 = vmatmul.mubr.f32.gmra.mrb[0].mxu0 %v639
      %v845 = vpop.f32.mrb[0].mxu0
      %v846 = vadd.f32 %v667, %v845
      %v847 = vpop.f32.mrb[0].mxu0
      %848 = vmatprep.mubr.f32.mxu0 0.0
      %849 = vmatmul.mubr.f32.gmra.mrb[0].mxu0 %v640
      %v850 = vpop.f32.mrb[0].mxu0
      %v851 = vadd.f32 %v667, %v850
      %v852 = vpop.f32.mrb[0].mxu0
      %853 = vmatprep.mubr.f32.mxu0 0.0
      %854 = vmatmul.mubr.f32.gmra.mrb[0].mxu0 %v641
      %v855 = vpop.f32.mrb[0].mxu0
      %v856 = vadd.f32 %v667, %v855
      %v857 = vpop.f32.mrb[0].mxu0
      %858 = vmatprep.mubr.f32.mxu0 0.0
      %859 = vmatmul.mubr.f32.gmra.mrb[0].mxu0 %v642
      %v860 = vpop.f32.mrb[0].mxu0
      %v861 = vadd.f32 %v667, %v860
      %v862 = vpop.f32.mrb[0].mxu0
      %863 = vmatprep.mubr.f32.mxu0 0.0
      %864 = vmatmul.mubr.f32.gmra.mrb[0].mxu0 %v643
      %v865 = vpop.f32.mrb[0].mxu0
      %v866 = vadd.f32 %v667, %v865
      %v867 = vpop.f32.mrb[0].mxu0
      %868 = vmatprep.mubr.f32.mxu0 0.0
      %869 = vmatmul.mubr.f32.gmra.mrb[0].mxu0 %v644
      %v870 = vpop.f32.mrb[0].mxu0
      %v871 = vadd.f32 %v667, %v870
      %v872 = vpop.f32.mrb[0].mxu0
      %873 = vmatprep.mubr.f32.mxu0 0.0
      %874 = vmatmul.mubr.f32.gmra.mrb[0].mxu0 %v645
      %v875 = vpop.f32.mrb[0].mxu0
      %v876 = vadd.f32 %v667, %v875
      %v877 = vpop.f32.mrb[0].mxu0
      %878 = vdwg.mxu0
      %v879 = vmax.f32 %v736, 0.0
      %v880 = vmax.f32 %v741, 0.0
      %v881 = vmax.f32 %v746, 0.0
      %v882 = vmax.f32 %v751, 0.0
      %v883 = vmax.f32 %v756, 0.0
      %v884 = vmax.f32 %v761, 0.0
      %v885 = vmax.f32 %v766, 0.0
      %v886 = vmax.f32 %v771, 0.0
      %v887 = vmax.f32 %v776, 0.0
      %v888 = vmax.f32 %v781, 0.0
      %v889 = vmax.f32 %v786, 0.0
      %v890 = vmax.f32 %v791, 0.0
      %v891 = vmax.f32 %v796, 0.0
      %v892 = vmax.f32 %v801, 0.0
      %v893 = vmax.f32 %v806, 0.0
      %v894 = vmax.f32 %v811, 0.0
      %v895 = vmax.f32 %v816, 0.0
      %v896 = vmax.f32 %v821, 0.0
      %v897 = vmax.f32 %v826, 0.0
      %v898 = vmax.f32 %v831, 0.0
      %v899 = vmax.f32 %v836, 0.0
      %v900 = vmax.f32 %v841, 0.0
      %v901 = vmax.f32 %v846, 0.0
      %v902 = vmax.f32 %v851, 0.0
      %v903 = vmax.f32 %v856, 0.0
      %v904 = vmax.f32 %v861, 0.0
      %v905 = vmax.f32 %v866, 0.0
      %v906 = vmax.f32 %v871, 0.0
      %v907 = vmax.f32 %v876, 0.0
      %v908 = vld [vmem:[%s4] sm:$0xff]
      %v909 = vld [vmem:[%s4 + $0x8] sm:$0xff]
      %v910 = vld [vmem:[%s4 + $0x10] sm:$0xff]
      %v911 = vld [vmem:[%s4 + $0x18] sm:$0xff]
      %v912 = vld [vmem:[%s4 + $0x20] sm:$0xff]
      %v913 = vld [vmem:[%s4 + $0x28] sm:$0xff]
      %v914 = vld [vmem:[%s4 + $0x30] sm:$0xff]
      %v915 = vld [vmem:[%s4 + $0x38] sm:$0xff]
      %v916 = vld [vmem:[%s4 + $0x40] sm:$0xf]
      %v917 = vld [vmem:[%s4 + $0x48] sm:$0xf]
      %vm918 = vcmask 793600
      %v920 = vsel %vm918, %v909, 0
      %v923 = vsel %vm918, %v911, 0
      %v926 = vsel %vm918, %v913, 0
      %v929 = vsel %vm918, %v915, 0
      %v932 = vsel %vm918, %v917, 0
      %vm934 = vcmask 1040384
      %v936 = vsel %vm934, %v907, 0
      %938 = vmatprep.subr.mxu0 0.0
      %939 = vmatpush1.msra.mxu0 %v879
      %940 = vmatprep.subr.mxu0 0.0
      %941 = vmatpush1.msra.mxu0 %v880
      %942 = vmatprep.subr.mxu0 0.0
      %943 = vmatpush1.msra.mxu0 %v881
      %944 = vmatprep.subr.mxu0 0.0
      %945 = vmatpush1.msra.mxu0 %v882
      %946 = vmatprep.subr.mxu0 0.0
      %947 = vmatpush1.msra.mxu0 %v883
      %948 = vmatprep.subr.mxu0 0.0
      %949 = vmatpush1.msra.mxu0 %v884
      %950 = vmatprep.subr.mxu0 0.0
      %951 = vmatpush1.msra.mxu0 %v885
      %952 = vmatprep.subr.mxu0 0.0
      %953 = vmatpush1.msra.mxu0 %v886
      %954 = vmatprep.subr.mxu0 0.0
      %955 = vmatpush1.msra.mxu0 %v887
      %956 = vmatprep.subr.mxu0 0.0
      %957 = vmatpush1.msra.mxu0 %v888
      %958 = vmatprep.subr.mxu0 0.0
      %959 = vmatpush1.msra.mxu0 %v889
      %960 = vmatprep.subr.mxu0 0.0
      %961 = vmatpush1.msra.mxu0 %v890
      %962 = vmatprep.subr.mxu0 0.0
      %963 = vmatpush1.msra.mxu0 %v891
      %964 = vmatprep.subr.mxu0 0.0
      %965 = vmatpush1.msra.mxu0 %v892
      %966 = vmatprep.subr.mxu0 0.0
      %967 = vmatpush1.msra.mxu0 %v893
      %968 = vmatprep.subr.mxu0 0.0
      %969 = vmatpush1.msra.mxu0 %v894
      %970 = vmatprep.subr.mxu0 0.0
      %971 = vmatpush1.msra.mxu0 %v895
      %972 = vmatprep.subr.mxu0 0.0
      %973 = vmatpush1.msra.mxu0 %v896
      %974 = vmatprep.subr.mxu0 0.0
      %975 = vmatpush1.msra.mxu0 %v897
      %976 = vmatprep.subr.mxu0 0.0
      %977 = vmatpush1.msra.mxu0 %v898
      %978 = vmatprep.subr.mxu0 0.0
      %979 = vmatpush1.msra.mxu0 %v899
      %980 = vmatprep.subr.mxu0 0.0
      %981 = vmatpush1.msra.mxu0 %v900
      %982 = vmatprep.subr.mxu0 0.0
      %983 = vmatpush1.msra.mxu0 %v901
      %984 = vmatprep.subr.mxu0 0.0
      %985 = vmatpush1.msra.mxu0 %v902
      %986 = vmatprep.subr.mxu0 0.0
      %987 = vmatpush1.msra.mxu0 %v903
      %988 = vmatprep.subr.mxu0 0.0
      %989 = vmatpush1.msra.mxu0 %v904
      %990 = vmatprep.subr.mxu0 0.0
      %991 = vmatpush1.msra.mxu0 %v905
      %992 = vmatprep.subr.mxu0 0.0
      %993 = vmatpush1.msra.mxu0 %v906
      %994 = vmatprep.subr.mxu0 0.0
      %995 = vmatpush1.msra.mxu0 %v936
      %996 = vmatprep.subr.mxu0 0.0
      %997 = vmatpush1.msra.mxu0 0.0
      %998 = vmatprep.subr.mxu0 0.0
      %999 = vmatpush1.msra.mxu0 0.0
      %1000 = vmatprep.subr.mxu0 0.0
      %1001 = vmatpush1.msra.mxu0 0.0
      %1002 = vmatprep.mubr.f32.mxu0 %v920
      %1003 = vmatmul.mubr.f32.gmra.mrb[0].mxu0 %v908
      %v1004 = vpop.f32.mrb[0].mxu0
      %v1005 = vadd.f32 0.0, %v1004
      %v1006 = vpop.f32.mrb[0].mxu0
      %1007 = vmatprep.mubr.f32.mxu0 %v923
      %1008 = vmatmul.mubr.f32.gmra.mrb[0].mxu0 %v910
      %v1009 = vpop.f32.mrb[0].mxu0
      %v1010 = vadd.f32 0.0, %v1009
      %v1011 = vpop.f32.mrb[0].mxu0
      %1012 = vmatprep.mubr.f32.mxu0 %v926
      %1013 = vmatmul.mubr.f32.gmra.mrb[0].mxu0 %v912
      %v1014 = vpop.f32.mrb[0].mxu0
      %v1015 = vadd.f32 0.0, %v1014
      %v1016 = vpop.f32.mrb[0].mxu0
      %1017 = vmatprep.mubr.f32.mxu0 %v929
      %1018 = vmatmul.mubr.f32.gmra.mrb[0].mxu0 %v914
      %v1019 = vpop.f32.mrb[0].mxu0
      %v1020 = vadd.f32 0.0, %v1019
      %v1021 = vpop.f32.mrb[0].mxu0
      %1022 = vmatprep.mubr.f32.mxu0 %v932
      %1023 = vmatmul.mubr.f32.gmra.mrb[0].mxu0 %v916
      %v1024 = vpop.f32.mrb[0].mxu0
      %v1025 = vadd.f32 0.0, %v1024
      %v1026 = vpop.f32.mrb[0].mxu0
      %1027 = vdwg.mxu0
      %v1028 = vld [vmem:[%s5] sm:$0xff]
      %v1029 = vld [vmem:[%s5 + $0x8] sm:$0xff]
      %v1030 = vld [vmem:[%s5 + $0x10] sm:$0xff]
      %v1031 = vld [vmem:[%s5 + $0x18] sm:$0xff]
      %s1032 = scalar_lea.vmem %s4, 80
      %v1033 = vld [vmem:[%s1032] sm:$0xff]
      %v1034 = vld [vmem:[%s1032 + $0x8] sm:$0xff]
      %v1035 = vld [vmem:[%s1032 + $0x10] sm:$0xff]
      %v1036 = vld [vmem:[%s1032 + $0x18] sm:$0xff]
      %v1037 = vld [vmem:[%s1032 + $0x20] sm:$0xff]
      %v1038 = vld [vmem:[%s1032 + $0x28] sm:$0xff]
      %v1039 = vld [vmem:[%s1032 + $0x30] sm:$0xff]
      %v1040 = vld [vmem:[%s1032 + $0x38] sm:$0xff]
      %v1041 = vld [vmem:[%s1032 + $0x40] sm:$0xf]
      %v1042 = vld [vmem:[%s1032 + $0x48] sm:$0xf]
      %v1044 = vsel %vm918, %v1034, 0
      %v1047 = vsel %vm918, %v1036, 0
      %v1050 = vsel %vm918, %v1038, 0
      %v1053 = vsel %vm918, %v1040, 0
      %v1056 = vsel %vm918, %v1042, 0
      %1058 = vmatprep.subr.mxu0 0.0
      %1059 = vmatpush1.msra.mxu0 %v879
      %1060 = vmatprep.subr.mxu0 0.0
      %1061 = vmatpush1.msra.mxu0 %v880
      %1062 = vmatprep.subr.mxu0 0.0
      %1063 = vmatpush1.msra.mxu0 %v881
      %1064 = vmatprep.subr.mxu0 0.0
      %1065 = vmatpush1.msra.mxu0 %v882
      %1066 = vmatprep.subr.mxu0 0.0
      %1067 = vmatpush1.msra.mxu0 %v883
      %1068 = vmatprep.subr.mxu0 0.0
      %1069 = vmatpush1.msra.mxu0 %v884
      %1070 = vmatprep.subr.mxu0 0.0
      %1071 = vmatpush1.msra.mxu0 %v885
      %1072 = vmatprep.subr.mxu0 0.0
      %1073 = vmatpush1.msra.mxu0 %v886
      %1074 = vmatprep.subr.mxu0 0.0
      %1075 = vmatpush1.msra.mxu0 %v887
      %1076 = vmatprep.subr.mxu0 0.0
      %1077 = vmatpush1.msra.mxu0 %v888
      %1078 = vmatprep.subr.mxu0 0.0
      %1079 = vmatpush1.msra.mxu0 %v889
      %1080 = vmatprep.subr.mxu0 0.0
      %1081 = vmatpush1.msra.mxu0 %v890
      %1082 = vmatprep.subr.mxu0 0.0
      %1083 = vmatpush1.msra.mxu0 %v891
      %1084 = vmatprep.subr.mxu0 0.0
      %1085 = vmatpush1.msra.mxu0 %v892
      %1086 = vmatprep.subr.mxu0 0.0
      %1087 = vmatpush1.msra.mxu0 %v893
      %1088 = vmatprep.subr.mxu0 0.0
      %1089 = vmatpush1.msra.mxu0 %v894
      %1090 = vmatprep.subr.mxu0 0.0
      %1091 = vmatpush1.msra.mxu0 %v895
      %1092 = vmatprep.subr.mxu0 0.0
      %1093 = vmatpush1.msra.mxu0 %v896
      %1094 = vmatprep.subr.mxu0 0.0
      %1095 = vmatpush1.msra.mxu0 %v897
      %1096 = vmatprep.subr.mxu0 0.0
      %1097 = vmatpush1.msra.mxu0 %v898
      %1098 = vmatprep.subr.mxu0 0.0
      %1099 = vmatpush1.msra.mxu0 %v899
      %1100 = vmatprep.subr.mxu0 0.0
      %1101 = vmatpush1.msra.mxu0 %v900
      %1102 = vmatprep.subr.mxu0 0.0
      %1103 = vmatpush1.msra.mxu0 %v901
      %1104 = vmatprep.subr.mxu0 0.0
      %1105 = vmatpush1.msra.mxu0 %v902
      %1106 = vmatprep.subr.mxu0 0.0
      %1107 = vmatpush1.msra.mxu0 %v903
      %1108 = vmatprep.subr.mxu0 0.0
      %1109 = vmatpush1.msra.mxu0 %v904
      %1110 = vmatprep.subr.mxu0 0.0
      %1111 = vmatpush1.msra.mxu0 %v905
      %1112 = vmatprep.subr.mxu0 0.0
      %1113 = vmatpush1.msra.mxu0 %v906
      %1114 = vmatprep.subr.mxu0 0.0
      %1115 = vmatpush1.msra.mxu0 %v936
      %1116 = vmatprep.subr.mxu0 0.0
      %1117 = vmatpush1.msra.mxu0 0.0
      %1118 = vmatprep.subr.mxu0 0.0
      %1119 = vmatpush1.msra.mxu0 0.0
      %1120 = vmatprep.subr.mxu0 0.0
      %1121 = vmatpush1.msra.mxu0 0.0
      %1122 = vmatprep.mubr.f32.mxu0 %v1044
      %1123 = vmatmul.mubr.f32.gmra.mrb[0].mxu0 %v1033
      %v1124 = vpop.f32.mrb[0].mxu0
      %v1125 = vadd.f32 0.0, %v1124
      %v1126 = vpop.f32.mrb[0].mxu0
      %1127 = vmatprep.mubr.f32.mxu0 %v1047
      %1128 = vmatmul.mubr.f32.gmra.mrb[0].mxu0 %v1035
      %v1129 = vpop.f32.mrb[0].mxu0
      %v1130 = vadd.f32 0.0, %v1129
      %v1131 = vpop.f32.mrb[0].mxu0
      %1132 = vmatprep.mubr.f32.mxu0 %v1050
      %1133 = vmatmul.mubr.f32.gmra.mrb[0].mxu0 %v1037
      %v1134 = vpop.f32.mrb[0].mxu0
      %v1135 = vadd.f32 0.0, %v1134
      %v1136 = vpop.f32.mrb[0].mxu0
      %1137 = vmatprep.mubr.f32.mxu0 %v1053
      %1138 = vmatmul.mubr.f32.gmra.mrb[0].mxu0 %v1039
      %v1139 = vpop.f32.mrb[0].mxu0
      %v1140 = vadd.f32 0.0, %v1139
      %v1141 = vpop.f32.mrb[0].mxu0
      %1142 = vmatprep.mubr.f32.mxu0 %v1056
      %1143 = vmatmul.mubr.f32.gmra.mrb[0].mxu0 %v1041
      %v1144 = vpop.f32.mrb[0].mxu0
      %v1145 = vadd.f32 0.0, %v1144
      %v1146 = vpop.f32.mrb[0].mxu0
      %1147 = vdwg.mxu0
      %s1148 = scalar_lea.vmem %s5, 32
      %v1149 = vld [vmem:[%s1148] sm:$0xff]
      %v1150 = vld [vmem:[%s1148 + $0x8] sm:$0xff]
      %v1151 = vld [vmem:[%s1148 + $0x10] sm:$0xff]
      %v1152 = vld [vmem:[%s1148 + $0x18] sm:$0xff]
      %vm1153 = vcmask 261120
      %v1155 = vsel %vm1153, %v1125, 0
      %v1158 = vsel %vm1153, %v1130, 0
      %v1161 = vsel %vm1153, %v1135, 0
      %v1164 = vsel %vm1153, %v1140, 0
      %v1167 = vsel %vm1153, %v1145, 0
      %1169 = vmatprep.subr.mxu0 0.0
      %1170 = vmatpush1.msra.mxu0 %v1149
      %1171 = vmatprep.subr.mxu0 0.0
      %1172 = vmatpush1.msra.mxu0 %v1150
      %1173 = vmatprep.subr.mxu0 0.0
      %1174 = vmatpush1.msra.mxu0 %v1151
      %1175 = vmatprep.subr.mxu0 0.0
      %1176 = vmatpush1.msra.mxu0 %v1152
      %1177 = vmatprep.subr.mxu0 0.0
      %1178 = vmatpush1.msra.mxu0 0.0
      %1179 = vmatprep.subr.mxu0 0.0
      %1180 = vmatpush1.msra.mxu0 0.0
      %1181 = vmatprep.subr.mxu0 0.0
      %1182 = vmatpush1.msra.mxu0 0.0
      %1183 = vmatprep.subr.mxu0 0.0
      %1184 = vmatpush1.msra.mxu0 0.0
      %1185 = vmatprep.subr.mxu0 0.0
      %1186 = vmatpush1.msra.mxu0 0.0
      %1187 = vmatprep.subr.mxu0 0.0
      %1188 = vmatpush1.msra.mxu0 0.0
      %1189 = vmatprep.subr.mxu0 0.0
      %1190 = vmatpush1.msra.mxu0 0.0
      %1191 = vmatprep.subr.mxu0 0.0
      %1192 = vmatpush1.msra.mxu0 0.0
      %1193 = vmatprep.subr.mxu0 0.0
      %1194 = vmatpush1.msra.mxu0 0.0
      %1195 = vmatprep.subr.mxu0 0.0
      %1196 = vmatpush1.msra.mxu0 0.0
      %1197 = vmatprep.subr.mxu0 0.0
      %1198 = vmatpush1.msra.mxu0 0.0
      %1199 = vmatprep.subr.mxu0 0.0
      %1200 = vmatpush1.msra.mxu0 0.0
      %1201 = vmatprep.subr.mxu0 0.0
      %1202 = vmatpush1.msra.mxu0 0.0
      %1203 = vmatprep.subr.mxu0 0.0
      %1204 = vmatpush1.msra.mxu0 0.0
      %1205 = vmatprep.subr.mxu0 0.0
      %1206 = vmatpush1.msra.mxu0 0.0
      %1207 = vmatprep.subr.mxu0 0.0
      %1208 = vmatpush1.msra.mxu0 0.0
      %1209 = vmatprep.subr.mxu0 0.0
      %1210 = vmatpush1.msra.mxu0 0.0
      %1211 = vmatprep.subr.mxu0 0.0
      %1212 = vmatpush1.msra.mxu0 0.0
      %1213 = vmatprep.subr.mxu0 0.0
      %1214 = vmatpush1.msra.mxu0 0.0
      %1215 = vmatprep.subr.mxu0 0.0
      %1216 = vmatpush1.msra.mxu0 0.0
      %1217 = vmatprep.subr.mxu0 0.0
      %1218 = vmatpush1.msra.mxu0 0.0
      %1219 = vmatprep.subr.mxu0 0.0
      %1220 = vmatpush1.msra.mxu0 0.0
      %1221 = vmatprep.subr.mxu0 0.0
      %1222 = vmatpush1.msra.mxu0 0.0
      %1223 = vmatprep.subr.mxu0 0.0
      %1224 = vmatpush1.msra.mxu0 0.0
      %1225 = vmatprep.subr.mxu0 0.0
      %1226 = vmatpush1.msra.mxu0 0.0
      %1227 = vmatprep.subr.mxu0 0.0
      %1228 = vmatpush1.msra.mxu0 0.0
      %1229 = vmatprep.subr.mxu0 0.0
      %1230 = vmatpush1.msra.mxu0 0.0
      %1231 = vmatprep.subr.mxu0 0.0
      %1232 = vmatpush1.msra.mxu0 0.0
      %1233 = vmatprep.mubr.f32.mxu0 0.0
      %1234 = vmatmul.mubr.f32.gmra.mrb[0].mxu0 %v1155
      %v1235 = vpop.f32.mrb[0].mxu0
      %v1236 = vadd.f32 0.0, %v1235
      %v1237 = vpop.f32.mrb[0].mxu0
      %1238 = vmatprep.mubr.f32.mxu0 0.0
      %1239 = vmatmul.mubr.f32.gmra.mrb[0].mxu0 %v1158
      %v1240 = vpop.f32.mrb[0].mxu0
      %v1241 = vadd.f32 0.0, %v1240
      %v1242 = vpop.f32.mrb[0].mxu0
      %1243 = vmatprep.mubr.f32.mxu0 0.0
      %1244 = vmatmul.mubr.f32.gmra.mrb[0].mxu0 %v1161
      %v1245 = vpop.f32.mrb[0].mxu0
      %v1246 = vadd.f32 0.0, %v1245
      %v1247 = vpop.f32.mrb[0].mxu0
      %1248 = vmatprep.mubr.f32.mxu0 0.0
      %1249 = vmatmul.mubr.f32.gmra.mrb[0].mxu0 %v1164
      %v1250 = vpop.f32.mrb[0].mxu0
      %v1251 = vadd.f32 0.0, %v1250
      %v1252 = vpop.f32.mrb[0].mxu0
      %1253 = vmatprep.mubr.f32.mxu0 0.0
      %1254 = vmatmul.mubr.f32.gmra.mrb[0].mxu0 %v1167
      %v1255 = vpop.f32.mrb[0].mxu0
      %v1256 = vadd.f32 0.0, %v1255
      %v1257 = vpop.f32.mrb[0].mxu0
      %1258 = vdwg.mxu0
      %v1260 = vsel %vm1153, %v1005, 0
      %v1263 = vsel %vm1153, %v1010, 0
      %v1266 = vsel %vm1153, %v1015, 0
      %v1269 = vsel %vm1153, %v1020, 0
      %v1272 = vsel %vm1153, %v1025, 0
      %1274 = vmatprep.subr.mxu0 0.0
      %1275 = vmatpush1.msra.mxu0 %v1028
      %1276 = vmatprep.subr.mxu0 0.0
      %1277 = vmatpush1.msra.mxu0 %v1029
      %1278 = vmatprep.subr.mxu0 0.0
      %1279 = vmatpush1.msra.mxu0 %v1030
      %1280 = vmatprep.subr.mxu0 0.0
      %1281 = vmatpush1.msra.mxu0 %v1031
      %1282 = vmatprep.subr.mxu0 0.0
      %1283 = vmatpush1.msra.mxu0 0.0
      %1284 = vmatprep.subr.mxu0 0.0
      %1285 = vmatpush1.msra.mxu0 0.0
      %1286 = vmatprep.subr.mxu0 0.0
      %1287 = vmatpush1.msra.mxu0 0.0
      %1288 = vmatprep.subr.mxu0 0.0
      %1289 = vmatpush1.msra.mxu0 0.0
      %1290 = vmatprep.subr.mxu0 0.0
      %1291 = vmatpush1.msra.mxu0 0.0
      %1292 = vmatprep.subr.mxu0 0.0
      %1293 = vmatpush1.msra.mxu0 0.0
      %1294 = vmatprep.subr.mxu0 0.0
      %1295 = vmatpush1.msra.mxu0 0.0
      %1296 = vmatprep.subr.mxu0 0.0
      %1297 = vmatpush1.msra.mxu0 0.0
      %1298 = vmatprep.subr.mxu0 0.0
      %1299 = vmatpush1.msra.mxu0 0.0
      %1300 = vmatprep.subr.mxu0 0.0
      %1301 = vmatpush1.msra.mxu0 0.0
      %1302 = vmatprep.subr.mxu0 0.0
      %1303 = vmatpush1.msra.mxu0 0.0
      %1304 = vmatprep.subr.mxu0 0.0
      %1305 = vmatpush1.msra.mxu0 0.0
      %1306 = vmatprep.subr.mxu0 0.0
      %1307 = vmatpush1.msra.mxu0 0.0
      %1308 = vmatprep.subr.mxu0 0.0
      %1309 = vmatpush1.msra.mxu0 0.0
      %1310 = vmatprep.subr.mxu0 0.0
      %1311 = vmatpush1.msra.mxu0 0.0
      %1312 = vmatprep.subr.mxu0 0.0
      %1313 = vmatpush1.msra.mxu0 0.0
      %1314 = vmatprep.subr.mxu0 0.0
      %1315 = vmatpush1.msra.mxu0 0.0
      %1316 = vmatprep.subr.mxu0 0.0
      %1317 = vmatpush1.msra.mxu0 0.0
      %1318 = vmatprep.subr.mxu0 0.0
      %1319 = vmatpush1.msra.mxu0 0.0
      %1320 = vmatprep.subr.mxu0 0.0
      %1321 = vmatpush1.msra.mxu0 0.0
      %1322 = vmatprep.subr.mxu0 0.0
      %1323 = vmatpush1.msra.mxu0 0.0
      %1324 = vmatprep.subr.mxu0 0.0
      %1325 = vmatpush1.msra.mxu0 0.0
      %1326 = vmatprep.subr.mxu0 0.0
      %1327 = vmatpush1.msra.mxu0 0.0
      %1328 = vmatprep.subr.mxu0 0.0
      %1329 = vmatpush1.msra.mxu0 0.0
      %1330 = vmatprep.subr.mxu0 0.0
      %1331 = vmatpush1.msra.mxu0 0.0
      %1332 = vmatprep.subr.mxu0 0.0
      %1333 = vmatpush1.msra.mxu0 0.0
      %1334 = vmatprep.subr.mxu0 0.0
      %1335 = vmatpush1.msra.mxu0 0.0
      %1336 = vmatprep.subr.mxu0 0.0
      %1337 = vmatpush1.msra.mxu0 0.0
      %1338 = vmatprep.mubr.f32.mxu0 0.0
      %1339 = vmatmul.mubr.f32.gmra.mrb[0].mxu0 %v1260
      %v1340 = vpop.f32.mrb[0].mxu0
      %v1341 = vadd.f32 %v1236, %v1340
      %v1342 = vpop.f32.mrb[0].mxu0
      %1343 = vmatprep.mubr.f32.mxu0 0.0
      %1344 = vmatmul.mubr.f32.gmra.mrb[0].mxu0 %v1263
      %v1345 = vpop.f32.mrb[0].mxu0
      %v1346 = vadd.f32 %v1241, %v1345
      %v1347 = vpop.f32.mrb[0].mxu0
      %1348 = vmatprep.mubr.f32.mxu0 0.0
      %1349 = vmatmul.mubr.f32.gmra.mrb[0].mxu0 %v1266
      %v1350 = vpop.f32.mrb[0].mxu0
      %v1351 = vadd.f32 %v1246, %v1350
      %v1352 = vpop.f32.mrb[0].mxu0
      %1353 = vmatprep.mubr.f32.mxu0 0.0
      %1354 = vmatmul.mubr.f32.gmra.mrb[0].mxu0 %v1269
      %v1355 = vpop.f32.mrb[0].mxu0
      %v1356 = vadd.f32 %v1251, %v1355
      %v1357 = vpop.f32.mrb[0].mxu0
      %1358 = vmatprep.mubr.f32.mxu0 0.0
      %1359 = vmatmul.mubr.f32.gmra.mrb[0].mxu0 %v1272
      %v1360 = vpop.f32.mrb[0].mxu0
      %v1361 = vadd.f32 %v1256, %v1360
      %v1362 = vpop.f32.mrb[0].mxu0
      %1363 = vdwg.mxu0
      %s1364 = scalar_lea.vmem %s4, 160
      %v1365 = vld [vmem:[%s1364] sm:$0xff]
      %v1366 = vld [vmem:[%s1364 + $0x8] sm:$0xff]
      %v1367 = vld [vmem:[%s1364 + $0x10] sm:$0xff]
      %v1368 = vld [vmem:[%s1364 + $0x18] sm:$0xff]
      %v1369 = vld [vmem:[%s1364 + $0x20] sm:$0xff]
      %v1370 = vld [vmem:[%s1364 + $0x28] sm:$0xff]
      %v1371 = vld [vmem:[%s1364 + $0x30] sm:$0xff]
      %v1372 = vld [vmem:[%s1364 + $0x38] sm:$0xff]
      %v1373 = vld [vmem:[%s1364 + $0x40] sm:$0xf]
      %v1374 = vld [vmem:[%s1364 + $0x48] sm:$0xf]
      %v1376 = vsel %vm918, %v1366, 0
      %v1379 = vsel %vm918, %v1368, 0
      %v1382 = vsel %vm918, %v1370, 0
      %v1385 = vsel %vm918, %v1372, 0
      %v1388 = vsel %vm918, %v1374, 0
      %1390 = vmatprep.subr.mxu0 0.0
      %1391 = vmatpush1.msra.mxu0 %v879
      %1392 = vmatprep.subr.mxu0 0.0
      %1393 = vmatpush1.msra.mxu0 %v880
      %1394 = vmatprep.subr.mxu0 0.0
      %1395 = vmatpush1.msra.mxu0 %v881
      %1396 = vmatprep.subr.mxu0 0.0
      %1397 = vmatpush1.msra.mxu0 %v882
      %1398 = vmatprep.subr.mxu0 0.0
      %1399 = vmatpush1.msra.mxu0 %v883
      %1400 = vmatprep.subr.mxu0 0.0
      %1401 = vmatpush1.msra.mxu0 %v884
      %1402 = vmatprep.subr.mxu0 0.0
      %1403 = vmatpush1.msra.mxu0 %v885
      %1404 = vmatprep.subr.mxu0 0.0
      %1405 = vmatpush1.msra.mxu0 %v886
      %1406 = vmatprep.subr.mxu0 0.0
      %1407 = vmatpush1.msra.mxu0 %v887
      %1408 = vmatprep.subr.mxu0 0.0
      %1409 = vmatpush1.msra.mxu0 %v888
      %1410 = vmatprep.subr.mxu0 0.0
      %1411 = vmatpush1.msra.mxu0 %v889
      %1412 = vmatprep.subr.mxu0 0.0
      %1413 = vmatpush1.msra.mxu0 %v890
      %1414 = vmatprep.subr.mxu0 0.0
      %1415 = vmatpush1.msra.mxu0 %v891
      %1416 = vmatprep.subr.mxu0 0.0
      %1417 = vmatpush1.msra.mxu0 %v892
      %1418 = vmatprep.subr.mxu0 0.0
      %1419 = vmatpush1.msra.mxu0 %v893
      %1420 = vmatprep.subr.mxu0 0.0
      %1421 = vmatpush1.msra.mxu0 %v894
      %1422 = vmatprep.subr.mxu0 0.0
      %1423 = vmatpush1.msra.mxu0 %v895
      %1424 = vmatprep.subr.mxu0 0.0
      %1425 = vmatpush1.msra.mxu0 %v896
      %1426 = vmatprep.subr.mxu0 0.0
      %1427 = vmatpush1.msra.mxu0 %v897
      %1428 = vmatprep.subr.mxu0 0.0
      %1429 = vmatpush1.msra.mxu0 %v898
      %1430 = vmatprep.subr.mxu0 0.0
      %1431 = vmatpush1.msra.mxu0 %v899
      %1432 = vmatprep.subr.mxu0 0.0
      %1433 = vmatpush1.msra.mxu0 %v900
      %1434 = vmatprep.subr.mxu0 0.0
      %1435 = vmatpush1.msra.mxu0 %v901
      %1436 = vmatprep.subr.mxu0 0.0
      %1437 = vmatpush1.msra.mxu0 %v902
      %1438 = vmatprep.subr.mxu0 0.0
      %1439 = vmatpush1.msra.mxu0 %v903
      %1440 = vmatprep.subr.mxu0 0.0
      %1441 = vmatpush1.msra.mxu0 %v904
      %1442 = vmatprep.subr.mxu0 0.0
      %1443 = vmatpush1.msra.mxu0 %v905
      %1444 = vmatprep.subr.mxu0 0.0
      %1445 = vmatpush1.msra.mxu0 %v906
      %1446 = vmatprep.subr.mxu0 0.0
      %1447 = vmatpush1.msra.mxu0 %v936
      %1448 = vmatprep.subr.mxu0 0.0
      %1449 = vmatpush1.msra.mxu0 0.0
      %1450 = vmatprep.subr.mxu0 0.0
      %1451 = vmatpush1.msra.mxu0 0.0
      %1452 = vmatprep.subr.mxu0 0.0
      %1453 = vmatpush1.msra.mxu0 0.0
      %1454 = vmatprep.mubr.f32.mxu0 %v1376
      %1455 = vmatmul.mubr.f32.gmra.mrb[0].mxu0 %v1365
      %v1456 = vpop.f32.mrb[0].mxu0
      %v1457 = vadd.f32 0.0, %v1456
      %v1458 = vpop.f32.mrb[0].mxu0
      %1459 = vmatprep.mubr.f32.mxu0 %v1379
      %1460 = vmatmul.mubr.f32.gmra.mrb[0].mxu0 %v1367
      %v1461 = vpop.f32.mrb[0].mxu0
      %v1462 = vadd.f32 0.0, %v1461
      %v1463 = vpop.f32.mrb[0].mxu0
      %1464 = vmatprep.mubr.f32.mxu0 %v1382
      %1465 = vmatmul.mubr.f32.gmra.mrb[0].mxu0 %v1369
      %v1466 = vpop.f32.mrb[0].mxu0
      %v1467 = vadd.f32 0.0, %v1466
      %v1468 = vpop.f32.mrb[0].mxu0
      %1469 = vmatprep.mubr.f32.mxu0 %v1385
      %1470 = vmatmul.mubr.f32.gmra.mrb[0].mxu0 %v1371
      %v1471 = vpop.f32.mrb[0].mxu0
      %v1472 = vadd.f32 0.0, %v1471
      %v1473 = vpop.f32.mrb[0].mxu0
      %1474 = vmatprep.mubr.f32.mxu0 %v1388
      %1475 = vmatmul.mubr.f32.gmra.mrb[0].mxu0 %v1373
      %v1476 = vpop.f32.mrb[0].mxu0
      %v1477 = vadd.f32 0.0, %v1476
      %v1478 = vpop.f32.mrb[0].mxu0
      %1479 = vdwg.mxu0
      %s1480 = scalar_lea.vmem %s5, 64
      %v1481 = vld [vmem:[%s1480] sm:$0xff]
      %v1482 = vld [vmem:[%s1480 + $0x8] sm:$0xff]
      %v1483 = vld [vmem:[%s1480 + $0x10] sm:$0xff]
      %v1484 = vld [vmem:[%s1480 + $0x18] sm:$0xff]
      %v1486 = vsel %vm1153, %v1457, 0
      %v1489 = vsel %vm1153, %v1462, 0
      %v1492 = vsel %vm1153, %v1467, 0
      %v1495 = vsel %vm1153, %v1472, 0
      %v1498 = vsel %vm1153, %v1477, 0
      %1500 = vmatprep.subr.mxu0 0.0
      %1501 = vmatpush1.msra.mxu0 %v1481
      %1502 = vmatprep.subr.mxu0 0.0
      %1503 = vmatpush1.msra.mxu0 %v1482
      %1504 = vmatprep.subr.mxu0 0.0
      %1505 = vmatpush1.msra.mxu0 %v1483
      %1506 = vmatprep.subr.mxu0 0.0
      %1507 = vmatpush1.msra.mxu0 %v1484
      %1508 = vmatprep.subr.mxu0 0.0
      %1509 = vmatpush1.msra.mxu0 0.0
      %1510 = vmatprep.subr.mxu0 0.0
      %1511 = vmatpush1.msra.mxu0 0.0
      %1512 = vmatprep.subr.mxu0 0.0
      %1513 = vmatpush1.msra.mxu0 0.0
      %1514 = vmatprep.subr.mxu0 0.0
      %1515 = vmatpush1.msra.mxu0 0.0
      %1516 = vmatprep.subr.mxu0 0.0
      %1517 = vmatpush1.msra.mxu0 0.0
      %1518 = vmatprep.subr.mxu0 0.0
      %1519 = vmatpush1.msra.mxu0 0.0
      %1520 = vmatprep.subr.mxu0 0.0
      %1521 = vmatpush1.msra.mxu0 0.0
      %1522 = vmatprep.subr.mxu0 0.0
      %1523 = vmatpush1.msra.mxu0 0.0
      %1524 = vmatprep.subr.mxu0 0.0
      %1525 = vmatpush1.msra.mxu0 0.0
      %1526 = vmatprep.subr.mxu0 0.0
      %1527 = vmatpush1.msra.mxu0 0.0
      %1528 = vmatprep.subr.mxu0 0.0
      %1529 = vmatpush1.msra.mxu0 0.0
      %1530 = vmatprep.subr.mxu0 0.0
      %1531 = vmatpush1.msra.mxu0 0.0
      %1532 = vmatprep.subr.mxu0 0.0
      %1533 = vmatpush1.msra.mxu0 0.0
      %1534 = vmatprep.subr.mxu0 0.0
      %1535 = vmatpush1.msra.mxu0 0.0
      %1536 = vmatprep.subr.mxu0 0.0
      %1537 = vmatpush1.msra.mxu0 0.0
      %1538 = vmatprep.subr.mxu0 0.0
      %1539 = vmatpush1.msra.mxu0 0.0
      %1540 = vmatprep.subr.mxu0 0.0
      %1541 = vmatpush1.msra.mxu0 0.0
      %1542 = vmatprep.subr.mxu0 0.0
      %1543 = vmatpush1.msra.mxu0 0.0
      %1544 = vmatprep.subr.mxu0 0.0
      %1545 = vmatpush1.msra.mxu0 0.0
      %1546 = vmatprep.subr.mxu0 0.0
      %1547 = vmatpush1.msra.mxu0 0.0
      %1548 = vmatprep.subr.mxu0 0.0
      %1549 = vmatpush1.msra.mxu0 0.0
      %1550 = vmatprep.subr.mxu0 0.0
      %1551 = vmatpush1.msra.mxu0 0.0
      %1552 = vmatprep.subr.mxu0 0.0
      %1553 = vmatpush1.msra.mxu0 0.0
      %1554 = vmatprep.subr.mxu0 0.0
      %1555 = vmatpush1.msra.mxu0 0.0
      %1556 = vmatprep.subr.mxu0 0.0
      %1557 = vmatpush1.msra.mxu0 0.0
      %1558 = vmatprep.subr.mxu0 0.0
      %1559 = vmatpush1.msra.mxu0 0.0
      %1560 = vmatprep.subr.mxu0 0.0
      %1561 = vmatpush1.msra.mxu0 0.0
      %1562 = vmatprep.subr.mxu0 0.0
      %1563 = vmatpush1.msra.mxu0 0.0
      %1564 = vmatprep.mubr.f32.mxu0 0.0
      %1565 = vmatmul.mubr.f32.gmra.mrb[0].mxu0 %v1486
      %v1566 = vpop.f32.mrb[0].mxu0
      %v1567 = vadd.f32 0.0, %v1566
      %v1568 = vpop.f32.mrb[0].mxu0
      %1569 = vmatprep.mubr.f32.mxu0 0.0
      %1570 = vmatmul.mubr.f32.gmra.mrb[0].mxu0 %v1489
      %v1571 = vpop.f32.mrb[0].mxu0
      %v1572 = vadd.f32 0.0, %v1571
      %v1573 = vpop.f32.mrb[0].mxu0
      %1574 = vmatprep.mubr.f32.mxu0 0.0
      %1575 = vmatmul.mubr.f32.gmra.mrb[0].mxu0 %v1492
      %v1576 = vpop.f32.mrb[0].mxu0
      %v1577 = vadd.f32 0.0, %v1576
      %v1578 = vpop.f32.mrb[0].mxu0
      %1579 = vmatprep.mubr.f32.mxu0 0.0
      %1580 = vmatmul.mubr.f32.gmra.mrb[0].mxu0 %v1495
      %v1581 = vpop.f32.mrb[0].mxu0
      %v1582 = vadd.f32 0.0, %v1581
      %v1583 = vpop.f32.mrb[0].mxu0
      %1584 = vmatprep.mubr.f32.mxu0 0.0
      %1585 = vmatmul.mubr.f32.gmra.mrb[0].mxu0 %v1498
      %v1586 = vpop.f32.mrb[0].mxu0
      %v1587 = vadd.f32 0.0, %v1586
      %v1588 = vpop.f32.mrb[0].mxu0
      %1589 = vdwg.mxu0
      %v1590 = vadd.f32 %v1341, %v1567
      %v1591 = vadd.f32 %v1346, %v1572
      %v1592 = vadd.f32 %v1351, %v1577
      %v1593 = vadd.f32 %v1356, %v1582
      %v1594 = vadd.f32 %v1361, %v1587
      %s1595 = scalar_lea.vmem %s4, 240
      %v1596 = vld [vmem:[%s1595] sm:$0xff]
      %v1597 = vld [vmem:[%s1595 + $0x8] sm:$0xff]
      %v1598 = vld [vmem:[%s1595 + $0x10] sm:$0xff]
      %v1599 = vld [vmem:[%s1595 + $0x18] sm:$0xff]
      %v1600 = vld [vmem:[%s1595 + $0x20] sm:$0xff]
      %v1601 = vld [vmem:[%s1595 + $0x28] sm:$0xff]
      %v1602 = vld [vmem:[%s1595 + $0x30] sm:$0xff]
      %v1603 = vld [vmem:[%s1595 + $0x38] sm:$0xff]
      %v1604 = vld [vmem:[%s1595 + $0x40] sm:$0xf]
      %v1605 = vld [vmem:[%s1595 + $0x48] sm:$0xf]
      %v1607 = vsel %vm918, %v1597, 0
      %v1610 = vsel %vm918, %v1599, 0
      %v1613 = vsel %vm918, %v1601, 0
      %v1616 = vsel %vm918, %v1603, 0
      %v1619 = vsel %vm918, %v1605, 0
      %1621 = vmatprep.subr.mxu0 0.0
      %1622 = vmatpush1.msra.mxu0 %v879
      %1623 = vmatprep.subr.mxu0 0.0
      %1624 = vmatpush1.msra.mxu0 %v880
      %1625 = vmatprep.subr.mxu0 0.0
      %1626 = vmatpush1.msra.mxu0 %v881
      %1627 = vmatprep.subr.mxu0 0.0
      %1628 = vmatpush1.msra.mxu0 %v882
      %1629 = vmatprep.subr.mxu0 0.0
      %1630 = vmatpush1.msra.mxu0 %v883
      %1631 = vmatprep.subr.mxu0 0.0
      %1632 = vmatpush1.msra.mxu0 %v884
      %1633 = vmatprep.subr.mxu0 0.0
      %1634 = vmatpush1.msra.mxu0 %v885
      %1635 = vmatprep.subr.mxu0 0.0
      %1636 = vmatpush1.msra.mxu0 %v886
      %1637 = vmatprep.subr.mxu0 0.0
      %1638 = vmatpush1.msra.mxu0 %v887
      %1639 = vmatprep.subr.mxu0 0.0
      %1640 = vmatpush1.msra.mxu0 %v888
      %1641 = vmatprep.subr.mxu0 0.0
      %1642 = vmatpush1.msra.mxu0 %v889
      %1643 = vmatprep.subr.mxu0 0.0
      %1644 = vmatpush1.msra.mxu0 %v890
      %1645 = vmatprep.subr.mxu0 0.0
      %1646 = vmatpush1.msra.mxu0 %v891
      %1647 = vmatprep.subr.mxu0 0.0
      %1648 = vmatpush1.msra.mxu0 %v892
      %1649 = vmatprep.subr.mxu0 0.0
      %1650 = vmatpush1.msra.mxu0 %v893
      %1651 = vmatprep.subr.mxu0 0.0
      %1652 = vmatpush1.msra.mxu0 %v894
      %1653 = vmatprep.subr.mxu0 0.0
      %1654 = vmatpush1.msra.mxu0 %v895
      %1655 = vmatprep.subr.mxu0 0.0
      %1656 = vmatpush1.msra.mxu0 %v896
      %1657 = vmatprep.subr.mxu0 0.0
      %1658 = vmatpush1.msra.mxu0 %v897
      %1659 = vmatprep.subr.mxu0 0.0
      %1660 = vmatpush1.msra.mxu0 %v898
      %1661 = vmatprep.subr.mxu0 0.0
      %1662 = vmatpush1.msra.mxu0 %v899
      %1663 = vmatprep.subr.mxu0 0.0
      %1664 = vmatpush1.msra.mxu0 %v900
      %1665 = vmatprep.subr.mxu0 0.0
      %1666 = vmatpush1.msra.mxu0 %v901
      %1667 = vmatprep.subr.mxu0 0.0
      %1668 = vmatpush1.msra.mxu0 %v902
      %1669 = vmatprep.subr.mxu0 0.0
      %1670 = vmatpush1.msra.mxu0 %v903
      %1671 = vmatprep.subr.mxu0 0.0
      %1672 = vmatpush1.msra.mxu0 %v904
      %1673 = vmatprep.subr.mxu0 0.0
      %1674 = vmatpush1.msra.mxu0 %v905
      %1675 = vmatprep.subr.mxu0 0.0
      %1676 = vmatpush1.msra.mxu0 %v906
      %1677 = vmatprep.subr.mxu0 0.0
      %1678 = vmatpush1.msra.mxu0 %v936
      %1679 = vmatprep.subr.mxu0 0.0
      %1680 = vmatpush1.msra.mxu0 0.0
      %1681 = vmatprep.subr.mxu0 0.0
      %1682 = vmatpush1.msra.mxu0 0.0
      %1683 = vmatprep.subr.mxu0 0.0
      %1684 = vmatpush1.msra.mxu0 0.0
      %1685 = vmatprep.mubr.f32.mxu0 %v1607
      %1686 = vmatmul.mubr.f32.gmra.mrb[0].mxu0 %v1596
      %v1687 = vpop.f32.mrb[0].mxu0
      %v1688 = vadd.f32 0.0, %v1687
      %v1689 = vpop.f32.mrb[0].mxu0
      %1690 = vmatprep.mubr.f32.mxu0 %v1610
      %1691 = vmatmul.mubr.f32.gmra.mrb[0].mxu0 %v1598
      %v1692 = vpop.f32.mrb[0].mxu0
      %v1693 = vadd.f32 0.0, %v1692
      %v1694 = vpop.f32.mrb[0].mxu0
      %1695 = vmatprep.mubr.f32.mxu0 %v1613
      %1696 = vmatmul.mubr.f32.gmra.mrb[0].mxu0 %v1600
      %v1697 = vpop.f32.mrb[0].mxu0
      %v1698 = vadd.f32 0.0, %v1697
      %v1699 = vpop.f32.mrb[0].mxu0
      %1700 = vmatprep.mubr.f32.mxu0 %v1616
      %1701 = vmatmul.mubr.f32.gmra.mrb[0].mxu0 %v1602
      %v1702 = vpop.f32.mrb[0].mxu0
      %v1703 = vadd.f32 0.0, %v1702
      %v1704 = vpop.f32.mrb[0].mxu0
      %1705 = vmatprep.mubr.f32.mxu0 %v1619
      %1706 = vmatmul.mubr.f32.gmra.mrb[0].mxu0 %v1604
      %v1707 = vpop.f32.mrb[0].mxu0
      %v1708 = vadd.f32 0.0, %v1707
      %v1709 = vpop.f32.mrb[0].mxu0
      %1710 = vdwg.mxu0
      %s1711 = scalar_lea.vmem %s5, 96
      %v1712 = vld [vmem:[%s1711] sm:$0xff]
      %v1713 = vld [vmem:[%s1711 + $0x8] sm:$0xff]
      %v1714 = vld [vmem:[%s1711 + $0x10] sm:$0xff]
      %v1715 = vld [vmem:[%s1711 + $0x18] sm:$0xff]
      %v1717 = vsel %vm1153, %v1688, 0
      %v1720 = vsel %vm1153, %v1693, 0
      %v1723 = vsel %vm1153, %v1698, 0
      %v1726 = vsel %vm1153, %v1703, 0
      %v1729 = vsel %vm1153, %v1708, 0
      %1731 = vmatprep.subr.mxu0 0.0
      %1732 = vmatpush1.msra.mxu0 %v1712
      %1733 = vmatprep.subr.mxu0 0.0
      %1734 = vmatpush1.msra.mxu0 %v1713
      %1735 = vmatprep.subr.mxu0 0.0
      %1736 = vmatpush1.msra.mxu0 %v1714
      %1737 = vmatprep.subr.mxu0 0.0
      %1738 = vmatpush1.msra.mxu0 %v1715
      %1739 = vmatprep.subr.mxu0 0.0
      %1740 = vmatpush1.msra.mxu0 0.0
      %1741 = vmatprep.subr.mxu0 0.0
      %1742 = vmatpush1.msra.mxu0 0.0
      %1743 = vmatprep.subr.mxu0 0.0
      %1744 = vmatpush1.msra.mxu0 0.0
      %1745 = vmatprep.subr.mxu0 0.0
      %1746 = vmatpush1.msra.mxu0 0.0
      %1747 = vmatprep.subr.mxu0 0.0
      %1748 = vmatpush1.msra.mxu0 0.0
      %1749 = vmatprep.subr.mxu0 0.0
      %1750 = vmatpush1.msra.mxu0 0.0
      %1751 = vmatprep.subr.mxu0 0.0
      %1752 = vmatpush1.msra.mxu0 0.0
      %1753 = vmatprep.subr.mxu0 0.0
      %1754 = vmatpush1.msra.mxu0 0.0
      %1755 = vmatprep.subr.mxu0 0.0
      %1756 = vmatpush1.msra.mxu0 0.0
      %1757 = vmatprep.subr.mxu0 0.0
      %1758 = vmatpush1.msra.mxu0 0.0
      %1759 = vmatprep.subr.mxu0 0.0
      %1760 = vmatpush1.msra.mxu0 0.0
      %1761 = vmatprep.subr.mxu0 0.0
      %1762 = vmatpush1.msra.mxu0 0.0
      %1763 = vmatprep.subr.mxu0 0.0
      %1764 = vmatpush1.msra.mxu0 0.0
      %1765 = vmatprep.subr.mxu0 0.0
      %1766 = vmatpush1.msra.mxu0 0.0
      %1767 = vmatprep.subr.mxu0 0.0
      %1768 = vmatpush1.msra.mxu0 0.0
      %1769 = vmatprep.subr.mxu0 0.0
      %1770 = vmatpush1.msra.mxu0 0.0
      %1771 = vmatprep.subr.mxu0 0.0
      %1772 = vmatpush1.msra.mxu0 0.0
      %1773 = vmatprep.subr.mxu0 0.0
      %1774 = vmatpush1.msra.mxu0 0.0
      %1775 = vmatprep.subr.mxu0 0.0
      %1776 = vmatpush1.msra.mxu0 0.0
      %1777 = vmatprep.subr.mxu0 0.0
      %1778 = vmatpush1.msra.mxu0 0.0
      %1779 = vmatprep.subr.mxu0 0.0
      %1780 = vmatpush1.msra.mxu0 0.0
      %1781 = vmatprep.subr.mxu0 0.0
      %1782 = vmatpush1.msra.mxu0 0.0
      %1783 = vmatprep.subr.mxu0 0.0
      %1784 = vmatpush1.msra.mxu0 0.0
      %1785 = vmatprep.subr.mxu0 0.0
      %1786 = vmatpush1.msra.mxu0 0.0
      %1787 = vmatprep.subr.mxu0 0.0
      %1788 = vmatpush1.msra.mxu0 0.0
      %1789 = vmatprep.subr.mxu0 0.0
      %1790 = vmatpush1.msra.mxu0 0.0
      %1791 = vmatprep.subr.mxu0 0.0
      %1792 = vmatpush1.msra.mxu0 0.0
      %1793 = vmatprep.subr.mxu0 0.0
      %1794 = vmatpush1.msra.mxu0 0.0
      %1795 = vmatprep.mubr.f32.mxu0 0.0
      %1796 = vmatmul.mubr.f32.gmra.mrb[0].mxu0 %v1717
      %v1797 = vpop.f32.mrb[0].mxu0
      %v1798 = vadd.f32 0.0, %v1797
      %v1799 = vpop.f32.mrb[0].mxu0
      %1800 = vmatprep.mubr.f32.mxu0 0.0
      %1801 = vmatmul.mubr.f32.gmra.mrb[0].mxu0 %v1720
      %v1802 = vpop.f32.mrb[0].mxu0
      %v1803 = vadd.f32 0.0, %v1802
      %v1804 = vpop.f32.mrb[0].mxu0
      %1805 = vmatprep.mubr.f32.mxu0 0.0
      %1806 = vmatmul.mubr.f32.gmra.mrb[0].mxu0 %v1723
      %v1807 = vpop.f32.mrb[0].mxu0
      %v1808 = vadd.f32 0.0, %v1807
      %v1809 = vpop.f32.mrb[0].mxu0
      %1810 = vmatprep.mubr.f32.mxu0 0.0
      %1811 = vmatmul.mubr.f32.gmra.mrb[0].mxu0 %v1726
      %v1812 = vpop.f32.mrb[0].mxu0
      %v1813 = vadd.f32 0.0, %v1812
      %v1814 = vpop.f32.mrb[0].mxu0
      %1815 = vmatprep.mubr.f32.mxu0 0.0
      %1816 = vmatmul.mubr.f32.gmra.mrb[0].mxu0 %v1729
      %v1817 = vpop.f32.mrb[0].mxu0
      %v1818 = vadd.f32 0.0, %v1817
      %v1819 = vpop.f32.mrb[0].mxu0
      %1820 = vdwg.mxu0
      %v1821 = vadd.f32 %v1590, %v1798
      %v1822 = vadd.f32 %v1591, %v1803
      %v1823 = vadd.f32 %v1592, %v1808
      %v1824 = vadd.f32 %v1593, %v1813
      %v1825 = vadd.f32 %v1594, %v1818
      %s1826 = scalar_lea.vmem %s4, 320
      %v1827 = vld [vmem:[%s1826] sm:$0xff]
      %v1828 = vld [vmem:[%s1826 + $0x8] sm:$0xff]
      %v1829 = vld [vmem:[%s1826 + $0x10] sm:$0xff]
      %v1830 = vld [vmem:[%s1826 + $0x18] sm:$0xff]
      %v1831 = vld [vmem:[%s1826 + $0x20] sm:$0xff]
      %v1832 = vld [vmem:[%s1826 + $0x28] sm:$0xff]
      %v1833 = vld [vmem:[%s1826 + $0x30] sm:$0xff]
      %v1834 = vld [vmem:[%s1826 + $0x38] sm:$0xff]
      %v1835 = vld [vmem:[%s1826 + $0x40] sm:$0xf]
      %v1836 = vld [vmem:[%s1826 + $0x48] sm:$0xf]
      %v1838 = vsel %vm918, %v1828, 0
      %v1841 = vsel %vm918, %v1830, 0
      %v1844 = vsel %vm918, %v1832, 0
      %v1847 = vsel %vm918, %v1834, 0
      %v1850 = vsel %vm918, %v1836, 0
      %1852 = vmatprep.subr.mxu0 0.0
      %1853 = vmatpush1.msra.mxu0 %v879
      %1854 = vmatprep.subr.mxu0 0.0
      %1855 = vmatpush1.msra.mxu0 %v880
      %1856 = vmatprep.subr.mxu0 0.0
      %1857 = vmatpush1.msra.mxu0 %v881
      %1858 = vmatprep.subr.mxu0 0.0
      %1859 = vmatpush1.msra.mxu0 %v882
      %1860 = vmatprep.subr.mxu0 0.0
      %1861 = vmatpush1.msra.mxu0 %v883
      %1862 = vmatprep.subr.mxu0 0.0
      %1863 = vmatpush1.msra.mxu0 %v884
      %1864 = vmatprep.subr.mxu0 0.0
      %1865 = vmatpush1.msra.mxu0 %v885
      %1866 = vmatprep.subr.mxu0 0.0
      %1867 = vmatpush1.msra.mxu0 %v886
      %1868 = vmatprep.subr.mxu0 0.0
      %1869 = vmatpush1.msra.mxu0 %v887
      %1870 = vmatprep.subr.mxu0 0.0
      %1871 = vmatpush1.msra.mxu0 %v888
      %1872 = vmatprep.subr.mxu0 0.0
      %1873 = vmatpush1.msra.mxu0 %v889
      %1874 = vmatprep.subr.mxu0 0.0
      %1875 = vmatpush1.msra.mxu0 %v890
      %1876 = vmatprep.subr.mxu0 0.0
      %1877 = vmatpush1.msra.mxu0 %v891
      %1878 = vmatprep.subr.mxu0 0.0
      %1879 = vmatpush1.msra.mxu0 %v892
      %1880 = vmatprep.subr.mxu0 0.0
      %1881 = vmatpush1.msra.mxu0 %v893
      %1882 = vmatprep.subr.mxu0 0.0
      %1883 = vmatpush1.msra.mxu0 %v894
      %1884 = vmatprep.subr.mxu0 0.0
      %1885 = vmatpush1.msra.mxu0 %v895
      %1886 = vmatprep.subr.mxu0 0.0
      %1887 = vmatpush1.msra.mxu0 %v896
      %1888 = vmatprep.subr.mxu0 0.0
      %1889 = vmatpush1.msra.mxu0 %v897
      %1890 = vmatprep.subr.mxu0 0.0
      %1891 = vmatpush1.msra.mxu0 %v898
      %1892 = vmatprep.subr.mxu0 0.0
      %1893 = vmatpush1.msra.mxu0 %v899
      %1894 = vmatprep.subr.mxu0 0.0
      %1895 = vmatpush1.msra.mxu0 %v900
      %1896 = vmatprep.subr.mxu0 0.0
      %1897 = vmatpush1.msra.mxu0 %v901
      %1898 = vmatprep.subr.mxu0 0.0
      %1899 = vmatpush1.msra.mxu0 %v902
      %1900 = vmatprep.subr.mxu0 0.0
      %1901 = vmatpush1.msra.mxu0 %v903
      %1902 = vmatprep.subr.mxu0 0.0
      %1903 = vmatpush1.msra.mxu0 %v904
      %1904 = vmatprep.subr.mxu0 0.0
      %1905 = vmatpush1.msra.mxu0 %v905
      %1906 = vmatprep.subr.mxu0 0.0
      %1907 = vmatpush1.msra.mxu0 %v906
      %1908 = vmatprep.subr.mxu0 0.0
      %1909 = vmatpush1.msra.mxu0 %v936
      %1910 = vmatprep.subr.mxu0 0.0
      %1911 = vmatpush1.msra.mxu0 0.0
      %1912 = vmatprep.subr.mxu0 0.0
      %1913 = vmatpush1.msra.mxu0 0.0
      %1914 = vmatprep.subr.mxu0 0.0
      %1915 = vmatpush1.msra.mxu0 0.0
      %1916 = vmatprep.mubr.f32.mxu0 %v1838
      %1917 = vmatmul.mubr.f32.gmra.mrb[0].mxu0 %v1827
      %v1918 = vpop.f32.mrb[0].mxu0
      %v1919 = vadd.f32 0.0, %v1918
      %v1920 = vpop.f32.mrb[0].mxu0
      %1921 = vmatprep.mubr.f32.mxu0 %v1841
      %1922 = vmatmul.mubr.f32.gmra.mrb[0].mxu0 %v1829
      %v1923 = vpop.f32.mrb[0].mxu0
      %v1924 = vadd.f32 0.0, %v1923
      %v1925 = vpop.f32.mrb[0].mxu0
      %1926 = vmatprep.mubr.f32.mxu0 %v1844
      %1927 = vmatmul.mubr.f32.gmra.mrb[0].mxu0 %v1831
      %v1928 = vpop.f32.mrb[0].mxu0
      %v1929 = vadd.f32 0.0, %v1928
      %v1930 = vpop.f32.mrb[0].mxu0
      %1931 = vmatprep.mubr.f32.mxu0 %v1847
      %1932 = vmatmul.mubr.f32.gmra.mrb[0].mxu0 %v1833
      %v1933 = vpop.f32.mrb[0].mxu0
      %v1934 = vadd.f32 0.0, %v1933
      %v1935 = vpop.f32.mrb[0].mxu0
      %1936 = vmatprep.mubr.f32.mxu0 %v1850
      %1937 = vmatmul.mubr.f32.gmra.mrb[0].mxu0 %v1835
      %v1938 = vpop.f32.mrb[0].mxu0
      %v1939 = vadd.f32 0.0, %v1938
      %v1940 = vpop.f32.mrb[0].mxu0
      %1941 = vdwg.mxu0
      %s1942 = scalar_lea.vmem %s5, 128
      %v1943 = vld [vmem:[%s1942] sm:$0xff]
      %v1944 = vld [vmem:[%s1942 + $0x8] sm:$0xff]
      %v1945 = vld [vmem:[%s1942 + $0x10] sm:$0xff]
      %v1946 = vld [vmem:[%s1942 + $0x18] sm:$0xff]
      %v1948 = vsel %vm1153, %v1919, 0
      %v1951 = vsel %vm1153, %v1924, 0
      %v1954 = vsel %vm1153, %v1929, 0
      %v1957 = vsel %vm1153, %v1934, 0
      %v1960 = vsel %vm1153, %v1939, 0
      %1962 = vmatprep.subr.mxu0 0.0
      %1963 = vmatpush1.msra.mxu0 %v1943
      %1964 = vmatprep.subr.mxu0 0.0
      %1965 = vmatpush1.msra.mxu0 %v1944
      %1966 = vmatprep.subr.mxu0 0.0
      %1967 = vmatpush1.msra.mxu0 %v1945
      %1968 = vmatprep.subr.mxu0 0.0
      %1969 = vmatpush1.msra.mxu0 %v1946
      %1970 = vmatprep.subr.mxu0 0.0
      %1971 = vmatpush1.msra.mxu0 0.0
      %1972 = vmatprep.subr.mxu0 0.0
      %1973 = vmatpush1.msra.mxu0 0.0
      %1974 = vmatprep.subr.mxu0 0.0
      %1975 = vmatpush1.msra.mxu0 0.0
      %1976 = vmatprep.subr.mxu0 0.0
      %1977 = vmatpush1.msra.mxu0 0.0
      %1978 = vmatprep.subr.mxu0 0.0
      %1979 = vmatpush1.msra.mxu0 0.0
      %1980 = vmatprep.subr.mxu0 0.0
      %1981 = vmatpush1.msra.mxu0 0.0
      %1982 = vmatprep.subr.mxu0 0.0
      %1983 = vmatpush1.msra.mxu0 0.0
      %1984 = vmatprep.subr.mxu0 0.0
      %1985 = vmatpush1.msra.mxu0 0.0
      %1986 = vmatprep.subr.mxu0 0.0
      %1987 = vmatpush1.msra.mxu0 0.0
      %1988 = vmatprep.subr.mxu0 0.0
      %1989 = vmatpush1.msra.mxu0 0.0
      %1990 = vmatprep.subr.mxu0 0.0
      %1991 = vmatpush1.msra.mxu0 0.0
      %1992 = vmatprep.subr.mxu0 0.0
      %1993 = vmatpush1.msra.mxu0 0.0
      %1994 = vmatprep.subr.mxu0 0.0
      %1995 = vmatpush1.msra.mxu0 0.0
      %1996 = vmatprep.subr.mxu0 0.0
      %1997 = vmatpush1.msra.mxu0 0.0
      %1998 = vmatprep.subr.mxu0 0.0
      %1999 = vmatpush1.msra.mxu0 0.0
      %2000 = vmatprep.subr.mxu0 0.0
      %2001 = vmatpush1.msra.mxu0 0.0
      %2002 = vmatprep.subr.mxu0 0.0
      %2003 = vmatpush1.msra.mxu0 0.0
      %2004 = vmatprep.subr.mxu0 0.0
      %2005 = vmatpush1.msra.mxu0 0.0
      %2006 = vmatprep.subr.mxu0 0.0
      %2007 = vmatpush1.msra.mxu0 0.0
      %2008 = vmatprep.subr.mxu0 0.0
      %2009 = vmatpush1.msra.mxu0 0.0
      %2010 = vmatprep.subr.mxu0 0.0
      %2011 = vmatpush1.msra.mxu0 0.0
      %2012 = vmatprep.subr.mxu0 0.0
      %2013 = vmatpush1.msra.mxu0 0.0
      %2014 = vmatprep.subr.mxu0 0.0
      %2015 = vmatpush1.msra.mxu0 0.0
      %2016 = vmatprep.subr.mxu0 0.0
      %2017 = vmatpush1.msra.mxu0 0.0
      %2018 = vmatprep.subr.mxu0 0.0
      %2019 = vmatpush1.msra.mxu0 0.0
      %2020 = vmatprep.subr.mxu0 0.0
      %2021 = vmatpush1.msra.mxu0 0.0
      %2022 = vmatprep.subr.mxu0 0.0
      %2023 = vmatpush1.msra.mxu0 0.0
      %2024 = vmatprep.subr.mxu0 0.0
      %2025 = vmatpush1.msra.mxu0 0.0
      %2026 = vmatprep.mubr.f32.mxu0 0.0
      %2027 = vmatmul.mubr.f32.gmra.mrb[0].mxu0 %v1948
      %v2028 = vpop.f32.mrb[0].mxu0
      %v2029 = vadd.f32 0.0, %v2028
      %v2030 = vpop.f32.mrb[0].mxu0
      %2031 = vmatprep.mubr.f32.mxu0 0.0
      %2032 = vmatmul.mubr.f32.gmra.mrb[0].mxu0 %v1951
      %v2033 = vpop.f32.mrb[0].mxu0
      %v2034 = vadd.f32 0.0, %v2033
      %v2035 = vpop.f32.mrb[0].mxu0
      %2036 = vmatprep.mubr.f32.mxu0 0.0
      %2037 = vmatmul.mubr.f32.gmra.mrb[0].mxu0 %v1954
      %v2038 = vpop.f32.mrb[0].mxu0
      %v2039 = vadd.f32 0.0, %v2038
      %v2040 = vpop.f32.mrb[0].mxu0
      %2041 = vmatprep.mubr.f32.mxu0 0.0
      %2042 = vmatmul.mubr.f32.gmra.mrb[0].mxu0 %v1957
      %v2043 = vpop.f32.mrb[0].mxu0
      %v2044 = vadd.f32 0.0, %v2043
      %v2045 = vpop.f32.mrb[0].mxu0
      %2046 = vmatprep.mubr.f32.mxu0 0.0
      %2047 = vmatmul.mubr.f32.gmra.mrb[0].mxu0 %v1960
      %v2048 = vpop.f32.mrb[0].mxu0
      %v2049 = vadd.f32 0.0, %v2048
      %v2050 = vpop.f32.mrb[0].mxu0
      %2051 = vdwg.mxu0
      %v2052 = vadd.f32 %v1821, %v2029
      %v2053 = vadd.f32 %v1822, %v2034
      %v2054 = vadd.f32 %v1823, %v2039
      %v2055 = vadd.f32 %v1824, %v2044
      %v2056 = vadd.f32 %v1825, %v2049
      %s2057 = scalar_lea.vmem %s4, 400
      %v2058 = vld [vmem:[%s2057] sm:$0xff]
      %v2059 = vld [vmem:[%s2057 + $0x8] sm:$0xff]
      %v2060 = vld [vmem:[%s2057 + $0x10] sm:$0xff]
      %v2061 = vld [vmem:[%s2057 + $0x18] sm:$0xff]
      %v2062 = vld [vmem:[%s2057 + $0x20] sm:$0xff]
      %v2063 = vld [vmem:[%s2057 + $0x28] sm:$0xff]
      %v2064 = vld [vmem:[%s2057 + $0x30] sm:$0xff]
      %v2065 = vld [vmem:[%s2057 + $0x38] sm:$0xff]
      %v2066 = vld [vmem:[%s2057 + $0x40] sm:$0xf]
      %v2067 = vld [vmem:[%s2057 + $0x48] sm:$0xf]
      %v2069 = vsel %vm918, %v2059, 0
      %v2072 = vsel %vm918, %v2061, 0
      %v2075 = vsel %vm918, %v2063, 0
      %v2078 = vsel %vm918, %v2065, 0
      %v2081 = vsel %vm918, %v2067, 0
      %2083 = vmatprep.subr.mxu0 0.0
      %2084 = vmatpush1.msra.mxu0 %v879
      %2085 = vmatprep.subr.mxu0 0.0
      %2086 = vmatpush1.msra.mxu0 %v880
      %2087 = vmatprep.subr.mxu0 0.0
      %2088 = vmatpush1.msra.mxu0 %v881
      %2089 = vmatprep.subr.mxu0 0.0
      %2090 = vmatpush1.msra.mxu0 %v882
      %2091 = vmatprep.subr.mxu0 0.0
      %2092 = vmatpush1.msra.mxu0 %v883
      %2093 = vmatprep.subr.mxu0 0.0
      %2094 = vmatpush1.msra.mxu0 %v884
      %2095 = vmatprep.subr.mxu0 0.0
      %2096 = vmatpush1.msra.mxu0 %v885
      %2097 = vmatprep.subr.mxu0 0.0
      %2098 = vmatpush1.msra.mxu0 %v886
      %2099 = vmatprep.subr.mxu0 0.0
      %2100 = vmatpush1.msra.mxu0 %v887
      %2101 = vmatprep.subr.mxu0 0.0
      %2102 = vmatpush1.msra.mxu0 %v888
      %2103 = vmatprep.subr.mxu0 0.0
      %2104 = vmatpush1.msra.mxu0 %v889
      %2105 = vmatprep.subr.mxu0 0.0
      %2106 = vmatpush1.msra.mxu0 %v890
      %2107 = vmatprep.subr.mxu0 0.0
      %2108 = vmatpush1.msra.mxu0 %v891
      %2109 = vmatprep.subr.mxu0 0.0
      %2110 = vmatpush1.msra.mxu0 %v892
      %2111 = vmatprep.subr.mxu0 0.0
      %2112 = vmatpush1.msra.mxu0 %v893
      %2113 = vmatprep.subr.mxu0 0.0
      %2114 = vmatpush1.msra.mxu0 %v894
      %2115 = vmatprep.subr.mxu0 0.0
      %2116 = vmatpush1.msra.mxu0 %v895
      %2117 = vmatprep.subr.mxu0 0.0
      %2118 = vmatpush1.msra.mxu0 %v896
      %2119 = vmatprep.subr.mxu0 0.0
      %2120 = vmatpush1.msra.mxu0 %v897
      %2121 = vmatprep.subr.mxu0 0.0
      %2122 = vmatpush1.msra.mxu0 %v898
      %2123 = vmatprep.subr.mxu0 0.0
      %2124 = vmatpush1.msra.mxu0 %v899
      %2125 = vmatprep.subr.mxu0 0.0
      %2126 = vmatpush1.msra.mxu0 %v900
      %2127 = vmatprep.subr.mxu0 0.0
      %2128 = vmatpush1.msra.mxu0 %v901
      %2129 = vmatprep.subr.mxu0 0.0
      %2130 = vmatpush1.msra.mxu0 %v902
      %2131 = vmatprep.subr.mxu0 0.0
      %2132 = vmatpush1.msra.mxu0 %v903
      %2133 = vmatprep.subr.mxu0 0.0
      %2134 = vmatpush1.msra.mxu0 %v904
      %2135 = vmatprep.subr.mxu0 0.0
      %2136 = vmatpush1.msra.mxu0 %v905
      %2137 = vmatprep.subr.mxu0 0.0
      %2138 = vmatpush1.msra.mxu0 %v906
      %2139 = vmatprep.subr.mxu0 0.0
      %2140 = vmatpush1.msra.mxu0 %v936
      %2141 = vmatprep.subr.mxu0 0.0
      %2142 = vmatpush1.msra.mxu0 0.0
      %2143 = vmatprep.subr.mxu0 0.0
      %2144 = vmatpush1.msra.mxu0 0.0
      %2145 = vmatprep.subr.mxu0 0.0
      %2146 = vmatpush1.msra.mxu0 0.0
      %2147 = vmatprep.mubr.f32.mxu0 %v2069
      %2148 = vmatmul.mubr.f32.gmra.mrb[0].mxu0 %v2058
      %v2149 = vpop.f32.mrb[0].mxu0
      %v2150 = vadd.f32 0.0, %v2149
      %v2151 = vpop.f32.mrb[0].mxu0
      %2152 = vmatprep.mubr.f32.mxu0 %v2072
      %2153 = vmatmul.mubr.f32.gmra.mrb[0].mxu0 %v2060
      %v2154 = vpop.f32.mrb[0].mxu0
      %v2155 = vadd.f32 0.0, %v2154
      %v2156 = vpop.f32.mrb[0].mxu0
      %2157 = vmatprep.mubr.f32.mxu0 %v2075
      %2158 = vmatmul.mubr.f32.gmra.mrb[0].mxu0 %v2062
      %v2159 = vpop.f32.mrb[0].mxu0
      %v2160 = vadd.f32 0.0, %v2159
      %v2161 = vpop.f32.mrb[0].mxu0
      %2162 = vmatprep.mubr.f32.mxu0 %v2078
      %2163 = vmatmul.mubr.f32.gmra.mrb[0].mxu0 %v2064
      %v2164 = vpop.f32.mrb[0].mxu0
      %v2165 = vadd.f32 0.0, %v2164
      %v2166 = vpop.f32.mrb[0].mxu0
      %2167 = vmatprep.mubr.f32.mxu0 %v2081
      %2168 = vmatmul.mubr.f32.gmra.mrb[0].mxu0 %v2066
      %v2169 = vpop.f32.mrb[0].mxu0
      %v2170 = vadd.f32 0.0, %v2169
      %v2171 = vpop.f32.mrb[0].mxu0
      %2172 = vdwg.mxu0
      %s2173 = scalar_lea.vmem %s5, 160
      %v2174 = vld [vmem:[%s2173] sm:$0xff]
      %v2175 = vld [vmem:[%s2173 + $0x8] sm:$0xff]
      %v2176 = vld [vmem:[%s2173 + $0x10] sm:$0xff]
      %v2177 = vld [vmem:[%s2173 + $0x18] sm:$0xff]
      %v2179 = vsel %vm1153, %v2150, 0
      %v2182 = vsel %vm1153, %v2155, 0
      %v2185 = vsel %vm1153, %v2160, 0
      %v2188 = vsel %vm1153, %v2165, 0
      %v2191 = vsel %vm1153, %v2170, 0
      %2193 = vmatprep.subr.mxu0 0.0
      %2194 = vmatpush1.msra.mxu0 %v2174
      %2195 = vmatprep.subr.mxu0 0.0
      %2196 = vmatpush1.msra.mxu0 %v2175
      %2197 = vmatprep.subr.mxu0 0.0
      %2198 = vmatpush1.msra.mxu0 %v2176
      %2199 = vmatprep.subr.mxu0 0.0
      %2200 = vmatpush1.msra.mxu0 %v2177
      %2201 = vmatprep.subr.mxu0 0.0
      %2202 = vmatpush1.msra.mxu0 0.0
      %2203 = vmatprep.subr.mxu0 0.0
      %2204 = vmatpush1.msra.mxu0 0.0
      %2205 = vmatprep.subr.mxu0 0.0
      %2206 = vmatpush1.msra.mxu0 0.0
      %2207 = vmatprep.subr.mxu0 0.0
      %2208 = vmatpush1.msra.mxu0 0.0
      %2209 = vmatprep.subr.mxu0 0.0
      %2210 = vmatpush1.msra.mxu0 0.0
      %2211 = vmatprep.subr.mxu0 0.0
      %2212 = vmatpush1.msra.mxu0 0.0
      %2213 = vmatprep.subr.mxu0 0.0
      %2214 = vmatpush1.msra.mxu0 0.0
      %2215 = vmatprep.subr.mxu0 0.0
      %2216 = vmatpush1.msra.mxu0 0.0
      %2217 = vmatprep.subr.mxu0 0.0
      %2218 = vmatpush1.msra.mxu0 0.0
      %2219 = vmatprep.subr.mxu0 0.0
      %2220 = vmatpush1.msra.mxu0 0.0
      %2221 = vmatprep.subr.mxu0 0.0
      %2222 = vmatpush1.msra.mxu0 0.0
      %2223 = vmatprep.subr.mxu0 0.0
      %2224 = vmatpush1.msra.mxu0 0.0
      %2225 = vmatprep.subr.mxu0 0.0
      %2226 = vmatpush1.msra.mxu0 0.0
      %2227 = vmatprep.subr.mxu0 0.0
      %2228 = vmatpush1.msra.mxu0 0.0
      %2229 = vmatprep.subr.mxu0 0.0
      %2230 = vmatpush1.msra.mxu0 0.0
      %2231 = vmatprep.subr.mxu0 0.0
      %2232 = vmatpush1.msra.mxu0 0.0
      %2233 = vmatprep.subr.mxu0 0.0
      %2234 = vmatpush1.msra.mxu0 0.0
      %2235 = vmatprep.subr.mxu0 0.0
      %2236 = vmatpush1.msra.mxu0 0.0
      %2237 = vmatprep.subr.mxu0 0.0
      %2238 = vmatpush1.msra.mxu0 0.0
      %2239 = vmatprep.subr.mxu0 0.0
      %2240 = vmatpush1.msra.mxu0 0.0
      %2241 = vmatprep.subr.mxu0 0.0
      %2242 = vmatpush1.msra.mxu0 0.0
      %2243 = vmatprep.subr.mxu0 0.0
      %2244 = vmatpush1.msra.mxu0 0.0
      %2245 = vmatprep.subr.mxu0 0.0
      %2246 = vmatpush1.msra.mxu0 0.0
      %2247 = vmatprep.subr.mxu0 0.0
      %2248 = vmatpush1.msra.mxu0 0.0
      %2249 = vmatprep.subr.mxu0 0.0
      %2250 = vmatpush1.msra.mxu0 0.0
      %2251 = vmatprep.subr.mxu0 0.0
      %2252 = vmatpush1.msra.mxu0 0.0
      %2253 = vmatprep.subr.mxu0 0.0
      %2254 = vmatpush1.msra.mxu0 0.0
      %2255 = vmatprep.subr.mxu0 0.0
      %2256 = vmatpush1.msra.mxu0 0.0
      %2257 = vmatprep.mubr.f32.mxu0 0.0
      %2258 = vmatmul.mubr.f32.gmra.mrb[0].mxu0 %v2179
      %v2259 = vpop.f32.mrb[0].mxu0
      %v2260 = vadd.f32 0.0, %v2259
      %v2261 = vpop.f32.mrb[0].mxu0
      %2262 = vmatprep.mubr.f32.mxu0 0.0
      %2263 = vmatmul.mubr.f32.gmra.mrb[0].mxu0 %v2182
      %v2264 = vpop.f32.mrb[0].mxu0
      %v2265 = vadd.f32 0.0, %v2264
      %v2266 = vpop.f32.mrb[0].mxu0
      %2267 = vmatprep.mubr.f32.mxu0 0.0
      %2268 = vmatmul.mubr.f32.gmra.mrb[0].mxu0 %v2185
      %v2269 = vpop.f32.mrb[0].mxu0
      %v2270 = vadd.f32 0.0, %v2269
      %v2271 = vpop.f32.mrb[0].mxu0
      %2272 = vmatprep.mubr.f32.mxu0 0.0
      %2273 = vmatmul.mubr.f32.gmra.mrb[0].mxu0 %v2188
      %v2274 = vpop.f32.mrb[0].mxu0
      %v2275 = vadd.f32 0.0, %v2274
      %v2276 = vpop.f32.mrb[0].mxu0
      %2277 = vmatprep.mubr.f32.mxu0 0.0
      %2278 = vmatmul.mubr.f32.gmra.mrb[0].mxu0 %v2191
      %v2279 = vpop.f32.mrb[0].mxu0
      %v2280 = vadd.f32 0.0, %v2279
      %v2281 = vpop.f32.mrb[0].mxu0
      %2282 = vdwg.mxu0
      %v2283 = vadd.f32 %v2052, %v2260
      %v2284 = vadd.f32 %v2053, %v2265
      %v2285 = vadd.f32 %v2054, %v2270
      %v2286 = vadd.f32 %v2055, %v2275
      %v2287 = vadd.f32 %v2056, %v2280
      %s2288 = scalar_lea.vmem %s4, 480
      %v2289 = vld [vmem:[%s2288] sm:$0xff]
      %v2290 = vld [vmem:[%s2288 + $0x8] sm:$0xff]
      %v2291 = vld [vmem:[%s2288 + $0x10] sm:$0xff]
      %v2292 = vld [vmem:[%s2288 + $0x18] sm:$0xff]
      %v2293 = vld [vmem:[%s2288 + $0x20] sm:$0xff]
      %v2294 = vld [vmem:[%s2288 + $0x28] sm:$0xff]
      %v2295 = vld [vmem:[%s2288 + $0x30] sm:$0xff]
      %v2296 = vld [vmem:[%s2288 + $0x38] sm:$0xff]
      %v2297 = vld [vmem:[%s2288 + $0x40] sm:$0xf]
      %v2298 = vld [vmem:[%s2288 + $0x48] sm:$0xf]
      %v2300 = vsel %vm918, %v2290, 0
      %v2303 = vsel %vm918, %v2292, 0
      %v2306 = vsel %vm918, %v2294, 0
      %v2309 = vsel %vm918, %v2296, 0
      %v2312 = vsel %vm918, %v2298, 0
      %2314 = vmatprep.subr.mxu0 0.0
      %2315 = vmatpush1.msra.mxu0 %v879
      %2316 = vmatprep.subr.mxu0 0.0
      %2317 = vmatpush1.msra.mxu0 %v880
      %2318 = vmatprep.subr.mxu0 0.0
      %2319 = vmatpush1.msra.mxu0 %v881
      %2320 = vmatprep.subr.mxu0 0.0
      %2321 = vmatpush1.msra.mxu0 %v882
      %2322 = vmatprep.subr.mxu0 0.0
      %2323 = vmatpush1.msra.mxu0 %v883
      %2324 = vmatprep.subr.mxu0 0.0
      %2325 = vmatpush1.msra.mxu0 %v884
      %2326 = vmatprep.subr.mxu0 0.0
      %2327 = vmatpush1.msra.mxu0 %v885
      %2328 = vmatprep.subr.mxu0 0.0
      %2329 = vmatpush1.msra.mxu0 %v886
      %2330 = vmatprep.subr.mxu0 0.0
      %2331 = vmatpush1.msra.mxu0 %v887
      %2332 = vmatprep.subr.mxu0 0.0
      %2333 = vmatpush1.msra.mxu0 %v888
      %2334 = vmatprep.subr.mxu0 0.0
      %2335 = vmatpush1.msra.mxu0 %v889
      %2336 = vmatprep.subr.mxu0 0.0
      %2337 = vmatpush1.msra.mxu0 %v890
      %2338 = vmatprep.subr.mxu0 0.0
      %2339 = vmatpush1.msra.mxu0 %v891
      %2340 = vmatprep.subr.mxu0 0.0
      %2341 = vmatpush1.msra.mxu0 %v892
      %2342 = vmatprep.subr.mxu0 0.0
      %2343 = vmatpush1.msra.mxu0 %v893
      %2344 = vmatprep.subr.mxu0 0.0
      %2345 = vmatpush1.msra.mxu0 %v894
      %2346 = vmatprep.subr.mxu0 0.0
      %2347 = vmatpush1.msra.mxu0 %v895
      %2348 = vmatprep.subr.mxu0 0.0
      %2349 = vmatpush1.msra.mxu0 %v896
      %2350 = vmatprep.subr.mxu0 0.0
      %2351 = vmatpush1.msra.mxu0 %v897
      %2352 = vmatprep.subr.mxu0 0.0
      %2353 = vmatpush1.msra.mxu0 %v898
      %2354 = vmatprep.subr.mxu0 0.0
      %2355 = vmatpush1.msra.mxu0 %v899
      %2356 = vmatprep.subr.mxu0 0.0
      %2357 = vmatpush1.msra.mxu0 %v900
      %2358 = vmatprep.subr.mxu0 0.0
      %2359 = vmatpush1.msra.mxu0 %v901
      %2360 = vmatprep.subr.mxu0 0.0
      %2361 = vmatpush1.msra.mxu0 %v902
      %2362 = vmatprep.subr.mxu0 0.0
      %2363 = vmatpush1.msra.mxu0 %v903
      %2364 = vmatprep.subr.mxu0 0.0
      %2365 = vmatpush1.msra.mxu0 %v904
      %2366 = vmatprep.subr.mxu0 0.0
      %2367 = vmatpush1.msra.mxu0 %v905
      %2368 = vmatprep.subr.mxu0 0.0
      %2369 = vmatpush1.msra.mxu0 %v906
      %2370 = vmatprep.subr.mxu0 0.0
      %2371 = vmatpush1.msra.mxu0 %v936
      %2372 = vmatprep.subr.mxu0 0.0
      %2373 = vmatpush1.msra.mxu0 0.0
      %2374 = vmatprep.subr.mxu0 0.0
      %2375 = vmatpush1.msra.mxu0 0.0
      %2376 = vmatprep.subr.mxu0 0.0
      %2377 = vmatpush1.msra.mxu0 0.0
      %2378 = vmatprep.mubr.f32.mxu0 %v2300
      %2379 = vmatmul.mubr.f32.gmra.mrb[0].mxu0 %v2289
      %v2380 = vpop.f32.mrb[0].mxu0
      %v2381 = vadd.f32 0.0, %v2380
      %v2382 = vpop.f32.mrb[0].mxu0
      %2383 = vmatprep.mubr.f32.mxu0 %v2303
      %2384 = vmatmul.mubr.f32.gmra.mrb[0].mxu0 %v2291
      %v2385 = vpop.f32.mrb[0].mxu0
      %v2386 = vadd.f32 0.0, %v2385
      %v2387 = vpop.f32.mrb[0].mxu0
      %2388 = vmatprep.mubr.f32.mxu0 %v2306
      %2389 = vmatmul.mubr.f32.gmra.mrb[0].mxu0 %v2293
      %v2390 = vpop.f32.mrb[0].mxu0
      %v2391 = vadd.f32 0.0, %v2390
      %v2392 = vpop.f32.mrb[0].mxu0
      %2393 = vmatprep.mubr.f32.mxu0 %v2309
      %2394 = vmatmul.mubr.f32.gmra.mrb[0].mxu0 %v2295
      %v2395 = vpop.f32.mrb[0].mxu0
      %v2396 = vadd.f32 0.0, %v2395
      %v2397 = vpop.f32.mrb[0].mxu0
      %2398 = vmatprep.mubr.f32.mxu0 %v2312
      %2399 = vmatmul.mubr.f32.gmra.mrb[0].mxu0 %v2297
      %v2400 = vpop.f32.mrb[0].mxu0
      %v2401 = vadd.f32 0.0, %v2400
      %v2402 = vpop.f32.mrb[0].mxu0
      %2403 = vdwg.mxu0
      %s2404 = scalar_lea.vmem %s5, 192
      %v2405 = vld [vmem:[%s2404] sm:$0xff]
      %v2406 = vld [vmem:[%s2404 + $0x8] sm:$0xff]
      %v2407 = vld [vmem:[%s2404 + $0x10] sm:$0xff]
      %v2408 = vld [vmem:[%s2404 + $0x18] sm:$0xff]
      %v2410 = vsel %vm1153, %v2381, 0
      %v2413 = vsel %vm1153, %v2386, 0
      %v2416 = vsel %vm1153, %v2391, 0
      %v2419 = vsel %vm1153, %v2396, 0
      %v2422 = vsel %vm1153, %v2401, 0
      %2424 = vmatprep.subr.mxu0 0.0
      %2425 = vmatpush1.msra.mxu0 %v2405
      %2426 = vmatprep.subr.mxu0 0.0
      %2427 = vmatpush1.msra.mxu0 %v2406
      %2428 = vmatprep.subr.mxu0 0.0
      %2429 = vmatpush1.msra.mxu0 %v2407
      %2430 = vmatprep.subr.mxu0 0.0
      %2431 = vmatpush1.msra.mxu0 %v2408
      %2432 = vmatprep.subr.mxu0 0.0
      %2433 = vmatpush1.msra.mxu0 0.0
      %2434 = vmatprep.subr.mxu0 0.0
      %2435 = vmatpush1.msra.mxu0 0.0
      %2436 = vmatprep.subr.mxu0 0.0
      %2437 = vmatpush1.msra.mxu0 0.0
      %2438 = vmatprep.subr.mxu0 0.0
      %2439 = vmatpush1.msra.mxu0 0.0
      %2440 = vmatprep.subr.mxu0 0.0
      %2441 = vmatpush1.msra.mxu0 0.0
      %2442 = vmatprep.subr.mxu0 0.0
      %2443 = vmatpush1.msra.mxu0 0.0
      %2444 = vmatprep.subr.mxu0 0.0
      %2445 = vmatpush1.msra.mxu0 0.0
      %2446 = vmatprep.subr.mxu0 0.0
      %2447 = vmatpush1.msra.mxu0 0.0
      %2448 = vmatprep.subr.mxu0 0.0
      %2449 = vmatpush1.msra.mxu0 0.0
      %2450 = vmatprep.subr.mxu0 0.0
      %2451 = vmatpush1.msra.mxu0 0.0
      %2452 = vmatprep.subr.mxu0 0.0
      %2453 = vmatpush1.msra.mxu0 0.0
      %2454 = vmatprep.subr.mxu0 0.0
      %2455 = vmatpush1.msra.mxu0 0.0
      %2456 = vmatprep.subr.mxu0 0.0
      %2457 = vmatpush1.msra.mxu0 0.0
      %2458 = vmatprep.subr.mxu0 0.0
      %2459 = vmatpush1.msra.mxu0 0.0
      %2460 = vmatprep.subr.mxu0 0.0
      %2461 = vmatpush1.msra.mxu0 0.0
      %2462 = vmatprep.subr.mxu0 0.0
      %2463 = vmatpush1.msra.mxu0 0.0
      %2464 = vmatprep.subr.mxu0 0.0
      %2465 = vmatpush1.msra.mxu0 0.0
      %2466 = vmatprep.subr.mxu0 0.0
      %2467 = vmatpush1.msra.mxu0 0.0
      %2468 = vmatprep.subr.mxu0 0.0
      %2469 = vmatpush1.msra.mxu0 0.0
      %2470 = vmatprep.subr.mxu0 0.0
      %2471 = vmatpush1.msra.mxu0 0.0
      %2472 = vmatprep.subr.mxu0 0.0
      %2473 = vmatpush1.msra.mxu0 0.0
      %2474 = vmatprep.subr.mxu0 0.0
      %2475 = vmatpush1.msra.mxu0 0.0
      %2476 = vmatprep.subr.mxu0 0.0
      %2477 = vmatpush1.msra.mxu0 0.0
      %2478 = vmatprep.subr.mxu0 0.0
      %2479 = vmatpush1.msra.mxu0 0.0
      %2480 = vmatprep.subr.mxu0 0.0
      %2481 = vmatpush1.msra.mxu0 0.0
      %2482 = vmatprep.subr.mxu0 0.0
      %2483 = vmatpush1.msra.mxu0 0.0
      %2484 = vmatprep.subr.mxu0 0.0
      %2485 = vmatpush1.msra.mxu0 0.0
      %2486 = vmatprep.subr.mxu0 0.0
      %2487 = vmatpush1.msra.mxu0 0.0
      %2488 = vmatprep.mubr.f32.mxu0 0.0
      %2489 = vmatmul.mubr.f32.gmra.mrb[0].mxu0 %v2410
      %v2490 = vpop.f32.mrb[0].mxu0
      %v2491 = vadd.f32 0.0, %v2490
      %v2492 = vpop.f32.mrb[0].mxu0
      %2493 = vmatprep.mubr.f32.mxu0 0.0
      %2494 = vmatmul.mubr.f32.gmra.mrb[0].mxu0 %v2413
      %v2495 = vpop.f32.mrb[0].mxu0
      %v2496 = vadd.f32 0.0, %v2495
      %v2497 = vpop.f32.mrb[0].mxu0
      %2498 = vmatprep.mubr.f32.mxu0 0.0
      %2499 = vmatmul.mubr.f32.gmra.mrb[0].mxu0 %v2416
      %v2500 = vpop.f32.mrb[0].mxu0
      %v2501 = vadd.f32 0.0, %v2500
      %v2502 = vpop.f32.mrb[0].mxu0
      %2503 = vmatprep.mubr.f32.mxu0 0.0
      %2504 = vmatmul.mubr.f32.gmra.mrb[0].mxu0 %v2419
      %v2505 = vpop.f32.mrb[0].mxu0
      %v2506 = vadd.f32 0.0, %v2505
      %v2507 = vpop.f32.mrb[0].mxu0
      %2508 = vmatprep.mubr.f32.mxu0 0.0
      %2509 = vmatmul.mubr.f32.gmra.mrb[0].mxu0 %v2422
      %v2510 = vpop.f32.mrb[0].mxu0
      %v2511 = vadd.f32 0.0, %v2510
      %v2512 = vpop.f32.mrb[0].mxu0
      %2513 = vdwg.mxu0
      %v2514 = vadd.f32 %v2283, %v2491
      %v2515 = vadd.f32 %v2284, %v2496
      %v2516 = vadd.f32 %v2285, %v2501
      %v2517 = vadd.f32 %v2286, %v2506
      %v2518 = vadd.f32 %v2287, %v2511
      %s2519 = scalar_lea.vmem %s4, 560
      %v2520 = vld [vmem:[%s2519] sm:$0xff]
      %v2521 = vld [vmem:[%s2519 + $0x8] sm:$0xff]
      %v2522 = vld [vmem:[%s2519 + $0x10] sm:$0xff]
      %v2523 = vld [vmem:[%s2519 + $0x18] sm:$0xff]
      %v2524 = vld [vmem:[%s2519 + $0x20] sm:$0xff]
      %v2525 = vld [vmem:[%s2519 + $0x28] sm:$0xff]
      %v2526 = vld [vmem:[%s2519 + $0x30] sm:$0xff]
      %v2527 = vld [vmem:[%s2519 + $0x38] sm:$0xff]
      %v2528 = vld [vmem:[%s2519 + $0x40] sm:$0xf]
      %v2529 = vld [vmem:[%s2519 + $0x48] sm:$0xf]
      %v2531 = vsel %vm918, %v2521, 0
      %v2534 = vsel %vm918, %v2523, 0
      %v2537 = vsel %vm918, %v2525, 0
      %v2540 = vsel %vm918, %v2527, 0
      %v2543 = vsel %vm918, %v2529, 0
      %2545 = vmatprep.subr.mxu0 0.0
      %2546 = vmatpush1.msra.mxu0 %v879
      %2547 = vmatprep.subr.mxu0 0.0
      %2548 = vmatpush1.msra.mxu0 %v880
      %2549 = vmatprep.subr.mxu0 0.0
      %2550 = vmatpush1.msra.mxu0 %v881
      %2551 = vmatprep.subr.mxu0 0.0
      %2552 = vmatpush1.msra.mxu0 %v882
      %2553 = vmatprep.subr.mxu0 0.0
      %2554 = vmatpush1.msra.mxu0 %v883
      %2555 = vmatprep.subr.mxu0 0.0
      %2556 = vmatpush1.msra.mxu0 %v884
      %2557 = vmatprep.subr.mxu0 0.0
      %2558 = vmatpush1.msra.mxu0 %v885
      %2559 = vmatprep.subr.mxu0 0.0
      %2560 = vmatpush1.msra.mxu0 %v886
      %2561 = vmatprep.subr.mxu0 0.0
      %2562 = vmatpush1.msra.mxu0 %v887
      %2563 = vmatprep.subr.mxu0 0.0
      %2564 = vmatpush1.msra.mxu0 %v888
      %2565 = vmatprep.subr.mxu0 0.0
      %2566 = vmatpush1.msra.mxu0 %v889
      %2567 = vmatprep.subr.mxu0 0.0
      %2568 = vmatpush1.msra.mxu0 %v890
      %2569 = vmatprep.subr.mxu0 0.0
      %2570 = vmatpush1.msra.mxu0 %v891
      %2571 = vmatprep.subr.mxu0 0.0
      %2572 = vmatpush1.msra.mxu0 %v892
      %2573 = vmatprep.subr.mxu0 0.0
      %2574 = vmatpush1.msra.mxu0 %v893
      %2575 = vmatprep.subr.mxu0 0.0
      %2576 = vmatpush1.msra.mxu0 %v894
      %2577 = vmatprep.subr.mxu0 0.0
      %2578 = vmatpush1.msra.mxu0 %v895
      %2579 = vmatprep.subr.mxu0 0.0
      %2580 = vmatpush1.msra.mxu0 %v896
      %2581 = vmatprep.subr.mxu0 0.0
      %2582 = vmatpush1.msra.mxu0 %v897
      %2583 = vmatprep.subr.mxu0 0.0
      %2584 = vmatpush1.msra.mxu0 %v898
      %2585 = vmatprep.subr.mxu0 0.0
      %2586 = vmatpush1.msra.mxu0 %v899
      %2587 = vmatprep.subr.mxu0 0.0
      %2588 = vmatpush1.msra.mxu0 %v900
      %2589 = vmatprep.subr.mxu0 0.0
      %2590 = vmatpush1.msra.mxu0 %v901
      %2591 = vmatprep.subr.mxu0 0.0
      %2592 = vmatpush1.msra.mxu0 %v902
      %2593 = vmatprep.subr.mxu0 0.0
      %2594 = vmatpush1.msra.mxu0 %v903
      %2595 = vmatprep.subr.mxu0 0.0
      %2596 = vmatpush1.msra.mxu0 %v904
      %2597 = vmatprep.subr.mxu0 0.0
      %2598 = vmatpush1.msra.mxu0 %v905
      %2599 = vmatprep.subr.mxu0 0.0
      %2600 = vmatpush1.msra.mxu0 %v906
      %2601 = vmatprep.subr.mxu0 0.0
      %2602 = vmatpush1.msra.mxu0 %v936
      %2603 = vmatprep.subr.mxu0 0.0
      %2604 = vmatpush1.msra.mxu0 0.0
      %2605 = vmatprep.subr.mxu0 0.0
      %2606 = vmatpush1.msra.mxu0 0.0
      %2607 = vmatprep.subr.mxu0 0.0
      %2608 = vmatpush1.msra.mxu0 0.0
      %2609 = vmatprep.mubr.f32.mxu0 %v2531
      %2610 = vmatmul.mubr.f32.gmra.mrb[0].mxu0 %v2520
      %v2611 = vpop.f32.mrb[0].mxu0
      %v2612 = vadd.f32 0.0, %v2611
      %v2613 = vpop.f32.mrb[0].mxu0
      %2614 = vmatprep.mubr.f32.mxu0 %v2534
      %2615 = vmatmul.mubr.f32.gmra.mrb[0].mxu0 %v2522
      %v2616 = vpop.f32.mrb[0].mxu0
      %v2617 = vadd.f32 0.0, %v2616
      %v2618 = vpop.f32.mrb[0].mxu0
      %2619 = vmatprep.mubr.f32.mxu0 %v2537
      %2620 = vmatmul.mubr.f32.gmra.mrb[0].mxu0 %v2524
      %v2621 = vpop.f32.mrb[0].mxu0
      %v2622 = vadd.f32 0.0, %v2621
      %v2623 = vpop.f32.mrb[0].mxu0
      %2624 = vmatprep.mubr.f32.mxu0 %v2540
      %2625 = vmatmul.mubr.f32.gmra.mrb[0].mxu0 %v2526
      %v2626 = vpop.f32.mrb[0].mxu0
      %v2627 = vadd.f32 0.0, %v2626
      %v2628 = vpop.f32.mrb[0].mxu0
      %2629 = vmatprep.mubr.f32.mxu0 %v2543
      %2630 = vmatmul.mubr.f32.gmra.mrb[0].mxu0 %v2528
      %v2631 = vpop.f32.mrb[0].mxu0
      %v2632 = vadd.f32 0.0, %v2631
      %v2633 = vpop.f32.mrb[0].mxu0
      %2634 = vdwg.mxu0
      %s2635 = scalar_lea.vmem %s5, 224
      %v2636 = vld [vmem:[%s2635] sm:$0xff]
      %v2637 = vld [vmem:[%s2635 + $0x8] sm:$0xff]
      %v2638 = vld [vmem:[%s2635 + $0x10] sm:$0xff]
      %v2639 = vld [vmem:[%s2635 + $0x18] sm:$0xff]
      %v2641 = vsel %vm1153, %v2612, 0
      %v2644 = vsel %vm1153, %v2617, 0
      %v2647 = vsel %vm1153, %v2622, 0
      %v2650 = vsel %vm1153, %v2627, 0
      %v2653 = vsel %vm1153, %v2632, 0
      %2655 = vmatprep.subr.mxu0 0.0
      %2656 = vmatpush1.msra.mxu0 %v2636
      %2657 = vmatprep.subr.mxu0 0.0
      %2658 = vmatpush1.msra.mxu0 %v2637
      %2659 = vmatprep.subr.mxu0 0.0
      %2660 = vmatpush1.msra.mxu0 %v2638
      %2661 = vmatprep.subr.mxu0 0.0
      %2662 = vmatpush1.msra.mxu0 %v2639
      %2663 = vmatprep.subr.mxu0 0.0
      %2664 = vmatpush1.msra.mxu0 0.0
      %2665 = vmatprep.subr.mxu0 0.0
      %2666 = vmatpush1.msra.mxu0 0.0
      %2667 = vmatprep.subr.mxu0 0.0
      %2668 = vmatpush1.msra.mxu0 0.0
      %2669 = vmatprep.subr.mxu0 0.0
      %2670 = vmatpush1.msra.mxu0 0.0
      %2671 = vmatprep.subr.mxu0 0.0
      %2672 = vmatpush1.msra.mxu0 0.0
      %2673 = vmatprep.subr.mxu0 0.0
      %2674 = vmatpush1.msra.mxu0 0.0
      %2675 = vmatprep.subr.mxu0 0.0
      %2676 = vmatpush1.msra.mxu0 0.0
      %2677 = vmatprep.subr.mxu0 0.0
      %2678 = vmatpush1.msra.mxu0 0.0
      %2679 = vmatprep.subr.mxu0 0.0
      %2680 = vmatpush1.msra.mxu0 0.0
      %2681 = vmatprep.subr.mxu0 0.0
      %2682 = vmatpush1.msra.mxu0 0.0
      %2683 = vmatprep.subr.mxu0 0.0
      %2684 = vmatpush1.msra.mxu0 0.0
      %2685 = vmatprep.subr.mxu0 0.0
      %2686 = vmatpush1.msra.mxu0 0.0
      %2687 = vmatprep.subr.mxu0 0.0
      %2688 = vmatpush1.msra.mxu0 0.0
      %2689 = vmatprep.subr.mxu0 0.0
      %2690 = vmatpush1.msra.mxu0 0.0
      %2691 = vmatprep.subr.mxu0 0.0
      %2692 = vmatpush1.msra.mxu0 0.0
      %2693 = vmatprep.subr.mxu0 0.0
      %2694 = vmatpush1.msra.mxu0 0.0
      %2695 = vmatprep.subr.mxu0 0.0
      %2696 = vmatpush1.msra.mxu0 0.0
      %2697 = vmatprep.subr.mxu0 0.0
      %2698 = vmatpush1.msra.mxu0 0.0
      %2699 = vmatprep.subr.mxu0 0.0
      %2700 = vmatpush1.msra.mxu0 0.0
      %2701 = vmatprep.subr.mxu0 0.0
      %2702 = vmatpush1.msra.mxu0 0.0
      %2703 = vmatprep.subr.mxu0 0.0
      %2704 = vmatpush1.msra.mxu0 0.0
      %2705 = vmatprep.subr.mxu0 0.0
      %2706 = vmatpush1.msra.mxu0 0.0
      %2707 = vmatprep.subr.mxu0 0.0
      %2708 = vmatpush1.msra.mxu0 0.0
      %2709 = vmatprep.subr.mxu0 0.0
      %2710 = vmatpush1.msra.mxu0 0.0
      %2711 = vmatprep.subr.mxu0 0.0
      %2712 = vmatpush1.msra.mxu0 0.0
      %2713 = vmatprep.subr.mxu0 0.0
      %2714 = vmatpush1.msra.mxu0 0.0
      %2715 = vmatprep.subr.mxu0 0.0
      %2716 = vmatpush1.msra.mxu0 0.0
      %2717 = vmatprep.subr.mxu0 0.0
      %2718 = vmatpush1.msra.mxu0 0.0
      %2719 = vmatprep.mubr.f32.mxu0 0.0
      %2720 = vmatmul.mubr.f32.gmra.mrb[0].mxu0 %v2641
      %v2721 = vpop.f32.mrb[0].mxu0
      %v2722 = vadd.f32 0.0, %v2721
      %v2723 = vpop.f32.mrb[0].mxu0
      %2724 = vmatprep.mubr.f32.mxu0 0.0
      %2725 = vmatmul.mubr.f32.gmra.mrb[0].mxu0 %v2644
      %v2726 = vpop.f32.mrb[0].mxu0
      %v2727 = vadd.f32 0.0, %v2726
      %v2728 = vpop.f32.mrb[0].mxu0
      %2729 = vmatprep.mubr.f32.mxu0 0.0
      %2730 = vmatmul.mubr.f32.gmra.mrb[0].mxu0 %v2647
      %v2731 = vpop.f32.mrb[0].mxu0
      %v2732 = vadd.f32 0.0, %v2731
      %v2733 = vpop.f32.mrb[0].mxu0
      %2734 = vmatprep.mubr.f32.mxu0 0.0
      %2735 = vmatmul.mubr.f32.gmra.mrb[0].mxu0 %v2650
      %v2736 = vpop.f32.mrb[0].mxu0
      %v2737 = vadd.f32 0.0, %v2736
      %v2738 = vpop.f32.mrb[0].mxu0
      %2739 = vmatprep.mubr.f32.mxu0 0.0
      %2740 = vmatmul.mubr.f32.gmra.mrb[0].mxu0 %v2653
      %v2741 = vpop.f32.mrb[0].mxu0
      %v2742 = vadd.f32 0.0, %v2741
      %v2743 = vpop.f32.mrb[0].mxu0
      %2744 = vdwg.mxu0
      %v2745 = vadd.f32 %v2514, %v2722
      %v2746 = vadd.f32 %v2515, %v2727
      %v2747 = vadd.f32 %v2516, %v2732
      %v2748 = vadd.f32 %v2517, %v2737
      %v2749 = vadd.f32 %v2518, %v2742
      %s2750 = scalar_lea.vmem %s4, 640
      %v2751 = vld [vmem:[%s2750] sm:$0xff]
      %v2752 = vld [vmem:[%s2750 + $0x8] sm:$0xff]
      %v2753 = vld [vmem:[%s2750 + $0x10] sm:$0xff]
      %v2754 = vld [vmem:[%s2750 + $0x18] sm:$0xff]
      %v2755 = vld [vmem:[%s2750 + $0x20] sm:$0xff]
      %v2756 = vld [vmem:[%s2750 + $0x28] sm:$0xff]
      %v2757 = vld [vmem:[%s2750 + $0x30] sm:$0xff]
      %v2758 = vld [vmem:[%s2750 + $0x38] sm:$0xff]
      %v2759 = vld [vmem:[%s2750 + $0x40] sm:$0xf]
      %v2760 = vld [vmem:[%s2750 + $0x48] sm:$0xf]
      %v2762 = vsel %vm918, %v2752, 0
      %v2765 = vsel %vm918, %v2754, 0
      %v2768 = vsel %vm918, %v2756, 0
      %v2771 = vsel %vm918, %v2758, 0
      %v2774 = vsel %vm918, %v2760, 0
      %2776 = vmatprep.subr.mxu0 0.0
      %2777 = vmatpush1.msra.mxu0 %v879
      %2778 = vmatprep.subr.mxu0 0.0
      %2779 = vmatpush1.msra.mxu0 %v880
      %2780 = vmatprep.subr.mxu0 0.0
      %2781 = vmatpush1.msra.mxu0 %v881
      %2782 = vmatprep.subr.mxu0 0.0
      %2783 = vmatpush1.msra.mxu0 %v882
      %2784 = vmatprep.subr.mxu0 0.0
      %2785 = vmatpush1.msra.mxu0 %v883
      %2786 = vmatprep.subr.mxu0 0.0
      %2787 = vmatpush1.msra.mxu0 %v884
      %2788 = vmatprep.subr.mxu0 0.0
      %2789 = vmatpush1.msra.mxu0 %v885
      %2790 = vmatprep.subr.mxu0 0.0
      %2791 = vmatpush1.msra.mxu0 %v886
      %2792 = vmatprep.subr.mxu0 0.0
      %2793 = vmatpush1.msra.mxu0 %v887
      %2794 = vmatprep.subr.mxu0 0.0
      %2795 = vmatpush1.msra.mxu0 %v888
      %2796 = vmatprep.subr.mxu0 0.0
      %2797 = vmatpush1.msra.mxu0 %v889
      %2798 = vmatprep.subr.mxu0 0.0
      %2799 = vmatpush1.msra.mxu0 %v890
      %2800 = vmatprep.subr.mxu0 0.0
      %2801 = vmatpush1.msra.mxu0 %v891
      %2802 = vmatprep.subr.mxu0 0.0
      %2803 = vmatpush1.msra.mxu0 %v892
      %2804 = vmatprep.subr.mxu0 0.0
      %2805 = vmatpush1.msra.mxu0 %v893
      %2806 = vmatprep.subr.mxu0 0.0
      %2807 = vmatpush1.msra.mxu0 %v894
      %2808 = vmatprep.subr.mxu0 0.0
      %2809 = vmatpush1.msra.mxu0 %v895
      %2810 = vmatprep.subr.mxu0 0.0
      %2811 = vmatpush1.msra.mxu0 %v896
      %2812 = vmatprep.subr.mxu0 0.0
      %2813 = vmatpush1.msra.mxu0 %v897
      %2814 = vmatprep.subr.mxu0 0.0
      %2815 = vmatpush1.msra.mxu0 %v898
      %2816 = vmatprep.subr.mxu0 0.0
      %2817 = vmatpush1.msra.mxu0 %v899
      %2818 = vmatprep.subr.mxu0 0.0
      %2819 = vmatpush1.msra.mxu0 %v900
      %2820 = vmatprep.subr.mxu0 0.0
      %2821 = vmatpush1.msra.mxu0 %v901
      %2822 = vmatprep.subr.mxu0 0.0
      %2823 = vmatpush1.msra.mxu0 %v902
      %2824 = vmatprep.subr.mxu0 0.0
      %2825 = vmatpush1.msra.mxu0 %v903
      %2826 = vmatprep.subr.mxu0 0.0
      %2827 = vmatpush1.msra.mxu0 %v904
      %2828 = vmatprep.subr.mxu0 0.0
      %2829 = vmatpush1.msra.mxu0 %v905
      %2830 = vmatprep.subr.mxu0 0.0
      %2831 = vmatpush1.msra.mxu0 %v906
      %2832 = vmatprep.subr.mxu0 0.0
      %2833 = vmatpush1.msra.mxu0 %v936
      %2834 = vmatprep.subr.mxu0 0.0
      %2835 = vmatpush1.msra.mxu0 0.0
      %2836 = vmatprep.subr.mxu0 0.0
      %2837 = vmatpush1.msra.mxu0 0.0
      %2838 = vmatprep.subr.mxu0 0.0
      %2839 = vmatpush1.msra.mxu0 0.0
      %2840 = vmatprep.mubr.f32.mxu0 %v2762
      %2841 = vmatmul.mubr.f32.gmra.mrb[0].mxu0 %v2751
      %v2842 = vpop.f32.mrb[0].mxu0
      %v2843 = vadd.f32 0.0, %v2842
      %v2844 = vpop.f32.mrb[0].mxu0
      %2845 = vmatprep.mubr.f32.mxu0 %v2765
      %2846 = vmatmul.mubr.f32.gmra.mrb[0].mxu0 %v2753
      %v2847 = vpop.f32.mrb[0].mxu0
      %v2848 = vadd.f32 0.0, %v2847
      %v2849 = vpop.f32.mrb[0].mxu0
      %2850 = vmatprep.mubr.f32.mxu0 %v2768
      %2851 = vmatmul.mubr.f32.gmra.mrb[0].mxu0 %v2755
      %v2852 = vpop.f32.mrb[0].mxu0
      %v2853 = vadd.f32 0.0, %v2852
      %v2854 = vpop.f32.mrb[0].mxu0
      %2855 = vmatprep.mubr.f32.mxu0 %v2771
      %2856 = vmatmul.mubr.f32.gmra.mrb[0].mxu0 %v2757
      %v2857 = vpop.f32.mrb[0].mxu0
      %v2858 = vadd.f32 0.0, %v2857
      %v2859 = vpop.f32.mrb[0].mxu0
      %2860 = vmatprep.mubr.f32.mxu0 %v2774
      %2861 = vmatmul.mubr.f32.gmra.mrb[0].mxu0 %v2759
      %v2862 = vpop.f32.mrb[0].mxu0
      %v2863 = vadd.f32 0.0, %v2862
      %v2864 = vpop.f32.mrb[0].mxu0
      %2865 = vdwg.mxu0
      %s2866 = scalar_lea.vmem %s5, 256
      %v2867 = vld [vmem:[%s2866] sm:$0xff]
      %v2868 = vld [vmem:[%s2866 + $0x8] sm:$0xff]
      %v2869 = vld [vmem:[%s2866 + $0x10] sm:$0xff]
      %v2870 = vld [vmem:[%s2866 + $0x18] sm:$0xff]
      %v2872 = vsel %vm1153, %v2843, 0
      %v2875 = vsel %vm1153, %v2848, 0
      %v2878 = vsel %vm1153, %v2853, 0
      %v2881 = vsel %vm1153, %v2858, 0
      %v2884 = vsel %vm1153, %v2863, 0
      %2886 = vmatprep.subr.mxu0 0.0
      %2887 = vmatpush1.msra.mxu0 %v2867
      %2888 = vmatprep.subr.mxu0 0.0
      %2889 = vmatpush1.msra.mxu0 %v2868
      %2890 = vmatprep.subr.mxu0 0.0
      %2891 = vmatpush1.msra.mxu0 %v2869
      %2892 = vmatprep.subr.mxu0 0.0
      %2893 = vmatpush1.msra.mxu0 %v2870
      %2894 = vmatprep.subr.mxu0 0.0
      %2895 = vmatpush1.msra.mxu0 0.0
      %2896 = vmatprep.subr.mxu0 0.0
      %2897 = vmatpush1.msra.mxu0 0.0
      %2898 = vmatprep.subr.mxu0 0.0
      %2899 = vmatpush1.msra.mxu0 0.0
      %2900 = vmatprep.subr.mxu0 0.0
      %2901 = vmatpush1.msra.mxu0 0.0
      %2902 = vmatprep.subr.mxu0 0.0
      %2903 = vmatpush1.msra.mxu0 0.0
      %2904 = vmatprep.subr.mxu0 0.0
      %2905 = vmatpush1.msra.mxu0 0.0
      %2906 = vmatprep.subr.mxu0 0.0
      %2907 = vmatpush1.msra.mxu0 0.0
      %2908 = vmatprep.subr.mxu0 0.0
      %2909 = vmatpush1.msra.mxu0 0.0
      %2910 = vmatprep.subr.mxu0 0.0
      %2911 = vmatpush1.msra.mxu0 0.0
      %2912 = vmatprep.subr.mxu0 0.0
      %2913 = vmatpush1.msra.mxu0 0.0
      %2914 = vmatprep.subr.mxu0 0.0
      %2915 = vmatpush1.msra.mxu0 0.0
      %2916 = vmatprep.subr.mxu0 0.0
      %2917 = vmatpush1.msra.mxu0 0.0
      %2918 = vmatprep.subr.mxu0 0.0
      %2919 = vmatpush1.msra.mxu0 0.0
      %2920 = vmatprep.subr.mxu0 0.0
      %2921 = vmatpush1.msra.mxu0 0.0
      %2922 = vmatprep.subr.mxu0 0.0
      %2923 = vmatpush1.msra.mxu0 0.0
      %2924 = vmatprep.subr.mxu0 0.0
      %2925 = vmatpush1.msra.mxu0 0.0
      %2926 = vmatprep.subr.mxu0 0.0
      %2927 = vmatpush1.msra.mxu0 0.0
      %2928 = vmatprep.subr.mxu0 0.0
      %2929 = vmatpush1.msra.mxu0 0.0
      %2930 = vmatprep.subr.mxu0 0.0
      %2931 = vmatpush1.msra.mxu0 0.0
      %2932 = vmatprep.subr.mxu0 0.0
      %2933 = vmatpush1.msra.mxu0 0.0
      %2934 = vmatprep.subr.mxu0 0.0
      %2935 = vmatpush1.msra.mxu0 0.0
      %2936 = vmatprep.subr.mxu0 0.0
      %2937 = vmatpush1.msra.mxu0 0.0
      %2938 = vmatprep.subr.mxu0 0.0
      %2939 = vmatpush1.msra.mxu0 0.0
      %2940 = vmatprep.subr.mxu0 0.0
      %2941 = vmatpush1.msra.mxu0 0.0
      %2942 = vmatprep.subr.mxu0 0.0
      %2943 = vmatpush1.msra.mxu0 0.0
      %2944 = vmatprep.subr.mxu0 0.0
      %2945 = vmatpush1.msra.mxu0 0.0
      %2946 = vmatprep.subr.mxu0 0.0
      %2947 = vmatpush1.msra.mxu0 0.0
      %2948 = vmatprep.subr.mxu0 0.0
      %2949 = vmatpush1.msra.mxu0 0.0
      %2950 = vmatprep.mubr.f32.mxu0 0.0
      %2951 = vmatmul.mubr.f32.gmra.mrb[0].mxu0 %v2872
      %v2952 = vpop.f32.mrb[0].mxu0
      %v2953 = vadd.f32 0.0, %v2952
      %v2954 = vpop.f32.mrb[0].mxu0
      %2955 = vmatprep.mubr.f32.mxu0 0.0
      %2956 = vmatmul.mubr.f32.gmra.mrb[0].mxu0 %v2875
      %v2957 = vpop.f32.mrb[0].mxu0
      %v2958 = vadd.f32 0.0, %v2957
      %v2959 = vpop.f32.mrb[0].mxu0
      %2960 = vmatprep.mubr.f32.mxu0 0.0
      %2961 = vmatmul.mubr.f32.gmra.mrb[0].mxu0 %v2878
      %v2962 = vpop.f32.mrb[0].mxu0
      %v2963 = vadd.f32 0.0, %v2962
      %v2964 = vpop.f32.mrb[0].mxu0
      %2965 = vmatprep.mubr.f32.mxu0 0.0
      %2966 = vmatmul.mubr.f32.gmra.mrb[0].mxu0 %v2881
      %v2967 = vpop.f32.mrb[0].mxu0
      %v2968 = vadd.f32 0.0, %v2967
      %v2969 = vpop.f32.mrb[0].mxu0
      %2970 = vmatprep.mubr.f32.mxu0 0.0
      %2971 = vmatmul.mubr.f32.gmra.mrb[0].mxu0 %v2884
      %v2972 = vpop.f32.mrb[0].mxu0
      %v2973 = vadd.f32 0.0, %v2972
      %v2974 = vpop.f32.mrb[0].mxu0
      %2975 = vdwg.mxu0
      %v2976 = vadd.f32 %v2745, %v2953
      %v2977 = vadd.f32 %v2746, %v2958
      %v2978 = vadd.f32 %v2747, %v2963
      %v2979 = vadd.f32 %v2748, %v2968
      %v2980 = vadd.f32 %v2749, %v2973
      %s2981 = scalar_lea.vmem %s4, 720
      %v2982 = vld [vmem:[%s2981] sm:$0xff]
      %v2983 = vld [vmem:[%s2981 + $0x8] sm:$0xff]
      %v2984 = vld [vmem:[%s2981 + $0x10] sm:$0xff]
      %v2985 = vld [vmem:[%s2981 + $0x18] sm:$0xff]
      %v2986 = vld [vmem:[%s2981 + $0x20] sm:$0xff]
      %v2987 = vld [vmem:[%s2981 + $0x28] sm:$0xff]
      %v2988 = vld [vmem:[%s2981 + $0x30] sm:$0xff]
      %v2989 = vld [vmem:[%s2981 + $0x38] sm:$0xff]
      %v2990 = vld [vmem:[%s2981 + $0x40] sm:$0xf]
      %v2991 = vld [vmem:[%s2981 + $0x48] sm:$0xf]
      %v2993 = vsel %vm918, %v2983, 0
      %v2996 = vsel %vm918, %v2985, 0
      %v2999 = vsel %vm918, %v2987, 0
      %v3002 = vsel %vm918, %v2989, 0
      %v3005 = vsel %vm918, %v2991, 0
      %3007 = vmatprep.subr.mxu0 0.0
      %3008 = vmatpush1.msra.mxu0 %v879
      %3009 = vmatprep.subr.mxu0 0.0
      %3010 = vmatpush1.msra.mxu0 %v880
      %3011 = vmatprep.subr.mxu0 0.0
      %3012 = vmatpush1.msra.mxu0 %v881
      %3013 = vmatprep.subr.mxu0 0.0
      %3014 = vmatpush1.msra.mxu0 %v882
      %3015 = vmatprep.subr.mxu0 0.0
      %3016 = vmatpush1.msra.mxu0 %v883
      %3017 = vmatprep.subr.mxu0 0.0
      %3018 = vmatpush1.msra.mxu0 %v884
      %3019 = vmatprep.subr.mxu0 0.0
      %3020 = vmatpush1.msra.mxu0 %v885
      %3021 = vmatprep.subr.mxu0 0.0
      %3022 = vmatpush1.msra.mxu0 %v886
      %3023 = vmatprep.subr.mxu0 0.0
      %3024 = vmatpush1.msra.mxu0 %v887
      %3025 = vmatprep.subr.mxu0 0.0
      %3026 = vmatpush1.msra.mxu0 %v888
      %3027 = vmatprep.subr.mxu0 0.0
      %3028 = vmatpush1.msra.mxu0 %v889
      %3029 = vmatprep.subr.mxu0 0.0
      %3030 = vmatpush1.msra.mxu0 %v890
      %3031 = vmatprep.subr.mxu0 0.0
      %3032 = vmatpush1.msra.mxu0 %v891
      %3033 = vmatprep.subr.mxu0 0.0
      %3034 = vmatpush1.msra.mxu0 %v892
      %3035 = vmatprep.subr.mxu0 0.0
      %3036 = vmatpush1.msra.mxu0 %v893
      %3037 = vmatprep.subr.mxu0 0.0
      %3038 = vmatpush1.msra.mxu0 %v894
      %3039 = vmatprep.subr.mxu0 0.0
      %3040 = vmatpush1.msra.mxu0 %v895
      %3041 = vmatprep.subr.mxu0 0.0
      %3042 = vmatpush1.msra.mxu0 %v896
      %3043 = vmatprep.subr.mxu0 0.0
      %3044 = vmatpush1.msra.mxu0 %v897
      %3045 = vmatprep.subr.mxu0 0.0
      %3046 = vmatpush1.msra.mxu0 %v898
      %3047 = vmatprep.subr.mxu0 0.0
      %3048 = vmatpush1.msra.mxu0 %v899
      %3049 = vmatprep.subr.mxu0 0.0
      %3050 = vmatpush1.msra.mxu0 %v900
      %3051 = vmatprep.subr.mxu0 0.0
      %3052 = vmatpush1.msra.mxu0 %v901
      %3053 = vmatprep.subr.mxu0 0.0
      %3054 = vmatpush1.msra.mxu0 %v902
      %3055 = vmatprep.subr.mxu0 0.0
      %3056 = vmatpush1.msra.mxu0 %v903
      %3057 = vmatprep.subr.mxu0 0.0
      %3058 = vmatpush1.msra.mxu0 %v904
      %3059 = vmatprep.subr.mxu0 0.0
      %3060 = vmatpush1.msra.mxu0 %v905
      %3061 = vmatprep.subr.mxu0 0.0
      %3062 = vmatpush1.msra.mxu0 %v906
      %3063 = vmatprep.subr.mxu0 0.0
      %3064 = vmatpush1.msra.mxu0 %v936
      %3065 = vmatprep.subr.mxu0 0.0
      %3066 = vmatpush1.msra.mxu0 0.0
      %3067 = vmatprep.subr.mxu0 0.0
      %3068 = vmatpush1.msra.mxu0 0.0
      %3069 = vmatprep.subr.mxu0 0.0
      %3070 = vmatpush1.msra.mxu0 0.0
      %3071 = vmatprep.mubr.f32.mxu0 %v2993
      %3072 = vmatmul.mubr.f32.gmra.mrb[0].mxu0 %v2982
      %v3073 = vpop.f32.mrb[0].mxu0
      %v3074 = vadd.f32 0.0, %v3073
      %v3075 = vpop.f32.mrb[0].mxu0
      %3076 = vmatprep.mubr.f32.mxu0 %v2996
      %3077 = vmatmul.mubr.f32.gmra.mrb[0].mxu0 %v2984
      %v3078 = vpop.f32.mrb[0].mxu0
      %v3079 = vadd.f32 0.0, %v3078
      %v3080 = vpop.f32.mrb[0].mxu0
      %3081 = vmatprep.mubr.f32.mxu0 %v2999
      %3082 = vmatmul.mubr.f32.gmra.mrb[0].mxu0 %v2986
      %v3083 = vpop.f32.mrb[0].mxu0
      %v3084 = vadd.f32 0.0, %v3083
      %v3085 = vpop.f32.mrb[0].mxu0
      %3086 = vmatprep.mubr.f32.mxu0 %v3002
      %3087 = vmatmul.mubr.f32.gmra.mrb[0].mxu0 %v2988
      %v3088 = vpop.f32.mrb[0].mxu0
      %v3089 = vadd.f32 0.0, %v3088
      %v3090 = vpop.f32.mrb[0].mxu0
      %3091 = vmatprep.mubr.f32.mxu0 %v3005
      %3092 = vmatmul.mubr.f32.gmra.mrb[0].mxu0 %v2990
      %v3093 = vpop.f32.mrb[0].mxu0
      %v3094 = vadd.f32 0.0, %v3093
      %v3095 = vpop.f32.mrb[0].mxu0
      %3096 = vdwg.mxu0
      %s3097 = scalar_lea.vmem %s5, 288
      %v3098 = vld [vmem:[%s3097] sm:$0xff]
      %v3099 = vld [vmem:[%s3097 + $0x8] sm:$0xff]
      %v3100 = vld [vmem:[%s3097 + $0x10] sm:$0xff]
      %v3101 = vld [vmem:[%s3097 + $0x18] sm:$0xff]
      %v3103 = vsel %vm1153, %v3074, 0
      %v3106 = vsel %vm1153, %v3079, 0
      %v3109 = vsel %vm1153, %v3084, 0
      %v3112 = vsel %vm1153, %v3089, 0
      %v3115 = vsel %vm1153, %v3094, 0
      %3117 = vmatprep.subr.mxu0 0.0
      %3118 = vmatpush1.msra.mxu0 %v3098
      %3119 = vmatprep.subr.mxu0 0.0
      %3120 = vmatpush1.msra.mxu0 %v3099
      %3121 = vmatprep.subr.mxu0 0.0
      %3122 = vmatpush1.msra.mxu0 %v3100
      %3123 = vmatprep.subr.mxu0 0.0
      %3124 = vmatpush1.msra.mxu0 %v3101
      %3125 = vmatprep.subr.mxu0 0.0
      %3126 = vmatpush1.msra.mxu0 0.0
      %3127 = vmatprep.subr.mxu0 0.0
      %3128 = vmatpush1.msra.mxu0 0.0
      %3129 = vmatprep.subr.mxu0 0.0
      %3130 = vmatpush1.msra.mxu0 0.0
      %3131 = vmatprep.subr.mxu0 0.0
      %3132 = vmatpush1.msra.mxu0 0.0
      %3133 = vmatprep.subr.mxu0 0.0
      %3134 = vmatpush1.msra.mxu0 0.0
      %3135 = vmatprep.subr.mxu0 0.0
      %3136 = vmatpush1.msra.mxu0 0.0
      %3137 = vmatprep.subr.mxu0 0.0
      %3138 = vmatpush1.msra.mxu0 0.0
      %3139 = vmatprep.subr.mxu0 0.0
      %3140 = vmatpush1.msra.mxu0 0.0
      %3141 = vmatprep.subr.mxu0 0.0
      %3142 = vmatpush1.msra.mxu0 0.0
      %3143 = vmatprep.subr.mxu0 0.0
      %3144 = vmatpush1.msra.mxu0 0.0
      %3145 = vmatprep.subr.mxu0 0.0
      %3146 = vmatpush1.msra.mxu0 0.0
      %3147 = vmatprep.subr.mxu0 0.0
      %3148 = vmatpush1.msra.mxu0 0.0
      %3149 = vmatprep.subr.mxu0 0.0
      %3150 = vmatpush1.msra.mxu0 0.0
      %3151 = vmatprep.subr.mxu0 0.0
      %3152 = vmatpush1.msra.mxu0 0.0
      %3153 = vmatprep.subr.mxu0 0.0
      %3154 = vmatpush1.msra.mxu0 0.0
      %3155 = vmatprep.subr.mxu0 0.0
      %3156 = vmatpush1.msra.mxu0 0.0
      %3157 = vmatprep.subr.mxu0 0.0
      %3158 = vmatpush1.msra.mxu0 0.0
      %3159 = vmatprep.subr.mxu0 0.0
      %3160 = vmatpush1.msra.mxu0 0.0
      %3161 = vmatprep.subr.mxu0 0.0
      %3162 = vmatpush1.msra.mxu0 0.0
      %3163 = vmatprep.subr.mxu0 0.0
      %3164 = vmatpush1.msra.mxu0 0.0
      %3165 = vmatprep.subr.mxu0 0.0
      %3166 = vmatpush1.msra.mxu0 0.0
      %3167 = vmatprep.subr.mxu0 0.0
      %3168 = vmatpush1.msra.mxu0 0.0
      %3169 = vmatprep.subr.mxu0 0.0
      %3170 = vmatpush1.msra.mxu0 0.0
      %3171 = vmatprep.subr.mxu0 0.0
      %3172 = vmatpush1.msra.mxu0 0.0
      %3173 = vmatprep.subr.mxu0 0.0
      %3174 = vmatpush1.msra.mxu0 0.0
      %3175 = vmatprep.subr.mxu0 0.0
      %3176 = vmatpush1.msra.mxu0 0.0
      %3177 = vmatprep.subr.mxu0 0.0
      %3178 = vmatpush1.msra.mxu0 0.0
      %3179 = vmatprep.subr.mxu0 0.0
      %3180 = vmatpush1.msra.mxu0 0.0
      %3181 = vmatprep.mubr.f32.mxu0 0.0
      %3182 = vmatmul.mubr.f32.gmra.mrb[0].mxu0 %v3103
      %v3183 = vpop.f32.mrb[0].mxu0
      %v3184 = vadd.f32 0.0, %v3183
      %v3185 = vpop.f32.mrb[0].mxu0
      %3186 = vmatprep.mubr.f32.mxu0 0.0
      %3187 = vmatmul.mubr.f32.gmra.mrb[0].mxu0 %v3106
      %v3188 = vpop.f32.mrb[0].mxu0
      %v3189 = vadd.f32 0.0, %v3188
      %v3190 = vpop.f32.mrb[0].mxu0
      %3191 = vmatprep.mubr.f32.mxu0 0.0
      %3192 = vmatmul.mubr.f32.gmra.mrb[0].mxu0 %v3109
      %v3193 = vpop.f32.mrb[0].mxu0
      %v3194 = vadd.f32 0.0, %v3193
      %v3195 = vpop.f32.mrb[0].mxu0
      %3196 = vmatprep.mubr.f32.mxu0 0.0
      %3197 = vmatmul.mubr.f32.gmra.mrb[0].mxu0 %v3112
      %v3198 = vpop.f32.mrb[0].mxu0
      %v3199 = vadd.f32 0.0, %v3198
      %v3200 = vpop.f32.mrb[0].mxu0
      %3201 = vmatprep.mubr.f32.mxu0 0.0
      %3202 = vmatmul.mubr.f32.gmra.mrb[0].mxu0 %v3115
      %v3203 = vpop.f32.mrb[0].mxu0
      %v3204 = vadd.f32 0.0, %v3203
      %v3205 = vpop.f32.mrb[0].mxu0
      %3206 = vdwg.mxu0
      %v3207 = vadd.f32 %v2976, %v3184
      %v3208 = vadd.f32 %v2977, %v3189
      %v3209 = vadd.f32 %v2978, %v3194
      %v3210 = vadd.f32 %v2979, %v3199
      %v3211 = vadd.f32 %v2980, %v3204
      %s3212 = scalar_lea.vmem %s4, 800
      %v3213 = vld [vmem:[%s3212] sm:$0xff]
      %v3214 = vld [vmem:[%s3212 + $0x8] sm:$0xff]
      %v3215 = vld [vmem:[%s3212 + $0x10] sm:$0xff]
      %v3216 = vld [vmem:[%s3212 + $0x18] sm:$0xff]
      %v3217 = vld [vmem:[%s3212 + $0x20] sm:$0xff]
      %v3218 = vld [vmem:[%s3212 + $0x28] sm:$0xff]
      %v3219 = vld [vmem:[%s3212 + $0x30] sm:$0xff]
      %v3220 = vld [vmem:[%s3212 + $0x38] sm:$0xff]
      %v3221 = vld [vmem:[%s3212 + $0x40] sm:$0xf]
      %v3222 = vld [vmem:[%s3212 + $0x48] sm:$0xf]
      %v3224 = vsel %vm918, %v3214, 0
      %v3227 = vsel %vm918, %v3216, 0
      %v3230 = vsel %vm918, %v3218, 0
      %v3233 = vsel %vm918, %v3220, 0
      %v3236 = vsel %vm918, %v3222, 0
      %3238 = vmatprep.subr.mxu0 0.0
      %3239 = vmatpush1.msra.mxu0 %v879
      %3240 = vmatprep.subr.mxu0 0.0
      %3241 = vmatpush1.msra.mxu0 %v880
      %3242 = vmatprep.subr.mxu0 0.0
      %3243 = vmatpush1.msra.mxu0 %v881
      %3244 = vmatprep.subr.mxu0 0.0
      %3245 = vmatpush1.msra.mxu0 %v882
      %3246 = vmatprep.subr.mxu0 0.0
      %3247 = vmatpush1.msra.mxu0 %v883
      %3248 = vmatprep.subr.mxu0 0.0
      %3249 = vmatpush1.msra.mxu0 %v884
      %3250 = vmatprep.subr.mxu0 0.0
      %3251 = vmatpush1.msra.mxu0 %v885
      %3252 = vmatprep.subr.mxu0 0.0
      %3253 = vmatpush1.msra.mxu0 %v886
      %3254 = vmatprep.subr.mxu0 0.0
      %3255 = vmatpush1.msra.mxu0 %v887
      %3256 = vmatprep.subr.mxu0 0.0
      %3257 = vmatpush1.msra.mxu0 %v888
      %3258 = vmatprep.subr.mxu0 0.0
      %3259 = vmatpush1.msra.mxu0 %v889
      %3260 = vmatprep.subr.mxu0 0.0
      %3261 = vmatpush1.msra.mxu0 %v890
      %3262 = vmatprep.subr.mxu0 0.0
      %3263 = vmatpush1.msra.mxu0 %v891
      %3264 = vmatprep.subr.mxu0 0.0
      %3265 = vmatpush1.msra.mxu0 %v892
      %3266 = vmatprep.subr.mxu0 0.0
      %3267 = vmatpush1.msra.mxu0 %v893
      %3268 = vmatprep.subr.mxu0 0.0
      %3269 = vmatpush1.msra.mxu0 %v894
      %3270 = vmatprep.subr.mxu0 0.0
      %3271 = vmatpush1.msra.mxu0 %v895
      %3272 = vmatprep.subr.mxu0 0.0
      %3273 = vmatpush1.msra.mxu0 %v896
      %3274 = vmatprep.subr.mxu0 0.0
      %3275 = vmatpush1.msra.mxu0 %v897
      %3276 = vmatprep.subr.mxu0 0.0
      %3277 = vmatpush1.msra.mxu0 %v898
      %3278 = vmatprep.subr.mxu0 0.0
      %3279 = vmatpush1.msra.mxu0 %v899
      %3280 = vmatprep.subr.mxu0 0.0
      %3281 = vmatpush1.msra.mxu0 %v900
      %3282 = vmatprep.subr.mxu0 0.0
      %3283 = vmatpush1.msra.mxu0 %v901
      %3284 = vmatprep.subr.mxu0 0.0
      %3285 = vmatpush1.msra.mxu0 %v902
      %3286 = vmatprep.subr.mxu0 0.0
      %3287 = vmatpush1.msra.mxu0 %v903
      %3288 = vmatprep.subr.mxu0 0.0
      %3289 = vmatpush1.msra.mxu0 %v904
      %3290 = vmatprep.subr.mxu0 0.0
      %3291 = vmatpush1.msra.mxu0 %v905
      %3292 = vmatprep.subr.mxu0 0.0
      %3293 = vmatpush1.msra.mxu0 %v906
      %3294 = vmatprep.subr.mxu0 0.0
      %3295 = vmatpush1.msra.mxu0 %v936
      %3296 = vmatprep.subr.mxu0 0.0
      %3297 = vmatpush1.msra.mxu0 0.0
      %3298 = vmatprep.subr.mxu0 0.0
      %3299 = vmatpush1.msra.mxu0 0.0
      %3300 = vmatprep.subr.mxu0 0.0
      %3301 = vmatpush1.msra.mxu0 0.0
      %3302 = vmatprep.mubr.f32.mxu0 %v3224
      %3303 = vmatmul.mubr.f32.gmra.mrb[0].mxu0 %v3213
      %v3304 = vpop.f32.mrb[0].mxu0
      %v3305 = vadd.f32 0.0, %v3304
      %v3306 = vpop.f32.mrb[0].mxu0
      %3307 = vmatprep.mubr.f32.mxu0 %v3227
      %3308 = vmatmul.mubr.f32.gmra.mrb[0].mxu0 %v3215
      %v3309 = vpop.f32.mrb[0].mxu0
      %v3310 = vadd.f32 0.0, %v3309
      %v3311 = vpop.f32.mrb[0].mxu0
      %3312 = vmatprep.mubr.f32.mxu0 %v3230
      %3313 = vmatmul.mubr.f32.gmra.mrb[0].mxu0 %v3217
      %v3314 = vpop.f32.mrb[0].mxu0
      %v3315 = vadd.f32 0.0, %v3314
      %v3316 = vpop.f32.mrb[0].mxu0
      %3317 = vmatprep.mubr.f32.mxu0 %v3233
      %3318 = vmatmul.mubr.f32.gmra.mrb[0].mxu0 %v3219
      %v3319 = vpop.f32.mrb[0].mxu0
      %v3320 = vadd.f32 0.0, %v3319
      %v3321 = vpop.f32.mrb[0].mxu0
      %3322 = vmatprep.mubr.f32.mxu0 %v3236
      %3323 = vmatmul.mubr.f32.gmra.mrb[0].mxu0 %v3221
      %v3324 = vpop.f32.mrb[0].mxu0
      %v3325 = vadd.f32 0.0, %v3324
      %v3326 = vpop.f32.mrb[0].mxu0
      %3327 = vdwg.mxu0
      %s3328 = scalar_lea.vmem %s5, 320
      %v3329 = vld [vmem:[%s3328] sm:$0xff]
      %v3330 = vld [vmem:[%s3328 + $0x8] sm:$0xff]
      %v3331 = vld [vmem:[%s3328 + $0x10] sm:$0xff]
      %v3332 = vld [vmem:[%s3328 + $0x18] sm:$0xff]
      %v3334 = vsel %vm1153, %v3305, 0
      %v3337 = vsel %vm1153, %v3310, 0
      %v3340 = vsel %vm1153, %v3315, 0
      %v3343 = vsel %vm1153, %v3320, 0
      %v3346 = vsel %vm1153, %v3325, 0
      %3348 = vmatprep.subr.mxu0 0.0
      %3349 = vmatpush1.msra.mxu0 %v3329
      %3350 = vmatprep.subr.mxu0 0.0
      %3351 = vmatpush1.msra.mxu0 %v3330
      %3352 = vmatprep.subr.mxu0 0.0
      %3353 = vmatpush1.msra.mxu0 %v3331
      %3354 = vmatprep.subr.mxu0 0.0
      %3355 = vmatpush1.msra.mxu0 %v3332
      %3356 = vmatprep.subr.mxu0 0.0
      %3357 = vmatpush1.msra.mxu0 0.0
      %3358 = vmatprep.subr.mxu0 0.0
      %3359 = vmatpush1.msra.mxu0 0.0
      %3360 = vmatprep.subr.mxu0 0.0
      %3361 = vmatpush1.msra.mxu0 0.0
      %3362 = vmatprep.subr.mxu0 0.0
      %3363 = vmatpush1.msra.mxu0 0.0
      %3364 = vmatprep.subr.mxu0 0.0
      %3365 = vmatpush1.msra.mxu0 0.0
      %3366 = vmatprep.subr.mxu0 0.0
      %3367 = vmatpush1.msra.mxu0 0.0
      %3368 = vmatprep.subr.mxu0 0.0
      %3369 = vmatpush1.msra.mxu0 0.0
      %3370 = vmatprep.subr.mxu0 0.0
      %3371 = vmatpush1.msra.mxu0 0.0
      %3372 = vmatprep.subr.mxu0 0.0
      %3373 = vmatpush1.msra.mxu0 0.0
      %3374 = vmatprep.subr.mxu0 0.0
      %3375 = vmatpush1.msra.mxu0 0.0
      %3376 = vmatprep.subr.mxu0 0.0
      %3377 = vmatpush1.msra.mxu0 0.0
      %3378 = vmatprep.subr.mxu0 0.0
      %3379 = vmatpush1.msra.mxu0 0.0
      %3380 = vmatprep.subr.mxu0 0.0
      %3381 = vmatpush1.msra.mxu0 0.0
      %3382 = vmatprep.subr.mxu0 0.0
      %3383 = vmatpush1.msra.mxu0 0.0
      %3384 = vmatprep.subr.mxu0 0.0
      %3385 = vmatpush1.msra.mxu0 0.0
      %3386 = vmatprep.subr.mxu0 0.0
      %3387 = vmatpush1.msra.mxu0 0.0
      %3388 = vmatprep.subr.mxu0 0.0
      %3389 = vmatpush1.msra.mxu0 0.0
      %3390 = vmatprep.subr.mxu0 0.0
      %3391 = vmatpush1.msra.mxu0 0.0
      %3392 = vmatprep.subr.mxu0 0.0
      %3393 = vmatpush1.msra.mxu0 0.0
      %3394 = vmatprep.subr.mxu0 0.0
      %3395 = vmatpush1.msra.mxu0 0.0
      %3396 = vmatprep.subr.mxu0 0.0
      %3397 = vmatpush1.msra.mxu0 0.0
      %3398 = vmatprep.subr.mxu0 0.0
      %3399 = vmatpush1.msra.mxu0 0.0
      %3400 = vmatprep.subr.mxu0 0.0
      %3401 = vmatpush1.msra.mxu0 0.0
      %3402 = vmatprep.subr.mxu0 0.0
      %3403 = vmatpush1.msra.mxu0 0.0
      %3404 = vmatprep.subr.mxu0 0.0
      %3405 = vmatpush1.msra.mxu0 0.0
      %3406 = vmatprep.subr.mxu0 0.0
      %3407 = vmatpush1.msra.mxu0 0.0
      %3408 = vmatprep.subr.mxu0 0.0
      %3409 = vmatpush1.msra.mxu0 0.0
      %3410 = vmatprep.subr.mxu0 0.0
      %3411 = vmatpush1.msra.mxu0 0.0
      %3412 = vmatprep.mubr.f32.mxu0 0.0
      %3413 = vmatmul.mubr.f32.gmra.mrb[0].mxu0 %v3334
      %v3414 = vpop.f32.mrb[0].mxu0
      %v3415 = vadd.f32 0.0, %v3414
      %v3416 = vpop.f32.mrb[0].mxu0
      %3417 = vmatprep.mubr.f32.mxu0 0.0
      %3418 = vmatmul.mubr.f32.gmra.mrb[0].mxu0 %v3337
      %v3419 = vpop.f32.mrb[0].mxu0
      %v3420 = vadd.f32 0.0, %v3419
      %v3421 = vpop.f32.mrb[0].mxu0
      %3422 = vmatprep.mubr.f32.mxu0 0.0
      %3423 = vmatmul.mubr.f32.gmra.mrb[0].mxu0 %v3340
      %v3424 = vpop.f32.mrb[0].mxu0
      %v3425 = vadd.f32 0.0, %v3424
      %v3426 = vpop.f32.mrb[0].mxu0
      %3427 = vmatprep.mubr.f32.mxu0 0.0
      %3428 = vmatmul.mubr.f32.gmra.mrb[0].mxu0 %v3343
      %v3429 = vpop.f32.mrb[0].mxu0
      %v3430 = vadd.f32 0.0, %v3429
      %v3431 = vpop.f32.mrb[0].mxu0
      %3432 = vmatprep.mubr.f32.mxu0 0.0
      %3433 = vmatmul.mubr.f32.gmra.mrb[0].mxu0 %v3346
      %v3434 = vpop.f32.mrb[0].mxu0
      %v3435 = vadd.f32 0.0, %v3434
      %v3436 = vpop.f32.mrb[0].mxu0
      %3437 = vdwg.mxu0
      %v3438 = vadd.f32 %v3207, %v3415
      %v3439 = vadd.f32 %v3208, %v3420
      %v3440 = vadd.f32 %v3209, %v3425
      %v3441 = vadd.f32 %v3210, %v3430
      %v3442 = vadd.f32 %v3211, %v3435
      %s3443 = scalar_lea.vmem %s4, 880
      %v3444 = vld [vmem:[%s3443] sm:$0xff]
      %v3445 = vld [vmem:[%s3443 + $0x8] sm:$0xff]
      %v3446 = vld [vmem:[%s3443 + $0x10] sm:$0xff]
      %v3447 = vld [vmem:[%s3443 + $0x18] sm:$0xff]
      %v3448 = vld [vmem:[%s3443 + $0x20] sm:$0xff]
      %v3449 = vld [vmem:[%s3443 + $0x28] sm:$0xff]
      %v3450 = vld [vmem:[%s3443 + $0x30] sm:$0xff]
      %v3451 = vld [vmem:[%s3443 + $0x38] sm:$0xff]
      %v3452 = vld [vmem:[%s3443 + $0x40] sm:$0xf]
      %v3453 = vld [vmem:[%s3443 + $0x48] sm:$0xf]
      %v3455 = vsel %vm918, %v3445, 0
      %v3458 = vsel %vm918, %v3447, 0
      %v3461 = vsel %vm918, %v3449, 0
      %v3464 = vsel %vm918, %v3451, 0
      %v3467 = vsel %vm918, %v3453, 0
      %3469 = vmatprep.subr.mxu0 0.0
      %3470 = vmatpush1.msra.mxu0 %v879
      %3471 = vmatprep.subr.mxu0 0.0
      %3472 = vmatpush1.msra.mxu0 %v880
      %3473 = vmatprep.subr.mxu0 0.0
      %3474 = vmatpush1.msra.mxu0 %v881
      %3475 = vmatprep.subr.mxu0 0.0
      %3476 = vmatpush1.msra.mxu0 %v882
      %3477 = vmatprep.subr.mxu0 0.0
      %3478 = vmatpush1.msra.mxu0 %v883
      %3479 = vmatprep.subr.mxu0 0.0
      %3480 = vmatpush1.msra.mxu0 %v884
      %3481 = vmatprep.subr.mxu0 0.0
      %3482 = vmatpush1.msra.mxu0 %v885
      %3483 = vmatprep.subr.mxu0 0.0
      %3484 = vmatpush1.msra.mxu0 %v886
      %3485 = vmatprep.subr.mxu0 0.0
      %3486 = vmatpush1.msra.mxu0 %v887
      %3487 = vmatprep.subr.mxu0 0.0
      %3488 = vmatpush1.msra.mxu0 %v888
      %3489 = vmatprep.subr.mxu0 0.0
      %3490 = vmatpush1.msra.mxu0 %v889
      %3491 = vmatprep.subr.mxu0 0.0
      %3492 = vmatpush1.msra.mxu0 %v890
      %3493 = vmatprep.subr.mxu0 0.0
      %3494 = vmatpush1.msra.mxu0 %v891
      %3495 = vmatprep.subr.mxu0 0.0
      %3496 = vmatpush1.msra.mxu0 %v892
      %3497 = vmatprep.subr.mxu0 0.0
      %3498 = vmatpush1.msra.mxu0 %v893
      %3499 = vmatprep.subr.mxu0 0.0
      %3500 = vmatpush1.msra.mxu0 %v894
      %3501 = vmatprep.subr.mxu0 0.0
      %3502 = vmatpush1.msra.mxu0 %v895
      %3503 = vmatprep.subr.mxu0 0.0
      %3504 = vmatpush1.msra.mxu0 %v896
      %3505 = vmatprep.subr.mxu0 0.0
      %3506 = vmatpush1.msra.mxu0 %v897
      %3507 = vmatprep.subr.mxu0 0.0
      %3508 = vmatpush1.msra.mxu0 %v898
      %3509 = vmatprep.subr.mxu0 0.0
      %3510 = vmatpush1.msra.mxu0 %v899
      %3511 = vmatprep.subr.mxu0 0.0
      %3512 = vmatpush1.msra.mxu0 %v900
      %3513 = vmatprep.subr.mxu0 0.0
      %3514 = vmatpush1.msra.mxu0 %v901
      %3515 = vmatprep.subr.mxu0 0.0
      %3516 = vmatpush1.msra.mxu0 %v902
      %3517 = vmatprep.subr.mxu0 0.0
      %3518 = vmatpush1.msra.mxu0 %v903
      %3519 = vmatprep.subr.mxu0 0.0
      %3520 = vmatpush1.msra.mxu0 %v904
      %3521 = vmatprep.subr.mxu0 0.0
      %3522 = vmatpush1.msra.mxu0 %v905
      %3523 = vmatprep.subr.mxu0 0.0
      %3524 = vmatpush1.msra.mxu0 %v906
      %3525 = vmatprep.subr.mxu0 0.0
      %3526 = vmatpush1.msra.mxu0 %v936
      %3527 = vmatprep.subr.mxu0 0.0
      %3528 = vmatpush1.msra.mxu0 0.0
      %3529 = vmatprep.subr.mxu0 0.0
      %3530 = vmatpush1.msra.mxu0 0.0
      %3531 = vmatprep.subr.mxu0 0.0
      %3532 = vmatpush1.msra.mxu0 0.0
      %3533 = vmatprep.mubr.f32.mxu0 %v3455
      %3534 = vmatmul.mubr.f32.gmra.mrb[0].mxu0 %v3444
      %v3535 = vpop.f32.mrb[0].mxu0
      %v3536 = vadd.f32 0.0, %v3535
      %v3537 = vpop.f32.mrb[0].mxu0
      %3538 = vmatprep.mubr.f32.mxu0 %v3458
      %3539 = vmatmul.mubr.f32.gmra.mrb[0].mxu0 %v3446
      %v3540 = vpop.f32.mrb[0].mxu0
      %v3541 = vadd.f32 0.0, %v3540
      %v3542 = vpop.f32.mrb[0].mxu0
      %3543 = vmatprep.mubr.f32.mxu0 %v3461
      %3544 = vmatmul.mubr.f32.gmra.mrb[0].mxu0 %v3448
      %v3545 = vpop.f32.mrb[0].mxu0
      %v3546 = vadd.f32 0.0, %v3545
      %v3547 = vpop.f32.mrb[0].mxu0
      %3548 = vmatprep.mubr.f32.mxu0 %v3464
      %3549 = vmatmul.mubr.f32.gmra.mrb[0].mxu0 %v3450
      %v3550 = vpop.f32.mrb[0].mxu0
      %v3551 = vadd.f32 0.0, %v3550
      %v3552 = vpop.f32.mrb[0].mxu0
      %3553 = vmatprep.mubr.f32.mxu0 %v3467
      %3554 = vmatmul.mubr.f32.gmra.mrb[0].mxu0 %v3452
      %v3555 = vpop.f32.mrb[0].mxu0
      %v3556 = vadd.f32 0.0, %v3555
      %v3557 = vpop.f32.mrb[0].mxu0
      %3558 = vdwg.mxu0
      %s3559 = scalar_lea.vmem %s5, 352
      %v3560 = vld [vmem:[%s3559] sm:$0xff]
      %v3561 = vld [vmem:[%s3559 + $0x8] sm:$0xff]
      %v3562 = vld [vmem:[%s3559 + $0x10] sm:$0xff]
      %v3563 = vld [vmem:[%s3559 + $0x18] sm:$0xff]
      %v3565 = vsel %vm1153, %v3536, 0
      %v3568 = vsel %vm1153, %v3541, 0
      %v3571 = vsel %vm1153, %v3546, 0
      %v3574 = vsel %vm1153, %v3551, 0
      %v3577 = vsel %vm1153, %v3556, 0
      %3579 = vmatprep.subr.mxu0 0.0
      %3580 = vmatpush1.msra.mxu0 %v3560
      %3581 = vmatprep.subr.mxu0 0.0
      %3582 = vmatpush1.msra.mxu0 %v3561
      %3583 = vmatprep.subr.mxu0 0.0
      %3584 = vmatpush1.msra.mxu0 %v3562
      %3585 = vmatprep.subr.mxu0 0.0
      %3586 = vmatpush1.msra.mxu0 %v3563
      %3587 = vmatprep.subr.mxu0 0.0
      %3588 = vmatpush1.msra.mxu0 0.0
      %3589 = vmatprep.subr.mxu0 0.0
      %3590 = vmatpush1.msra.mxu0 0.0
      %3591 = vmatprep.subr.mxu0 0.0
      %3592 = vmatpush1.msra.mxu0 0.0
      %3593 = vmatprep.subr.mxu0 0.0
      %3594 = vmatpush1.msra.mxu0 0.0
      %3595 = vmatprep.subr.mxu0 0.0
      %3596 = vmatpush1.msra.mxu0 0.0
      %3597 = vmatprep.subr.mxu0 0.0
      %3598 = vmatpush1.msra.mxu0 0.0
      %3599 = vmatprep.subr.mxu0 0.0
      %3600 = vmatpush1.msra.mxu0 0.0
      %3601 = vmatprep.subr.mxu0 0.0
      %3602 = vmatpush1.msra.mxu0 0.0
      %3603 = vmatprep.subr.mxu0 0.0
      %3604 = vmatpush1.msra.mxu0 0.0
      %3605 = vmatprep.subr.mxu0 0.0
      %3606 = vmatpush1.msra.mxu0 0.0
      %3607 = vmatprep.subr.mxu0 0.0
      %3608 = vmatpush1.msra.mxu0 0.0
      %3609 = vmatprep.subr.mxu0 0.0
      %3610 = vmatpush1.msra.mxu0 0.0
      %3611 = vmatprep.subr.mxu0 0.0
      %3612 = vmatpush1.msra.mxu0 0.0
      %3613 = vmatprep.subr.mxu0 0.0
      %3614 = vmatpush1.msra.mxu0 0.0
      %3615 = vmatprep.subr.mxu0 0.0
      %3616 = vmatpush1.msra.mxu0 0.0
      %3617 = vmatprep.subr.mxu0 0.0
      %3618 = vmatpush1.msra.mxu0 0.0
      %3619 = vmatprep.subr.mxu0 0.0
      %3620 = vmatpush1.msra.mxu0 0.0
      %3621 = vmatprep.subr.mxu0 0.0
      %3622 = vmatpush1.msra.mxu0 0.0
      %3623 = vmatprep.subr.mxu0 0.0
      %3624 = vmatpush1.msra.mxu0 0.0
      %3625 = vmatprep.subr.mxu0 0.0
      %3626 = vmatpush1.msra.mxu0 0.0
      %3627 = vmatprep.subr.mxu0 0.0
      %3628 = vmatpush1.msra.mxu0 0.0
      %3629 = vmatprep.subr.mxu0 0.0
      %3630 = vmatpush1.msra.mxu0 0.0
      %3631 = vmatprep.subr.mxu0 0.0
      %3632 = vmatpush1.msra.mxu0 0.0
      %3633 = vmatprep.subr.mxu0 0.0
      %3634 = vmatpush1.msra.mxu0 0.0
      %3635 = vmatprep.subr.mxu0 0.0
      %3636 = vmatpush1.msra.mxu0 0.0
      %3637 = vmatprep.subr.mxu0 0.0
      %3638 = vmatpush1.msra.mxu0 0.0
      %3639 = vmatprep.subr.mxu0 0.0
      %3640 = vmatpush1.msra.mxu0 0.0
      %3641 = vmatprep.subr.mxu0 0.0
      %3642 = vmatpush1.msra.mxu0 0.0
      %3643 = vmatprep.mubr.f32.mxu0 0.0
      %3644 = vmatmul.mubr.f32.gmra.mrb[0].mxu0 %v3565
      %v3645 = vpop.f32.mrb[0].mxu0
      %v3646 = vadd.f32 0.0, %v3645
      %v3647 = vpop.f32.mrb[0].mxu0
      %3648 = vmatprep.mubr.f32.mxu0 0.0
      %3649 = vmatmul.mubr.f32.gmra.mrb[0].mxu0 %v3568
      %v3650 = vpop.f32.mrb[0].mxu0
      %v3651 = vadd.f32 0.0, %v3650
      %v3652 = vpop.f32.mrb[0].mxu0
      %3653 = vmatprep.mubr.f32.mxu0 0.0
      %3654 = vmatmul.mubr.f32.gmra.mrb[0].mxu0 %v3571
      %v3655 = vpop.f32.mrb[0].mxu0
      %v3656 = vadd.f32 0.0, %v3655
      %v3657 = vpop.f32.mrb[0].mxu0
      %3658 = vmatprep.mubr.f32.mxu0 0.0
      %3659 = vmatmul.mubr.f32.gmra.mrb[0].mxu0 %v3574
      %v3660 = vpop.f32.mrb[0].mxu0
      %v3661 = vadd.f32 0.0, %v3660
      %v3662 = vpop.f32.mrb[0].mxu0
      %3663 = vmatprep.mubr.f32.mxu0 0.0
      %3664 = vmatmul.mubr.f32.gmra.mrb[0].mxu0 %v3577
      %v3665 = vpop.f32.mrb[0].mxu0
      %v3666 = vadd.f32 0.0, %v3665
      %v3667 = vpop.f32.mrb[0].mxu0
      %3668 = vdwg.mxu0
      %v3669 = vadd.f32 %v3438, %v3646
      %v3670 = vadd.f32 %v3439, %v3651
      %v3671 = vadd.f32 %v3440, %v3656
      %v3672 = vadd.f32 %v3441, %v3661
      %v3673 = vadd.f32 %v3442, %v3666
      %s3674 = scalar_lea.vmem %s4, 960
      %v3675 = vld [vmem:[%s3674] sm:$0xff]
      %v3676 = vld [vmem:[%s3674 + $0x8] sm:$0xff]
      %v3677 = vld [vmem:[%s3674 + $0x10] sm:$0xff]
      %v3678 = vld [vmem:[%s3674 + $0x18] sm:$0xff]
      %v3679 = vld [vmem:[%s3674 + $0x20] sm:$0xff]
      %v3680 = vld [vmem:[%s3674 + $0x28] sm:$0xff]
      %v3681 = vld [vmem:[%s3674 + $0x30] sm:$0xff]
      %v3682 = vld [vmem:[%s3674 + $0x38] sm:$0xff]
      %v3683 = vld [vmem:[%s3674 + $0x40] sm:$0xf]
      %v3684 = vld [vmem:[%s3674 + $0x48] sm:$0xf]
      %v3686 = vsel %vm918, %v3676, 0
      %v3689 = vsel %vm918, %v3678, 0
      %v3692 = vsel %vm918, %v3680, 0
      %v3695 = vsel %vm918, %v3682, 0
      %v3698 = vsel %vm918, %v3684, 0
      %3700 = vmatprep.subr.mxu0 0.0
      %3701 = vmatpush1.msra.mxu0 %v879
      %3702 = vmatprep.subr.mxu0 0.0
      %3703 = vmatpush1.msra.mxu0 %v880
      %3704 = vmatprep.subr.mxu0 0.0
      %3705 = vmatpush1.msra.mxu0 %v881
      %3706 = vmatprep.subr.mxu0 0.0
      %3707 = vmatpush1.msra.mxu0 %v882
      %3708 = vmatprep.subr.mxu0 0.0
      %3709 = vmatpush1.msra.mxu0 %v883
      %3710 = vmatprep.subr.mxu0 0.0
      %3711 = vmatpush1.msra.mxu0 %v884
      %3712 = vmatprep.subr.mxu0 0.0
      %3713 = vmatpush1.msra.mxu0 %v885
      %3714 = vmatprep.subr.mxu0 0.0
      %3715 = vmatpush1.msra.mxu0 %v886
      %3716 = vmatprep.subr.mxu0 0.0
      %3717 = vmatpush1.msra.mxu0 %v887
      %3718 = vmatprep.subr.mxu0 0.0
      %3719 = vmatpush1.msra.mxu0 %v888
      %3720 = vmatprep.subr.mxu0 0.0
      %3721 = vmatpush1.msra.mxu0 %v889
      %3722 = vmatprep.subr.mxu0 0.0
      %3723 = vmatpush1.msra.mxu0 %v890
      %3724 = vmatprep.subr.mxu0 0.0
      %3725 = vmatpush1.msra.mxu0 %v891
      %3726 = vmatprep.subr.mxu0 0.0
      %3727 = vmatpush1.msra.mxu0 %v892
      %3728 = vmatprep.subr.mxu0 0.0
      %3729 = vmatpush1.msra.mxu0 %v893
      %3730 = vmatprep.subr.mxu0 0.0
      %3731 = vmatpush1.msra.mxu0 %v894
      %3732 = vmatprep.subr.mxu0 0.0
      %3733 = vmatpush1.msra.mxu0 %v895
      %3734 = vmatprep.subr.mxu0 0.0
      %3735 = vmatpush1.msra.mxu0 %v896
      %3736 = vmatprep.subr.mxu0 0.0
      %3737 = vmatpush1.msra.mxu0 %v897
      %3738 = vmatprep.subr.mxu0 0.0
      %3739 = vmatpush1.msra.mxu0 %v898
      %3740 = vmatprep.subr.mxu0 0.0
      %3741 = vmatpush1.msra.mxu0 %v899
      %3742 = vmatprep.subr.mxu0 0.0
      %3743 = vmatpush1.msra.mxu0 %v900
      %3744 = vmatprep.subr.mxu0 0.0
      %3745 = vmatpush1.msra.mxu0 %v901
      %3746 = vmatprep.subr.mxu0 0.0
      %3747 = vmatpush1.msra.mxu0 %v902
      %3748 = vmatprep.subr.mxu0 0.0
      %3749 = vmatpush1.msra.mxu0 %v903
      %3750 = vmatprep.subr.mxu0 0.0
      %3751 = vmatpush1.msra.mxu0 %v904
      %3752 = vmatprep.subr.mxu0 0.0
      %3753 = vmatpush1.msra.mxu0 %v905
      %3754 = vmatprep.subr.mxu0 0.0
      %3755 = vmatpush1.msra.mxu0 %v906
      %3756 = vmatprep.subr.mxu0 0.0
      %3757 = vmatpush1.msra.mxu0 %v936
      %3758 = vmatprep.subr.mxu0 0.0
      %3759 = vmatpush1.msra.mxu0 0.0
      %3760 = vmatprep.subr.mxu0 0.0
      %3761 = vmatpush1.msra.mxu0 0.0
      %3762 = vmatprep.subr.mxu0 0.0
      %3763 = vmatpush1.msra.mxu0 0.0
      %3764 = vmatprep.mubr.f32.mxu0 %v3686
      %3765 = vmatmul.mubr.f32.gmra.mrb[0].mxu0 %v3675
      %v3766 = vpop.f32.mrb[0].mxu0
      %v3767 = vadd.f32 0.0, %v3766
      %v3768 = vpop.f32.mrb[0].mxu0
      %3769 = vmatprep.mubr.f32.mxu0 %v3689
      %3770 = vmatmul.mubr.f32.gmra.mrb[0].mxu0 %v3677
      %v3771 = vpop.f32.mrb[0].mxu0
      %v3772 = vadd.f32 0.0, %v3771
      %v3773 = vpop.f32.mrb[0].mxu0
      %3774 = vmatprep.mubr.f32.mxu0 %v3692
      %3775 = vmatmul.mubr.f32.gmra.mrb[0].mxu0 %v3679
      %v3776 = vpop.f32.mrb[0].mxu0
      %v3777 = vadd.f32 0.0, %v3776
      %v3778 = vpop.f32.mrb[0].mxu0
      %3779 = vmatprep.mubr.f32.mxu0 %v3695
      %3780 = vmatmul.mubr.f32.gmra.mrb[0].mxu0 %v3681
      %v3781 = vpop.f32.mrb[0].mxu0
      %v3782 = vadd.f32 0.0, %v3781
      %v3783 = vpop.f32.mrb[0].mxu0
      %3784 = vmatprep.mubr.f32.mxu0 %v3698
      %3785 = vmatmul.mubr.f32.gmra.mrb[0].mxu0 %v3683
      %v3786 = vpop.f32.mrb[0].mxu0
      %v3787 = vadd.f32 0.0, %v3786
      %v3788 = vpop.f32.mrb[0].mxu0
      %3789 = vdwg.mxu0
      %s3790 = scalar_lea.vmem %s5, 384
      %v3791 = vld [vmem:[%s3790] sm:$0xff]
      %v3792 = vld [vmem:[%s3790 + $0x8] sm:$0xff]
      %v3793 = vld [vmem:[%s3790 + $0x10] sm:$0xff]
      %v3794 = vld [vmem:[%s3790 + $0x18] sm:$0xff]
      %v3796 = vsel %vm1153, %v3767, 0
      %v3799 = vsel %vm1153, %v3772, 0
      %v3802 = vsel %vm1153, %v3777, 0
      %v3805 = vsel %vm1153, %v3782, 0
      %v3808 = vsel %vm1153, %v3787, 0
      %3810 = vmatprep.subr.mxu0 0.0
      %3811 = vmatpush1.msra.mxu0 %v3791
      %3812 = vmatprep.subr.mxu0 0.0
      %3813 = vmatpush1.msra.mxu0 %v3792
      %3814 = vmatprep.subr.mxu0 0.0
      %3815 = vmatpush1.msra.mxu0 %v3793
      %3816 = vmatprep.subr.mxu0 0.0
      %3817 = vmatpush1.msra.mxu0 %v3794
      %3818 = vmatprep.subr.mxu0 0.0
      %3819 = vmatpush1.msra.mxu0 0.0
      %3820 = vmatprep.subr.mxu0 0.0
      %3821 = vmatpush1.msra.mxu0 0.0
      %3822 = vmatprep.subr.mxu0 0.0
      %3823 = vmatpush1.msra.mxu0 0.0
      %3824 = vmatprep.subr.mxu0 0.0
      %3825 = vmatpush1.msra.mxu0 0.0
      %3826 = vmatprep.subr.mxu0 0.0
      %3827 = vmatpush1.msra.mxu0 0.0
      %3828 = vmatprep.subr.mxu0 0.0
      %3829 = vmatpush1.msra.mxu0 0.0
      %3830 = vmatprep.subr.mxu0 0.0
      %3831 = vmatpush1.msra.mxu0 0.0
      %3832 = vmatprep.subr.mxu0 0.0
      %3833 = vmatpush1.msra.mxu0 0.0
      %3834 = vmatprep.subr.mxu0 0.0
      %3835 = vmatpush1.msra.mxu0 0.0
      %3836 = vmatprep.subr.mxu0 0.0
      %3837 = vmatpush1.msra.mxu0 0.0
      %3838 = vmatprep.subr.mxu0 0.0
      %3839 = vmatpush1.msra.mxu0 0.0
      %3840 = vmatprep.subr.mxu0 0.0
      %3841 = vmatpush1.msra.mxu0 0.0
      %3842 = vmatprep.subr.mxu0 0.0
      %3843 = vmatpush1.msra.mxu0 0.0
      %3844 = vmatprep.subr.mxu0 0.0
      %3845 = vmatpush1.msra.mxu0 0.0
      %3846 = vmatprep.subr.mxu0 0.0
      %3847 = vmatpush1.msra.mxu0 0.0
      %3848 = vmatprep.subr.mxu0 0.0
      %3849 = vmatpush1.msra.mxu0 0.0
      %3850 = vmatprep.subr.mxu0 0.0
      %3851 = vmatpush1.msra.mxu0 0.0
      %3852 = vmatprep.subr.mxu0 0.0
      %3853 = vmatpush1.msra.mxu0 0.0
      %3854 = vmatprep.subr.mxu0 0.0
      %3855 = vmatpush1.msra.mxu0 0.0
      %3856 = vmatprep.subr.mxu0 0.0
      %3857 = vmatpush1.msra.mxu0 0.0
      %3858 = vmatprep.subr.mxu0 0.0
      %3859 = vmatpush1.msra.mxu0 0.0
      %3860 = vmatprep.subr.mxu0 0.0
      %3861 = vmatpush1.msra.mxu0 0.0
      %3862 = vmatprep.subr.mxu0 0.0
      %3863 = vmatpush1.msra.mxu0 0.0
      %3864 = vmatprep.subr.mxu0 0.0
      %3865 = vmatpush1.msra.mxu0 0.0
      %3866 = vmatprep.subr.mxu0 0.0
      %3867 = vmatpush1.msra.mxu0 0.0
      %3868 = vmatprep.subr.mxu0 0.0
      %3869 = vmatpush1.msra.mxu0 0.0
      %3870 = vmatprep.subr.mxu0 0.0
      %3871 = vmatpush1.msra.mxu0 0.0
      %3872 = vmatprep.subr.mxu0 0.0
      %3873 = vmatpush1.msra.mxu0 0.0
      %3874 = vmatprep.mubr.f32.mxu0 0.0
      %3875 = vmatmul.mubr.f32.gmra.mrb[0].mxu0 %v3796
      %v3876 = vpop.f32.mrb[0].mxu0
      %v3877 = vadd.f32 0.0, %v3876
      %v3878 = vpop.f32.mrb[0].mxu0
      %3879 = vmatprep.mubr.f32.mxu0 0.0
      %3880 = vmatmul.mubr.f32.gmra.mrb[0].mxu0 %v3799
      %v3881 = vpop.f32.mrb[0].mxu0
      %v3882 = vadd.f32 0.0, %v3881
      %v3883 = vpop.f32.mrb[0].mxu0
      %3884 = vmatprep.mubr.f32.mxu0 0.0
      %3885 = vmatmul.mubr.f32.gmra.mrb[0].mxu0 %v3802
      %v3886 = vpop.f32.mrb[0].mxu0
      %v3887 = vadd.f32 0.0, %v3886
      %v3888 = vpop.f32.mrb[0].mxu0
      %3889 = vmatprep.mubr.f32.mxu0 0.0
      %3890 = vmatmul.mubr.f32.gmra.mrb[0].mxu0 %v3805
      %v3891 = vpop.f32.mrb[0].mxu0
      %v3892 = vadd.f32 0.0, %v3891
      %v3893 = vpop.f32.mrb[0].mxu0
      %3894 = vmatprep.mubr.f32.mxu0 0.0
      %3895 = vmatmul.mubr.f32.gmra.mrb[0].mxu0 %v3808
      %v3896 = vpop.f32.mrb[0].mxu0
      %v3897 = vadd.f32 0.0, %v3896
      %v3898 = vpop.f32.mrb[0].mxu0
      %3899 = vdwg.mxu0
      %v3900 = vadd.f32 %v3669, %v3877
      %v3901 = vadd.f32 %v3670, %v3882
      %v3902 = vadd.f32 %v3671, %v3887
      %v3903 = vadd.f32 %v3672, %v3892
      %v3904 = vadd.f32 %v3673, %v3897
      %s3905 = scalar_lea.vmem %s4, 1040
      %v3906 = vld [vmem:[%s3905] sm:$0xff]
      %v3907 = vld [vmem:[%s3905 + $0x8] sm:$0xff]
      %v3908 = vld [vmem:[%s3905 + $0x10] sm:$0xff]
      %v3909 = vld [vmem:[%s3905 + $0x18] sm:$0xff]
      %v3910 = vld [vmem:[%s3905 + $0x20] sm:$0xff]
      %v3911 = vld [vmem:[%s3905 + $0x28] sm:$0xff]
      %v3912 = vld [vmem:[%s3905 + $0x30] sm:$0xff]
      %v3913 = vld [vmem:[%s3905 + $0x38] sm:$0xff]
      %v3914 = vld [vmem:[%s3905 + $0x40] sm:$0xf]
      %v3915 = vld [vmem:[%s3905 + $0x48] sm:$0xf]
      %v3917 = vsel %vm918, %v3907, 0
      %v3920 = vsel %vm918, %v3909, 0
      %v3923 = vsel %vm918, %v3911, 0
      %v3926 = vsel %vm918, %v3913, 0
      %v3929 = vsel %vm918, %v3915, 0
      %3931 = vmatprep.subr.mxu0 0.0
      %3932 = vmatpush1.msra.mxu0 %v879
      %3933 = vmatprep.subr.mxu0 0.0
      %3934 = vmatpush1.msra.mxu0 %v880
      %3935 = vmatprep.subr.mxu0 0.0
      %3936 = vmatpush1.msra.mxu0 %v881
      %3937 = vmatprep.subr.mxu0 0.0
      %3938 = vmatpush1.msra.mxu0 %v882
      %3939 = vmatprep.subr.mxu0 0.0
      %3940 = vmatpush1.msra.mxu0 %v883
      %3941 = vmatprep.subr.mxu0 0.0
      %3942 = vmatpush1.msra.mxu0 %v884
      %3943 = vmatprep.subr.mxu0 0.0
      %3944 = vmatpush1.msra.mxu0 %v885
      %3945 = vmatprep.subr.mxu0 0.0
      %3946 = vmatpush1.msra.mxu0 %v886
      %3947 = vmatprep.subr.mxu0 0.0
      %3948 = vmatpush1.msra.mxu0 %v887
      %3949 = vmatprep.subr.mxu0 0.0
      %3950 = vmatpush1.msra.mxu0 %v888
      %3951 = vmatprep.subr.mxu0 0.0
      %3952 = vmatpush1.msra.mxu0 %v889
      %3953 = vmatprep.subr.mxu0 0.0
      %3954 = vmatpush1.msra.mxu0 %v890
      %3955 = vmatprep.subr.mxu0 0.0
      %3956 = vmatpush1.msra.mxu0 %v891
      %3957 = vmatprep.subr.mxu0 0.0
      %3958 = vmatpush1.msra.mxu0 %v892
      %3959 = vmatprep.subr.mxu0 0.0
      %3960 = vmatpush1.msra.mxu0 %v893
      %3961 = vmatprep.subr.mxu0 0.0
      %3962 = vmatpush1.msra.mxu0 %v894
      %3963 = vmatprep.subr.mxu0 0.0
      %3964 = vmatpush1.msra.mxu0 %v895
      %3965 = vmatprep.subr.mxu0 0.0
      %3966 = vmatpush1.msra.mxu0 %v896
      %3967 = vmatprep.subr.mxu0 0.0
      %3968 = vmatpush1.msra.mxu0 %v897
      %3969 = vmatprep.subr.mxu0 0.0
      %3970 = vmatpush1.msra.mxu0 %v898
      %3971 = vmatprep.subr.mxu0 0.0
      %3972 = vmatpush1.msra.mxu0 %v899
      %3973 = vmatprep.subr.mxu0 0.0
      %3974 = vmatpush1.msra.mxu0 %v900
      %3975 = vmatprep.subr.mxu0 0.0
      %3976 = vmatpush1.msra.mxu0 %v901
      %3977 = vmatprep.subr.mxu0 0.0
      %3978 = vmatpush1.msra.mxu0 %v902
      %3979 = vmatprep.subr.mxu0 0.0
      %3980 = vmatpush1.msra.mxu0 %v903
      %3981 = vmatprep.subr.mxu0 0.0
      %3982 = vmatpush1.msra.mxu0 %v904
      %3983 = vmatprep.subr.mxu0 0.0
      %3984 = vmatpush1.msra.mxu0 %v905
      %3985 = vmatprep.subr.mxu0 0.0
      %3986 = vmatpush1.msra.mxu0 %v906
      %3987 = vmatprep.subr.mxu0 0.0
      %3988 = vmatpush1.msra.mxu0 %v936
      %3989 = vmatprep.subr.mxu0 0.0
      %3990 = vmatpush1.msra.mxu0 0.0
      %3991 = vmatprep.subr.mxu0 0.0
      %3992 = vmatpush1.msra.mxu0 0.0
      %3993 = vmatprep.subr.mxu0 0.0
      %3994 = vmatpush1.msra.mxu0 0.0
      %3995 = vmatprep.mubr.f32.mxu0 %v3917
      %3996 = vmatmul.mubr.f32.gmra.mrb[0].mxu0 %v3906
      %v3997 = vpop.f32.mrb[0].mxu0
      %v3998 = vadd.f32 0.0, %v3997
      %v3999 = vpop.f32.mrb[0].mxu0
      %4000 = vmatprep.mubr.f32.mxu0 %v3920
      %4001 = vmatmul.mubr.f32.gmra.mrb[0].mxu0 %v3908
      %v4002 = vpop.f32.mrb[0].mxu0
      %v4003 = vadd.f32 0.0, %v4002
      %v4004 = vpop.f32.mrb[0].mxu0
      %4005 = vmatprep.mubr.f32.mxu0 %v3923
      %4006 = vmatmul.mubr.f32.gmra.mrb[0].mxu0 %v3910
      %v4007 = vpop.f32.mrb[0].mxu0
      %v4008 = vadd.f32 0.0, %v4007
      %v4009 = vpop.f32.mrb[0].mxu0
      %4010 = vmatprep.mubr.f32.mxu0 %v3926
      %4011 = vmatmul.mubr.f32.gmra.mrb[0].mxu0 %v3912
      %v4012 = vpop.f32.mrb[0].mxu0
      %v4013 = vadd.f32 0.0, %v4012
      %v4014 = vpop.f32.mrb[0].mxu0
      %4015 = vmatprep.mubr.f32.mxu0 %v3929
      %4016 = vmatmul.mubr.f32.gmra.mrb[0].mxu0 %v3914
      %v4017 = vpop.f32.mrb[0].mxu0
      %v4018 = vadd.f32 0.0, %v4017
      %v4019 = vpop.f32.mrb[0].mxu0
      %4020 = vdwg.mxu0
      %s4021 = scalar_lea.vmem %s5, 416
      %v4022 = vld [vmem:[%s4021] sm:$0xff]
      %v4023 = vld [vmem:[%s4021 + $0x8] sm:$0xff]
      %v4024 = vld [vmem:[%s4021 + $0x10] sm:$0xff]
      %v4025 = vld [vmem:[%s4021 + $0x18] sm:$0xff]
      %v4027 = vsel %vm1153, %v3998, 0
      %v4030 = vsel %vm1153, %v4003, 0
      %v4033 = vsel %vm1153, %v4008, 0
      %v4036 = vsel %vm1153, %v4013, 0
      %v4039 = vsel %vm1153, %v4018, 0
      %4041 = vmatprep.subr.mxu0 0.0
      %4042 = vmatpush1.msra.mxu0 %v4022
      %4043 = vmatprep.subr.mxu0 0.0
      %4044 = vmatpush1.msra.mxu0 %v4023
      %4045 = vmatprep.subr.mxu0 0.0
      %4046 = vmatpush1.msra.mxu0 %v4024
      %4047 = vmatprep.subr.mxu0 0.0
      %4048 = vmatpush1.msra.mxu0 %v4025
      %4049 = vmatprep.subr.mxu0 0.0
      %4050 = vmatpush1.msra.mxu0 0.0
      %4051 = vmatprep.subr.mxu0 0.0
      %4052 = vmatpush1.msra.mxu0 0.0
      %4053 = vmatprep.subr.mxu0 0.0
      %4054 = vmatpush1.msra.mxu0 0.0
      %4055 = vmatprep.subr.mxu0 0.0
      %4056 = vmatpush1.msra.mxu0 0.0
      %4057 = vmatprep.subr.mxu0 0.0
      %4058 = vmatpush1.msra.mxu0 0.0
      %4059 = vmatprep.subr.mxu0 0.0
      %4060 = vmatpush1.msra.mxu0 0.0
      %4061 = vmatprep.subr.mxu0 0.0
      %4062 = vmatpush1.msra.mxu0 0.0
      %4063 = vmatprep.subr.mxu0 0.0
      %4064 = vmatpush1.msra.mxu0 0.0
      %4065 = vmatprep.subr.mxu0 0.0
      %4066 = vmatpush1.msra.mxu0 0.0
      %4067 = vmatprep.subr.mxu0 0.0
      %4068 = vmatpush1.msra.mxu0 0.0
      %4069 = vmatprep.subr.mxu0 0.0
      %4070 = vmatpush1.msra.mxu0 0.0
      %4071 = vmatprep.subr.mxu0 0.0
      %4072 = vmatpush1.msra.mxu0 0.0
      %4073 = vmatprep.subr.mxu0 0.0
      %4074 = vmatpush1.msra.mxu0 0.0
      %4075 = vmatprep.subr.mxu0 0.0
      %4076 = vmatpush1.msra.mxu0 0.0
      %4077 = vmatprep.subr.mxu0 0.0
      %4078 = vmatpush1.msra.mxu0 0.0
      %4079 = vmatprep.subr.mxu0 0.0
      %4080 = vmatpush1.msra.mxu0 0.0
      %4081 = vmatprep.subr.mxu0 0.0
      %4082 = vmatpush1.msra.mxu0 0.0
      %4083 = vmatprep.subr.mxu0 0.0
      %4084 = vmatpush1.msra.mxu0 0.0
      %4085 = vmatprep.subr.mxu0 0.0
      %4086 = vmatpush1.msra.mxu0 0.0
      %4087 = vmatprep.subr.mxu0 0.0
      %4088 = vmatpush1.msra.mxu0 0.0
      %4089 = vmatprep.subr.mxu0 0.0
      %4090 = vmatpush1.msra.mxu0 0.0
      %4091 = vmatprep.subr.mxu0 0.0
      %4092 = vmatpush1.msra.mxu0 0.0
      %4093 = vmatprep.subr.mxu0 0.0
      %4094 = vmatpush1.msra.mxu0 0.0
      %4095 = vmatprep.subr.mxu0 0.0
      %4096 = vmatpush1.msra.mxu0 0.0
      %4097 = vmatprep.subr.mxu0 0.0
      %4098 = vmatpush1.msra.mxu0 0.0
      %4099 = vmatprep.subr.mxu0 0.0
      %4100 = vmatpush1.msra.mxu0 0.0
      %4101 = vmatprep.subr.mxu0 0.0
      %4102 = vmatpush1.msra.mxu0 0.0
      %4103 = vmatprep.subr.mxu0 0.0
      %4104 = vmatpush1.msra.mxu0 0.0
      %4105 = vmatprep.mubr.f32.mxu0 0.0
      %4106 = vmatmul.mubr.f32.gmra.mrb[0].mxu0 %v4027
      %v4107 = vpop.f32.mrb[0].mxu0
      %v4108 = vadd.f32 0.0, %v4107
      %v4109 = vpop.f32.mrb[0].mxu0
      %4110 = vmatprep.mubr.f32.mxu0 0.0
      %4111 = vmatmul.mubr.f32.gmra.mrb[0].mxu0 %v4030
      %v4112 = vpop.f32.mrb[0].mxu0
      %v4113 = vadd.f32 0.0, %v4112
      %v4114 = vpop.f32.mrb[0].mxu0
      %4115 = vmatprep.mubr.f32.mxu0 0.0
      %4116 = vmatmul.mubr.f32.gmra.mrb[0].mxu0 %v4033
      %v4117 = vpop.f32.mrb[0].mxu0
      %v4118 = vadd.f32 0.0, %v4117
      %v4119 = vpop.f32.mrb[0].mxu0
      %4120 = vmatprep.mubr.f32.mxu0 0.0
      %4121 = vmatmul.mubr.f32.gmra.mrb[0].mxu0 %v4036
      %v4122 = vpop.f32.mrb[0].mxu0
      %v4123 = vadd.f32 0.0, %v4122
      %v4124 = vpop.f32.mrb[0].mxu0
      %4125 = vmatprep.mubr.f32.mxu0 0.0
      %4126 = vmatmul.mubr.f32.gmra.mrb[0].mxu0 %v4039
      %v4127 = vpop.f32.mrb[0].mxu0
      %v4128 = vadd.f32 0.0, %v4127
      %v4129 = vpop.f32.mrb[0].mxu0
      %4130 = vdwg.mxu0
      %v4131 = vadd.f32 %v3900, %v4108
      %v4132 = vadd.f32 %v3901, %v4113
      %v4133 = vadd.f32 %v3902, %v4118
      %v4134 = vadd.f32 %v3903, %v4123
      %v4135 = vadd.f32 %v3904, %v4128
      %s4136 = scalar_lea.vmem %s4, 1120
      %v4137 = vld [vmem:[%s4136] sm:$0xff]
      %v4138 = vld [vmem:[%s4136 + $0x8] sm:$0xff]
      %v4139 = vld [vmem:[%s4136 + $0x10] sm:$0xff]
      %v4140 = vld [vmem:[%s4136 + $0x18] sm:$0xff]
      %v4141 = vld [vmem:[%s4136 + $0x20] sm:$0xff]
      %v4142 = vld [vmem:[%s4136 + $0x28] sm:$0xff]
      %v4143 = vld [vmem:[%s4136 + $0x30] sm:$0xff]
      %v4144 = vld [vmem:[%s4136 + $0x38] sm:$0xff]
      %v4145 = vld [vmem:[%s4136 + $0x40] sm:$0xf]
      %v4146 = vld [vmem:[%s4136 + $0x48] sm:$0xf]
      %v4148 = vsel %vm918, %v4138, 0
      %v4151 = vsel %vm918, %v4140, 0
      %v4154 = vsel %vm918, %v4142, 0
      %v4157 = vsel %vm918, %v4144, 0
      %v4160 = vsel %vm918, %v4146, 0
      %4162 = vmatprep.subr.mxu0 0.0
      %4163 = vmatpush1.msra.mxu0 %v879
      %4164 = vmatprep.subr.mxu0 0.0
      %4165 = vmatpush1.msra.mxu0 %v880
      %4166 = vmatprep.subr.mxu0 0.0
      %4167 = vmatpush1.msra.mxu0 %v881
      %4168 = vmatprep.subr.mxu0 0.0
      %4169 = vmatpush1.msra.mxu0 %v882
      %4170 = vmatprep.subr.mxu0 0.0
      %4171 = vmatpush1.msra.mxu0 %v883
      %4172 = vmatprep.subr.mxu0 0.0
      %4173 = vmatpush1.msra.mxu0 %v884
      %4174 = vmatprep.subr.mxu0 0.0
      %4175 = vmatpush1.msra.mxu0 %v885
      %4176 = vmatprep.subr.mxu0 0.0
      %4177 = vmatpush1.msra.mxu0 %v886
      %4178 = vmatprep.subr.mxu0 0.0
      %4179 = vmatpush1.msra.mxu0 %v887
      %4180 = vmatprep.subr.mxu0 0.0
      %4181 = vmatpush1.msra.mxu0 %v888
      %4182 = vmatprep.subr.mxu0 0.0
      %4183 = vmatpush1.msra.mxu0 %v889
      %4184 = vmatprep.subr.mxu0 0.0
      %4185 = vmatpush1.msra.mxu0 %v890
      %4186 = vmatprep.subr.mxu0 0.0
      %4187 = vmatpush1.msra.mxu0 %v891
      %4188 = vmatprep.subr.mxu0 0.0
      %4189 = vmatpush1.msra.mxu0 %v892
      %4190 = vmatprep.subr.mxu0 0.0
      %4191 = vmatpush1.msra.mxu0 %v893
      %4192 = vmatprep.subr.mxu0 0.0
      %4193 = vmatpush1.msra.mxu0 %v894
      %4194 = vmatprep.subr.mxu0 0.0
      %4195 = vmatpush1.msra.mxu0 %v895
      %4196 = vmatprep.subr.mxu0 0.0
      %4197 = vmatpush1.msra.mxu0 %v896
      %4198 = vmatprep.subr.mxu0 0.0
      %4199 = vmatpush1.msra.mxu0 %v897
      %4200 = vmatprep.subr.mxu0 0.0
      %4201 = vmatpush1.msra.mxu0 %v898
      %4202 = vmatprep.subr.mxu0 0.0
      %4203 = vmatpush1.msra.mxu0 %v899
      %4204 = vmatprep.subr.mxu0 0.0
      %4205 = vmatpush1.msra.mxu0 %v900
      %4206 = vmatprep.subr.mxu0 0.0
      %4207 = vmatpush1.msra.mxu0 %v901
      %4208 = vmatprep.subr.mxu0 0.0
      %4209 = vmatpush1.msra.mxu0 %v902
      %4210 = vmatprep.subr.mxu0 0.0
      %4211 = vmatpush1.msra.mxu0 %v903
      %4212 = vmatprep.subr.mxu0 0.0
      %4213 = vmatpush1.msra.mxu0 %v904
      %4214 = vmatprep.subr.mxu0 0.0
      %4215 = vmatpush1.msra.mxu0 %v905
      %4216 = vmatprep.subr.mxu0 0.0
      %4217 = vmatpush1.msra.mxu0 %v906
      %4218 = vmatprep.subr.mxu0 0.0
      %4219 = vmatpush1.msra.mxu0 %v936
      %4220 = vmatprep.subr.mxu0 0.0
      %4221 = vmatpush1.msra.mxu0 0.0
      %4222 = vmatprep.subr.mxu0 0.0
      %4223 = vmatpush1.msra.mxu0 0.0
      %4224 = vmatprep.subr.mxu0 0.0
      %4225 = vmatpush1.msra.mxu0 0.0
      %4226 = vmatprep.mubr.f32.mxu0 %v4148
      %4227 = vmatmul.mubr.f32.gmra.mrb[0].mxu0 %v4137
      %v4228 = vpop.f32.mrb[0].mxu0
      %v4229 = vadd.f32 0.0, %v4228
      %v4230 = vpop.f32.mrb[0].mxu0
      %4231 = vmatprep.mubr.f32.mxu0 %v4151
      %4232 = vmatmul.mubr.f32.gmra.mrb[0].mxu0 %v4139
      %v4233 = vpop.f32.mrb[0].mxu0
      %v4234 = vadd.f32 0.0, %v4233
      %v4235 = vpop.f32.mrb[0].mxu0
      %4236 = vmatprep.mubr.f32.mxu0 %v4154
      %4237 = vmatmul.mubr.f32.gmra.mrb[0].mxu0 %v4141
      %v4238 = vpop.f32.mrb[0].mxu0
      %v4239 = vadd.f32 0.0, %v4238
      %v4240 = vpop.f32.mrb[0].mxu0
      %4241 = vmatprep.mubr.f32.mxu0 %v4157
      %4242 = vmatmul.mubr.f32.gmra.mrb[0].mxu0 %v4143
      %v4243 = vpop.f32.mrb[0].mxu0
      %v4244 = vadd.f32 0.0, %v4243
      %v4245 = vpop.f32.mrb[0].mxu0
      %4246 = vmatprep.mubr.f32.mxu0 %v4160
      %4247 = vmatmul.mubr.f32.gmra.mrb[0].mxu0 %v4145
      %v4248 = vpop.f32.mrb[0].mxu0
      %v4249 = vadd.f32 0.0, %v4248
      %v4250 = vpop.f32.mrb[0].mxu0
      %4251 = vdwg.mxu0
      %s4252 = scalar_lea.vmem %s5, 448
      %v4253 = vld [vmem:[%s4252] sm:$0xff]
      %v4254 = vld [vmem:[%s4252 + $0x8] sm:$0xff]
      %v4255 = vld [vmem:[%s4252 + $0x10] sm:$0xff]
      %v4256 = vld [vmem:[%s4252 + $0x18] sm:$0xff]
      %v4258 = vsel %vm1153, %v4229, 0
      %v4261 = vsel %vm1153, %v4234, 0
      %v4264 = vsel %vm1153, %v4239, 0
      %v4267 = vsel %vm1153, %v4244, 0
      %v4270 = vsel %vm1153, %v4249, 0
      %4272 = vmatprep.subr.mxu0 0.0
      %4273 = vmatpush1.msra.mxu0 %v4253
      %4274 = vmatprep.subr.mxu0 0.0
      %4275 = vmatpush1.msra.mxu0 %v4254
      %4276 = vmatprep.subr.mxu0 0.0
      %4277 = vmatpush1.msra.mxu0 %v4255
      %4278 = vmatprep.subr.mxu0 0.0
      %4279 = vmatpush1.msra.mxu0 %v4256
      %4280 = vmatprep.subr.mxu0 0.0
      %4281 = vmatpush1.msra.mxu0 0.0
      %4282 = vmatprep.subr.mxu0 0.0
      %4283 = vmatpush1.msra.mxu0 0.0
      %4284 = vmatprep.subr.mxu0 0.0
      %4285 = vmatpush1.msra.mxu0 0.0
      %4286 = vmatprep.subr.mxu0 0.0
      %4287 = vmatpush1.msra.mxu0 0.0
      %4288 = vmatprep.subr.mxu0 0.0
      %4289 = vmatpush1.msra.mxu0 0.0
      %4290 = vmatprep.subr.mxu0 0.0
      %4291 = vmatpush1.msra.mxu0 0.0
      %4292 = vmatprep.subr.mxu0 0.0
      %4293 = vmatpush1.msra.mxu0 0.0
      %4294 = vmatprep.subr.mxu0 0.0
      %4295 = vmatpush1.msra.mxu0 0.0
      %4296 = vmatprep.subr.mxu0 0.0
      %4297 = vmatpush1.msra.mxu0 0.0
      %4298 = vmatprep.subr.mxu0 0.0
      %4299 = vmatpush1.msra.mxu0 0.0
      %4300 = vmatprep.subr.mxu0 0.0
      %4301 = vmatpush1.msra.mxu0 0.0
      %4302 = vmatprep.subr.mxu0 0.0
      %4303 = vmatpush1.msra.mxu0 0.0
      %4304 = vmatprep.subr.mxu0 0.0
      %4305 = vmatpush1.msra.mxu0 0.0
      %4306 = vmatprep.subr.mxu0 0.0
      %4307 = vmatpush1.msra.mxu0 0.0
      %4308 = vmatprep.subr.mxu0 0.0
      %4309 = vmatpush1.msra.mxu0 0.0
      %4310 = vmatprep.subr.mxu0 0.0
      %4311 = vmatpush1.msra.mxu0 0.0
      %4312 = vmatprep.subr.mxu0 0.0
      %4313 = vmatpush1.msra.mxu0 0.0
      %4314 = vmatprep.subr.mxu0 0.0
      %4315 = vmatpush1.msra.mxu0 0.0
      %4316 = vmatprep.subr.mxu0 0.0
      %4317 = vmatpush1.msra.mxu0 0.0
      %4318 = vmatprep.subr.mxu0 0.0
      %4319 = vmatpush1.msra.mxu0 0.0
      %4320 = vmatprep.subr.mxu0 0.0
      %4321 = vmatpush1.msra.mxu0 0.0
      %4322 = vmatprep.subr.mxu0 0.0
      %4323 = vmatpush1.msra.mxu0 0.0
      %4324 = vmatprep.subr.mxu0 0.0
      %4325 = vmatpush1.msra.mxu0 0.0
      %4326 = vmatprep.subr.mxu0 0.0
      %4327 = vmatpush1.msra.mxu0 0.0
      %4328 = vmatprep.subr.mxu0 0.0
      %4329 = vmatpush1.msra.mxu0 0.0
      %4330 = vmatprep.subr.mxu0 0.0
      %4331 = vmatpush1.msra.mxu0 0.0
      %4332 = vmatprep.subr.mxu0 0.0
      %4333 = vmatpush1.msra.mxu0 0.0
      %4334 = vmatprep.subr.mxu0 0.0
      %4335 = vmatpush1.msra.mxu0 0.0
      %4336 = vmatprep.mubr.f32.mxu0 0.0
      %4337 = vmatmul.mubr.f32.gmra.mrb[0].mxu0 %v4258
      %v4338 = vpop.f32.mrb[0].mxu0
      %v4339 = vadd.f32 0.0, %v4338
      %v4340 = vpop.f32.mrb[0].mxu0
      %4341 = vmatprep.mubr.f32.mxu0 0.0
      %4342 = vmatmul.mubr.f32.gmra.mrb[0].mxu0 %v4261
      %v4343 = vpop.f32.mrb[0].mxu0
      %v4344 = vadd.f32 0.0, %v4343
      %v4345 = vpop.f32.mrb[0].mxu0
      %4346 = vmatprep.mubr.f32.mxu0 0.0
      %4347 = vmatmul.mubr.f32.gmra.mrb[0].mxu0 %v4264
      %v4348 = vpop.f32.mrb[0].mxu0
      %v4349 = vadd.f32 0.0, %v4348
      %v4350 = vpop.f32.mrb[0].mxu0
      %4351 = vmatprep.mubr.f32.mxu0 0.0
      %4352 = vmatmul.mubr.f32.gmra.mrb[0].mxu0 %v4267
      %v4353 = vpop.f32.mrb[0].mxu0
      %v4354 = vadd.f32 0.0, %v4353
      %v4355 = vpop.f32.mrb[0].mxu0
      %4356 = vmatprep.mubr.f32.mxu0 0.0
      %4357 = vmatmul.mubr.f32.gmra.mrb[0].mxu0 %v4270
      %v4358 = vpop.f32.mrb[0].mxu0
      %v4359 = vadd.f32 0.0, %v4358
      %v4360 = vpop.f32.mrb[0].mxu0
      %4361 = vdwg.mxu0
      %v4362 = vadd.f32 %v4131, %v4339
      %v4363 = vadd.f32 %v4132, %v4344
      %v4364 = vadd.f32 %v4133, %v4349
      %v4365 = vadd.f32 %v4134, %v4354
      %v4366 = vadd.f32 %v4135, %v4359
      %s4367 = scalar_lea.vmem %s4, 1200
      %v4368 = vld [vmem:[%s4367] sm:$0xff]
      %v4369 = vld [vmem:[%s4367 + $0x8] sm:$0xff]
      %v4370 = vld [vmem:[%s4367 + $0x10] sm:$0xff]
      %v4371 = vld [vmem:[%s4367 + $0x18] sm:$0xff]
      %v4372 = vld [vmem:[%s4367 + $0x20] sm:$0xff]
      %v4373 = vld [vmem:[%s4367 + $0x28] sm:$0xff]
      %v4374 = vld [vmem:[%s4367 + $0x30] sm:$0xff]
      %v4375 = vld [vmem:[%s4367 + $0x38] sm:$0xff]
      %v4376 = vld [vmem:[%s4367 + $0x40] sm:$0xf]
      %v4377 = vld [vmem:[%s4367 + $0x48] sm:$0xf]
      %v4379 = vsel %vm918, %v4369, 0
      %v4382 = vsel %vm918, %v4371, 0
      %v4385 = vsel %vm918, %v4373, 0
      %v4388 = vsel %vm918, %v4375, 0
      %v4391 = vsel %vm918, %v4377, 0
      %4393 = vmatprep.subr.mxu0 0.0
      %4394 = vmatpush1.msra.mxu0 %v879
      %4395 = vmatprep.subr.mxu0 0.0
      %4396 = vmatpush1.msra.mxu0 %v880
      %4397 = vmatprep.subr.mxu0 0.0
      %4398 = vmatpush1.msra.mxu0 %v881
      %4399 = vmatprep.subr.mxu0 0.0
      %4400 = vmatpush1.msra.mxu0 %v882
      %4401 = vmatprep.subr.mxu0 0.0
      %4402 = vmatpush1.msra.mxu0 %v883
      %4403 = vmatprep.subr.mxu0 0.0
      %4404 = vmatpush1.msra.mxu0 %v884
      %4405 = vmatprep.subr.mxu0 0.0
      %4406 = vmatpush1.msra.mxu0 %v885
      %4407 = vmatprep.subr.mxu0 0.0
      %4408 = vmatpush1.msra.mxu0 %v886
      %4409 = vmatprep.subr.mxu0 0.0
      %4410 = vmatpush1.msra.mxu0 %v887
      %4411 = vmatprep.subr.mxu0 0.0
      %4412 = vmatpush1.msra.mxu0 %v888
      %4413 = vmatprep.subr.mxu0 0.0
      %4414 = vmatpush1.msra.mxu0 %v889
      %4415 = vmatprep.subr.mxu0 0.0
      %4416 = vmatpush1.msra.mxu0 %v890
      %4417 = vmatprep.subr.mxu0 0.0
      %4418 = vmatpush1.msra.mxu0 %v891
      %4419 = vmatprep.subr.mxu0 0.0
      %4420 = vmatpush1.msra.mxu0 %v892
      %4421 = vmatprep.subr.mxu0 0.0
      %4422 = vmatpush1.msra.mxu0 %v893
      %4423 = vmatprep.subr.mxu0 0.0
      %4424 = vmatpush1.msra.mxu0 %v894
      %4425 = vmatprep.subr.mxu0 0.0
      %4426 = vmatpush1.msra.mxu0 %v895
      %4427 = vmatprep.subr.mxu0 0.0
      %4428 = vmatpush1.msra.mxu0 %v896
      %4429 = vmatprep.subr.mxu0 0.0
      %4430 = vmatpush1.msra.mxu0 %v897
      %4431 = vmatprep.subr.mxu0 0.0
      %4432 = vmatpush1.msra.mxu0 %v898
      %4433 = vmatprep.subr.mxu0 0.0
      %4434 = vmatpush1.msra.mxu0 %v899
      %4435 = vmatprep.subr.mxu0 0.0
      %4436 = vmatpush1.msra.mxu0 %v900
      %4437 = vmatprep.subr.mxu0 0.0
      %4438 = vmatpush1.msra.mxu0 %v901
      %4439 = vmatprep.subr.mxu0 0.0
      %4440 = vmatpush1.msra.mxu0 %v902
      %4441 = vmatprep.subr.mxu0 0.0
      %4442 = vmatpush1.msra.mxu0 %v903
      %4443 = vmatprep.subr.mxu0 0.0
      %4444 = vmatpush1.msra.mxu0 %v904
      %4445 = vmatprep.subr.mxu0 0.0
      %4446 = vmatpush1.msra.mxu0 %v905
      %4447 = vmatprep.subr.mxu0 0.0
      %4448 = vmatpush1.msra.mxu0 %v906
      %4449 = vmatprep.subr.mxu0 0.0
      %4450 = vmatpush1.msra.mxu0 %v936
      %4451 = vmatprep.subr.mxu0 0.0
      %4452 = vmatpush1.msra.mxu0 0.0
      %4453 = vmatprep.subr.mxu0 0.0
      %4454 = vmatpush1.msra.mxu0 0.0
      %4455 = vmatprep.subr.mxu0 0.0
      %4456 = vmatpush1.msra.mxu0 0.0
      %4457 = vmatprep.mubr.f32.mxu0 %v4379
      %4458 = vmatmul.mubr.f32.gmra.mrb[0].mxu0 %v4368
      %v4459 = vpop.f32.mrb[0].mxu0
      %v4460 = vadd.f32 0.0, %v4459
      %v4461 = vpop.f32.mrb[0].mxu0
      %4462 = vmatprep.mubr.f32.mxu0 %v4382
      %4463 = vmatmul.mubr.f32.gmra.mrb[0].mxu0 %v4370
      %v4464 = vpop.f32.mrb[0].mxu0
      %v4465 = vadd.f32 0.0, %v4464
      %v4466 = vpop.f32.mrb[0].mxu0
      %4467 = vmatprep.mubr.f32.mxu0 %v4385
      %4468 = vmatmul.mubr.f32.gmra.mrb[0].mxu0 %v4372
      %v4469 = vpop.f32.mrb[0].mxu0
      %v4470 = vadd.f32 0.0, %v4469
      %v4471 = vpop.f32.mrb[0].mxu0
      %4472 = vmatprep.mubr.f32.mxu0 %v4388
      %4473 = vmatmul.mubr.f32.gmra.mrb[0].mxu0 %v4374
      %v4474 = vpop.f32.mrb[0].mxu0
      %v4475 = vadd.f32 0.0, %v4474
      %v4476 = vpop.f32.mrb[0].mxu0
      %4477 = vmatprep.mubr.f32.mxu0 %v4391
      %4478 = vmatmul.mubr.f32.gmra.mrb[0].mxu0 %v4376
      %v4479 = vpop.f32.mrb[0].mxu0
      %v4480 = vadd.f32 0.0, %v4479
      %v4481 = vpop.f32.mrb[0].mxu0
      %4482 = vdwg.mxu0
      %s4483 = scalar_lea.vmem %s5, 480
      %v4484 = vld [vmem:[%s4483] sm:$0xff]
      %v4485 = vld [vmem:[%s4483 + $0x8] sm:$0xff]
      %v4486 = vld [vmem:[%s4483 + $0x10] sm:$0xff]
      %v4487 = vld [vmem:[%s4483 + $0x18] sm:$0xff]
      %v4489 = vsel %vm1153, %v4460, 0
      %v4492 = vsel %vm1153, %v4465, 0
      %v4495 = vsel %vm1153, %v4470, 0
      %v4498 = vsel %vm1153, %v4475, 0
      %v4501 = vsel %vm1153, %v4480, 0
      %4503 = vmatprep.subr.mxu0 0.0
      %4504 = vmatpush1.msra.mxu0 %v4484
      %4505 = vmatprep.subr.mxu0 0.0
      %4506 = vmatpush1.msra.mxu0 %v4485
      %4507 = vmatprep.subr.mxu0 0.0
      %4508 = vmatpush1.msra.mxu0 %v4486
      %4509 = vmatprep.subr.mxu0 0.0
      %4510 = vmatpush1.msra.mxu0 %v4487
      %4511 = vmatprep.subr.mxu0 0.0
      %4512 = vmatpush1.msra.mxu0 0.0
      %4513 = vmatprep.subr.mxu0 0.0
      %4514 = vmatpush1.msra.mxu0 0.0
      %4515 = vmatprep.subr.mxu0 0.0
      %4516 = vmatpush1.msra.mxu0 0.0
      %4517 = vmatprep.subr.mxu0 0.0
      %4518 = vmatpush1.msra.mxu0 0.0
      %4519 = vmatprep.subr.mxu0 0.0
      %4520 = vmatpush1.msra.mxu0 0.0
      %4521 = vmatprep.subr.mxu0 0.0
      %4522 = vmatpush1.msra.mxu0 0.0
      %4523 = vmatprep.subr.mxu0 0.0
      %4524 = vmatpush1.msra.mxu0 0.0
      %4525 = vmatprep.subr.mxu0 0.0
      %4526 = vmatpush1.msra.mxu0 0.0
      %4527 = vmatprep.subr.mxu0 0.0
      %4528 = vmatpush1.msra.mxu0 0.0
      %4529 = vmatprep.subr.mxu0 0.0
      %4530 = vmatpush1.msra.mxu0 0.0
      %4531 = vmatprep.subr.mxu0 0.0
      %4532 = vmatpush1.msra.mxu0 0.0
      %4533 = vmatprep.subr.mxu0 0.0
      %4534 = vmatpush1.msra.mxu0 0.0
      %4535 = vmatprep.subr.mxu0 0.0
      %4536 = vmatpush1.msra.mxu0 0.0
      %4537 = vmatprep.subr.mxu0 0.0
      %4538 = vmatpush1.msra.mxu0 0.0
      %4539 = vmatprep.subr.mxu0 0.0
      %4540 = vmatpush1.msra.mxu0 0.0
      %4541 = vmatprep.subr.mxu0 0.0
      %4542 = vmatpush1.msra.mxu0 0.0
      %4543 = vmatprep.subr.mxu0 0.0
      %4544 = vmatpush1.msra.mxu0 0.0
      %4545 = vmatprep.subr.mxu0 0.0
      %4546 = vmatpush1.msra.mxu0 0.0
      %4547 = vmatprep.subr.mxu0 0.0
      %4548 = vmatpush1.msra.mxu0 0.0
      %4549 = vmatprep.subr.mxu0 0.0
      %4550 = vmatpush1.msra.mxu0 0.0
      %4551 = vmatprep.subr.mxu0 0.0
      %4552 = vmatpush1.msra.mxu0 0.0
      %4553 = vmatprep.subr.mxu0 0.0
      %4554 = vmatpush1.msra.mxu0 0.0
      %4555 = vmatprep.subr.mxu0 0.0
      %4556 = vmatpush1.msra.mxu0 0.0
      %4557 = vmatprep.subr.mxu0 0.0
      %4558 = vmatpush1.msra.mxu0 0.0
      %4559 = vmatprep.subr.mxu0 0.0
      %4560 = vmatpush1.msra.mxu0 0.0
      %4561 = vmatprep.subr.mxu0 0.0
      %4562 = vmatpush1.msra.mxu0 0.0
      %4563 = vmatprep.subr.mxu0 0.0
      %4564 = vmatpush1.msra.mxu0 0.0
      %4565 = vmatprep.subr.mxu0 0.0
      %4566 = vmatpush1.msra.mxu0 0.0
      %4567 = vmatprep.mubr.f32.mxu0 0.0
      %4568 = vmatmul.mubr.f32.gmra.mrb[0].mxu0 %v4489
      %v4569 = vpop.f32.mrb[0].mxu0
      %v4570 = vadd.f32 0.0, %v4569
      %v4571 = vpop.f32.mrb[0].mxu0
      %4572 = vmatprep.mubr.f32.mxu0 0.0
      %4573 = vmatmul.mubr.f32.gmra.mrb[0].mxu0 %v4492
      %v4574 = vpop.f32.mrb[0].mxu0
      %v4575 = vadd.f32 0.0, %v4574
      %v4576 = vpop.f32.mrb[0].mxu0
      %4577 = vmatprep.mubr.f32.mxu0 0.0
      %4578 = vmatmul.mubr.f32.gmra.mrb[0].mxu0 %v4495
      %v4579 = vpop.f32.mrb[0].mxu0
      %v4580 = vadd.f32 0.0, %v4579
      %v4581 = vpop.f32.mrb[0].mxu0
      %4582 = vmatprep.mubr.f32.mxu0 0.0
      %4583 = vmatmul.mubr.f32.gmra.mrb[0].mxu0 %v4498
      %v4584 = vpop.f32.mrb[0].mxu0
      %v4585 = vadd.f32 0.0, %v4584
      %v4586 = vpop.f32.mrb[0].mxu0
      %4587 = vmatprep.mubr.f32.mxu0 0.0
      %4588 = vmatmul.mubr.f32.gmra.mrb[0].mxu0 %v4501
      %v4589 = vpop.f32.mrb[0].mxu0
      %v4590 = vadd.f32 0.0, %v4589
      %v4591 = vpop.f32.mrb[0].mxu0
      %4592 = vdwg.mxu0
      %v4593 = vadd.f32 %v4362, %v4570
      %v4594 = vadd.f32 %v4363, %v4575
      %v4595 = vadd.f32 %v4364, %v4580
      %v4596 = vadd.f32 %v4365, %v4585
      %v4597 = vadd.f32 %v4366, %v4590
      %v4598 = vld [vmem:[%s6] sm:$0x1]
      %v4600 = vlaneseq
      %v4601 = vshrl.u32 %v4600, 7
      %v4602 = vsub.s32 0, %v4601
      %v4603 = vrot.slane %v4598, %v4602
      %v4605 = vadd.f32 %v4593, %v4603
      %v4606 = vadd.f32 %v4594, %v4603
      %v4607 = vadd.f32 %v4595, %v4603
      %v4608 = vadd.f32 %v4596, %v4603
      %v4609 = vadd.f32 %v4597, %v4603
      %v4610 = vmax.f32 %v4605, 0.0
      %v4611 = vmax.f32 %v4606, 0.0
      %v4612 = vmax.f32 %v4607, 0.0
      %v4613 = vmax.f32 %v4608, 0.0
      %v4614 = vmax.f32 %v4609, 0.0
      %v4615 = vld [vmem:[%s7] sm:$0xff]
      %v4616 = vld [vmem:[%s7 + $0x8] sm:$0xff]
      %vm4617 = vcmask 293888
      %v4619 = vsel %vm4617, %v4615, 0
      %v4622 = vsel %vm4617, %v4616, 0
      %vm4624 = vcmask 1043456
      %v4626 = vsel %vm4624, %v4614, 0
      %4628 = vmatprep.subr.mxu0 0.0
      %4629 = vmatpush1.msra.mxu0 %v4610
      %4630 = vmatprep.subr.mxu0 0.0
      %4631 = vmatpush1.msra.mxu0 %v4611
      %4632 = vmatprep.subr.mxu0 0.0
      %4633 = vmatpush1.msra.mxu0 %v4612
      %4634 = vmatprep.subr.mxu0 0.0
      %4635 = vmatpush1.msra.mxu0 %v4613
      %4636 = vmatprep.subr.mxu0 0.0
      %4637 = vmatpush1.msra.mxu0 %v4626
      %4638 = vmatprep.subr.mxu0 0.0
      %4639 = vmatpush1.msra.mxu0 0.0
      %4640 = vmatprep.subr.mxu0 0.0
      %4641 = vmatpush1.msra.mxu0 0.0
      %4642 = vmatprep.subr.mxu0 0.0
      %4643 = vmatpush1.msra.mxu0 0.0
      %4644 = vmatprep.subr.mxu0 0.0
      %4645 = vmatpush1.msra.mxu0 0.0
      %4646 = vmatprep.subr.mxu0 0.0
      %4647 = vmatpush1.msra.mxu0 0.0
      %4648 = vmatprep.subr.mxu0 0.0
      %4649 = vmatpush1.msra.mxu0 0.0
      %4650 = vmatprep.subr.mxu0 0.0
      %4651 = vmatpush1.msra.mxu0 0.0
      %4652 = vmatprep.subr.mxu0 0.0
      %4653 = vmatpush1.msra.mxu0 0.0
      %4654 = vmatprep.subr.mxu0 0.0
      %4655 = vmatpush1.msra.mxu0 0.0
      %4656 = vmatprep.subr.mxu0 0.0
      %4657 = vmatpush1.msra.mxu0 0.0
      %4658 = vmatprep.subr.mxu0 0.0
      %4659 = vmatpush1.msra.mxu0 0.0
      %4660 = vmatprep.subr.mxu0 0.0
      %4661 = vmatpush1.msra.mxu0 0.0
      %4662 = vmatprep.subr.mxu0 0.0
      %4663 = vmatpush1.msra.mxu0 0.0
      %4664 = vmatprep.subr.mxu0 0.0
      %4665 = vmatpush1.msra.mxu0 0.0
      %4666 = vmatprep.subr.mxu0 0.0
      %4667 = vmatpush1.msra.mxu0 0.0
      %4668 = vmatprep.subr.mxu0 0.0
      %4669 = vmatpush1.msra.mxu0 0.0
      %4670 = vmatprep.subr.mxu0 0.0
      %4671 = vmatpush1.msra.mxu0 0.0
      %4672 = vmatprep.subr.mxu0 0.0
      %4673 = vmatpush1.msra.mxu0 0.0
      %4674 = vmatprep.subr.mxu0 0.0
      %4675 = vmatpush1.msra.mxu0 0.0
      %4676 = vmatprep.subr.mxu0 0.0
      %4677 = vmatpush1.msra.mxu0 0.0
      %4678 = vmatprep.subr.mxu0 0.0
      %4679 = vmatpush1.msra.mxu0 0.0
      %4680 = vmatprep.subr.mxu0 0.0
      %4681 = vmatpush1.msra.mxu0 0.0
      %4682 = vmatprep.subr.mxu0 0.0
      %4683 = vmatpush1.msra.mxu0 0.0
      %4684 = vmatprep.subr.mxu0 0.0
      %4685 = vmatpush1.msra.mxu0 0.0
      %4686 = vmatprep.subr.mxu0 0.0
      %4687 = vmatpush1.msra.mxu0 0.0
      %4688 = vmatprep.subr.mxu0 0.0
      %4689 = vmatpush1.msra.mxu0 0.0
      %4690 = vmatprep.subr.mxu0 0.0
      %4691 = vmatpush1.msra.mxu0 0.0
      %4692 = vmatprep.mubr.f32.mxu0 0.0
      %4693 = vmatmul.mubr.f32.gmra.mrb[0].mxu0 %v4619
      %v4694 = vpop.f32.mrb[0].mxu0
      %v4695 = vadd.f32 0.0, %v4694
      %v4696 = vpop.f32.mrb[0].mxu0
      %4697 = vmatprep.mubr.f32.mxu0 0.0
      %4698 = vmatmul.mubr.f32.gmra.mrb[0].mxu0 %v4622
      %v4699 = vpop.f32.mrb[0].mxu0
      %v4700 = vadd.f32 0.0, %v4699
      %v4701 = vpop.f32.mrb[0].mxu0
      %4702 = vdwg.mxu0
      %v4703 = vld [vmem:[%s8] sm:$0xff]
      %v4704 = vld [vmem:[%s8 + $0x8] sm:$0xff]
      %v4705 = vld [vmem:[%s8 + $0x10] sm:$0xff]
      %v4706 = vld [vmem:[%s8 + $0x18] sm:$0xff]
      %v4707 = vld [vmem:[%s8 + $0x20] sm:$0xff]
      %v4708 = vld [vmem:[%s8 + $0x28] sm:$0xff]
      %v4709 = vld [vmem:[%s8 + $0x30] sm:$0xff]
      %v4710 = vld [vmem:[%s8 + $0x38] sm:$0xff]
      %s4711 = scalar_lea.vmem %s7, 16
      %v4712 = vld [vmem:[%s4711] sm:$0xff]
      %v4713 = vld [vmem:[%s4711 + $0x8] sm:$0xff]
      %v4715 = vsel %vm4617, %v4712, 0
      %v4718 = vsel %vm4617, %v4713, 0
      %4720 = vmatprep.subr.mxu0 0.0
      %4721 = vmatpush1.msra.mxu0 %v4610
      %4722 = vmatprep.subr.mxu0 0.0
      %4723 = vmatpush1.msra.mxu0 %v4611
      %4724 = vmatprep.subr.mxu0 0.0
      %4725 = vmatpush1.msra.mxu0 %v4612
      %4726 = vmatprep.subr.mxu0 0.0
      %4727 = vmatpush1.msra.mxu0 %v4613
      %4728 = vmatprep.subr.mxu0 0.0
      %4729 = vmatpush1.msra.mxu0 %v4626
      %4730 = vmatprep.subr.mxu0 0.0
      %4731 = vmatpush1.msra.mxu0 0.0
      %4732 = vmatprep.subr.mxu0 0.0
      %4733 = vmatpush1.msra.mxu0 0.0
      %4734 = vmatprep.subr.mxu0 0.0
      %4735 = vmatpush1.msra.mxu0 0.0
      %4736 = vmatprep.subr.mxu0 0.0
      %4737 = vmatpush1.msra.mxu0 0.0
      %4738 = vmatprep.subr.mxu0 0.0
      %4739 = vmatpush1.msra.mxu0 0.0
      %4740 = vmatprep.subr.mxu0 0.0
      %4741 = vmatpush1.msra.mxu0 0.0
      %4742 = vmatprep.subr.mxu0 0.0
      %4743 = vmatpush1.msra.mxu0 0.0
      %4744 = vmatprep.subr.mxu0 0.0
      %4745 = vmatpush1.msra.mxu0 0.0
      %4746 = vmatprep.subr.mxu0 0.0
      %4747 = vmatpush1.msra.mxu0 0.0
      %4748 = vmatprep.subr.mxu0 0.0
      %4749 = vmatpush1.msra.mxu0 0.0
      %4750 = vmatprep.subr.mxu0 0.0
      %4751 = vmatpush1.msra.mxu0 0.0
      %4752 = vmatprep.subr.mxu0 0.0
      %4753 = vmatpush1.msra.mxu0 0.0
      %4754 = vmatprep.subr.mxu0 0.0
      %4755 = vmatpush1.msra.mxu0 0.0
      %4756 = vmatprep.subr.mxu0 0.0
      %4757 = vmatpush1.msra.mxu0 0.0
      %4758 = vmatprep.subr.mxu0 0.0
      %4759 = vmatpush1.msra.mxu0 0.0
      %4760 = vmatprep.subr.mxu0 0.0
      %4761 = vmatpush1.msra.mxu0 0.0
      %4762 = vmatprep.subr.mxu0 0.0
      %4763 = vmatpush1.msra.mxu0 0.0
      %4764 = vmatprep.subr.mxu0 0.0
      %4765 = vmatpush1.msra.mxu0 0.0
      %4766 = vmatprep.subr.mxu0 0.0
      %4767 = vmatpush1.msra.mxu0 0.0
      %4768 = vmatprep.subr.mxu0 0.0
      %4769 = vmatpush1.msra.mxu0 0.0
      %4770 = vmatprep.subr.mxu0 0.0
      %4771 = vmatpush1.msra.mxu0 0.0
      %4772 = vmatprep.subr.mxu0 0.0
      %4773 = vmatpush1.msra.mxu0 0.0
      %4774 = vmatprep.subr.mxu0 0.0
      %4775 = vmatpush1.msra.mxu0 0.0
      %4776 = vmatprep.subr.mxu0 0.0
      %4777 = vmatpush1.msra.mxu0 0.0
      %4778 = vmatprep.subr.mxu0 0.0
      %4779 = vmatpush1.msra.mxu0 0.0
      %4780 = vmatprep.subr.mxu0 0.0
      %4781 = vmatpush1.msra.mxu0 0.0
      %4782 = vmatprep.subr.mxu0 0.0
      %4783 = vmatpush1.msra.mxu0 0.0
      %4784 = vmatprep.mubr.f32.mxu0 0.0
      %4785 = vmatmul.mubr.f32.gmra.mrb[0].mxu0 %v4715
      %v4786 = vpop.f32.mrb[0].mxu0
      %v4787 = vadd.f32 0.0, %v4786
      %v4788 = vpop.f32.mrb[0].mxu0
      %4789 = vmatprep.mubr.f32.mxu0 0.0
      %4790 = vmatmul.mubr.f32.gmra.mrb[0].mxu0 %v4718
      %v4791 = vpop.f32.mrb[0].mxu0
      %v4792 = vadd.f32 0.0, %v4791
      %v4793 = vpop.f32.mrb[0].mxu0
      %4794 = vdwg.mxu0
      %s4795 = scalar_lea.vmem %s8, 64
      %v4796 = vld [vmem:[%s4795] sm:$0xff]
      %v4797 = vld [vmem:[%s4795 + $0x8] sm:$0xff]
      %v4798 = vld [vmem:[%s4795 + $0x10] sm:$0xff]
      %v4799 = vld [vmem:[%s4795 + $0x18] sm:$0xff]
      %v4800 = vld [vmem:[%s4795 + $0x20] sm:$0xff]
      %v4801 = vld [vmem:[%s4795 + $0x28] sm:$0xff]
      %v4802 = vld [vmem:[%s4795 + $0x30] sm:$0xff]
      %v4803 = vld [vmem:[%s4795 + $0x38] sm:$0xff]
      %vm4804 = vcmask 523264
      %v4806 = vsel %vm4804, %v4787, 0
      %v4809 = vsel %vm4804, %v4792, 0
      %4811 = vmatprep.subr.mxu0 0.0
      %4812 = vmatpush1.msra.mxu0 %v4796
      %4813 = vmatprep.subr.mxu0 0.0
      %4814 = vmatpush1.msra.mxu0 %v4797
      %4815 = vmatprep.subr.mxu0 0.0
      %4816 = vmatpush1.msra.mxu0 %v4798
      %4817 = vmatprep.subr.mxu0 0.0
      %4818 = vmatpush1.msra.mxu0 %v4799
      %4819 = vmatprep.subr.mxu0 0.0
      %4820 = vmatpush1.msra.mxu0 %v4800
      %4821 = vmatprep.subr.mxu0 0.0
      %4822 = vmatpush1.msra.mxu0 %v4801
      %4823 = vmatprep.subr.mxu0 0.0
      %4824 = vmatpush1.msra.mxu0 %v4802
      %4825 = vmatprep.subr.mxu0 0.0
      %4826 = vmatpush1.msra.mxu0 %v4803
      %4827 = vmatprep.subr.mxu0 0.0
      %4828 = vmatpush1.msra.mxu0 0.0
      %4829 = vmatprep.subr.mxu0 0.0
      %4830 = vmatpush1.msra.mxu0 0.0
      %4831 = vmatprep.subr.mxu0 0.0
      %4832 = vmatpush1.msra.mxu0 0.0
      %4833 = vmatprep.subr.mxu0 0.0
      %4834 = vmatpush1.msra.mxu0 0.0
      %4835 = vmatprep.subr.mxu0 0.0
      %4836 = vmatpush1.msra.mxu0 0.0
      %4837 = vmatprep.subr.mxu0 0.0
      %4838 = vmatpush1.msra.mxu0 0.0
      %4839 = vmatprep.subr.mxu0 0.0
      %4840 = vmatpush1.msra.mxu0 0.0
      %4841 = vmatprep.subr.mxu0 0.0
      %4842 = vmatpush1.msra.mxu0 0.0
      %4843 = vmatprep.subr.mxu0 0.0
      %4844 = vmatpush1.msra.mxu0 0.0
      %4845 = vmatprep.subr.mxu0 0.0
      %4846 = vmatpush1.msra.mxu0 0.0
      %4847 = vmatprep.subr.mxu0 0.0
      %4848 = vmatpush1.msra.mxu0 0.0
      %4849 = vmatprep.subr.mxu0 0.0
      %4850 = vmatpush1.msra.mxu0 0.0
      %4851 = vmatprep.subr.mxu0 0.0
      %4852 = vmatpush1.msra.mxu0 0.0
      %4853 = vmatprep.subr.mxu0 0.0
      %4854 = vmatpush1.msra.mxu0 0.0
      %4855 = vmatprep.subr.mxu0 0.0
      %4856 = vmatpush1.msra.mxu0 0.0
      %4857 = vmatprep.subr.mxu0 0.0
      %4858 = vmatpush1.msra.mxu0 0.0
      %4859 = vmatprep.subr.mxu0 0.0
      %4860 = vmatpush1.msra.mxu0 0.0
      %4861 = vmatprep.subr.mxu0 0.0
      %4862 = vmatpush1.msra.mxu0 0.0
      %4863 = vmatprep.subr.mxu0 0.0
      %4864 = vmatpush1.msra.mxu0 0.0
      %4865 = vmatprep.subr.mxu0 0.0
      %4866 = vmatpush1.msra.mxu0 0.0
      %4867 = vmatprep.subr.mxu0 0.0
      %4868 = vmatpush1.msra.mxu0 0.0
      %4869 = vmatprep.subr.mxu0 0.0
      %4870 = vmatpush1.msra.mxu0 0.0
      %4871 = vmatprep.subr.mxu0 0.0
      %4872 = vmatpush1.msra.mxu0 0.0
      %4873 = vmatprep.subr.mxu0 0.0
      %4874 = vmatpush1.msra.mxu0 0.0
      %4875 = vmatprep.mubr.f32.mxu0 0.0
      %4876 = vmatmul.mubr.f32.gmra.mrb[0].mxu0 %v4806
      %v4877 = vpop.f32.mrb[0].mxu0
      %v4878 = vadd.f32 0.0, %v4877
      %v4879 = vpop.f32.mrb[0].mxu0
      %4880 = vmatprep.mubr.f32.mxu0 0.0
      %4881 = vmatmul.mubr.f32.gmra.mrb[0].mxu0 %v4809
      %v4882 = vpop.f32.mrb[0].mxu0
      %v4883 = vadd.f32 0.0, %v4882
      %v4884 = vpop.f32.mrb[0].mxu0
      %4885 = vdwg.mxu0
      %v4887 = vsel %vm4804, %v4695, 0
      %v4890 = vsel %vm4804, %v4700, 0
      %4892 = vmatprep.subr.mxu0 0.0
      %4893 = vmatpush1.msra.mxu0 %v4703
      %4894 = vmatprep.subr.mxu0 0.0
      %4895 = vmatpush1.msra.mxu0 %v4704
      %4896 = vmatprep.subr.mxu0 0.0
      %4897 = vmatpush1.msra.mxu0 %v4705
      %4898 = vmatprep.subr.mxu0 0.0
      %4899 = vmatpush1.msra.mxu0 %v4706
      %4900 = vmatprep.subr.mxu0 0.0
      %4901 = vmatpush1.msra.mxu0 %v4707
      %4902 = vmatprep.subr.mxu0 0.0
      %4903 = vmatpush1.msra.mxu0 %v4708
      %4904 = vmatprep.subr.mxu0 0.0
      %4905 = vmatpush1.msra.mxu0 %v4709
      %4906 = vmatprep.subr.mxu0 0.0
      %4907 = vmatpush1.msra.mxu0 %v4710
      %4908 = vmatprep.subr.mxu0 0.0
      %4909 = vmatpush1.msra.mxu0 0.0
      %4910 = vmatprep.subr.mxu0 0.0
      %4911 = vmatpush1.msra.mxu0 0.0
      %4912 = vmatprep.subr.mxu0 0.0
      %4913 = vmatpush1.msra.mxu0 0.0
      %4914 = vmatprep.subr.mxu0 0.0
      %4915 = vmatpush1.msra.mxu0 0.0
      %4916 = vmatprep.subr.mxu0 0.0
      %4917 = vmatpush1.msra.mxu0 0.0
      %4918 = vmatprep.subr.mxu0 0.0
      %4919 = vmatpush1.msra.mxu0 0.0
      %4920 = vmatprep.subr.mxu0 0.0
      %4921 = vmatpush1.msra.mxu0 0.0
      %4922 = vmatprep.subr.mxu0 0.0
      %4923 = vmatpush1.msra.mxu0 0.0
      %4924 = vmatprep.subr.mxu0 0.0
      %4925 = vmatpush1.msra.mxu0 0.0
      %4926 = vmatprep.subr.mxu0 0.0
      %4927 = vmatpush1.msra.mxu0 0.0
      %4928 = vmatprep.subr.mxu0 0.0
      %4929 = vmatpush1.msra.mxu0 0.0
      %4930 = vmatprep.subr.mxu0 0.0
      %4931 = vmatpush1.msra.mxu0 0.0
      %4932 = vmatprep.subr.mxu0 0.0
      %4933 = vmatpush1.msra.mxu0 0.0
      %4934 = vmatprep.subr.mxu0 0.0
      %4935 = vmatpush1.msra.mxu0 0.0
      %4936 = vmatprep.subr.mxu0 0.0
      %4937 = vmatpush1.msra.mxu0 0.0
      %4938 = vmatprep.subr.mxu0 0.0
      %4939 = vmatpush1.msra.mxu0 0.0
      %4940 = vmatprep.subr.mxu0 0.0
      %4941 = vmatpush1.msra.mxu0 0.0
      %4942 = vmatprep.subr.mxu0 0.0
      %4943 = vmatpush1.msra.mxu0 0.0
      %4944 = vmatprep.subr.mxu0 0.0
      %4945 = vmatpush1.msra.mxu0 0.0
      %4946 = vmatprep.subr.mxu0 0.0
      %4947 = vmatpush1.msra.mxu0 0.0
      %4948 = vmatprep.subr.mxu0 0.0
      %4949 = vmatpush1.msra.mxu0 0.0
      %4950 = vmatprep.subr.mxu0 0.0
      %4951 = vmatpush1.msra.mxu0 0.0
      %4952 = vmatprep.subr.mxu0 0.0
      %4953 = vmatpush1.msra.mxu0 0.0
      %4954 = vmatprep.subr.mxu0 0.0
      %4955 = vmatpush1.msra.mxu0 0.0
      %4956 = vmatprep.mubr.f32.mxu0 0.0
      %4957 = vmatmul.mubr.f32.gmra.mrb[0].mxu0 %v4887
      %v4958 = vpop.f32.mrb[0].mxu0
      %v4959 = vadd.f32 %v4878, %v4958
      %v4960 = vpop.f32.mrb[0].mxu0
      %4961 = vmatprep.mubr.f32.mxu0 0.0
      %4962 = vmatmul.mubr.f32.gmra.mrb[0].mxu0 %v4890
      %v4963 = vpop.f32.mrb[0].mxu0
      %v4964 = vadd.f32 %v4883, %v4963
      %v4965 = vpop.f32.mrb[0].mxu0
      %4966 = vdwg.mxu0
      %s4967 = scalar_lea.vmem %s7, 32
      %v4968 = vld [vmem:[%s4967] sm:$0xff]
      %v4969 = vld [vmem:[%s4967 + $0x8] sm:$0xff]
      %v4971 = vsel %vm4617, %v4968, 0
      %v4974 = vsel %vm4617, %v4969, 0
      %4976 = vmatprep.subr.mxu0 0.0
      %4977 = vmatpush1.msra.mxu0 %v4610
      %4978 = vmatprep.subr.mxu0 0.0
      %4979 = vmatpush1.msra.mxu0 %v4611
      %4980 = vmatprep.subr.mxu0 0.0
      %4981 = vmatpush1.msra.mxu0 %v4612
      %4982 = vmatprep.subr.mxu0 0.0
      %4983 = vmatpush1.msra.mxu0 %v4613
      %4984 = vmatprep.subr.mxu0 0.0
      %4985 = vmatpush1.msra.mxu0 %v4626
      %4986 = vmatprep.subr.mxu0 0.0
      %4987 = vmatpush1.msra.mxu0 0.0
      %4988 = vmatprep.subr.mxu0 0.0
      %4989 = vmatpush1.msra.mxu0 0.0
      %4990 = vmatprep.subr.mxu0 0.0
      %4991 = vmatpush1.msra.mxu0 0.0
      %4992 = vmatprep.subr.mxu0 0.0
      %4993 = vmatpush1.msra.mxu0 0.0
      %4994 = vmatprep.subr.mxu0 0.0
      %4995 = vmatpush1.msra.mxu0 0.0
      %4996 = vmatprep.subr.mxu0 0.0
      %4997 = vmatpush1.msra.mxu0 0.0
      %4998 = vmatprep.subr.mxu0 0.0
      %4999 = vmatpush1.msra.mxu0 0.0
      %5000 = vmatprep.subr.mxu0 0.0
      %5001 = vmatpush1.msra.mxu0 0.0
      %5002 = vmatprep.subr.mxu0 0.0
      %5003 = vmatpush1.msra.mxu0 0.0
      %5004 = vmatprep.subr.mxu0 0.0
      %5005 = vmatpush1.msra.mxu0 0.0
      %5006 = vmatprep.subr.mxu0 0.0
      %5007 = vmatpush1.msra.mxu0 0.0
      %5008 = vmatprep.subr.mxu0 0.0
      %5009 = vmatpush1.msra.mxu0 0.0
      %5010 = vmatprep.subr.mxu0 0.0
      %5011 = vmatpush1.msra.mxu0 0.0
      %5012 = vmatprep.subr.mxu0 0.0
      %5013 = vmatpush1.msra.mxu0 0.0
      %5014 = vmatprep.subr.mxu0 0.0
      %5015 = vmatpush1.msra.mxu0 0.0
      %5016 = vmatprep.subr.mxu0 0.0
      %5017 = vmatpush1.msra.mxu0 0.0
      %5018 = vmatprep.subr.mxu0 0.0
      %5019 = vmatpush1.msra.mxu0 0.0
      %5020 = vmatprep.subr.mxu0 0.0
      %5021 = vmatpush1.msra.mxu0 0.0
      %5022 = vmatprep.subr.mxu0 0.0
      %5023 = vmatpush1.msra.mxu0 0.0
      %5024 = vmatprep.subr.mxu0 0.0
      %5025 = vmatpush1.msra.mxu0 0.0
      %5026 = vmatprep.subr.mxu0 0.0
      %5027 = vmatpush1.msra.mxu0 0.0
      %5028 = vmatprep.subr.mxu0 0.0
      %5029 = vmatpush1.msra.mxu0 0.0
      %5030 = vmatprep.subr.mxu0 0.0
      %5031 = vmatpush1.msra.mxu0 0.0
      %5032 = vmatprep.subr.mxu0 0.0
      %5033 = vmatpush1.msra.mxu0 0.0
      %5034 = vmatprep.subr.mxu0 0.0
      %5035 = vmatpush1.msra.mxu0 0.0
      %5036 = vmatprep.subr.mxu0 0.0
      %5037 = vmatpush1.msra.mxu0 0.0
      %5038 = vmatprep.subr.mxu0 0.0
      %5039 = vmatpush1.msra.mxu0 0.0
      %5040 = vmatprep.mubr.f32.mxu0 0.0
      %5041 = vmatmul.mubr.f32.gmra.mrb[0].mxu0 %v4971
      %v5042 = vpop.f32.mrb[0].mxu0
      %v5043 = vadd.f32 0.0, %v5042
      %v5044 = vpop.f32.mrb[0].mxu0
      %5045 = vmatprep.mubr.f32.mxu0 0.0
      %5046 = vmatmul.mubr.f32.gmra.mrb[0].mxu0 %v4974
      %v5047 = vpop.f32.mrb[0].mxu0
      %v5048 = vadd.f32 0.0, %v5047
      %v5049 = vpop.f32.mrb[0].mxu0
      %5050 = vdwg.mxu0
      %s5051 = scalar_lea.vmem %s8, 128
      %v5052 = vld [vmem:[%s5051] sm:$0xff]
      %v5053 = vld [vmem:[%s5051 + $0x8] sm:$0xff]
      %v5054 = vld [vmem:[%s5051 + $0x10] sm:$0xff]
      %v5055 = vld [vmem:[%s5051 + $0x18] sm:$0xff]
      %v5056 = vld [vmem:[%s5051 + $0x20] sm:$0xff]
      %v5057 = vld [vmem:[%s5051 + $0x28] sm:$0xff]
      %v5058 = vld [vmem:[%s5051 + $0x30] sm:$0xff]
      %v5059 = vld [vmem:[%s5051 + $0x38] sm:$0xff]
      %v5061 = vsel %vm4804, %v5043, 0
      %v5064 = vsel %vm4804, %v5048, 0
      %5066 = vmatprep.subr.mxu0 0.0
      %5067 = vmatpush1.msra.mxu0 %v5052
      %5068 = vmatprep.subr.mxu0 0.0
      %5069 = vmatpush1.msra.mxu0 %v5053
      %5070 = vmatprep.subr.mxu0 0.0
      %5071 = vmatpush1.msra.mxu0 %v5054
      %5072 = vmatprep.subr.mxu0 0.0
      %5073 = vmatpush1.msra.mxu0 %v5055
      %5074 = vmatprep.subr.mxu0 0.0
      %5075 = vmatpush1.msra.mxu0 %v5056
      %5076 = vmatprep.subr.mxu0 0.0
      %5077 = vmatpush1.msra.mxu0 %v5057
      %5078 = vmatprep.subr.mxu0 0.0
      %5079 = vmatpush1.msra.mxu0 %v5058
      %5080 = vmatprep.subr.mxu0 0.0
      %5081 = vmatpush1.msra.mxu0 %v5059
      %5082 = vmatprep.subr.mxu0 0.0
      %5083 = vmatpush1.msra.mxu0 0.0
      %5084 = vmatprep.subr.mxu0 0.0
      %5085 = vmatpush1.msra.mxu0 0.0
      %5086 = vmatprep.subr.mxu0 0.0
      %5087 = vmatpush1.msra.mxu0 0.0
      %5088 = vmatprep.subr.mxu0 0.0
      %5089 = vmatpush1.msra.mxu0 0.0
      %5090 = vmatprep.subr.mxu0 0.0
      %5091 = vmatpush1.msra.mxu0 0.0
      %5092 = vmatprep.subr.mxu0 0.0
      %5093 = vmatpush1.msra.mxu0 0.0
      %5094 = vmatprep.subr.mxu0 0.0
      %5095 = vmatpush1.msra.mxu0 0.0
      %5096 = vmatprep.subr.mxu0 0.0
      %5097 = vmatpush1.msra.mxu0 0.0
      %5098 = vmatprep.subr.mxu0 0.0
      %5099 = vmatpush1.msra.mxu0 0.0
      %5100 = vmatprep.subr.mxu0 0.0
      %5101 = vmatpush1.msra.mxu0 0.0
      %5102 = vmatprep.subr.mxu0 0.0
      %5103 = vmatpush1.msra.mxu0 0.0
      %5104 = vmatprep.subr.mxu0 0.0
      %5105 = vmatpush1.msra.mxu0 0.0
      %5106 = vmatprep.subr.mxu0 0.0
      %5107 = vmatpush1.msra.mxu0 0.0
      %5108 = vmatprep.subr.mxu0 0.0
      %5109 = vmatpush1.msra.mxu0 0.0
      %5110 = vmatprep.subr.mxu0 0.0
      %5111 = vmatpush1.msra.mxu0 0.0
      %5112 = vmatprep.subr.mxu0 0.0
      %5113 = vmatpush1.msra.mxu0 0.0
      %5114 = vmatprep.subr.mxu0 0.0
      %5115 = vmatpush1.msra.mxu0 0.0
      %5116 = vmatprep.subr.mxu0 0.0
      %5117 = vmatpush1.msra.mxu0 0.0
      %5118 = vmatprep.subr.mxu0 0.0
      %5119 = vmatpush1.msra.mxu0 0.0
      %5120 = vmatprep.subr.mxu0 0.0
      %5121 = vmatpush1.msra.mxu0 0.0
      %5122 = vmatprep.subr.mxu0 0.0
      %5123 = vmatpush1.msra.mxu0 0.0
      %5124 = vmatprep.subr.mxu0 0.0
      %5125 = vmatpush1.msra.mxu0 0.0
      %5126 = vmatprep.subr.mxu0 0.0
      %5127 = vmatpush1.msra.mxu0 0.0
      %5128 = vmatprep.subr.mxu0 0.0
      %5129 = vmatpush1.msra.mxu0 0.0
      %5130 = vmatprep.mubr.f32.mxu0 0.0
      %5131 = vmatmul.mubr.f32.gmra.mrb[0].mxu0 %v5061
      %v5132 = vpop.f32.mrb[0].mxu0
      %v5133 = vadd.f32 0.0, %v5132
      %v5134 = vpop.f32.mrb[0].mxu0
      %5135 = vmatprep.mubr.f32.mxu0 0.0
      %5136 = vmatmul.mubr.f32.gmra.mrb[0].mxu0 %v5064
      %v5137 = vpop.f32.mrb[0].mxu0
      %v5138 = vadd.f32 0.0, %v5137
      %v5139 = vpop.f32.mrb[0].mxu0
      %5140 = vdwg.mxu0
      %v5141 = vadd.f32 %v4959, %v5133
      %v5142 = vadd.f32 %v4964, %v5138
      %s5143 = scalar_lea.vmem %s7, 48
      %v5144 = vld [vmem:[%s5143] sm:$0xff]
      %v5145 = vld [vmem:[%s5143 + $0x8] sm:$0xff]
      %v5147 = vsel %vm4617, %v5144, 0
      %v5150 = vsel %vm4617, %v5145, 0
      %5152 = vmatprep.subr.mxu0 0.0
      %5153 = vmatpush1.msra.mxu0 %v4610
      %5154 = vmatprep.subr.mxu0 0.0
      %5155 = vmatpush1.msra.mxu0 %v4611
      %5156 = vmatprep.subr.mxu0 0.0
      %5157 = vmatpush1.msra.mxu0 %v4612
      %5158 = vmatprep.subr.mxu0 0.0
      %5159 = vmatpush1.msra.mxu0 %v4613
      %5160 = vmatprep.subr.mxu0 0.0
      %5161 = vmatpush1.msra.mxu0 %v4626
      %5162 = vmatprep.subr.mxu0 0.0
      %5163 = vmatpush1.msra.mxu0 0.0
      %5164 = vmatprep.subr.mxu0 0.0
      %5165 = vmatpush1.msra.mxu0 0.0
      %5166 = vmatprep.subr.mxu0 0.0
      %5167 = vmatpush1.msra.mxu0 0.0
      %5168 = vmatprep.subr.mxu0 0.0
      %5169 = vmatpush1.msra.mxu0 0.0
      %5170 = vmatprep.subr.mxu0 0.0
      %5171 = vmatpush1.msra.mxu0 0.0
      %5172 = vmatprep.subr.mxu0 0.0
      %5173 = vmatpush1.msra.mxu0 0.0
      %5174 = vmatprep.subr.mxu0 0.0
      %5175 = vmatpush1.msra.mxu0 0.0
      %5176 = vmatprep.subr.mxu0 0.0
      %5177 = vmatpush1.msra.mxu0 0.0
      %5178 = vmatprep.subr.mxu0 0.0
      %5179 = vmatpush1.msra.mxu0 0.0
      %5180 = vmatprep.subr.mxu0 0.0
      %5181 = vmatpush1.msra.mxu0 0.0
      %5182 = vmatprep.subr.mxu0 0.0
      %5183 = vmatpush1.msra.mxu0 0.0
      %5184 = vmatprep.subr.mxu0 0.0
      %5185 = vmatpush1.msra.mxu0 0.0
      %5186 = vmatprep.subr.mxu0 0.0
      %5187 = vmatpush1.msra.mxu0 0.0
      %5188 = vmatprep.subr.mxu0 0.0
      %5189 = vmatpush1.msra.mxu0 0.0
      %5190 = vmatprep.subr.mxu0 0.0
      %5191 = vmatpush1.msra.mxu0 0.0
      %5192 = vmatprep.subr.mxu0 0.0
      %5193 = vmatpush1.msra.mxu0 0.0
      %5194 = vmatprep.subr.mxu0 0.0
      %5195 = vmatpush1.msra.mxu0 0.0
      %5196 = vmatprep.subr.mxu0 0.0
      %5197 = vmatpush1.msra.mxu0 0.0
      %5198 = vmatprep.subr.mxu0 0.0
      %5199 = vmatpush1.msra.mxu0 0.0
      %5200 = vmatprep.subr.mxu0 0.0
      %5201 = vmatpush1.msra.mxu0 0.0
      %5202 = vmatprep.subr.mxu0 0.0
      %5203 = vmatpush1.msra.mxu0 0.0
      %5204 = vmatprep.subr.mxu0 0.0
      %5205 = vmatpush1.msra.mxu0 0.0
      %5206 = vmatprep.subr.mxu0 0.0
      %5207 = vmatpush1.msra.mxu0 0.0
      %5208 = vmatprep.subr.mxu0 0.0
      %5209 = vmatpush1.msra.mxu0 0.0
      %5210 = vmatprep.subr.mxu0 0.0
      %5211 = vmatpush1.msra.mxu0 0.0
      %5212 = vmatprep.subr.mxu0 0.0
      %5213 = vmatpush1.msra.mxu0 0.0
      %5214 = vmatprep.subr.mxu0 0.0
      %5215 = vmatpush1.msra.mxu0 0.0
      %5216 = vmatprep.mubr.f32.mxu0 0.0
      %5217 = vmatmul.mubr.f32.gmra.mrb[0].mxu0 %v5147
      %v5218 = vpop.f32.mrb[0].mxu0
      %v5219 = vadd.f32 0.0, %v5218
      %v5220 = vpop.f32.mrb[0].mxu0
      %5221 = vmatprep.mubr.f32.mxu0 0.0
      %5222 = vmatmul.mubr.f32.gmra.mrb[0].mxu0 %v5150
      %v5223 = vpop.f32.mrb[0].mxu0
      %v5224 = vadd.f32 0.0, %v5223
      %v5225 = vpop.f32.mrb[0].mxu0
      %5226 = vdwg.mxu0
      %s5227 = scalar_lea.vmem %s8, 192
      %v5228 = vld [vmem:[%s5227] sm:$0xff]
      %v5229 = vld [vmem:[%s5227 + $0x8] sm:$0xff]
      %v5230 = vld [vmem:[%s5227 + $0x10] sm:$0xff]
      %v5231 = vld [vmem:[%s5227 + $0x18] sm:$0xff]
      %v5232 = vld [vmem:[%s5227 + $0x20] sm:$0xff]
      %v5233 = vld [vmem:[%s5227 + $0x28] sm:$0xff]
      %v5234 = vld [vmem:[%s5227 + $0x30] sm:$0xff]
      %v5235 = vld [vmem:[%s5227 + $0x38] sm:$0xff]
      %v5237 = vsel %vm4804, %v5219, 0
      %v5240 = vsel %vm4804, %v5224, 0
      %5242 = vmatprep.subr.mxu0 0.0
      %5243 = vmatpush1.msra.mxu0 %v5228
      %5244 = vmatprep.subr.mxu0 0.0
      %5245 = vmatpush1.msra.mxu0 %v5229
      %5246 = vmatprep.subr.mxu0 0.0
      %5247 = vmatpush1.msra.mxu0 %v5230
      %5248 = vmatprep.subr.mxu0 0.0
      %5249 = vmatpush1.msra.mxu0 %v5231
      %5250 = vmatprep.subr.mxu0 0.0
      %5251 = vmatpush1.msra.mxu0 %v5232
      %5252 = vmatprep.subr.mxu0 0.0
      %5253 = vmatpush1.msra.mxu0 %v5233
      %5254 = vmatprep.subr.mxu0 0.0
      %5255 = vmatpush1.msra.mxu0 %v5234
      %5256 = vmatprep.subr.mxu0 0.0
      %5257 = vmatpush1.msra.mxu0 %v5235
      %5258 = vmatprep.subr.mxu0 0.0
      %5259 = vmatpush1.msra.mxu0 0.0
      %5260 = vmatprep.subr.mxu0 0.0
      %5261 = vmatpush1.msra.mxu0 0.0
      %5262 = vmatprep.subr.mxu0 0.0
      %5263 = vmatpush1.msra.mxu0 0.0
      %5264 = vmatprep.subr.mxu0 0.0
      %5265 = vmatpush1.msra.mxu0 0.0
      %5266 = vmatprep.subr.mxu0 0.0
      %5267 = vmatpush1.msra.mxu0 0.0
      %5268 = vmatprep.subr.mxu0 0.0
      %5269 = vmatpush1.msra.mxu0 0.0
      %5270 = vmatprep.subr.mxu0 0.0
      %5271 = vmatpush1.msra.mxu0 0.0
      %5272 = vmatprep.subr.mxu0 0.0
      %5273 = vmatpush1.msra.mxu0 0.0
      %5274 = vmatprep.subr.mxu0 0.0
      %5275 = vmatpush1.msra.mxu0 0.0
      %5276 = vmatprep.subr.mxu0 0.0
      %5277 = vmatpush1.msra.mxu0 0.0
      %5278 = vmatprep.subr.mxu0 0.0
      %5279 = vmatpush1.msra.mxu0 0.0
      %5280 = vmatprep.subr.mxu0 0.0
      %5281 = vmatpush1.msra.mxu0 0.0
      %5282 = vmatprep.subr.mxu0 0.0
      %5283 = vmatpush1.msra.mxu0 0.0
      %5284 = vmatprep.subr.mxu0 0.0
      %5285 = vmatpush1.msra.mxu0 0.0
      %5286 = vmatprep.subr.mxu0 0.0
      %5287 = vmatpush1.msra.mxu0 0.0
      %5288 = vmatprep.subr.mxu0 0.0
      %5289 = vmatpush1.msra.mxu0 0.0
      %5290 = vmatprep.subr.mxu0 0.0
      %5291 = vmatpush1.msra.mxu0 0.0
      %5292 = vmatprep.subr.mxu0 0.0
      %5293 = vmatpush1.msra.mxu0 0.0
      %5294 = vmatprep.subr.mxu0 0.0
      %5295 = vmatpush1.msra.mxu0 0.0
      %5296 = vmatprep.subr.mxu0 0.0
      %5297 = vmatpush1.msra.mxu0 0.0
      %5298 = vmatprep.subr.mxu0 0.0
      %5299 = vmatpush1.msra.mxu0 0.0
      %5300 = vmatprep.subr.mxu0 0.0
      %5301 = vmatpush1.msra.mxu0 0.0
      %5302 = vmatprep.subr.mxu0 0.0
      %5303 = vmatpush1.msra.mxu0 0.0
      %5304 = vmatprep.subr.mxu0 0.0
      %5305 = vmatpush1.msra.mxu0 0.0
      %5306 = vmatprep.mubr.f32.mxu0 0.0
      %5307 = vmatmul.mubr.f32.gmra.mrb[0].mxu0 %v5237
      %v5308 = vpop.f32.mrb[0].mxu0
      %v5309 = vadd.f32 0.0, %v5308
      %v5310 = vpop.f32.mrb[0].mxu0
      %5311 = vmatprep.mubr.f32.mxu0 0.0
      %5312 = vmatmul.mubr.f32.gmra.mrb[0].mxu0 %v5240
      %v5313 = vpop.f32.mrb[0].mxu0
      %v5314 = vadd.f32 0.0, %v5313
      %v5315 = vpop.f32.mrb[0].mxu0
      %5316 = vdwg.mxu0
      %v5317 = vadd.f32 %v5141, %v5309
      %v5318 = vadd.f32 %v5142, %v5314
      %s5319 = scalar_lea.vmem %s7, 64
      %v5320 = vld [vmem:[%s5319] sm:$0xff]
      %v5321 = vld [vmem:[%s5319 + $0x8] sm:$0xff]
      %v5323 = vsel %vm4617, %v5320, 0
      %v5326 = vsel %vm4617, %v5321, 0
      %5328 = vmatprep.subr.mxu0 0.0
      %5329 = vmatpush1.msra.mxu0 %v4610
      %5330 = vmatprep.subr.mxu0 0.0
      %5331 = vmatpush1.msra.mxu0 %v4611
      %5332 = vmatprep.subr.mxu0 0.0
      %5333 = vmatpush1.msra.mxu0 %v4612
      %5334 = vmatprep.subr.mxu0 0.0
      %5335 = vmatpush1.msra.mxu0 %v4613
      %5336 = vmatprep.subr.mxu0 0.0
      %5337 = vmatpush1.msra.mxu0 %v4626
      %5338 = vmatprep.subr.mxu0 0.0
      %5339 = vmatpush1.msra.mxu0 0.0
      %5340 = vmatprep.subr.mxu0 0.0
      %5341 = vmatpush1.msra.mxu0 0.0
      %5342 = vmatprep.subr.mxu0 0.0
      %5343 = vmatpush1.msra.mxu0 0.0
      %5344 = vmatprep.subr.mxu0 0.0
      %5345 = vmatpush1.msra.mxu0 0.0
      %5346 = vmatprep.subr.mxu0 0.0
      %5347 = vmatpush1.msra.mxu0 0.0
      %5348 = vmatprep.subr.mxu0 0.0
      %5349 = vmatpush1.msra.mxu0 0.0
      %5350 = vmatprep.subr.mxu0 0.0
      %5351 = vmatpush1.msra.mxu0 0.0
      %5352 = vmatprep.subr.mxu0 0.0
      %5353 = vmatpush1.msra.mxu0 0.0
      %5354 = vmatprep.subr.mxu0 0.0
      %5355 = vmatpush1.msra.mxu0 0.0
      %5356 = vmatprep.subr.mxu0 0.0
      %5357 = vmatpush1.msra.mxu0 0.0
      %5358 = vmatprep.subr.mxu0 0.0
      %5359 = vmatpush1.msra.mxu0 0.0
      %5360 = vmatprep.subr.mxu0 0.0
      %5361 = vmatpush1.msra.mxu0 0.0
      %5362 = vmatprep.subr.mxu0 0.0
      %5363 = vmatpush1.msra.mxu0 0.0
      %5364 = vmatprep.subr.mxu0 0.0
      %5365 = vmatpush1.msra.mxu0 0.0
      %5366 = vmatprep.subr.mxu0 0.0
      %5367 = vmatpush1.msra.mxu0 0.0
      %5368 = vmatprep.subr.mxu0 0.0
      %5369 = vmatpush1.msra.mxu0 0.0
      %5370 = vmatprep.subr.mxu0 0.0
      %5371 = vmatpush1.msra.mxu0 0.0
      %5372 = vmatprep.subr.mxu0 0.0
      %5373 = vmatpush1.msra.mxu0 0.0
      %5374 = vmatprep.subr.mxu0 0.0
      %5375 = vmatpush1.msra.mxu0 0.0
      %5376 = vmatprep.subr.mxu0 0.0
      %5377 = vmatpush1.msra.mxu0 0.0
      %5378 = vmatprep.subr.mxu0 0.0
      %5379 = vmatpush1.msra.mxu0 0.0
      %5380 = vmatprep.subr.mxu0 0.0
      %5381 = vmatpush1.msra.mxu0 0.0
      %5382 = vmatprep.subr.mxu0 0.0
      %5383 = vmatpush1.msra.mxu0 0.0
      %5384 = vmatprep.subr.mxu0 0.0
      %5385 = vmatpush1.msra.mxu0 0.0
      %5386 = vmatprep.subr.mxu0 0.0
      %5387 = vmatpush1.msra.mxu0 0.0
      %5388 = vmatprep.subr.mxu0 0.0
      %5389 = vmatpush1.msra.mxu0 0.0
      %5390 = vmatprep.subr.mxu0 0.0
      %5391 = vmatpush1.msra.mxu0 0.0
      %5392 = vmatprep.mubr.f32.mxu0 0.0
      %5393 = vmatmul.mubr.f32.gmra.mrb[0].mxu0 %v5323
      %v5394 = vpop.f32.mrb[0].mxu0
      %v5395 = vadd.f32 0.0, %v5394
      %v5396 = vpop.f32.mrb[0].mxu0
      %5397 = vmatprep.mubr.f32.mxu0 0.0
      %5398 = vmatmul.mubr.f32.gmra.mrb[0].mxu0 %v5326
      %v5399 = vpop.f32.mrb[0].mxu0
      %v5400 = vadd.f32 0.0, %v5399
      %v5401 = vpop.f32.mrb[0].mxu0
      %5402 = vdwg.mxu0
      %s5403 = scalar_lea.vmem %s8, 256
      %v5404 = vld [vmem:[%s5403] sm:$0xff]
      %v5405 = vld [vmem:[%s5403 + $0x8] sm:$0xff]
      %v5406 = vld [vmem:[%s5403 + $0x10] sm:$0xff]
      %v5407 = vld [vmem:[%s5403 + $0x18] sm:$0xff]
      %v5408 = vld [vmem:[%s5403 + $0x20] sm:$0xff]
      %v5409 = vld [vmem:[%s5403 + $0x28] sm:$0xff]
      %v5410 = vld [vmem:[%s5403 + $0x30] sm:$0xff]
      %v5411 = vld [vmem:[%s5403 + $0x38] sm:$0xff]
      %v5413 = vsel %vm4804, %v5395, 0
      %v5416 = vsel %vm4804, %v5400, 0
      %5418 = vmatprep.subr.mxu0 0.0
      %5419 = vmatpush1.msra.mxu0 %v5404
      %5420 = vmatprep.subr.mxu0 0.0
      %5421 = vmatpush1.msra.mxu0 %v5405
      %5422 = vmatprep.subr.mxu0 0.0
      %5423 = vmatpush1.msra.mxu0 %v5406
      %5424 = vmatprep.subr.mxu0 0.0
      %5425 = vmatpush1.msra.mxu0 %v5407
      %5426 = vmatprep.subr.mxu0 0.0
      %5427 = vmatpush1.msra.mxu0 %v5408
      %5428 = vmatprep.subr.mxu0 0.0
      %5429 = vmatpush1.msra.mxu0 %v5409
      %5430 = vmatprep.subr.mxu0 0.0
      %5431 = vmatpush1.msra.mxu0 %v5410
      %5432 = vmatprep.subr.mxu0 0.0
      %5433 = vmatpush1.msra.mxu0 %v5411
      %5434 = vmatprep.subr.mxu0 0.0
      %5435 = vmatpush1.msra.mxu0 0.0
      %5436 = vmatprep.subr.mxu0 0.0
      %5437 = vmatpush1.msra.mxu0 0.0
      %5438 = vmatprep.subr.mxu0 0.0
      %5439 = vmatpush1.msra.mxu0 0.0
      %5440 = vmatprep.subr.mxu0 0.0
      %5441 = vmatpush1.msra.mxu0 0.0
      %5442 = vmatprep.subr.mxu0 0.0
      %5443 = vmatpush1.msra.mxu0 0.0
      %5444 = vmatprep.subr.mxu0 0.0
      %5445 = vmatpush1.msra.mxu0 0.0
      %5446 = vmatprep.subr.mxu0 0.0
      %5447 = vmatpush1.msra.mxu0 0.0
      %5448 = vmatprep.subr.mxu0 0.0
      %5449 = vmatpush1.msra.mxu0 0.0
      %5450 = vmatprep.subr.mxu0 0.0
      %5451 = vmatpush1.msra.mxu0 0.0
      %5452 = vmatprep.subr.mxu0 0.0
      %5453 = vmatpush1.msra.mxu0 0.0
      %5454 = vmatprep.subr.mxu0 0.0
      %5455 = vmatpush1.msra.mxu0 0.0
      %5456 = vmatprep.subr.mxu0 0.0
      %5457 = vmatpush1.msra.mxu0 0.0
      %5458 = vmatprep.subr.mxu0 0.0
      %5459 = vmatpush1.msra.mxu0 0.0
      %5460 = vmatprep.subr.mxu0 0.0
      %5461 = vmatpush1.msra.mxu0 0.0
      %5462 = vmatprep.subr.mxu0 0.0
      %5463 = vmatpush1.msra.mxu0 0.0
      %5464 = vmatprep.subr.mxu0 0.0
      %5465 = vmatpush1.msra.mxu0 0.0
      %5466 = vmatprep.subr.mxu0 0.0
      %5467 = vmatpush1.msra.mxu0 0.0
      %5468 = vmatprep.subr.mxu0 0.0
      %5469 = vmatpush1.msra.mxu0 0.0
      %5470 = vmatprep.subr.mxu0 0.0
      %5471 = vmatpush1.msra.mxu0 0.0
      %5472 = vmatprep.subr.mxu0 0.0
      %5473 = vmatpush1.msra.mxu0 0.0
      %5474 = vmatprep.subr.mxu0 0.0
      %5475 = vmatpush1.msra.mxu0 0.0
      %5476 = vmatprep.subr.mxu0 0.0
      %5477 = vmatpush1.msra.mxu0 0.0
      %5478 = vmatprep.subr.mxu0 0.0
      %5479 = vmatpush1.msra.mxu0 0.0
      %5480 = vmatprep.subr.mxu0 0.0
      %5481 = vmatpush1.msra.mxu0 0.0
      %5482 = vmatprep.mubr.f32.mxu0 0.0
      %5483 = vmatmul.mubr.f32.gmra.mrb[0].mxu0 %v5413
      %v5484 = vpop.f32.mrb[0].mxu0
      %v5485 = vadd.f32 0.0, %v5484
      %v5486 = vpop.f32.mrb[0].mxu0
      %5487 = vmatprep.mubr.f32.mxu0 0.0
      %5488 = vmatmul.mubr.f32.gmra.mrb[0].mxu0 %v5416
      %v5489 = vpop.f32.mrb[0].mxu0
      %v5490 = vadd.f32 0.0, %v5489
      %v5491 = vpop.f32.mrb[0].mxu0
      %5492 = vdwg.mxu0
      %v5493 = vadd.f32 %v5317, %v5485
      %v5494 = vadd.f32 %v5318, %v5490
      %s5495 = scalar_lea.vmem %s7, 80
      %v5496 = vld [vmem:[%s5495] sm:$0xff]
      %v5497 = vld [vmem:[%s5495 + $0x8] sm:$0xff]
      %v5499 = vsel %vm4617, %v5496, 0
      %v5502 = vsel %vm4617, %v5497, 0
      %5504 = vmatprep.subr.mxu0 0.0
      %5505 = vmatpush1.msra.mxu0 %v4610
      %5506 = vmatprep.subr.mxu0 0.0
      %5507 = vmatpush1.msra.mxu0 %v4611
      %5508 = vmatprep.subr.mxu0 0.0
      %5509 = vmatpush1.msra.mxu0 %v4612
      %5510 = vmatprep.subr.mxu0 0.0
      %5511 = vmatpush1.msra.mxu0 %v4613
      %5512 = vmatprep.subr.mxu0 0.0
      %5513 = vmatpush1.msra.mxu0 %v4626
      %5514 = vmatprep.subr.mxu0 0.0
      %5515 = vmatpush1.msra.mxu0 0.0
      %5516 = vmatprep.subr.mxu0 0.0
      %5517 = vmatpush1.msra.mxu0 0.0
      %5518 = vmatprep.subr.mxu0 0.0
      %5519 = vmatpush1.msra.mxu0 0.0
      %5520 = vmatprep.subr.mxu0 0.0
      %5521 = vmatpush1.msra.mxu0 0.0
      %5522 = vmatprep.subr.mxu0 0.0
      %5523 = vmatpush1.msra.mxu0 0.0
      %5524 = vmatprep.subr.mxu0 0.0
      %5525 = vmatpush1.msra.mxu0 0.0
      %5526 = vmatprep.subr.mxu0 0.0
      %5527 = vmatpush1.msra.mxu0 0.0
      %5528 = vmatprep.subr.mxu0 0.0
      %5529 = vmatpush1.msra.mxu0 0.0
      %5530 = vmatprep.subr.mxu0 0.0
      %5531 = vmatpush1.msra.mxu0 0.0
      %5532 = vmatprep.subr.mxu0 0.0
      %5533 = vmatpush1.msra.mxu0 0.0
      %5534 = vmatprep.subr.mxu0 0.0
      %5535 = vmatpush1.msra.mxu0 0.0
      %5536 = vmatprep.subr.mxu0 0.0
      %5537 = vmatpush1.msra.mxu0 0.0
      %5538 = vmatprep.subr.mxu0 0.0
      %5539 = vmatpush1.msra.mxu0 0.0
      %5540 = vmatprep.subr.mxu0 0.0
      %5541 = vmatpush1.msra.mxu0 0.0
      %5542 = vmatprep.subr.mxu0 0.0
      %5543 = vmatpush1.msra.mxu0 0.0
      %5544 = vmatprep.subr.mxu0 0.0
      %5545 = vmatpush1.msra.mxu0 0.0
      %5546 = vmatprep.subr.mxu0 0.0
      %5547 = vmatpush1.msra.mxu0 0.0
      %5548 = vmatprep.subr.mxu0 0.0
      %5549 = vmatpush1.msra.mxu0 0.0
      %5550 = vmatprep.subr.mxu0 0.0
      %5551 = vmatpush1.msra.mxu0 0.0
      %5552 = vmatprep.subr.mxu0 0.0
      %5553 = vmatpush1.msra.mxu0 0.0
      %5554 = vmatprep.subr.mxu0 0.0
      %5555 = vmatpush1.msra.mxu0 0.0
      %5556 = vmatprep.subr.mxu0 0.0
      %5557 = vmatpush1.msra.mxu0 0.0
      %5558 = vmatprep.subr.mxu0 0.0
      %5559 = vmatpush1.msra.mxu0 0.0
      %5560 = vmatprep.subr.mxu0 0.0
      %5561 = vmatpush1.msra.mxu0 0.0
      %5562 = vmatprep.subr.mxu0 0.0
      %5563 = vmatpush1.msra.mxu0 0.0
      %5564 = vmatprep.subr.mxu0 0.0
      %5565 = vmatpush1.msra.mxu0 0.0
      %5566 = vmatprep.subr.mxu0 0.0
      %5567 = vmatpush1.msra.mxu0 0.0
      %5568 = vmatprep.mubr.f32.mxu0 0.0
      %5569 = vmatmul.mubr.f32.gmra.mrb[0].mxu0 %v5499
      %v5570 = vpop.f32.mrb[0].mxu0
      %v5571 = vadd.f32 0.0, %v5570
      %v5572 = vpop.f32.mrb[0].mxu0
      %5573 = vmatprep.mubr.f32.mxu0 0.0
      %5574 = vmatmul.mubr.f32.gmra.mrb[0].mxu0 %v5502
      %v5575 = vpop.f32.mrb[0].mxu0
      %v5576 = vadd.f32 0.0, %v5575
      %v5577 = vpop.f32.mrb[0].mxu0
      %5578 = vdwg.mxu0
      %s5579 = scalar_lea.vmem %s8, 320
      %v5580 = vld [vmem:[%s5579] sm:$0xff]
      %v5581 = vld [vmem:[%s5579 + $0x8] sm:$0xff]
      %v5582 = vld [vmem:[%s5579 + $0x10] sm:$0xff]
      %v5583 = vld [vmem:[%s5579 + $0x18] sm:$0xff]
      %v5584 = vld [vmem:[%s5579 + $0x20] sm:$0xff]
      %v5585 = vld [vmem:[%s5579 + $0x28] sm:$0xff]
      %v5586 = vld [vmem:[%s5579 + $0x30] sm:$0xff]
      %v5587 = vld [vmem:[%s5579 + $0x38] sm:$0xff]
      %v5589 = vsel %vm4804, %v5571, 0
      %v5592 = vsel %vm4804, %v5576, 0
      %5594 = vmatprep.subr.mxu0 0.0
      %5595 = vmatpush1.msra.mxu0 %v5580
      %5596 = vmatprep.subr.mxu0 0.0
      %5597 = vmatpush1.msra.mxu0 %v5581
      %5598 = vmatprep.subr.mxu0 0.0
      %5599 = vmatpush1.msra.mxu0 %v5582
      %5600 = vmatprep.subr.mxu0 0.0
      %5601 = vmatpush1.msra.mxu0 %v5583
      %5602 = vmatprep.subr.mxu0 0.0
      %5603 = vmatpush1.msra.mxu0 %v5584
      %5604 = vmatprep.subr.mxu0 0.0
      %5605 = vmatpush1.msra.mxu0 %v5585
      %5606 = vmatprep.subr.mxu0 0.0
      %5607 = vmatpush1.msra.mxu0 %v5586
      %5608 = vmatprep.subr.mxu0 0.0
      %5609 = vmatpush1.msra.mxu0 %v5587
      %5610 = vmatprep.subr.mxu0 0.0
      %5611 = vmatpush1.msra.mxu0 0.0
      %5612 = vmatprep.subr.mxu0 0.0
      %5613 = vmatpush1.msra.mxu0 0.0
      %5614 = vmatprep.subr.mxu0 0.0
      %5615 = vmatpush1.msra.mxu0 0.0
      %5616 = vmatprep.subr.mxu0 0.0
      %5617 = vmatpush1.msra.mxu0 0.0
      %5618 = vmatprep.subr.mxu0 0.0
      %5619 = vmatpush1.msra.mxu0 0.0
      %5620 = vmatprep.subr.mxu0 0.0
      %5621 = vmatpush1.msra.mxu0 0.0
      %5622 = vmatprep.subr.mxu0 0.0
      %5623 = vmatpush1.msra.mxu0 0.0
      %5624 = vmatprep.subr.mxu0 0.0
      %5625 = vmatpush1.msra.mxu0 0.0
      %5626 = vmatprep.subr.mxu0 0.0
      %5627 = vmatpush1.msra.mxu0 0.0
      %5628 = vmatprep.subr.mxu0 0.0
      %5629 = vmatpush1.msra.mxu0 0.0
      %5630 = vmatprep.subr.mxu0 0.0
      %5631 = vmatpush1.msra.mxu0 0.0
      %5632 = vmatprep.subr.mxu0 0.0
      %5633 = vmatpush1.msra.mxu0 0.0
      %5634 = vmatprep.subr.mxu0 0.0
      %5635 = vmatpush1.msra.mxu0 0.0
      %5636 = vmatprep.subr.mxu0 0.0
      %5637 = vmatpush1.msra.mxu0 0.0
      %5638 = vmatprep.subr.mxu0 0.0
      %5639 = vmatpush1.msra.mxu0 0.0
      %5640 = vmatprep.subr.mxu0 0.0
      %5641 = vmatpush1.msra.mxu0 0.0
      %5642 = vmatprep.subr.mxu0 0.0
      %5643 = vmatpush1.msra.mxu0 0.0
      %5644 = vmatprep.subr.mxu0 0.0
      %5645 = vmatpush1.msra.mxu0 0.0
      %5646 = vmatprep.subr.mxu0 0.0
      %5647 = vmatpush1.msra.mxu0 0.0
      %5648 = vmatprep.subr.mxu0 0.0
      %5649 = vmatpush1.msra.mxu0 0.0
      %5650 = vmatprep.subr.mxu0 0.0
      %5651 = vmatpush1.msra.mxu0 0.0
      %5652 = vmatprep.subr.mxu0 0.0
      %5653 = vmatpush1.msra.mxu0 0.0
      %5654 = vmatprep.subr.mxu0 0.0
      %5655 = vmatpush1.msra.mxu0 0.0
      %5656 = vmatprep.subr.mxu0 0.0
      %5657 = vmatpush1.msra.mxu0 0.0
      %5658 = vmatprep.mubr.f32.mxu0 0.0
      %5659 = vmatmul.mubr.f32.gmra.mrb[0].mxu0 %v5589
      %v5660 = vpop.f32.mrb[0].mxu0
      %v5661 = vadd.f32 0.0, %v5660
      %v5662 = vpop.f32.mrb[0].mxu0
      %5663 = vmatprep.mubr.f32.mxu0 0.0
      %5664 = vmatmul.mubr.f32.gmra.mrb[0].mxu0 %v5592
      %v5665 = vpop.f32.mrb[0].mxu0
      %v5666 = vadd.f32 0.0, %v5665
      %v5667 = vpop.f32.mrb[0].mxu0
      %5668 = vdwg.mxu0
      %v5669 = vadd.f32 %v5493, %v5661
      %v5670 = vadd.f32 %v5494, %v5666
      %s5671 = scalar_lea.vmem %s7, 96
      %v5672 = vld [vmem:[%s5671] sm:$0xff]
      %v5673 = vld [vmem:[%s5671 + $0x8] sm:$0xff]
      %v5675 = vsel %vm4617, %v5672, 0
      %v5678 = vsel %vm4617, %v5673, 0
      %5680 = vmatprep.subr.mxu0 0.0
      %5681 = vmatpush1.msra.mxu0 %v4610
      %5682 = vmatprep.subr.mxu0 0.0
      %5683 = vmatpush1.msra.mxu0 %v4611
      %5684 = vmatprep.subr.mxu0 0.0
      %5685 = vmatpush1.msra.mxu0 %v4612
      %5686 = vmatprep.subr.mxu0 0.0
      %5687 = vmatpush1.msra.mxu0 %v4613
      %5688 = vmatprep.subr.mxu0 0.0
      %5689 = vmatpush1.msra.mxu0 %v4626
      %5690 = vmatprep.subr.mxu0 0.0
      %5691 = vmatpush1.msra.mxu0 0.0
      %5692 = vmatprep.subr.mxu0 0.0
      %5693 = vmatpush1.msra.mxu0 0.0
      %5694 = vmatprep.subr.mxu0 0.0
      %5695 = vmatpush1.msra.mxu0 0.0
      %5696 = vmatprep.subr.mxu0 0.0
      %5697 = vmatpush1.msra.mxu0 0.0
      %5698 = vmatprep.subr.mxu0 0.0
      %5699 = vmatpush1.msra.mxu0 0.0
      %5700 = vmatprep.subr.mxu0 0.0
      %5701 = vmatpush1.msra.mxu0 0.0
      %5702 = vmatprep.subr.mxu0 0.0
      %5703 = vmatpush1.msra.mxu0 0.0
      %5704 = vmatprep.subr.mxu0 0.0
      %5705 = vmatpush1.msra.mxu0 0.0
      %5706 = vmatprep.subr.mxu0 0.0
      %5707 = vmatpush1.msra.mxu0 0.0
      %5708 = vmatprep.subr.mxu0 0.0
      %5709 = vmatpush1.msra.mxu0 0.0
      %5710 = vmatprep.subr.mxu0 0.0
      %5711 = vmatpush1.msra.mxu0 0.0
      %5712 = vmatprep.subr.mxu0 0.0
      %5713 = vmatpush1.msra.mxu0 0.0
      %5714 = vmatprep.subr.mxu0 0.0
      %5715 = vmatpush1.msra.mxu0 0.0
      %5716 = vmatprep.subr.mxu0 0.0
      %5717 = vmatpush1.msra.mxu0 0.0
      %5718 = vmatprep.subr.mxu0 0.0
      %5719 = vmatpush1.msra.mxu0 0.0
      %5720 = vmatprep.subr.mxu0 0.0
      %5721 = vmatpush1.msra.mxu0 0.0
      %5722 = vmatprep.subr.mxu0 0.0
      %5723 = vmatpush1.msra.mxu0 0.0
      %5724 = vmatprep.subr.mxu0 0.0
      %5725 = vmatpush1.msra.mxu0 0.0
      %5726 = vmatprep.subr.mxu0 0.0
      %5727 = vmatpush1.msra.mxu0 0.0
      %5728 = vmatprep.subr.mxu0 0.0
      %5729 = vmatpush1.msra.mxu0 0.0
      %5730 = vmatprep.subr.mxu0 0.0
      %5731 = vmatpush1.msra.mxu0 0.0
      %5732 = vmatprep.subr.mxu0 0.0
      %5733 = vmatpush1.msra.mxu0 0.0
      %5734 = vmatprep.subr.mxu0 0.0
      %5735 = vmatpush1.msra.mxu0 0.0
      %5736 = vmatprep.subr.mxu0 0.0
      %5737 = vmatpush1.msra.mxu0 0.0
      %5738 = vmatprep.subr.mxu0 0.0
      %5739 = vmatpush1.msra.mxu0 0.0
      %5740 = vmatprep.subr.mxu0 0.0
      %5741 = vmatpush1.msra.mxu0 0.0
      %5742 = vmatprep.subr.mxu0 0.0
      %5743 = vmatpush1.msra.mxu0 0.0
      %5744 = vmatprep.mubr.f32.mxu0 0.0
      %5745 = vmatmul.mubr.f32.gmra.mrb[0].mxu0 %v5675
      %v5746 = vpop.f32.mrb[0].mxu0
      %v5747 = vadd.f32 0.0, %v5746
      %v5748 = vpop.f32.mrb[0].mxu0
      %5749 = vmatprep.mubr.f32.mxu0 0.0
      %5750 = vmatmul.mubr.f32.gmra.mrb[0].mxu0 %v5678
      %v5751 = vpop.f32.mrb[0].mxu0
      %v5752 = vadd.f32 0.0, %v5751
      %v5753 = vpop.f32.mrb[0].mxu0
      %5754 = vdwg.mxu0
      %s5755 = scalar_lea.vmem %s8, 384
      %v5756 = vld [vmem:[%s5755] sm:$0xff]
      %v5757 = vld [vmem:[%s5755 + $0x8] sm:$0xff]
      %v5758 = vld [vmem:[%s5755 + $0x10] sm:$0xff]
      %v5759 = vld [vmem:[%s5755 + $0x18] sm:$0xff]
      %v5760 = vld [vmem:[%s5755 + $0x20] sm:$0xff]
      %v5761 = vld [vmem:[%s5755 + $0x28] sm:$0xff]
      %v5762 = vld [vmem:[%s5755 + $0x30] sm:$0xff]
      %v5763 = vld [vmem:[%s5755 + $0x38] sm:$0xff]
      %v5765 = vsel %vm4804, %v5747, 0
      %v5768 = vsel %vm4804, %v5752, 0
      %5770 = vmatprep.subr.mxu0 0.0
      %5771 = vmatpush1.msra.mxu0 %v5756
      %5772 = vmatprep.subr.mxu0 0.0
      %5773 = vmatpush1.msra.mxu0 %v5757
      %5774 = vmatprep.subr.mxu0 0.0
      %5775 = vmatpush1.msra.mxu0 %v5758
      %5776 = vmatprep.subr.mxu0 0.0
      %5777 = vmatpush1.msra.mxu0 %v5759
      %5778 = vmatprep.subr.mxu0 0.0
      %5779 = vmatpush1.msra.mxu0 %v5760
      %5780 = vmatprep.subr.mxu0 0.0
      %5781 = vmatpush1.msra.mxu0 %v5761
      %5782 = vmatprep.subr.mxu0 0.0
      %5783 = vmatpush1.msra.mxu0 %v5762
      %5784 = vmatprep.subr.mxu0 0.0
      %5785 = vmatpush1.msra.mxu0 %v5763
      %5786 = vmatprep.subr.mxu0 0.0
      %5787 = vmatpush1.msra.mxu0 0.0
      %5788 = vmatprep.subr.mxu0 0.0
      %5789 = vmatpush1.msra.mxu0 0.0
      %5790 = vmatprep.subr.mxu0 0.0
      %5791 = vmatpush1.msra.mxu0 0.0
      %5792 = vmatprep.subr.mxu0 0.0
      %5793 = vmatpush1.msra.mxu0 0.0
      %5794 = vmatprep.subr.mxu0 0.0
      %5795 = vmatpush1.msra.mxu0 0.0
      %5796 = vmatprep.subr.mxu0 0.0
      %5797 = vmatpush1.msra.mxu0 0.0
      %5798 = vmatprep.subr.mxu0 0.0
      %5799 = vmatpush1.msra.mxu0 0.0
      %5800 = vmatprep.subr.mxu0 0.0
      %5801 = vmatpush1.msra.mxu0 0.0
      %5802 = vmatprep.subr.mxu0 0.0
      %5803 = vmatpush1.msra.mxu0 0.0
      %5804 = vmatprep.subr.mxu0 0.0
      %5805 = vmatpush1.msra.mxu0 0.0
      %5806 = vmatprep.subr.mxu0 0.0
      %5807 = vmatpush1.msra.mxu0 0.0
      %5808 = vmatprep.subr.mxu0 0.0
      %5809 = vmatpush1.msra.mxu0 0.0
      %5810 = vmatprep.subr.mxu0 0.0
      %5811 = vmatpush1.msra.mxu0 0.0
      %5812 = vmatprep.subr.mxu0 0.0
      %5813 = vmatpush1.msra.mxu0 0.0
      %5814 = vmatprep.subr.mxu0 0.0
      %5815 = vmatpush1.msra.mxu0 0.0
      %5816 = vmatprep.subr.mxu0 0.0
      %5817 = vmatpush1.msra.mxu0 0.0
      %5818 = vmatprep.subr.mxu0 0.0
      %5819 = vmatpush1.msra.mxu0 0.0
      %5820 = vmatprep.subr.mxu0 0.0
      %5821 = vmatpush1.msra.mxu0 0.0
      %5822 = vmatprep.subr.mxu0 0.0
      %5823 = vmatpush1.msra.mxu0 0.0
      %5824 = vmatprep.subr.mxu0 0.0
      %5825 = vmatpush1.msra.mxu0 0.0
      %5826 = vmatprep.subr.mxu0 0.0
      %5827 = vmatpush1.msra.mxu0 0.0
      %5828 = vmatprep.subr.mxu0 0.0
      %5829 = vmatpush1.msra.mxu0 0.0
      %5830 = vmatprep.subr.mxu0 0.0
      %5831 = vmatpush1.msra.mxu0 0.0
      %5832 = vmatprep.subr.mxu0 0.0
      %5833 = vmatpush1.msra.mxu0 0.0
      %5834 = vmatprep.mubr.f32.mxu0 0.0
      %5835 = vmatmul.mubr.f32.gmra.mrb[0].mxu0 %v5765
      %v5836 = vpop.f32.mrb[0].mxu0
      %v5837 = vadd.f32 0.0, %v5836
      %v5838 = vpop.f32.mrb[0].mxu0
      %5839 = vmatprep.mubr.f32.mxu0 0.0
      %5840 = vmatmul.mubr.f32.gmra.mrb[0].mxu0 %v5768
      %v5841 = vpop.f32.mrb[0].mxu0
      %v5842 = vadd.f32 0.0, %v5841
      %v5843 = vpop.f32.mrb[0].mxu0
      %5844 = vdwg.mxu0
      %v5845 = vadd.f32 %v5669, %v5837
      %v5846 = vadd.f32 %v5670, %v5842
      %s5847 = scalar_lea.vmem %s7, 112
      %v5848 = vld [vmem:[%s5847] sm:$0xff]
      %v5849 = vld [vmem:[%s5847 + $0x8] sm:$0xff]
      %v5851 = vsel %vm4617, %v5848, 0
      %v5854 = vsel %vm4617, %v5849, 0
      %5856 = vmatprep.subr.mxu0 0.0
      %5857 = vmatpush1.msra.mxu0 %v4610
      %5858 = vmatprep.subr.mxu0 0.0
      %5859 = vmatpush1.msra.mxu0 %v4611
      %5860 = vmatprep.subr.mxu0 0.0
      %5861 = vmatpush1.msra.mxu0 %v4612
      %5862 = vmatprep.subr.mxu0 0.0
      %5863 = vmatpush1.msra.mxu0 %v4613
      %5864 = vmatprep.subr.mxu0 0.0
      %5865 = vmatpush1.msra.mxu0 %v4626
      %5866 = vmatprep.subr.mxu0 0.0
      %5867 = vmatpush1.msra.mxu0 0.0
      %5868 = vmatprep.subr.mxu0 0.0
      %5869 = vmatpush1.msra.mxu0 0.0
      %5870 = vmatprep.subr.mxu0 0.0
      %5871 = vmatpush1.msra.mxu0 0.0
      %5872 = vmatprep.subr.mxu0 0.0
      %5873 = vmatpush1.msra.mxu0 0.0
      %5874 = vmatprep.subr.mxu0 0.0
      %5875 = vmatpush1.msra.mxu0 0.0
      %5876 = vmatprep.subr.mxu0 0.0
      %5877 = vmatpush1.msra.mxu0 0.0
      %5878 = vmatprep.subr.mxu0 0.0
      %5879 = vmatpush1.msra.mxu0 0.0
      %5880 = vmatprep.subr.mxu0 0.0
      %5881 = vmatpush1.msra.mxu0 0.0
      %5882 = vmatprep.subr.mxu0 0.0
      %5883 = vmatpush1.msra.mxu0 0.0
      %5884 = vmatprep.subr.mxu0 0.0
      %5885 = vmatpush1.msra.mxu0 0.0
      %5886 = vmatprep.subr.mxu0 0.0
      %5887 = vmatpush1.msra.mxu0 0.0
      %5888 = vmatprep.subr.mxu0 0.0
      %5889 = vmatpush1.msra.mxu0 0.0
      %5890 = vmatprep.subr.mxu0 0.0
      %5891 = vmatpush1.msra.mxu0 0.0
      %5892 = vmatprep.subr.mxu0 0.0
      %5893 = vmatpush1.msra.mxu0 0.0
      %5894 = vmatprep.subr.mxu0 0.0
      %5895 = vmatpush1.msra.mxu0 0.0
      %5896 = vmatprep.subr.mxu0 0.0
      %5897 = vmatpush1.msra.mxu0 0.0
      %5898 = vmatprep.subr.mxu0 0.0
      %5899 = vmatpush1.msra.mxu0 0.0
      %5900 = vmatprep.subr.mxu0 0.0
      %5901 = vmatpush1.msra.mxu0 0.0
      %5902 = vmatprep.subr.mxu0 0.0
      %5903 = vmatpush1.msra.mxu0 0.0
      %5904 = vmatprep.subr.mxu0 0.0
      %5905 = vmatpush1.msra.mxu0 0.0
      %5906 = vmatprep.subr.mxu0 0.0
      %5907 = vmatpush1.msra.mxu0 0.0
      %5908 = vmatprep.subr.mxu0 0.0
      %5909 = vmatpush1.msra.mxu0 0.0
      %5910 = vmatprep.subr.mxu0 0.0
      %5911 = vmatpush1.msra.mxu0 0.0
      %5912 = vmatprep.subr.mxu0 0.0
      %5913 = vmatpush1.msra.mxu0 0.0
      %5914 = vmatprep.subr.mxu0 0.0
      %5915 = vmatpush1.msra.mxu0 0.0
      %5916 = vmatprep.subr.mxu0 0.0
      %5917 = vmatpush1.msra.mxu0 0.0
      %5918 = vmatprep.subr.mxu0 0.0
      %5919 = vmatpush1.msra.mxu0 0.0
      %5920 = vmatprep.mubr.f32.mxu0 0.0
      %5921 = vmatmul.mubr.f32.gmra.mrb[0].mxu0 %v5851
      %v5922 = vpop.f32.mrb[0].mxu0
      %v5923 = vadd.f32 0.0, %v5922
      %v5924 = vpop.f32.mrb[0].mxu0
      %5925 = vmatprep.mubr.f32.mxu0 0.0
      %5926 = vmatmul.mubr.f32.gmra.mrb[0].mxu0 %v5854
      %v5927 = vpop.f32.mrb[0].mxu0
      %v5928 = vadd.f32 0.0, %v5927
      %v5929 = vpop.f32.mrb[0].mxu0
      %5930 = vdwg.mxu0
      %s5931 = scalar_lea.vmem %s8, 448
      %v5932 = vld [vmem:[%s5931] sm:$0xff]
      %v5933 = vld [vmem:[%s5931 + $0x8] sm:$0xff]
      %v5934 = vld [vmem:[%s5931 + $0x10] sm:$0xff]
      %v5935 = vld [vmem:[%s5931 + $0x18] sm:$0xff]
      %v5936 = vld [vmem:[%s5931 + $0x20] sm:$0xff]
      %v5937 = vld [vmem:[%s5931 + $0x28] sm:$0xff]
      %v5938 = vld [vmem:[%s5931 + $0x30] sm:$0xff]
      %v5939 = vld [vmem:[%s5931 + $0x38] sm:$0xff]
      %v5941 = vsel %vm4804, %v5923, 0
      %v5944 = vsel %vm4804, %v5928, 0
      %5946 = vmatprep.subr.mxu0 0.0
      %5947 = vmatpush1.msra.mxu0 %v5932
      %5948 = vmatprep.subr.mxu0 0.0
      %5949 = vmatpush1.msra.mxu0 %v5933
      %5950 = vmatprep.subr.mxu0 0.0
      %5951 = vmatpush1.msra.mxu0 %v5934
      %5952 = vmatprep.subr.mxu0 0.0
      %5953 = vmatpush1.msra.mxu0 %v5935
      %5954 = vmatprep.subr.mxu0 0.0
      %5955 = vmatpush1.msra.mxu0 %v5936
      %5956 = vmatprep.subr.mxu0 0.0
      %5957 = vmatpush1.msra.mxu0 %v5937
      %5958 = vmatprep.subr.mxu0 0.0
      %5959 = vmatpush1.msra.mxu0 %v5938
      %5960 = vmatprep.subr.mxu0 0.0
      %5961 = vmatpush1.msra.mxu0 %v5939
      %5962 = vmatprep.subr.mxu0 0.0
      %5963 = vmatpush1.msra.mxu0 0.0
      %5964 = vmatprep.subr.mxu0 0.0
      %5965 = vmatpush1.msra.mxu0 0.0
      %5966 = vmatprep.subr.mxu0 0.0
      %5967 = vmatpush1.msra.mxu0 0.0
      %5968 = vmatprep.subr.mxu0 0.0
      %5969 = vmatpush1.msra.mxu0 0.0
      %5970 = vmatprep.subr.mxu0 0.0
      %5971 = vmatpush1.msra.mxu0 0.0
      %5972 = vmatprep.subr.mxu0 0.0
      %5973 = vmatpush1.msra.mxu0 0.0
      %5974 = vmatprep.subr.mxu0 0.0
      %5975 = vmatpush1.msra.mxu0 0.0
      %5976 = vmatprep.subr.mxu0 0.0
      %5977 = vmatpush1.msra.mxu0 0.0
      %5978 = vmatprep.subr.mxu0 0.0
      %5979 = vmatpush1.msra.mxu0 0.0
      %5980 = vmatprep.subr.mxu0 0.0
      %5981 = vmatpush1.msra.mxu0 0.0
      %5982 = vmatprep.subr.mxu0 0.0
      %5983 = vmatpush1.msra.mxu0 0.0
      %5984 = vmatprep.subr.mxu0 0.0
      %5985 = vmatpush1.msra.mxu0 0.0
      %5986 = vmatprep.subr.mxu0 0.0
      %5987 = vmatpush1.msra.mxu0 0.0
      %5988 = vmatprep.subr.mxu0 0.0
      %5989 = vmatpush1.msra.mxu0 0.0
      %5990 = vmatprep.subr.mxu0 0.0
      %5991 = vmatpush1.msra.mxu0 0.0
      %5992 = vmatprep.subr.mxu0 0.0
      %5993 = vmatpush1.msra.mxu0 0.0
      %5994 = vmatprep.subr.mxu0 0.0
      %5995 = vmatpush1.msra.mxu0 0.0
      %5996 = vmatprep.subr.mxu0 0.0
      %5997 = vmatpush1.msra.mxu0 0.0
      %5998 = vmatprep.subr.mxu0 0.0
      %5999 = vmatpush1.msra.mxu0 0.0
      %6000 = vmatprep.subr.mxu0 0.0
      %6001 = vmatpush1.msra.mxu0 0.0
      %6002 = vmatprep.subr.mxu0 0.0
      %6003 = vmatpush1.msra.mxu0 0.0
      %6004 = vmatprep.subr.mxu0 0.0
      %6005 = vmatpush1.msra.mxu0 0.0
      %6006 = vmatprep.subr.mxu0 0.0
      %6007 = vmatpush1.msra.mxu0 0.0
      %6008 = vmatprep.subr.mxu0 0.0
      %6009 = vmatpush1.msra.mxu0 0.0
      %6010 = vmatprep.mubr.f32.mxu0 0.0
      %6011 = vmatmul.mubr.f32.gmra.mrb[0].mxu0 %v5941
      %v6012 = vpop.f32.mrb[0].mxu0
      %v6013 = vadd.f32 0.0, %v6012
      %v6014 = vpop.f32.mrb[0].mxu0
      %6015 = vmatprep.mubr.f32.mxu0 0.0
      %6016 = vmatmul.mubr.f32.gmra.mrb[0].mxu0 %v5944
      %v6017 = vpop.f32.mrb[0].mxu0
      %v6018 = vadd.f32 0.0, %v6017
      %v6019 = vpop.f32.mrb[0].mxu0
      %6020 = vdwg.mxu0
      %v6021 = vadd.f32 %v5845, %v6013
      %v6022 = vadd.f32 %v5846, %v6018
      %s6023 = scalar_lea.vmem %s7, 128
      %v6024 = vld [vmem:[%s6023] sm:$0xff]
      %v6025 = vld [vmem:[%s6023 + $0x8] sm:$0xff]
      %v6027 = vsel %vm4617, %v6024, 0
      %v6030 = vsel %vm4617, %v6025, 0
      %6032 = vmatprep.subr.mxu0 0.0
      %6033 = vmatpush1.msra.mxu0 %v4610
      %6034 = vmatprep.subr.mxu0 0.0
      %6035 = vmatpush1.msra.mxu0 %v4611
      %6036 = vmatprep.subr.mxu0 0.0
      %6037 = vmatpush1.msra.mxu0 %v4612
      %6038 = vmatprep.subr.mxu0 0.0
      %6039 = vmatpush1.msra.mxu0 %v4613
      %6040 = vmatprep.subr.mxu0 0.0
      %6041 = vmatpush1.msra.mxu0 %v4626
      %6042 = vmatprep.subr.mxu0 0.0
      %6043 = vmatpush1.msra.mxu0 0.0
      %6044 = vmatprep.subr.mxu0 0.0
      %6045 = vmatpush1.msra.mxu0 0.0
      %6046 = vmatprep.subr.mxu0 0.0
      %6047 = vmatpush1.msra.mxu0 0.0
      %6048 = vmatprep.subr.mxu0 0.0
      %6049 = vmatpush1.msra.mxu0 0.0
      %6050 = vmatprep.subr.mxu0 0.0
      %6051 = vmatpush1.msra.mxu0 0.0
      %6052 = vmatprep.subr.mxu0 0.0
      %6053 = vmatpush1.msra.mxu0 0.0
      %6054 = vmatprep.subr.mxu0 0.0
      %6055 = vmatpush1.msra.mxu0 0.0
      %6056 = vmatprep.subr.mxu0 0.0
      %6057 = vmatpush1.msra.mxu0 0.0
      %6058 = vmatprep.subr.mxu0 0.0
      %6059 = vmatpush1.msra.mxu0 0.0
      %6060 = vmatprep.subr.mxu0 0.0
      %6061 = vmatpush1.msra.mxu0 0.0
      %6062 = vmatprep.subr.mxu0 0.0
      %6063 = vmatpush1.msra.mxu0 0.0
      %6064 = vmatprep.subr.mxu0 0.0
      %6065 = vmatpush1.msra.mxu0 0.0
      %6066 = vmatprep.subr.mxu0 0.0
      %6067 = vmatpush1.msra.mxu0 0.0
      %6068 = vmatprep.subr.mxu0 0.0
      %6069 = vmatpush1.msra.mxu0 0.0
      %6070 = vmatprep.subr.mxu0 0.0
      %6071 = vmatpush1.msra.mxu0 0.0
      %6072 = vmatprep.subr.mxu0 0.0
      %6073 = vmatpush1.msra.mxu0 0.0
      %6074 = vmatprep.subr.mxu0 0.0
      %6075 = vmatpush1.msra.mxu0 0.0
      %6076 = vmatprep.subr.mxu0 0.0
      %6077 = vmatpush1.msra.mxu0 0.0
      %6078 = vmatprep.subr.mxu0 0.0
      %6079 = vmatpush1.msra.mxu0 0.0
      %6080 = vmatprep.subr.mxu0 0.0
      %6081 = vmatpush1.msra.mxu0 0.0
      %6082 = vmatprep.subr.mxu0 0.0
      %6083 = vmatpush1.msra.mxu0 0.0
      %6084 = vmatprep.subr.mxu0 0.0
      %6085 = vmatpush1.msra.mxu0 0.0
      %6086 = vmatprep.subr.mxu0 0.0
      %6087 = vmatpush1.msra.mxu0 0.0
      %6088 = vmatprep.subr.mxu0 0.0
      %6089 = vmatpush1.msra.mxu0 0.0
      %6090 = vmatprep.subr.mxu0 0.0
      %6091 = vmatpush1.msra.mxu0 0.0
      %6092 = vmatprep.subr.mxu0 0.0
      %6093 = vmatpush1.msra.mxu0 0.0
      %6094 = vmatprep.subr.mxu0 0.0
      %6095 = vmatpush1.msra.mxu0 0.0
      %6096 = vmatprep.mubr.f32.mxu0 0.0
      %6097 = vmatmul.mubr.f32.gmra.mrb[0].mxu0 %v6027
      %v6098 = vpop.f32.mrb[0].mxu0
      %v6099 = vadd.f32 0.0, %v6098
      %v6100 = vpop.f32.mrb[0].mxu0
      %6101 = vmatprep.mubr.f32.mxu0 0.0
      %6102 = vmatmul.mubr.f32.gmra.mrb[0].mxu0 %v6030
      %v6103 = vpop.f32.mrb[0].mxu0
      %v6104 = vadd.f32 0.0, %v6103
      %v6105 = vpop.f32.mrb[0].mxu0
      %6106 = vdwg.mxu0
      %s6107 = scalar_lea.vmem %s8, 512
      %v6108 = vld [vmem:[%s6107] sm:$0xff]
      %v6109 = vld [vmem:[%s6107 + $0x8] sm:$0xff]
      %v6110 = vld [vmem:[%s6107 + $0x10] sm:$0xff]
      %v6111 = vld [vmem:[%s6107 + $0x18] sm:$0xff]
      %v6112 = vld [vmem:[%s6107 + $0x20] sm:$0xff]
      %v6113 = vld [vmem:[%s6107 + $0x28] sm:$0xff]
      %v6114 = vld [vmem:[%s6107 + $0x30] sm:$0xff]
      %v6115 = vld [vmem:[%s6107 + $0x38] sm:$0xff]
      %v6117 = vsel %vm4804, %v6099, 0
      %v6120 = vsel %vm4804, %v6104, 0
      %6122 = vmatprep.subr.mxu0 0.0
      %6123 = vmatpush1.msra.mxu0 %v6108
      %6124 = vmatprep.subr.mxu0 0.0
      %6125 = vmatpush1.msra.mxu0 %v6109
      %6126 = vmatprep.subr.mxu0 0.0
      %6127 = vmatpush1.msra.mxu0 %v6110
      %6128 = vmatprep.subr.mxu0 0.0
      %6129 = vmatpush1.msra.mxu0 %v6111
      %6130 = vmatprep.subr.mxu0 0.0
      %6131 = vmatpush1.msra.mxu0 %v6112
      %6132 = vmatprep.subr.mxu0 0.0
      %6133 = vmatpush1.msra.mxu0 %v6113
      %6134 = vmatprep.subr.mxu0 0.0
      %6135 = vmatpush1.msra.mxu0 %v6114
      %6136 = vmatprep.subr.mxu0 0.0
      %6137 = vmatpush1.msra.mxu0 %v6115
      %6138 = vmatprep.subr.mxu0 0.0
      %6139 = vmatpush1.msra.mxu0 0.0
      %6140 = vmatprep.subr.mxu0 0.0
      %6141 = vmatpush1.msra.mxu0 0.0
      %6142 = vmatprep.subr.mxu0 0.0
      %6143 = vmatpush1.msra.mxu0 0.0
      %6144 = vmatprep.subr.mxu0 0.0
      %6145 = vmatpush1.msra.mxu0 0.0
      %6146 = vmatprep.subr.mxu0 0.0
      %6147 = vmatpush1.msra.mxu0 0.0
      %6148 = vmatprep.subr.mxu0 0.0
      %6149 = vmatpush1.msra.mxu0 0.0
      %6150 = vmatprep.subr.mxu0 0.0
      %6151 = vmatpush1.msra.mxu0 0.0
      %6152 = vmatprep.subr.mxu0 0.0
      %6153 = vmatpush1.msra.mxu0 0.0
      %6154 = vmatprep.subr.mxu0 0.0
      %6155 = vmatpush1.msra.mxu0 0.0
      %6156 = vmatprep.subr.mxu0 0.0
      %6157 = vmatpush1.msra.mxu0 0.0
      %6158 = vmatprep.subr.mxu0 0.0
      %6159 = vmatpush1.msra.mxu0 0.0
      %6160 = vmatprep.subr.mxu0 0.0
      %6161 = vmatpush1.msra.mxu0 0.0
      %6162 = vmatprep.subr.mxu0 0.0
      %6163 = vmatpush1.msra.mxu0 0.0
      %6164 = vmatprep.subr.mxu0 0.0
      %6165 = vmatpush1.msra.mxu0 0.0
      %6166 = vmatprep.subr.mxu0 0.0
      %6167 = vmatpush1.msra.mxu0 0.0
      %6168 = vmatprep.subr.mxu0 0.0
      %6169 = vmatpush1.msra.mxu0 0.0
      %6170 = vmatprep.subr.mxu0 0.0
      %6171 = vmatpush1.msra.mxu0 0.0
      %6172 = vmatprep.subr.mxu0 0.0
      %6173 = vmatpush1.msra.mxu0 0.0
      %6174 = vmatprep.subr.mxu0 0.0
      %6175 = vmatpush1.msra.mxu0 0.0
      %6176 = vmatprep.subr.mxu0 0.0
      %6177 = vmatpush1.msra.mxu0 0.0
      %6178 = vmatprep.subr.mxu0 0.0
      %6179 = vmatpush1.msra.mxu0 0.0
      %6180 = vmatprep.subr.mxu0 0.0
      %6181 = vmatpush1.msra.mxu0 0.0
      %6182 = vmatprep.subr.mxu0 0.0
      %6183 = vmatpush1.msra.mxu0 0.0
      %6184 = vmatprep.subr.mxu0 0.0
      %6185 = vmatpush1.msra.mxu0 0.0
      %6186 = vmatprep.mubr.f32.mxu0 0.0
      %6187 = vmatmul.mubr.f32.gmra.mrb[0].mxu0 %v6117
      %v6188 = vpop.f32.mrb[0].mxu0
      %v6189 = vadd.f32 0.0, %v6188
      %v6190 = vpop.f32.mrb[0].mxu0
      %6191 = vmatprep.mubr.f32.mxu0 0.0
      %6192 = vmatmul.mubr.f32.gmra.mrb[0].mxu0 %v6120
      %v6193 = vpop.f32.mrb[0].mxu0
      %v6194 = vadd.f32 0.0, %v6193
      %v6195 = vpop.f32.mrb[0].mxu0
      %6196 = vdwg.mxu0
      %v6197 = vadd.f32 %v6021, %v6189
      %v6198 = vadd.f32 %v6022, %v6194
      %v6199 = vld [vmem:[%s9] sm:$0x1]
      %v6201 = vlaneseq
      %v6202 = vshrl.u32 %v6201, 7
      %v6203 = vsub.s32 0, %v6202
      %v6204 = vrot.slane %v6199, %v6203
      %v6206 = vadd.f32 %v6197, %v6204
      %v6207 = vadd.f32 %v6198, %v6204
      %v6208 = vmax.f32 %v6206, 0.0
      %v6209 = vmax.f32 %v6207, 0.0
      %v6210 = vld [vmem:[%s10] sm:$0xff]
      %v6211 = vld [vmem:[%s10 + $0x8] sm:$0xff]
      %v6212 = vld [vmem:[%s10 + $0x10] sm:$0xff]
      %v6213 = vld [vmem:[%s10 + $0x18] sm:$0xff]
      %v6214 = vld [vmem:[%s10 + $0x20] sm:$0xff]
      %v6215 = vld [vmem:[%s10 + $0x28] sm:$0xff]
      %v6216 = vld [vmem:[%s10 + $0x30] sm:$0xff]
      %v6217 = vld [vmem:[%s10 + $0x38] sm:$0xff]
      %v6218 = vld [vmem:[%s11] sm:$0x1]
      %v6220 = vlaneseq
      %v6221 = vshrl.u32 %v6220, 7
      %v6222 = vsub.s32 0, %v6221
      %v6223 = vrot.slane %v6218, %v6222
      %v6226 = vsel %vm4804, %v6208, 0
      %v6229 = vsel %vm4804, %v6209, 0
      %6231 = vmatprep.subr.mxu0 0.0
      %6232 = vmatpush1.msra.mxu0 %v6210
      %6233 = vmatprep.subr.mxu0 0.0
      %6234 = vmatpush1.msra.mxu0 %v6211
      %6235 = vmatprep.subr.mxu0 0.0
      %6236 = vmatpush1.msra.mxu0 %v6212
      %6237 = vmatprep.subr.mxu0 0.0
      %6238 = vmatpush1.msra.mxu0 %v6213
      %6239 = vmatprep.subr.mxu0 0.0
      %6240 = vmatpush1.msra.mxu0 %v6214
      %6241 = vmatprep.subr.mxu0 0.0
      %6242 = vmatpush1.msra.mxu0 %v6215
      %6243 = vmatprep.subr.mxu0 0.0
      %6244 = vmatpush1.msra.mxu0 %v6216
      %6245 = vmatprep.subr.mxu0 0.0
      %6246 = vmatpush1.msra.mxu0 %v6217
      %6247 = vmatprep.subr.mxu0 0.0
      %6248 = vmatpush1.msra.mxu0 0.0
      %6249 = vmatprep.subr.mxu0 0.0
      %6250 = vmatpush1.msra.mxu0 0.0
      %6251 = vmatprep.subr.mxu0 0.0
      %6252 = vmatpush1.msra.mxu0 0.0
      %6253 = vmatprep.subr.mxu0 0.0
      %6254 = vmatpush1.msra.mxu0 0.0
      %6255 = vmatprep.subr.mxu0 0.0
      %6256 = vmatpush1.msra.mxu0 0.0
      %6257 = vmatprep.subr.mxu0 0.0
      %6258 = vmatpush1.msra.mxu0 0.0
      %6259 = vmatprep.subr.mxu0 0.0
      %6260 = vmatpush1.msra.mxu0 0.0
      %6261 = vmatprep.subr.mxu0 0.0
      %6262 = vmatpush1.msra.mxu0 0.0
      %6263 = vmatprep.subr.mxu0 0.0
      %6264 = vmatpush1.msra.mxu0 0.0
      %6265 = vmatprep.subr.mxu0 0.0
      %6266 = vmatpush1.msra.mxu0 0.0
      %6267 = vmatprep.subr.mxu0 0.0
      %6268 = vmatpush1.msra.mxu0 0.0
      %6269 = vmatprep.subr.mxu0 0.0
      %6270 = vmatpush1.msra.mxu0 0.0
      %6271 = vmatprep.subr.mxu0 0.0
      %6272 = vmatpush1.msra.mxu0 0.0
      %6273 = vmatprep.subr.mxu0 0.0
      %6274 = vmatpush1.msra.mxu0 0.0
      %6275 = vmatprep.subr.mxu0 0.0
      %6276 = vmatpush1.msra.mxu0 0.0
      %6277 = vmatprep.subr.mxu0 0.0
      %6278 = vmatpush1.msra.mxu0 0.0
      %6279 = vmatprep.subr.mxu0 0.0
      %6280 = vmatpush1.msra.mxu0 0.0
      %6281 = vmatprep.subr.mxu0 0.0
      %6282 = vmatpush1.msra.mxu0 0.0
      %6283 = vmatprep.subr.mxu0 0.0
      %6284 = vmatpush1.msra.mxu0 0.0
      %6285 = vmatprep.subr.mxu0 0.0
      %6286 = vmatpush1.msra.mxu0 0.0
      %6287 = vmatprep.subr.mxu0 0.0
      %6288 = vmatpush1.msra.mxu0 0.0
      %6289 = vmatprep.subr.mxu0 0.0
      %6290 = vmatpush1.msra.mxu0 0.0
      %6291 = vmatprep.subr.mxu0 0.0
      %6292 = vmatpush1.msra.mxu0 0.0
      %6293 = vmatprep.subr.mxu0 0.0
      %6294 = vmatpush1.msra.mxu0 0.0
      %6295 = vmatprep.mubr.f32.mxu0 0.0
      %6296 = vmatmul.mubr.f32.gmra.mrb[0].mxu0 %v6226
      %v6297 = vpop.f32.mrb[0].mxu0
      %v6298 = vadd.f32 %v6223, %v6297
      %v6299 = vpop.f32.mrb[0].mxu0
      %6300 = vmatprep.mubr.f32.mxu0 0.0
      %6301 = vmatmul.mubr.f32.gmra.mrb[0].mxu0 %v6229
      %v6302 = vpop.f32.mrb[0].mxu0
      %v6303 = vadd.f32 %v6223, %v6302
      %v6304 = vpop.f32.mrb[0].mxu0
      %6305 = vdwg.mxu0
      %v6306 = vld [vmem:[%s611] sm:$0x1]
      %v6307 = vld [vmem:[%s12] sm:$0xff]
      %v6308 = vld [vmem:[%s12 + $0x8] sm:$0xff]
      %v6309 = vld [vmem:[%s12 + $0x10] sm:$0xff]
      %v6310 = vld [vmem:[%s12 + $0x18] sm:$0xff]
      %v6311 = vld [vmem:[%s12 + $0x20] sm:$0xff]
      %v6312 = vld [vmem:[%s12 + $0x28] sm:$0xff]
      %v6313 = vld [vmem:[%s13] sm:$0x1]
      %vm6314 = vcmask 392192
      %v6316 = vsel %vm6314, %v6306, 0
      %6318 = vmatprep.subr.mxu0 0.0
      %6319 = vmatpush1.msra.mxu0 %v6307
      %6320 = vmatprep.subr.mxu0 0.0
      %6321 = vmatpush1.msra.mxu0 %v6308
      %6322 = vmatprep.subr.mxu0 0.0
      %6323 = vmatpush1.msra.mxu0 %v6309
      %6324 = vmatprep.subr.mxu0 0.0
      %6325 = vmatpush1.msra.mxu0 %v6310
      %6326 = vmatprep.subr.mxu0 0.0
      %6327 = vmatpush1.msra.mxu0 %v6311
      %6328 = vmatprep.subr.mxu0 0.0
      %6329 = vmatpush1.msra.mxu0 %v6312
      %6330 = vmatprep.subr.mxu0 0.0
      %6331 = vmatpush1.msra.mxu0 0.0
      %6332 = vmatprep.subr.mxu0 0.0
      %6333 = vmatpush1.msra.mxu0 0.0
      %6334 = vmatprep.subr.mxu0 0.0
      %6335 = vmatpush1.msra.mxu0 0.0
      %6336 = vmatprep.subr.mxu0 0.0
      %6337 = vmatpush1.msra.mxu0 0.0
      %6338 = vmatprep.subr.mxu0 0.0
      %6339 = vmatpush1.msra.mxu0 0.0
      %6340 = vmatprep.subr.mxu0 0.0
      %6341 = vmatpush1.msra.mxu0 0.0
      %6342 = vmatprep.subr.mxu0 0.0
      %6343 = vmatpush1.msra.mxu0 0.0
      %6344 = vmatprep.subr.mxu0 0.0
      %6345 = vmatpush1.msra.mxu0 0.0
      %6346 = vmatprep.subr.mxu0 0.0
      %6347 = vmatpush1.msra.mxu0 0.0
      %6348 = vmatprep.subr.mxu0 0.0
      %6349 = vmatpush1.msra.mxu0 0.0
      %6350 = vmatprep.subr.mxu0 0.0
      %6351 = vmatpush1.msra.mxu0 0.0
      %6352 = vmatprep.subr.mxu0 0.0
      %6353 = vmatpush1.msra.mxu0 0.0
      %6354 = vmatprep.subr.mxu0 0.0
      %6355 = vmatpush1.msra.mxu0 0.0
      %6356 = vmatprep.subr.mxu0 0.0
      %6357 = vmatpush1.msra.mxu0 0.0
      %6358 = vmatprep.subr.mxu0 0.0
      %6359 = vmatpush1.msra.mxu0 0.0
      %6360 = vmatprep.subr.mxu0 0.0
      %6361 = vmatpush1.msra.mxu0 0.0
      %6362 = vmatprep.subr.mxu0 0.0
      %6363 = vmatpush1.msra.mxu0 0.0
      %6364 = vmatprep.subr.mxu0 0.0
      %6365 = vmatpush1.msra.mxu0 0.0
      %6366 = vmatprep.subr.mxu0 0.0
      %6367 = vmatpush1.msra.mxu0 0.0
      %6368 = vmatprep.subr.mxu0 0.0
      %6369 = vmatpush1.msra.mxu0 0.0
      %6370 = vmatprep.subr.mxu0 0.0
      %6371 = vmatpush1.msra.mxu0 0.0
      %6372 = vmatprep.subr.mxu0 0.0
      %6373 = vmatpush1.msra.mxu0 0.0
      %6374 = vmatprep.subr.mxu0 0.0
      %6375 = vmatpush1.msra.mxu0 0.0
      %6376 = vmatprep.subr.mxu0 0.0
      %6377 = vmatpush1.msra.mxu0 0.0
      %6378 = vmatprep.subr.mxu0 0.0
      %6379 = vmatpush1.msra.mxu0 0.0
      %6380 = vmatprep.subr.mxu0 0.0
      %6381 = vmatpush1.msra.mxu0 0.0
      %6382 = vmatprep.mubr.f32.mxu0 0.0
      %6383 = vmatmul.mubr.f32.gmra.mrb[0].mxu0 %v6316
      %v6384 = vpop.f32.mrb[0].mxu0
      %v6385 = vadd.f32 %v6313, %v6384
      %v6386 = vpop.f32.mrb[0].mxu0
      %6387 = vdwg.mxu0
      %v6388 = vmax.f32 %v6385, 0.0
      %v6389 = vld [vmem:[%s14] sm:$0xff]
      %v6390 = vld [vmem:[%s14 + $0x8] sm:$0xff]
      %v6391 = vld [vmem:[%s14 + $0x10] sm:$0xff]
      %v6392 = vld [vmem:[%s14 + $0x18] sm:$0xff]
      %v6393 = vld [vmem:[%s15] sm:$0x1]
      %v6395 = vsel %vm1153, %v6388, 0
      %6397 = vmatprep.subr.mxu0 0.0
      %6398 = vmatpush1.msra.mxu0 %v6389
      %6399 = vmatprep.subr.mxu0 0.0
      %6400 = vmatpush1.msra.mxu0 %v6390
      %6401 = vmatprep.subr.mxu0 0.0
      %6402 = vmatpush1.msra.mxu0 %v6391
      %6403 = vmatprep.subr.mxu0 0.0
      %6404 = vmatpush1.msra.mxu0 %v6392
      %6405 = vmatprep.subr.mxu0 0.0
      %6406 = vmatpush1.msra.mxu0 0.0
      %6407 = vmatprep.subr.mxu0 0.0
      %6408 = vmatpush1.msra.mxu0 0.0
      %6409 = vmatprep.subr.mxu0 0.0
      %6410 = vmatpush1.msra.mxu0 0.0
      %6411 = vmatprep.subr.mxu0 0.0
      %6412 = vmatpush1.msra.mxu0 0.0
      %6413 = vmatprep.subr.mxu0 0.0
      %6414 = vmatpush1.msra.mxu0 0.0
      %6415 = vmatprep.subr.mxu0 0.0
      %6416 = vmatpush1.msra.mxu0 0.0
      %6417 = vmatprep.subr.mxu0 0.0
      %6418 = vmatpush1.msra.mxu0 0.0
      %6419 = vmatprep.subr.mxu0 0.0
      %6420 = vmatpush1.msra.mxu0 0.0
      %6421 = vmatprep.subr.mxu0 0.0
      %6422 = vmatpush1.msra.mxu0 0.0
      %6423 = vmatprep.subr.mxu0 0.0
      %6424 = vmatpush1.msra.mxu0 0.0
      %6425 = vmatprep.subr.mxu0 0.0
      %6426 = vmatpush1.msra.mxu0 0.0
      %6427 = vmatprep.subr.mxu0 0.0
      %6428 = vmatpush1.msra.mxu0 0.0
      %6429 = vmatprep.subr.mxu0 0.0
      %6430 = vmatpush1.msra.mxu0 0.0
      %6431 = vmatprep.subr.mxu0 0.0
      %6432 = vmatpush1.msra.mxu0 0.0
      %6433 = vmatprep.subr.mxu0 0.0
      %6434 = vmatpush1.msra.mxu0 0.0
      %6435 = vmatprep.subr.mxu0 0.0
      %6436 = vmatpush1.msra.mxu0 0.0
      %6437 = vmatprep.subr.mxu0 0.0
      %6438 = vmatpush1.msra.mxu0 0.0
      %6439 = vmatprep.subr.mxu0 0.0
      %6440 = vmatpush1.msra.mxu0 0.0
      %6441 = vmatprep.subr.mxu0 0.0
      %6442 = vmatpush1.msra.mxu0 0.0
      %6443 = vmatprep.subr.mxu0 0.0
      %6444 = vmatpush1.msra.mxu0 0.0
      %6445 = vmatprep.subr.mxu0 0.0
      %6446 = vmatpush1.msra.mxu0 0.0
      %6447 = vmatprep.subr.mxu0 0.0
      %6448 = vmatpush1.msra.mxu0 0.0
      %6449 = vmatprep.subr.mxu0 0.0
      %6450 = vmatpush1.msra.mxu0 0.0
      %6451 = vmatprep.subr.mxu0 0.0
      %6452 = vmatpush1.msra.mxu0 0.0
      %6453 = vmatprep.subr.mxu0 0.0
      %6454 = vmatpush1.msra.mxu0 0.0
      %6455 = vmatprep.subr.mxu0 0.0
      %6456 = vmatpush1.msra.mxu0 0.0
      %6457 = vmatprep.subr.mxu0 0.0
      %6458 = vmatpush1.msra.mxu0 0.0
      %6459 = vmatprep.subr.mxu0 0.0
      %6460 = vmatpush1.msra.mxu0 0.0
      %6461 = vmatprep.mubr.f32.mxu0 0.0
      %6462 = vmatmul.mubr.f32.gmra.mrb[0].mxu0 %v6395
      %v6463 = vpop.f32.mrb[0].mxu0
      %v6464 = vadd.f32 %v6393, %v6463
      %v6465 = vpop.f32.mrb[0].mxu0
      %6466 = vdwg.mxu0
      %v6467 = vmax.f32 %v6464, 0.0
      %v6468 = vld [vmem:[%s16] sm:$0xff]
      %v6469 = vld [vmem:[%s16 + $0x8] sm:$0xff]
      %v6470 = vld [vmem:[%s16 + $0x10] sm:$0xff]
      %v6471 = vld [vmem:[%s16 + $0x18] sm:$0xff]
      %v6472 = vld [vmem:[%s17] sm:$0x1]
      %v6474 = vsel %vm1153, %v6467, 0
      %6476 = vmatprep.subr.mxu0 0.0
      %6477 = vmatpush1.msra.mxu0 %v6468
      %6478 = vmatprep.subr.mxu0 0.0
      %6479 = vmatpush1.msra.mxu0 %v6469
      %6480 = vmatprep.subr.mxu0 0.0
      %6481 = vmatpush1.msra.mxu0 %v6470
      %6482 = vmatprep.subr.mxu0 0.0
      %6483 = vmatpush1.msra.mxu0 %v6471
      %6484 = vmatprep.subr.mxu0 0.0
      %6485 = vmatpush1.msra.mxu0 0.0
      %6486 = vmatprep.subr.mxu0 0.0
      %6487 = vmatpush1.msra.mxu0 0.0
      %6488 = vmatprep.subr.mxu0 0.0
      %6489 = vmatpush1.msra.mxu0 0.0
      %6490 = vmatprep.subr.mxu0 0.0
      %6491 = vmatpush1.msra.mxu0 0.0
      %6492 = vmatprep.subr.mxu0 0.0
      %6493 = vmatpush1.msra.mxu0 0.0
      %6494 = vmatprep.subr.mxu0 0.0
      %6495 = vmatpush1.msra.mxu0 0.0
      %6496 = vmatprep.subr.mxu0 0.0
      %6497 = vmatpush1.msra.mxu0 0.0
      %6498 = vmatprep.subr.mxu0 0.0
      %6499 = vmatpush1.msra.mxu0 0.0
      %6500 = vmatprep.subr.mxu0 0.0
      %6501 = vmatpush1.msra.mxu0 0.0
      %6502 = vmatprep.subr.mxu0 0.0
      %6503 = vmatpush1.msra.mxu0 0.0
      %6504 = vmatprep.subr.mxu0 0.0
      %6505 = vmatpush1.msra.mxu0 0.0
      %6506 = vmatprep.subr.mxu0 0.0
      %6507 = vmatpush1.msra.mxu0 0.0
      %6508 = vmatprep.subr.mxu0 0.0
      %6509 = vmatpush1.msra.mxu0 0.0
      %6510 = vmatprep.subr.mxu0 0.0
      %6511 = vmatpush1.msra.mxu0 0.0
      %6512 = vmatprep.subr.mxu0 0.0
      %6513 = vmatpush1.msra.mxu0 0.0
      %6514 = vmatprep.subr.mxu0 0.0
      %6515 = vmatpush1.msra.mxu0 0.0
      %6516 = vmatprep.subr.mxu0 0.0
      %6517 = vmatpush1.msra.mxu0 0.0
      %6518 = vmatprep.subr.mxu0 0.0
      %6519 = vmatpush1.msra.mxu0 0.0
      %6520 = vmatprep.subr.mxu0 0.0
      %6521 = vmatpush1.msra.mxu0 0.0
      %6522 = vmatprep.subr.mxu0 0.0
      %6523 = vmatpush1.msra.mxu0 0.0
      %6524 = vmatprep.subr.mxu0 0.0
      %6525 = vmatpush1.msra.mxu0 0.0
      %6526 = vmatprep.subr.mxu0 0.0
      %6527 = vmatpush1.msra.mxu0 0.0
      %6528 = vmatprep.subr.mxu0 0.0
      %6529 = vmatpush1.msra.mxu0 0.0
      %6530 = vmatprep.subr.mxu0 0.0
      %6531 = vmatpush1.msra.mxu0 0.0
      %6532 = vmatprep.subr.mxu0 0.0
      %6533 = vmatpush1.msra.mxu0 0.0
      %6534 = vmatprep.subr.mxu0 0.0
      %6535 = vmatpush1.msra.mxu0 0.0
      %6536 = vmatprep.subr.mxu0 0.0
      %6537 = vmatpush1.msra.mxu0 0.0
      %6538 = vmatprep.subr.mxu0 0.0
      %6539 = vmatpush1.msra.mxu0 0.0
      %6540 = vmatprep.mubr.f32.mxu0 0.0
      %6541 = vmatmul.mubr.f32.gmra.mrb[0].mxu0 %v6474
      %v6542 = vpop.f32.mrb[0].mxu0
      %v6543 = vadd.f32 %v6472, %v6542
      %v6544 = vpop.f32.mrb[0].mxu0
      %6545 = vdwg.mxu0
      %v6546 = vmax.f32 %v6543, 0.0
      %v6549 = vrot.slane %v6298, 7
      %v6550 = vrot.slane %v6303, 7
      %v6551 = vsel %vm934, %v6549, %v6550
      %v6555 = vsel %vm934, %v6546, %v6549
      %v6556 = vld [vmem:[%s18] sm:$0xff]
      %v6557 = vld [vmem:[%s18 + $0x8] sm:$0xff]
      %v6558 = vld [vmem:[%s18 + $0x10] sm:$0x1]
      %6562 = vrot.lane.b32.xlu0 %v6556, 16
      %v6563 = vpop.permute.xlu0 %6562
      %6564 = vrot.lane.b32.xlu0 %v6557, 16
      %v6565 = vpop.permute.xlu0 %6564
      %6566 = vrot.lane.b32.xlu0 %v6558, 16
      %v6567 = vpop.permute.xlu0 %6566
      %vm6571 = vcmask 130048
      %v6572 = vsel %vm6571, %v6555, %v6563
      %v6573 = vsel %vm6571, %v6551, %v6565
      %v6574 = vsel %vm6571, %v6550, %v6567
      %6575 = vst.msk [vmem:[%s616] sm:$0xff] %vm1153, %v6572
      %6576 = vst.msk [vmem:[%s616 + $0x8] sm:$0xff] %vm1153, %v6573
      %vm6577 = vcmask 253952
      %6578 = vst.msk [vmem:[%s616 + $0x10] sm:$0x1] %vm6577, %v6574
      %p6579 = scmp.lt.s32.totalorder %s30, 1
      %s6580 = scalar_select %p6579, %s30, 1
      %s6581 = smul.addr %s6580, 3
      %s6582 = smul.addr %s6581, 8
      %s6583 = scalar_lea.vmem %s19, %s6582
      // Predicated region
      $region97: #{loco_transformer_forward.1} parent=95 // pred_check
        %p6584 = pneg %p457
      $region98: #{loco_transformer_forward.1} parent=95 // pred_check_branch
        %6586 = sbr.rel (%p6584) target = $region100
      $region99: #{loco_transformer_forward.1} parent=95 // pred_region
        _
      $region100: #{loco_transformer_forward.1} parent=95 // pred_fallthru
        _
    $region96: #{loco_transformer_forward.1} parent=5 // pred_fallthru
      _
    %p6587 = scmp.le.s32.totalorder 2, %s25
    // Predicated region
    $region101: #{loco_transformer_forward.1} parent=5 // pred_check
      %p6588 = pneg %p6587
    $region102: #{loco_transformer_forward.1} parent=5 // pred_check_branch
      %6590 = sbr.rel (%p6588) target = $region104
    $region103: #{loco_transformer_forward.1} parent=5 // pred_region
      %s6591 = ssub.s32 %s25, 2
      // Predicated region
      $region105: #{loco_transformer_forward.1} parent=103 // pred_check
        %p6592 = pneg %p463
      $region106: #{loco_transformer_forward.1} parent=103 // pred_check_branch
        %6594 = sbr.rel (%p6592) target = $region108
      $region107: #{loco_transformer_forward.1} parent=103 // pred_region
        %p6595 = scmp.lt.s32.totalorder %s31, 1
        %s6596 = scalar_select %p6595, %s31, 1
        %s6597 = smul.addr %s6596, 3
        %s6598 = smul.addr %s6597, 8
        %s6599 = scalar_lea.vmem %s19, %s6598
      $region108: #{loco_transformer_forward.1} parent=103 // pred_fallthru
        _
    $region104: #{loco_transformer_forward.1} parent=5 // pred_fallthru
      _
  $region6: #{loco_transformer_forward.1} parent=0 // loop_footer
    %s29 = sadd.s32 1, %s25
  $region7: #{loco_transformer_forward.1} parent=0 // loop_footer_branch
    %24 = sbr.rel target = $region3
  $region8: #{loco_transformer_forward.1} parent=0 // loop_exit
    _

</llo_original>
